<compile_context>
chip_gen: v7x
topology: tpu7x:2x2x1
jax: 0.10.0
libtpu: 0.0.40
codegen_flags: <defaults>
</compile_context>

<pallas_src>
import jax
import jax.numpy as jnp
from jax.experimental import pallas as pl
from jax.experimental.pallas import tpu as pltpu

F32 = jnp.float32
BF16 = jnp.bfloat16
LANE = 128  # pad every narrow feature width up to one lane tile


# --------------------------------------------------------------------------
# Fused forward kernel
# --------------------------------------------------------------------------

def _elu(z):
    # exp only on the non-positive branch; ELU(0)=0 keeps inactive lanes clean.
    return jnp.where(z > 0.0, z, jnp.exp(jnp.minimum(z, 0.0)) - 1.0)


def _mlp_block(x_bf, w_ref, b_ref, sc_ref, sh_ref):
    """Linear -> ReLU -> eval-BatchNorm. bf16 MXU operands, f32 epilogue, bf16 result."""
    z = jnp.dot(x_bf, w_ref[...], preferred_element_type=F32) + b_ref[...]
    return (jnp.maximum(z, 0.0) * sc_ref[...] + sh_ref[...]).astype(BF16)


def _make_fused_kernel(depth, num_graphs, nodes_per_graph):
    n_scratch = 5

    def kernel(*refs):
        in_refs = refs[:-(1 + n_scratch)]
        o_ref = refs[-(1 + n_scratch)]
        g2_buf, g3_buf, p1g_buf, p2_buf, sems = refs[-n_scratch:]

        it = iter(in_refs)
        nxt = lambda: next(it)
        a_ref, x_ref = nxt(), nxt()                       # (N,N) bf16, (N,128) bf16
        sage = [(nxt(), nxt()) for _ in range(depth)]     # stacked [wl';wr'] (256,128), shift'
        g1_w, g1_b, g1_sc, g1_sh = nxt(), nxt(), nxt(), nxt()
        g2_hbm, g2_b, g2_sc, g2_sh = nxt(), nxt(), nxt(), nxt()
        g3_hbm, g3_b, g3_sc, g3_sh = nxt(), nxt(), nxt(), nxt()
        p1l_w, p1g_hbm, p1_b, p1_sc, p1_sh = nxt(), nxt(), nxt(), nxt(), nxt()
        p2_hbm, p2_b, p2_sc, p2_sh = nxt(), nxt(), nxt(), nxt()
        p3_w, p3_b, p3_sc, p3_sh = nxt(), nxt(), nxt(), nxt()
        out_w, out_b = nxt(), nxt()

        # --- kick off streaming of the 4 big MLP weights; hide behind SAGE/glob compute ---
        cp_g2 = pltpu.make_async_copy(g2_hbm, g2_buf, sems.at[0])
        cp_g3 = pltpu.make_async_copy(g3_hbm, g3_buf, sems.at[1])
        cp_p1g = pltpu.make_async_copy(p1g_hbm, p1g_buf, sems.at[2])
        cp_p2 = pltpu.make_async_copy(p2_hbm, p2_buf, sems.at[3])
        cp_g2.start(); cp_g3.start(); cp_p1g.start(); cp_p2.start()

        # --- SAGEConv stack: mean-aggr matmul + one fused linear (BN folded) + ELU.
        #     Layer i's output lands in lanes [i*hidden,(i+1)*hidden) of `feat`; x_sage is
        #     already at lanes [depth*hidden, feat).  `feat` at the end == local_features.
        a = a_ref[...]
        feat = x_ref[...]
        for w_ref, sh_ref in sage:
            aggr = jnp.dot(a, feat, preferred_element_type=F32).astype(BF16)
            both = jnp.concatenate([aggr, feat], axis=1)              # (N, 256) bf16
            z = jnp.dot(both, w_ref[...], preferred_element_type=F32) + sh_ref[...]
            feat = feat + _elu(z).astype(BF16)                        # disjoint lanes -> exact

        # --- glob MLP [feat, 256, 512, 1024] ---
        z = jnp.dot(feat, g1_w[...], preferred_element_type=F32) + g1_b[...]
        h = (jnp.maximum(z, 0.0) * g1_sc[...] + g1_sh[...]).astype(BF16)
        cp_g2.wait()
        h = _mlp_block(h, g2_buf, g2_b, g2_sc, g2_sh)
        cp_g3.wait()
        h = _mlp_block(h, g3_buf, g3_b, g3_sc, g3_sh)                 # (N, 1024) bf16

        # --- pred MLP [feat+1024, 512, 256, 128]; gfeat branch done on G rows only ---
        z = jnp.dot(feat, p1l_w[...], preferred_element_type=F32) + p1_b[...]   # local part
        cp_p1g.wait()
        n = z.shape[0]
        row = jax.lax.broadcasted_iota(jnp.int32, (n, 1), 0)
        gb = jnp.zeros_like(z)
        for gi in range(num_graphs):                                   # static, G is small
            lo = gi * nodes_per_graph
            hi = lo + nodes_per_graph
            pooled = jnp.max(h[lo:hi, :], axis=0, keepdims=True)       # (1, 1024) bf16
            gz = jnp.dot(pooled, p1g_buf[...], preferred_element_type=F32)  # (1, 512)
            in_g = jnp.logical_and(row >= lo, row < hi)
            gb = jnp.where(in_g, gz, gb)                               # repeat_interleave
        z = z + gb
        h = (jnp.maximum(z, 0.0) * p1_sc[...] + p1_sh[...]).astype(BF16)
        cp_p2.wait()
        h = _mlp_block(h, p2_buf, p2_b, p2_sc, p2_sh)
        h = _mlp_block(h, p3_w, p3_b, p3_sc, p3_sh)                    # (N, 128) bf16

        # --- output Linear(128 -> 1) padded to 128 lanes (column 0 is the result) ---
        o_ref[...] = (jnp.dot(h, out_w[...], preferred_element_type=F32)
                      + out_b[...])

    return kernel


# --------------------------------------------------------------------------
# Host-side parameter init / folding / lane placement
# --------------------------------------------------------------------------

def _pad_to(x, shape):
    return jnp.pad(x, [(0, t - s) for s, t in zip(x.shape, shape)])


def _init_linear(key, fan_in, fan_out, bias=True):
    k1, k2 = jax.random.split(key)
    lim = 1.0 / jnp.sqrt(jnp.float32(fan_in))
    w = jax.random.uniform(k1, (fan_in, fan_out), F32, -lim, lim)
    b = (jax.random.uniform(k2, (1, fan_out), F32, -lim, lim) if bias else None)
    return w, b


def _init_bn(key, dim, eps=1e-5):
    k1, k2, k3 = jax.random.split(key, 3)
    weight = 1.0 + 0.1 * jax.random.normal(k1, (dim,), F32)
    bias = 0.1 * jax.random.normal(k2, (dim,), F32)
    running_mean = 0.1 * jax.random.normal(k3, (dim,), F32)
    running_var = jnp.ones((dim,), F32)
    scale = weight / jnp.sqrt(running_var + eps)
    shift = bias - running_mean * scale
    return scale.reshape(1, dim), shift.reshape(1, dim)


def init_params(key, in_channels, hidden, depth):
    params = {"sage": [], "glob": [], "pred": []}
    cin = in_channels
    for _ in range(depth):
        key, k1, k2, k3 = jax.random.split(key, 4)
        wl, bl = _init_linear(k1, cin, hidden, bias=True)
        wr, _ = _init_linear(k2, cin, hidden, bias=False)
        scale, shift = _init_bn(k3, hidden)
        params["sage"].append(
            {"wl": wl, "wr": wr, "bl": bl, "scale": scale, "shift": shift})
        cin = hidden

    feat = in_channels + hidden * depth
    for dims in ([feat, 256, 512, 1024],):
        for i in range(1, len(dims)):
            key, k1, k2 = jax.random.split(key, 3)
            w, b = _init_linear(k1, dims[i - 1], dims[i])
            scale, shift = _init_bn(k2, dims[i])
            params["glob"].append({"w": w, "b": b, "scale": scale, "shift": shift})
    for dims in ([feat + 1024, 512, 256, 128],):
        for i in range(1, len(dims)):
            key, k1, k2 = jax.random.split(key, 3)
            w, b = _init_linear(k1, dims[i - 1], dims[i])
            scale, shift = _init_bn(k2, dims[i])
            params["pred"].append({"w": w, "b": b, "scale": scale, "shift": shift})

    key, k1 = jax.random.split(key)
    w, b = _init_linear(k1, 128, 1)
    params["out"] = {"w": w, "b": b}
    return params


def pack_params(params, in_channels, hidden, depth):
    """Fold eval-BN into the SAGE linears, lane-place them so the running feature tile is the
    local_features concat, stack wl'/wr' into one weight, and cast matmul operands to bf16."""
    feat_w = in_channels + hidden * depth
    assert feat_w <= LANE and hidden <= LANE
    flat = []

    for i, p in enumerate(params["sage"]):
        scale, shift = p["scale"], p["shift"]
        wl_f = p["wl"] * scale
        wr_f = p["wr"] * scale
        sh_f = p["bl"] * scale + shift
        cin = in_channels if i == 0 else hidden
        in_off = depth * hidden if i == 0 else (i - 1) * hidden   # where this layer reads
        out_off = i * hidden                                      # where this layer writes

        def place(w):
            return jnp.zeros((LANE, LANE), F32).at[
                in_off:in_off + cin, out_off:out_off + hidden].set(w)

        w_stacked = jnp.concatenate([place(wl_f), place(wr_f)], axis=0).astype(BF16)
        sh_p = jnp.zeros((1, LANE), F32).at[:, out_off:out_off + hidden].set(sh_f)
        flat += [w_stacked, sh_p]

    # Lane placement matches the concat order (layer_0..layer_{d-1}, x_sage), so the first
    # glob/pred linears are just zero-row-padded from 55 to 128 K-rows.
    g1, g2, g3 = params["glob"]
    flat += [_pad_to(g1["w"], (LANE, g1["w"].shape[1])).astype(BF16),
             g1["b"], g1["scale"], g1["shift"]]
    for p in (g2, g3):
        flat += [p["w"].astype(BF16), p["b"], p["scale"], p["shift"]]

    p1, p2, p3 = params["pred"]
    flat += [_pad_to(p1["w"][:feat_w, :], (LANE, p1["w"].shape[1])).astype(BF16),
             p1["w"][feat_w:, :].astype(BF16),            # gfeat branch (1024, 512)
             p1["b"], p1["scale"], p1["shift"]]
    for p in (p2, p3):
        flat += [p["w"].astype(BF16), p["b"], p["scale"], p["shift"]]

    flat += [_pad_to(params["out"]["w"], (LANE, LANE)).astype(BF16),
             _pad_to(params["out"]["b"], (1, LANE)).astype(F32)]
    return tuple(flat)


# --------------------------------------------------------------------------
# Forward pass (single fused pallas_call)
# --------------------------------------------------------------------------

def forward(flat_params, x_sage, a_mean, depth, hidden, in_channels,
            num_graphs, nodes_per_graph):
    n = x_sage.shape[0]
    # Place x_sage at lanes [depth*hidden, feat) — its slot in the local_features concat.
    off = depth * hidden
    x_pad = jnp.zeros((n, LANE), BF16).at[:, off:off + in_channels].set(
        x_sage.astype(BF16))
    inputs = (a_mean.astype(BF16), x_pad) + tuple(flat_params)

    # Big weights streamed from HBM by the kernel itself (overlapped with compute).
    base = 2 + 2 * depth
    hbm_pos = {base + 4, base + 8, base + 13, base + 17}   # g2_w, g3_w, pred1_gfeat_w, p2_w
    in_specs = [
        pl.BlockSpec(memory_space=pl.ANY) if i in hbm_pos
        else pl.BlockSpec(memory_space=pltpu.MemorySpace.VMEM)
        for i in range(len(inputs))
    ]

    out_pad = pl.pallas_call(
        _make_fused_kernel(depth, num_graphs, nodes_per_graph),
        out_shape=jax.ShapeDtypeStruct((n, LANE), F32),
        in_specs=in_specs,
        out_specs=pl.BlockSpec(memory_space=pltpu.MemorySpace.VMEM),
        scratch_shapes=[
            pltpu.VMEM(inputs[base + 4].shape, BF16),      # g2  (256, 512)
            pltpu.VMEM(inputs[base + 8].shape, BF16),      # g3  (512, 1024)
            pltpu.VMEM(inputs[base + 13].shape, BF16),     # pred1 gfeat (1024, 512)
            pltpu.VMEM(inputs[base + 17].shape, BF16),     # p2  (512, 256)
            pltpu.SemaphoreType.DMA((4,)),
        ],
        compiler_params=pltpu.CompilerParams(vmem_limit_bytes=32 * 1024 * 1024),
    )(*inputs)
    return out_pad[:, :1]                                  # real Linear(128,1) output


# --------------------------------------------------------------------------
# Main
# --------------------------------------------------------------------------

if __name__ == "__main__":
    DEPTH, HIDDEN, IN_CHANNELS = 3, 16, 7      # spline=False -> 7 input channels
    N, G = 64, 2                               # 2 graphs, 32 nodes each (contiguous batch)
    NPG = N // G
    E_PER_GRAPH = 128

    key = jax.random.PRNGKey(0)
    key, kp, kn, kc, ke, kw = jax.random.split(key, 6)

    pos = jax.random.normal(kp, (N, 3), F32)
    norm_raw = jax.random.normal(kn, (N, 3), F32)
    norm = norm_raw / jnp.linalg.norm(norm_raw, axis=1, keepdims=True)
    curve = jax.random.normal(kc, (N, 1), F32)
    x_sage = jnp.concatenate([pos, norm, curve], axis=1)          # (N, 7)

    # random intra-graph edges
    srcs, dsts = [], []
    for g in range(G):
        ke, k1, k2 = jax.random.split(ke, 3)
        srcs.append(jax.random.randint(k1, (E_PER_GRAPH,), g * NPG, (g + 1) * NPG))
        dsts.append(jax.random.randint(k2, (E_PER_GRAPH,), g * NPG, (g + 1) * NPG))
    src = jnp.concatenate(srcs)
    dst = jnp.concatenate(dsts)

    # dense row-normalized adjacency for SAGE mean aggregation:
    # aggr[i] = mean_{j : (j -> i)} x[j]   (0 if no in-edges)
    deg = jnp.zeros((N,), F32).at[dst].add(1.0)
    a_mean = jnp.zeros((N, N), F32).at[dst, src].add(1.0)
    a_mean = a_mean / jnp.maximum(deg, 1.0)[:, None]

    params = init_params(kw, IN_CHANNELS, HIDDEN, DEPTH)
    flat_params = pack_params(params, IN_CHANNELS, HIDDEN, DEPTH)

    fwd = jax.jit(forward, static_argnames=("depth", "hidden", "in_channels",
                                            "num_graphs", "nodes_per_graph"))
    out = fwd(flat_params, x_sage, a_mean,
              depth=DEPTH, hidden=HIDDEN, in_channels=IN_CHANNELS,
              num_graphs=G, nodes_per_graph=NPG)
    out = jax.block_until_ready(out)

    assert out.shape == (N, 1), out.shape
    assert jnp.all(jnp.isfinite(out))
    print("KERNEL_OK")
</pallas_src>

<mosaic_0001>
module attributes {stable_mosaic.version = 11 : i64} {
  func.func @kernel(%arg0: memref<64x64xbf16, #tpu.memory_space<vmem>>, %arg1: memref<64x128xbf16, #tpu.memory_space<vmem>>, %arg2: memref<256x128xbf16, #tpu.memory_space<vmem>>, %arg3: memref<1x128xf32, #tpu.memory_space<vmem>>, %arg4: memref<256x128xbf16, #tpu.memory_space<vmem>>, %arg5: memref<1x128xf32, #tpu.memory_space<vmem>>, %arg6: memref<256x128xbf16, #tpu.memory_space<vmem>>, %arg7: memref<1x128xf32, #tpu.memory_space<vmem>>, %arg8: memref<128x256xbf16, #tpu.memory_space<vmem>>, %arg9: memref<1x256xf32, #tpu.memory_space<vmem>>, %arg10: memref<1x256xf32, #tpu.memory_space<vmem>>, %arg11: memref<1x256xf32, #tpu.memory_space<vmem>>, %arg12: memref<256x512xbf16, #tpu.memory_space<any>>, %arg13: memref<1x512xf32, #tpu.memory_space<vmem>>, %arg14: memref<1x512xf32, #tpu.memory_space<vmem>>, %arg15: memref<1x512xf32, #tpu.memory_space<vmem>>, %arg16: memref<512x1024xbf16, #tpu.memory_space<any>>, %arg17: memref<1x1024xf32, #tpu.memory_space<vmem>>, %arg18: memref<1x1024xf32, #tpu.memory_space<vmem>>, %arg19: memref<1x1024xf32, #tpu.memory_space<vmem>>, %arg20: memref<128x512xbf16, #tpu.memory_space<vmem>>, %arg21: memref<1024x512xbf16, #tpu.memory_space<any>>, %arg22: memref<1x512xf32, #tpu.memory_space<vmem>>, %arg23: memref<1x512xf32, #tpu.memory_space<vmem>>, %arg24: memref<1x512xf32, #tpu.memory_space<vmem>>, %arg25: memref<512x256xbf16, #tpu.memory_space<any>>, %arg26: memref<1x256xf32, #tpu.memory_space<vmem>>, %arg27: memref<1x256xf32, #tpu.memory_space<vmem>>, %arg28: memref<1x256xf32, #tpu.memory_space<vmem>>, %arg29: memref<256x128xbf16, #tpu.memory_space<vmem>>, %arg30: memref<1x128xf32, #tpu.memory_space<vmem>>, %arg31: memref<1x128xf32, #tpu.memory_space<vmem>>, %arg32: memref<1x128xf32, #tpu.memory_space<vmem>>, %arg33: memref<128x128xbf16, #tpu.memory_space<vmem>>, %arg34: memref<1x128xf32, #tpu.memory_space<vmem>>, %arg35: memref<64x128xf32, #tpu.memory_space<vmem>>, %arg36: memref<256x512xbf16, #tpu.memory_space<vmem>>, %arg37: memref<512x1024xbf16, #tpu.memory_space<vmem>>, %arg38: memref<1024x512xbf16, #tpu.memory_space<vmem>>, %arg39: memref<512x256xbf16, #tpu.memory_space<vmem>>, %arg40: memref<4x!tpu.dma_semaphore, #tpu.memory_space<semaphore_mem>>) attributes {dimension_semantics = [], scalar_prefetch = 0 : i64, scratch_operands = 5 : i64, tpu.core_type = #tpu.core_type<tc>} {
    %c0_i32 = arith.constant 0 : i32
    %0 = tpu.memref_slice %arg40[%c0_i32] : memref<4x!tpu.dma_semaphore, #tpu.memory_space<semaphore_mem>> -> memref<1x!tpu.dma_semaphore, #tpu.memory_space<semaphore_mem>>
    %1 = tpu.memref_squeeze %0 : memref<1x!tpu.dma_semaphore, #tpu.memory_space<semaphore_mem>> -> memref<!tpu.dma_semaphore, #tpu.memory_space<semaphore_mem>>
    tpu.enqueue_dma source(%arg12 : memref<256x512xbf16, #tpu.memory_space<any>>) target(%arg36 : memref<256x512xbf16, #tpu.memory_space<vmem>>) target_semaphore(%1 : memref<!tpu.dma_semaphore, #tpu.memory_space<semaphore_mem>>)
    %c1_i32 = arith.constant 1 : i32
    %2 = tpu.memref_slice %arg40[%c1_i32] : memref<4x!tpu.dma_semaphore, #tpu.memory_space<semaphore_mem>> -> memref<1x!tpu.dma_semaphore, #tpu.memory_space<semaphore_mem>>
    %3 = tpu.memref_squeeze %2 : memref<1x!tpu.dma_semaphore, #tpu.memory_space<semaphore_mem>> -> memref<!tpu.dma_semaphore, #tpu.memory_space<semaphore_mem>>
    tpu.enqueue_dma source(%arg16 : memref<512x1024xbf16, #tpu.memory_space<any>>) target(%arg37 : memref<512x1024xbf16, #tpu.memory_space<vmem>>) target_semaphore(%3 : memref<!tpu.dma_semaphore, #tpu.memory_space<semaphore_mem>>)
    %c2_i32 = arith.constant 2 : i32
    %4 = tpu.memref_slice %arg40[%c2_i32] : memref<4x!tpu.dma_semaphore, #tpu.memory_space<semaphore_mem>> -> memref<1x!tpu.dma_semaphore, #tpu.memory_space<semaphore_mem>>
    %5 = tpu.memref_squeeze %4 : memref<1x!tpu.dma_semaphore, #tpu.memory_space<semaphore_mem>> -> memref<!tpu.dma_semaphore, #tpu.memory_space<semaphore_mem>>
    tpu.enqueue_dma source(%arg21 : memref<1024x512xbf16, #tpu.memory_space<any>>) target(%arg38 : memref<1024x512xbf16, #tpu.memory_space<vmem>>) target_semaphore(%5 : memref<!tpu.dma_semaphore, #tpu.memory_space<semaphore_mem>>)
    %c3_i32 = arith.constant 3 : i32
    %6 = tpu.memref_slice %arg40[%c3_i32] : memref<4x!tpu.dma_semaphore, #tpu.memory_space<semaphore_mem>> -> memref<1x!tpu.dma_semaphore, #tpu.memory_space<semaphore_mem>>
    %7 = tpu.memref_squeeze %6 : memref<1x!tpu.dma_semaphore, #tpu.memory_space<semaphore_mem>> -> memref<!tpu.dma_semaphore, #tpu.memory_space<semaphore_mem>>
    tpu.enqueue_dma source(%arg25 : memref<512x256xbf16, #tpu.memory_space<any>>) target(%arg39 : memref<512x256xbf16, #tpu.memory_space<vmem>>) target_semaphore(%7 : memref<!tpu.dma_semaphore, #tpu.memory_space<semaphore_mem>>)
    %c0 = arith.constant 0 : index
    %c0_0 = arith.constant 0 : index
    %8 = vector.load %arg0[%c0, %c0_0] : memref<64x64xbf16, #tpu.memory_space<vmem>>, vector<64x64xbf16>
    %c0_1 = arith.constant 0 : index
    %c0_2 = arith.constant 0 : index
    %9 = vector.load %arg1[%c0_1, %c0_2] : memref<64x128xbf16, #tpu.memory_space<vmem>>, vector<64x128xbf16>
    %cst = arith.constant dense<0.000000e+00> : vector<64x128xf32>
    %10 = tpu.matmul %8, %9, %cst {dimension_numbers = #tpu.dot_dimension_numbers<[1], [0], [0], [1], [0, 0, 1, 1], [], []>} : vector<64x64xbf16>, vector<64x128xbf16>, vector<64x128xf32> -> vector<64x128xf32>
    %11 = arith.truncf %10 : vector<64x128xf32> to vector<64x128xbf16>
    %12 = tpu.concatenate %11, %9 in 1 : vector<64x128xbf16>, vector<64x128xbf16> -> vector<64x256xbf16>
    %c0_3 = arith.constant 0 : index
    %c0_4 = arith.constant 0 : index
    %13 = vector.load %arg2[%c0_3, %c0_4] : memref<256x128xbf16, #tpu.memory_space<vmem>>, vector<256x128xbf16>
    %cst_5 = arith.constant dense<0.000000e+00> : vector<64x128xf32>
    %14 = tpu.matmul %12, %13, %cst_5 {dimension_numbers = #tpu.dot_dimension_numbers<[1], [0], [0], [1], [0, 0, 1, 1], [], []>} : vector<64x256xbf16>, vector<256x128xbf16>, vector<64x128xf32> -> vector<64x128xf32>
    %c0_6 = arith.constant 0 : index
    %c0_7 = arith.constant 0 : index
    %15 = vector.load %arg3[%c0_6, %c0_7] : memref<1x128xf32, #tpu.memory_space<vmem>>, vector<1x128xf32>
    %16 = vector.broadcast %15 : vector<1x128xf32> to vector<64x128xf32>
    %17 = arith.addf %14, %16 : vector<64x128xf32>
    %cst_8 = arith.constant 0.000000e+00 : f32
    %18 = vector.broadcast %cst_8 : f32 to vector<64x128xf32>
    %19 = arith.cmpf ogt, %17, %18 : vector<64x128xf32>
    %cst_9 = arith.constant 0.000000e+00 : f32
    %20 = vector.broadcast %cst_9 : f32 to vector<64x128xf32>
    %21 = arith.minimumf %17, %20 : vector<64x128xf32>
    %22 = math.exp %21 : vector<64x128xf32>
    %cst_10 = arith.constant 1.000000e+00 : f32
    %23 = vector.broadcast %cst_10 : f32 to vector<64x128xf32>
    %24 = arith.subf %22, %23 : vector<64x128xf32>
    %25 = arith.select %19, %17, %24 : vector<64x128xi1>, vector<64x128xf32>
    %26 = arith.truncf %25 : vector<64x128xf32> to vector<64x128xbf16>
    %27 = arith.addf %9, %26 : vector<64x128xbf16>
    %cst_11 = arith.constant dense<0.000000e+00> : vector<64x128xf32>
    %28 = tpu.matmul %8, %27, %cst_11 {dimension_numbers = #tpu.dot_dimension_numbers<[1], [0], [0], [1], [0, 0, 1, 1], [], []>} : vector<64x64xbf16>, vector<64x128xbf16>, vector<64x128xf32> -> vector<64x128xf32>
    %29 = arith.truncf %28 : vector<64x128xf32> to vector<64x128xbf16>
    %30 = tpu.concatenate %29, %27 in 1 : vector<64x128xbf16>, vector<64x128xbf16> -> vector<64x256xbf16>
    %c0_12 = arith.constant 0 : index
    %c0_13 = arith.constant 0 : index
    %31 = vector.load %arg4[%c0_12, %c0_13] : memref<256x128xbf16, #tpu.memory_space<vmem>>, vector<256x128xbf16>
    %cst_14 = arith.constant dense<0.000000e+00> : vector<64x128xf32>
    %32 = tpu.matmul %30, %31, %cst_14 {dimension_numbers = #tpu.dot_dimension_numbers<[1], [0], [0], [1], [0, 0, 1, 1], [], []>} : vector<64x256xbf16>, vector<256x128xbf16>, vector<64x128xf32> -> vector<64x128xf32>
    %c0_15 = arith.constant 0 : index
    %c0_16 = arith.constant 0 : index
    %33 = vector.load %arg5[%c0_15, %c0_16] : memref<1x128xf32, #tpu.memory_space<vmem>>, vector<1x128xf32>
    %34 = vector.broadcast %33 : vector<1x128xf32> to vector<64x128xf32>
    %35 = arith.addf %32, %34 : vector<64x128xf32>
    %cst_17 = arith.constant 0.000000e+00 : f32
    %36 = vector.broadcast %cst_17 : f32 to vector<64x128xf32>
    %37 = arith.cmpf ogt, %35, %36 : vector<64x128xf32>
    %cst_18 = arith.constant 0.000000e+00 : f32
    %38 = vector.broadcast %cst_18 : f32 to vector<64x128xf32>
    %39 = arith.minimumf %35, %38 : vector<64x128xf32>
    %40 = math.exp %39 : vector<64x128xf32>
    %cst_19 = arith.constant 1.000000e+00 : f32
    %41 = vector.broadcast %cst_19 : f32 to vector<64x128xf32>
    %42 = arith.subf %40, %41 : vector<64x128xf32>
    %43 = arith.select %37, %35, %42 : vector<64x128xi1>, vector<64x128xf32>
    %44 = arith.truncf %43 : vector<64x128xf32> to vector<64x128xbf16>
    %45 = arith.addf %27, %44 : vector<64x128xbf16>
    %cst_20 = arith.constant dense<0.000000e+00> : vector<64x128xf32>
    %46 = tpu.matmul %8, %45, %cst_20 {dimension_numbers = #tpu.dot_dimension_numbers<[1], [0], [0], [1], [0, 0, 1, 1], [], []>} : vector<64x64xbf16>, vector<64x128xbf16>, vector<64x128xf32> -> vector<64x128xf32>
    %47 = arith.truncf %46 : vector<64x128xf32> to vector<64x128xbf16>
    %48 = tpu.concatenate %47, %45 in 1 : vector<64x128xbf16>, vector<64x128xbf16> -> vector<64x256xbf16>
    %c0_21 = arith.constant 0 : index
    %c0_22 = arith.constant 0 : index
    %49 = vector.load %arg6[%c0_21, %c0_22] : memref<256x128xbf16, #tpu.memory_space<vmem>>, vector<256x128xbf16>
    %cst_23 = arith.constant dense<0.000000e+00> : vector<64x128xf32>
    %50 = tpu.matmul %48, %49, %cst_23 {dimension_numbers = #tpu.dot_dimension_numbers<[1], [0], [0], [1], [0, 0, 1, 1], [], []>} : vector<64x256xbf16>, vector<256x128xbf16>, vector<64x128xf32> -> vector<64x128xf32>
    %c0_24 = arith.constant 0 : index
    %c0_25 = arith.constant 0 : index
    %51 = vector.load %arg7[%c0_24, %c0_25] : memref<1x128xf32, #tpu.memory_space<vmem>>, vector<1x128xf32>
    %52 = vector.broadcast %51 : vector<1x128xf32> to vector<64x128xf32>
    %53 = arith.addf %50, %52 : vector<64x128xf32>
    %cst_26 = arith.constant 0.000000e+00 : f32
    %54 = vector.broadcast %cst_26 : f32 to vector<64x128xf32>
    %55 = arith.cmpf ogt, %53, %54 : vector<64x128xf32>
    %cst_27 = arith.constant 0.000000e+00 : f32
    %56 = vector.broadcast %cst_27 : f32 to vector<64x128xf32>
    %57 = arith.minimumf %53, %56 : vector<64x128xf32>
    %58 = math.exp %57 : vector<64x128xf32>
    %cst_28 = arith.constant 1.000000e+00 : f32
    %59 = vector.broadcast %cst_28 : f32 to vector<64x128xf32>
    %60 = arith.subf %58, %59 : vector<64x128xf32>
    %61 = arith.select %55, %53, %60 : vector<64x128xi1>, vector<64x128xf32>
    %62 = arith.truncf %61 : vector<64x128xf32> to vector<64x128xbf16>
    %63 = arith.addf %45, %62 : vector<64x128xbf16>
    %c0_29 = arith.constant 0 : index
    %c0_30 = arith.constant 0 : index
    %64 = vector.load %arg8[%c0_29, %c0_30] : memref<128x256xbf16, #tpu.memory_space<vmem>>, vector<128x256xbf16>
    %cst_31 = arith.constant dense<0.000000e+00> : vector<64x256xf32>
    %65 = tpu.matmul %63, %64, %cst_31 {dimension_numbers = #tpu.dot_dimension_numbers<[1], [0], [0], [1], [0, 0, 1, 1], [], []>} : vector<64x128xbf16>, vector<128x256xbf16>, vector<64x256xf32> -> vector<64x256xf32>
    %c0_32 = arith.constant 0 : index
    %c0_33 = arith.constant 0 : index
    %66 = vector.load %arg9[%c0_32, %c0_33] : memref<1x256xf32, #tpu.memory_space<vmem>>, vector<1x256xf32>
    %67 = vector.broadcast %66 : vector<1x256xf32> to vector<64x256xf32>
    %68 = arith.addf %65, %67 : vector<64x256xf32>
    %cst_34 = arith.constant 0.000000e+00 : f32
    %69 = vector.broadcast %cst_34 : f32 to vector<64x256xf32>
    %70 = arith.maximumf %68, %69 : vector<64x256xf32>
    %c0_35 = arith.constant 0 : index
    %c0_36 = arith.constant 0 : index
    %71 = vector.load %arg10[%c0_35, %c0_36] : memref<1x256xf32, #tpu.memory_space<vmem>>, vector<1x256xf32>
    %72 = vector.broadcast %71 : vector<1x256xf32> to vector<64x256xf32>
    %73 = arith.mulf %70, %72 : vector<64x256xf32>
    %c0_37 = arith.constant 0 : index
    %c0_38 = arith.constant 0 : index
    %74 = vector.load %arg11[%c0_37, %c0_38] : memref<1x256xf32, #tpu.memory_space<vmem>>, vector<1x256xf32>
    %75 = vector.broadcast %74 : vector<1x256xf32> to vector<64x256xf32>
    %76 = arith.addf %73, %75 : vector<64x256xf32>
    %77 = arith.truncf %76 : vector<64x256xf32> to vector<64x256xbf16>
    %c0_i32_39 = arith.constant 0 : i32
    %78 = tpu.memref_slice %arg40[%c0_i32_39] : memref<4x!tpu.dma_semaphore, #tpu.memory_space<semaphore_mem>> -> memref<1x!tpu.dma_semaphore, #tpu.memory_space<semaphore_mem>>
    %79 = tpu.memref_squeeze %78 : memref<1x!tpu.dma_semaphore, #tpu.memory_space<semaphore_mem>> -> memref<!tpu.dma_semaphore, #tpu.memory_space<semaphore_mem>>
    tpu.wait_dma2 semaphore(%79 : memref<!tpu.dma_semaphore, #tpu.memory_space<semaphore_mem>>) src(%arg12 : memref<256x512xbf16, #tpu.memory_space<any>>) dst(%arg36 : memref<256x512xbf16, #tpu.memory_space<vmem>>)
    %c0_40 = arith.constant 0 : index
    %c0_41 = arith.constant 0 : index
    %80 = vector.load %arg36[%c0_40, %c0_41] : memref<256x512xbf16, #tpu.memory_space<vmem>>, vector<256x512xbf16>
    %cst_42 = arith.constant dense<0.000000e+00> : vector<64x512xf32>
    %81 = tpu.matmul %77, %80, %cst_42 {dimension_numbers = #tpu.dot_dimension_numbers<[1], [0], [0], [1], [0, 0, 1, 1], [], []>} : vector<64x256xbf16>, vector<256x512xbf16>, vector<64x512xf32> -> vector<64x512xf32>
    %c0_43 = arith.constant 0 : index
    %c0_44 = arith.constant 0 : index
    %82 = vector.load %arg13[%c0_43, %c0_44] : memref<1x512xf32, #tpu.memory_space<vmem>>, vector<1x512xf32>
    %83 = vector.broadcast %82 : vector<1x512xf32> to vector<64x512xf32>
    %84 = arith.addf %81, %83 : vector<64x512xf32>
    %cst_45 = arith.constant 0.000000e+00 : f32
    %85 = vector.broadcast %cst_45 : f32 to vector<64x512xf32>
    %86 = arith.maximumf %84, %85 : vector<64x512xf32>
    %c0_46 = arith.constant 0 : index
    %c0_47 = arith.constant 0 : index
    %87 = vector.load %arg14[%c0_46, %c0_47] : memref<1x512xf32, #tpu.memory_space<vmem>>, vector<1x512xf32>
    %88 = vector.broadcast %87 : vector<1x512xf32> to vector<64x512xf32>
    %89 = arith.mulf %86, %88 : vector<64x512xf32>
    %c0_48 = arith.constant 0 : index
    %c0_49 = arith.constant 0 : index
    %90 = vector.load %arg15[%c0_48, %c0_49] : memref<1x512xf32, #tpu.memory_space<vmem>>, vector<1x512xf32>
    %91 = vector.broadcast %90 : vector<1x512xf32> to vector<64x512xf32>
    %92 = arith.addf %89, %91 : vector<64x512xf32>
    %93 = arith.truncf %92 : vector<64x512xf32> to vector<64x512xbf16>
    %c1_i32_50 = arith.constant 1 : i32
    %94 = tpu.memref_slice %arg40[%c1_i32_50] : memref<4x!tpu.dma_semaphore, #tpu.memory_space<semaphore_mem>> -> memref<1x!tpu.dma_semaphore, #tpu.memory_space<semaphore_mem>>
    %95 = tpu.memref_squeeze %94 : memref<1x!tpu.dma_semaphore, #tpu.memory_space<semaphore_mem>> -> memref<!tpu.dma_semaphore, #tpu.memory_space<semaphore_mem>>
    tpu.wait_dma2 semaphore(%95 : memref<!tpu.dma_semaphore, #tpu.memory_space<semaphore_mem>>) src(%arg16 : memref<512x1024xbf16, #tpu.memory_space<any>>) dst(%arg37 : memref<512x1024xbf16, #tpu.memory_space<vmem>>)
    %c0_51 = arith.constant 0 : index
    %c0_52 = arith.constant 0 : index
    %96 = vector.load %arg37[%c0_51, %c0_52] : memref<512x1024xbf16, #tpu.memory_space<vmem>>, vector<512x1024xbf16>
    %cst_53 = arith.constant dense<0.000000e+00> : vector<64x1024xf32>
    %97 = tpu.matmul %93, %96, %cst_53 {dimension_numbers = #tpu.dot_dimension_numbers<[1], [0], [0], [1], [0, 0, 1, 1], [], []>} : vector<64x512xbf16>, vector<512x1024xbf16>, vector<64x1024xf32> -> vector<64x1024xf32>
    %c0_54 = arith.constant 0 : index
    %c0_55 = arith.constant 0 : index
    %98 = vector.load %arg17[%c0_54, %c0_55] : memref<1x1024xf32, #tpu.memory_space<vmem>>, vector<1x1024xf32>
    %99 = vector.broadcast %98 : vector<1x1024xf32> to vector<64x1024xf32>
    %100 = arith.addf %97, %99 : vector<64x1024xf32>
    %cst_56 = arith.constant 0.000000e+00 : f32
    %101 = vector.broadcast %cst_56 : f32 to vector<64x1024xf32>
    %102 = arith.maximumf %100, %101 : vector<64x1024xf32>
    %c0_57 = arith.constant 0 : index
    %c0_58 = arith.constant 0 : index
    %103 = vector.load %arg18[%c0_57, %c0_58] : memref<1x1024xf32, #tpu.memory_space<vmem>>, vector<1x1024xf32>
    %104 = vector.broadcast %103 : vector<1x1024xf32> to vector<64x1024xf32>
    %105 = arith.mulf %102, %104 : vector<64x1024xf32>
    %c0_59 = arith.constant 0 : index
    %c0_60 = arith.constant 0 : index
    %106 = vector.load %arg19[%c0_59, %c0_60] : memref<1x1024xf32, #tpu.memory_space<vmem>>, vector<1x1024xf32>
    %107 = vector.broadcast %106 : vector<1x1024xf32> to vector<64x1024xf32>
    %108 = arith.addf %105, %107 : vector<64x1024xf32>
    %109 = arith.truncf %108 : vector<64x1024xf32> to vector<64x1024xbf16>
    %c0_61 = arith.constant 0 : index
    %c0_62 = arith.constant 0 : index
    %110 = vector.load %arg20[%c0_61, %c0_62] : memref<128x512xbf16, #tpu.memory_space<vmem>>, vector<128x512xbf16>
    %cst_63 = arith.constant dense<0.000000e+00> : vector<64x512xf32>
    %111 = tpu.matmul %63, %110, %cst_63 {dimension_numbers = #tpu.dot_dimension_numbers<[1], [0], [0], [1], [0, 0, 1, 1], [], []>} : vector<64x128xbf16>, vector<128x512xbf16>, vector<64x512xf32> -> vector<64x512xf32>
    %c0_64 = arith.constant 0 : index
    %c0_65 = arith.constant 0 : index
    %112 = vector.load %arg22[%c0_64, %c0_65] : memref<1x512xf32, #tpu.memory_space<vmem>>, vector<1x512xf32>
    %113 = vector.broadcast %112 : vector<1x512xf32> to vector<64x512xf32>
    %114 = arith.addf %111, %113 : vector<64x512xf32>
    %c2_i32_66 = arith.constant 2 : i32
    %115 = tpu.memref_slice %arg40[%c2_i32_66] : memref<4x!tpu.dma_semaphore, #tpu.memory_space<semaphore_mem>> -> memref<1x!tpu.dma_semaphore, #tpu.memory_space<semaphore_mem>>
    %116 = tpu.memref_squeeze %115 : memref<1x!tpu.dma_semaphore, #tpu.memory_space<semaphore_mem>> -> memref<!tpu.dma_semaphore, #tpu.memory_space<semaphore_mem>>
    tpu.wait_dma2 semaphore(%116 : memref<!tpu.dma_semaphore, #tpu.memory_space<semaphore_mem>>) src(%arg21 : memref<1024x512xbf16, #tpu.memory_space<any>>) dst(%arg38 : memref<1024x512xbf16, #tpu.memory_space<vmem>>)
    %117 = tpu.iota {dimensions = array<i32: 0>} : vector<64x1xi32>
    %cst_67 = arith.constant 0.000000e+00 : f32
    %118 = vector.broadcast %cst_67 : f32 to vector<64x512xf32>
    %119 = vector.extract_strided_slice %109 {offsets = [0, 0], sizes = [32, 1024], strides = [1, 1]} : vector<64x1024xbf16> to vector<32x1024xbf16>
    %cst_68 = arith.constant dense<0xFF80> : vector<1024xbf16>
    %120 = vector.multi_reduction <maximumf>, %119, %cst_68 [0] : vector<32x1024xbf16> to vector<1024xbf16>
    %121 = vector.shape_cast %120 : vector<1024xbf16> to vector<1x1024xbf16>
    %c0_69 = arith.constant 0 : index
    %c0_70 = arith.constant 0 : index
    %122 = vector.load %arg38[%c0_69, %c0_70] : memref<1024x512xbf16, #tpu.memory_space<vmem>>, vector<1024x512xbf16>
    %cst_71 = arith.constant dense<0.000000e+00> : vector<1x512xf32>
    %123 = tpu.matmul %121, %122, %cst_71 {dimension_numbers = #tpu.dot_dimension_numbers<[1], [0], [0], [1], [0, 0, 1, 1], [], []>} : vector<1x1024xbf16>, vector<1024x512xbf16>, vector<1x512xf32> -> vector<1x512xf32>
    %c0_i32_72 = arith.constant 0 : i32
    %124 = vector.broadcast %c0_i32_72 : i32 to vector<64x1xi32>
    %125 = arith.cmpi sge, %117, %124 : vector<64x1xi32>
    %c32_i32 = arith.constant 32 : i32
    %126 = vector.broadcast %c32_i32 : i32 to vector<64x1xi32>
    %127 = arith.cmpi slt, %117, %126 : vector<64x1xi32>
    %128 = arith.andi %125, %127 : vector<64x1xi1>
    %129 = vector.shape_cast %128 : vector<64x1xi1> to vector<64x1xi1>
    %130 = vector.broadcast %129 : vector<64x1xi1> to vector<64x512xi1>
    %131 = vector.shape_cast %123 : vector<1x512xf32> to vector<1x512xf32>
    %132 = vector.broadcast %131 : vector<1x512xf32> to vector<64x512xf32>
    %133 = arith.select %130, %132, %118 : vector<64x512xi1>, vector<64x512xf32>
    %134 = vector.extract_strided_slice %109 {offsets = [32, 0], sizes = [32, 1024], strides = [1, 1]} : vector<64x1024xbf16> to vector<32x1024xbf16>
    %cst_73 = arith.constant dense<0xFF80> : vector<1024xbf16>
    %135 = vector.multi_reduction <maximumf>, %134, %cst_73 [0] : vector<32x1024xbf16> to vector<1024xbf16>
    %136 = vector.shape_cast %135 : vector<1024xbf16> to vector<1x1024xbf16>
    %c0_74 = arith.constant 0 : index
    %c0_75 = arith.constant 0 : index
    %137 = vector.load %arg38[%c0_74, %c0_75] : memref<1024x512xbf16, #tpu.memory_space<vmem>>, vector<1024x512xbf16>
    %cst_76 = arith.constant dense<0.000000e+00> : vector<1x512xf32>
    %138 = tpu.matmul %136, %137, %cst_76 {dimension_numbers = #tpu.dot_dimension_numbers<[1], [0], [0], [1], [0, 0, 1, 1], [], []>} : vector<1x1024xbf16>, vector<1024x512xbf16>, vector<1x512xf32> -> vector<1x512xf32>
    %c32_i32_77 = arith.constant 32 : i32
    %139 = vector.broadcast %c32_i32_77 : i32 to vector<64x1xi32>
    %140 = arith.cmpi sge, %117, %139 : vector<64x1xi32>
    %c64_i32 = arith.constant 64 : i32
    %141 = vector.broadcast %c64_i32 : i32 to vector<64x1xi32>
    %142 = arith.cmpi slt, %117, %141 : vector<64x1xi32>
    %143 = arith.andi %140, %142 : vector<64x1xi1>
    %144 = vector.shape_cast %143 : vector<64x1xi1> to vector<64x1xi1>
    %145 = vector.broadcast %144 : vector<64x1xi1> to vector<64x512xi1>
    %146 = vector.shape_cast %138 : vector<1x512xf32> to vector<1x512xf32>
    %147 = vector.broadcast %146 : vector<1x512xf32> to vector<64x512xf32>
    %148 = arith.select %145, %147, %133 : vector<64x512xi1>, vector<64x512xf32>
    %149 = arith.addf %114, %148 : vector<64x512xf32>
    %cst_78 = arith.constant 0.000000e+00 : f32
    %150 = vector.broadcast %cst_78 : f32 to vector<64x512xf32>
    %151 = arith.maximumf %149, %150 : vector<64x512xf32>
    %c0_79 = arith.constant 0 : index
    %c0_80 = arith.constant 0 : index
    %152 = vector.load %arg23[%c0_79, %c0_80] : memref<1x512xf32, #tpu.memory_space<vmem>>, vector<1x512xf32>
    %153 = vector.broadcast %152 : vector<1x512xf32> to vector<64x512xf32>
    %154 = arith.mulf %151, %153 : vector<64x512xf32>
    %c0_81 = arith.constant 0 : index
    %c0_82 = arith.constant 0 : index
    %155 = vector.load %arg24[%c0_81, %c0_82] : memref<1x512xf32, #tpu.memory_space<vmem>>, vector<1x512xf32>
    %156 = vector.broadcast %155 : vector<1x512xf32> to vector<64x512xf32>
    %157 = arith.addf %154, %156 : vector<64x512xf32>
    %158 = arith.truncf %157 : vector<64x512xf32> to vector<64x512xbf16>
    %c3_i32_83 = arith.constant 3 : i32
    %159 = tpu.memref_slice %arg40[%c3_i32_83] : memref<4x!tpu.dma_semaphore, #tpu.memory_space<semaphore_mem>> -> memref<1x!tpu.dma_semaphore, #tpu.memory_space<semaphore_mem>>
    %160 = tpu.memref_squeeze %159 : memref<1x!tpu.dma_semaphore, #tpu.memory_space<semaphore_mem>> -> memref<!tpu.dma_semaphore, #tpu.memory_space<semaphore_mem>>
    tpu.wait_dma2 semaphore(%160 : memref<!tpu.dma_semaphore, #tpu.memory_space<semaphore_mem>>) src(%arg25 : memref<512x256xbf16, #tpu.memory_space<any>>) dst(%arg39 : memref<512x256xbf16, #tpu.memory_space<vmem>>)
    %c0_84 = arith.constant 0 : index
    %c0_85 = arith.constant 0 : index
    %161 = vector.load %arg39[%c0_84, %c0_85] : memref<512x256xbf16, #tpu.memory_space<vmem>>, vector<512x256xbf16>
    %cst_86 = arith.constant dense<0.000000e+00> : vector<64x256xf32>
    %162 = tpu.matmul %158, %161, %cst_86 {dimension_numbers = #tpu.dot_dimension_numbers<[1], [0], [0], [1], [0, 0, 1, 1], [], []>} : vector<64x512xbf16>, vector<512x256xbf16>, vector<64x256xf32> -> vector<64x256xf32>
    %c0_87 = arith.constant 0 : index
    %c0_88 = arith.constant 0 : index
    %163 = vector.load %arg26[%c0_87, %c0_88] : memref<1x256xf32, #tpu.memory_space<vmem>>, vector<1x256xf32>
    %164 = vector.broadcast %163 : vector<1x256xf32> to vector<64x256xf32>
    %165 = arith.addf %162, %164 : vector<64x256xf32>
    %cst_89 = arith.constant 0.000000e+00 : f32
    %166 = vector.broadcast %cst_89 : f32 to vector<64x256xf32>
    %167 = arith.maximumf %165, %166 : vector<64x256xf32>
    %c0_90 = arith.constant 0 : index
    %c0_91 = arith.constant 0 : index
    %168 = vector.load %arg27[%c0_90, %c0_91] : memref<1x256xf32, #tpu.memory_space<vmem>>, vector<1x256xf32>
    %169 = vector.broadcast %168 : vector<1x256xf32> to vector<64x256xf32>
    %170 = arith.mulf %167, %169 : vector<64x256xf32>
    %c0_92 = arith.constant 0 : index
    %c0_93 = arith.constant 0 : index
    %171 = vector.load %arg28[%c0_92, %c0_93] : memref<1x256xf32, #tpu.memory_space<vmem>>, vector<1x256xf32>
    %172 = vector.broadcast %171 : vector<1x256xf32> to vector<64x256xf32>
    %173 = arith.addf %170, %172 : vector<64x256xf32>
    %174 = arith.truncf %173 : vector<64x256xf32> to vector<64x256xbf16>
    %c0_94 = arith.constant 0 : index
    %c0_95 = arith.constant 0 : index
    %175 = vector.load %arg29[%c0_94, %c0_95] : memref<256x128xbf16, #tpu.memory_space<vmem>>, vector<256x128xbf16>
    %cst_96 = arith.constant dense<0.000000e+00> : vector<64x128xf32>
    %176 = tpu.matmul %174, %175, %cst_96 {dimension_numbers = #tpu.dot_dimension_numbers<[1], [0], [0], [1], [0, 0, 1, 1], [], []>} : vector<64x256xbf16>, vector<256x128xbf16>, vector<64x128xf32> -> vector<64x128xf32>
    %c0_97 = arith.constant 0 : index
    %c0_98 = arith.constant 0 : index
    %177 = vector.load %arg30[%c0_97, %c0_98] : memref<1x128xf32, #tpu.memory_space<vmem>>, vector<1x128xf32>
    %178 = vector.broadcast %177 : vector<1x128xf32> to vector<64x128xf32>
    %179 = arith.addf %176, %178 : vector<64x128xf32>
    %cst_99 = arith.constant 0.000000e+00 : f32
    %180 = vector.broadcast %cst_99 : f32 to vector<64x128xf32>
    %181 = arith.maximumf %179, %180 : vector<64x128xf32>
    %c0_100 = arith.constant 0 : index
    %c0_101 = arith.constant 0 : index
    %182 = vector.load %arg31[%c0_100, %c0_101] : memref<1x128xf32, #tpu.memory_space<vmem>>, vector<1x128xf32>
    %183 = vector.broadcast %182 : vector<1x128xf32> to vector<64x128xf32>
    %184 = arith.mulf %181, %183 : vector<64x128xf32>
    %c0_102 = arith.constant 0 : index
    %c0_103 = arith.constant 0 : index
    %185 = vector.load %arg32[%c0_102, %c0_103] : memref<1x128xf32, #tpu.memory_space<vmem>>, vector<1x128xf32>
    %186 = vector.broadcast %185 : vector<1x128xf32> to vector<64x128xf32>
    %187 = arith.addf %184, %186 : vector<64x128xf32>
    %188 = arith.truncf %187 : vector<64x128xf32> to vector<64x128xbf16>
    %c0_104 = arith.constant 0 : index
    %c0_105 = arith.constant 0 : index
    %189 = vector.load %arg33[%c0_104, %c0_105] : memref<128x128xbf16, #tpu.memory_space<vmem>>, vector<128x128xbf16>
    %cst_106 = arith.constant dense<0.000000e+00> : vector<64x128xf32>
    %190 = tpu.matmul %188, %189, %cst_106 {dimension_numbers = #tpu.dot_dimension_numbers<[1], [0], [0], [1], [0, 0, 1, 1], [], []>} : vector<64x128xbf16>, vector<128x128xbf16>, vector<64x128xf32> -> vector<64x128xf32>
    %c0_107 = arith.constant 0 : index
    %c0_108 = arith.constant 0 : index
    %191 = vector.load %arg34[%c0_107, %c0_108] : memref<1x128xf32, #tpu.memory_space<vmem>>, vector<1x128xf32>
    %192 = vector.broadcast %191 : vector<1x128xf32> to vector<64x128xf32>
    %193 = arith.addf %190, %192 : vector<64x128xf32>
    %c0_109 = arith.constant 0 : index
    %c0_110 = arith.constant 0 : index
    %194 = vector.load %arg35[%c0_109, %c0_110] : memref<64x128xf32, #tpu.memory_space<vmem>>, vector<64x128xf32>
    tpu.vector_store %arg35[%c0_109, %c0_110], %193 {strides = array<i32>} : memref<64x128xf32, #tpu.memory_space<vmem>>, vector<64x128xf32>,
    return
  }
}

</mosaic_0001>

<llo_original>
// kernel: forward.1
$region0: #{forward.1}
  #allocation0 [shape = 'u32[]', space=smem, size = 0x4, offset = 0x4, fixed_abs, tag = 'smem constant byte address 0x4 - core index']
  #allocation1 [shape = 'u32[144,128]{1,0:T(1,128)}', space=vmem, size = 0x12000, scoped, tag = 'internal scratch']
  #allocation2 [shape = 'bf16[256,512]{1,0:T(16,128)(2,1)}', space=vmem, size = 0x40000, scoped, tag = 'scratch operand']
  #allocation3 [shape = 'bf16[512,1024]{1,0:T(16,128)(2,1)}', space=vmem, size = 0x100000, scoped, tag = 'scratch operand']
  #allocation4 [shape = 'bf16[1024,512]{1,0:T(16,128)(2,1)}', space=vmem, size = 0x100000, scoped, tag = 'scratch operand']
  #allocation5 [shape = 'bf16[512,256]{1,0:T(16,128)(2,1)}', space=vmem, size = 0x40000, scoped, tag = 'scratch operand']
  #allocation6 [shape = 's32[4]{0}', space=sflag, size = 0x10, scoped, tag = 'scratch operand']
  #allocation45 [shape = 's32[]', space=sflag, size = 0x4, offset = 0, fixed_abs, tag = 'sflag constant byte address 0x0 - dummy sync flag']
  #allocation47 [shape = 's32[]', space=sflag, size = 0x4, offset = 0, fixed_abs, tag = 'sflag constant byte address 0x0 - dummy sync flag']
  #allocation49 [shape = 's32[]', space=sflag, size = 0x4, offset = 0, fixed_abs, tag = 'sflag constant byte address 0x0 - dummy sync flag']
  #allocation51 [shape = 's32[]', space=sflag, size = 0x4, offset = 0, fixed_abs, tag = 'sflag constant byte address 0x0 - dummy sync flag']
  %s0 = inlined_call_operand.smem [shape: u32[36], index: -1, kind: input, shape index: {}]
  %s1 = sld [smem:[%s0]]
  %s2 = scalar_lea.smem %s0, 1
  %s3 = sld [smem:[%s2]]
  %s4 = scalar_lea.smem %s0, 2
  %s5 = sld [smem:[%s4]]
  %s6 = scalar_lea.smem %s0, 3
  %s7 = sld [smem:[%s6]]
  %s8 = scalar_lea.smem %s0, 4
  %s9 = sld [smem:[%s8]]
  %s10 = scalar_lea.smem %s0, 5
  %s11 = sld [smem:[%s10]]
  %s12 = scalar_lea.smem %s0, 6
  %s13 = sld [smem:[%s12]]
  %s14 = scalar_lea.smem %s0, 7
  %s15 = sld [smem:[%s14]]
  %s16 = scalar_lea.smem %s0, 8
  %s17 = sld [smem:[%s16]]
  %s18 = scalar_lea.smem %s0, 9
  %s19 = sld [smem:[%s18]]
  %s20 = scalar_lea.smem %s0, 10
  %s21 = sld [smem:[%s20]]
  %s22 = scalar_lea.smem %s0, 11
  %s23 = sld [smem:[%s22]]
  %s24 = scalar_lea.smem %s0, 12
  %s25 = sld [smem:[%s24]]
  %s26 = scalar_lea.smem %s0, 13
  %s27 = sld [smem:[%s26]]
  %s28 = scalar_lea.smem %s0, 14
  %s29 = sld [smem:[%s28]]
  %s30 = scalar_lea.smem %s0, 15
  %s31 = sld [smem:[%s30]]
  %s32 = scalar_lea.smem %s0, 16
  %s33 = sld [smem:[%s32]]
  %s34 = scalar_lea.smem %s0, 17
  %s35 = sld [smem:[%s34]]
  %s36 = scalar_lea.smem %s0, 18
  %s37 = sld [smem:[%s36]]
  %s38 = scalar_lea.smem %s0, 19
  %s39 = sld [smem:[%s38]]
  %s40 = scalar_lea.smem %s0, 20
  %s41 = sld [smem:[%s40]]
  %s42 = scalar_lea.smem %s0, 21
  %s43 = sld [smem:[%s42]]
  %s44 = scalar_lea.smem %s0, 22
  %s45 = sld [smem:[%s44]]
  %s46 = scalar_lea.smem %s0, 23
  %s47 = sld [smem:[%s46]]
  %s48 = scalar_lea.smem %s0, 24
  %s49 = sld [smem:[%s48]]
  %s50 = scalar_lea.smem %s0, 25
  %s51 = sld [smem:[%s50]]
  %s52 = scalar_lea.smem %s0, 26
  %s53 = sld [smem:[%s52]]
  %s54 = scalar_lea.smem %s0, 27
  %s55 = sld [smem:[%s54]]
  %s56 = scalar_lea.smem %s0, 28
  %s57 = sld [smem:[%s56]]
  %s58 = scalar_lea.smem %s0, 29
  %s59 = sld [smem:[%s58]]
  %s60 = scalar_lea.smem %s0, 30
  %s61 = sld [smem:[%s60]]
  %s62 = scalar_lea.smem %s0, 31
  %s63 = sld [smem:[%s62]]
  %s64 = scalar_lea.smem %s0, 32
  %s65 = sld [smem:[%s64]]
  %s66 = scalar_lea.smem %s0, 33
  %s67 = sld [smem:[%s66]]
  %s68 = scalar_lea.smem %s0, 34
  %s69 = sld [smem:[%s68]]
  %s70 = scalar_lea.smem %s0, 35
  %s71 = sld [smem:[%s70]]
  %s72 = sld [smem:[#allocation0]]
  $region234: #{forward.1} parent=0
    _
  %s74 = ssub.s32 1, %s72
  %s75 = scalar_select 0, %s74, %s72
  $region1: #{forward.1} parent=0
    #allocation7 [shape = 'u8[65536]{0}', space=vmem, size = 0x10000, scoped, tag = 'input window, operand 2, single buffered']
    #allocation8 [shape = 's32[1]{0}', space=sflag, size = 0x4, scoped, tag = 'scoped memory for forward.1']
    #allocation9 [shape = 'u8[65536]{0}', space=vmem, size = 0x10000, scoped, tag = 'input window, operand 4, single buffered']
    #allocation10 [shape = 's32[1]{0}', space=sflag, size = 0x4, scoped, tag = 'scoped memory for forward.1']
    #allocation11 [shape = 'u8[512]{0}', space=vmem, size = 0x400, scoped, tag = 'input window, operand 5, single buffered']
    #allocation12 [shape = 'u8[65536]{0}', space=vmem, size = 0x10000, scoped, tag = 'input window, operand 6, single buffered']
    #allocation13 [shape = 's32[1]{0}', space=sflag, size = 0x4, scoped, tag = 'scoped memory for forward.1']
    #allocation14 [shape = 'u8[512]{0}', space=vmem, size = 0x400, scoped, tag = 'input window, operand 7, single buffered']
    #allocation15 [shape = 'u8[65536]{0}', space=vmem, size = 0x10000, scoped, tag = 'input window, operand 8, single buffered']
    #allocation16 [shape = 's32[1]{0}', space=sflag, size = 0x4, scoped, tag = 'scoped memory for forward.1']
    #allocation17 [shape = 'u8[1024]{0}', space=vmem, size = 0x400, scoped, tag = 'input window, operand 10, single buffered']
    #allocation18 [shape = 'u8[1024]{0}', space=vmem, size = 0x400, scoped, tag = 'input window, operand 11, single buffered']
    #allocation19 [shape = 's32[1]{0}', space=sflag, size = 0x4, scoped, tag = 'scoped memory for forward.1']
    #allocation20 [shape = 'u8[2048]{0}', space=vmem, size = 0x800, scoped, tag = 'input window, operand 13, single buffered']
    #allocation21 [shape = 'u8[2048]{0}', space=vmem, size = 0x800, scoped, tag = 'input window, operand 14, single buffered']
    #allocation22 [shape = 's32[1]{0}', space=sflag, size = 0x4, scoped, tag = 'scoped memory for forward.1']
    #allocation23 [shape = 'u8[2048]{0}', space=vmem, size = 0x800, scoped, tag = 'input window, operand 15, single buffered']
    #allocation24 [shape = 'u8[4096]{0}', space=vmem, size = 0x1000, scoped, tag = 'input window, operand 17, single buffered']
    #allocation25 [shape = 's32[1]{0}', space=sflag, size = 0x4, scoped, tag = 'scoped memory for forward.1']
    #allocation26 [shape = 'u8[4096]{0}', space=vmem, size = 0x1000, scoped, tag = 'input window, operand 18, single buffered']
    #allocation27 [shape = 'u8[4096]{0}', space=vmem, size = 0x1000, scoped, tag = 'input window, operand 19, single buffered']
    #allocation28 [shape = 's32[1]{0}', space=sflag, size = 0x4, scoped, tag = 'scoped memory for forward.1']
    #allocation29 [shape = 'u8[2048]{0}', space=vmem, size = 0x800, scoped, tag = 'input window, operand 22, single buffered']
    #allocation30 [shape = 'u8[2048]{0}', space=vmem, size = 0x800, scoped, tag = 'input window, operand 23, single buffered']
    #allocation31 [shape = 's32[1]{0}', space=sflag, size = 0x4, scoped, tag = 'scoped memory for forward.1']
    #allocation32 [shape = 'u8[2048]{0}', space=vmem, size = 0x800, scoped, tag = 'input window, operand 24, single buffered']
    #allocation33 [shape = 'u8[1024]{0}', space=vmem, size = 0x400, scoped, tag = 'input window, operand 26, single buffered']
    #allocation34 [shape = 's32[1]{0}', space=sflag, size = 0x4, scoped, tag = 'scoped memory for forward.1']
    #allocation35 [shape = 'u8[1024]{0}', space=vmem, size = 0x400, scoped, tag = 'input window, operand 27, single buffered']
    #allocation36 [shape = 'u8[1024]{0}', space=vmem, size = 0x400, scoped, tag = 'input window, operand 28, single buffered']
    #allocation37 [shape = 's32[1]{0}', space=sflag, size = 0x4, scoped, tag = 'scoped memory for forward.1']
    #allocation38 [shape = 'u8[65536]{0}', space=vmem, size = 0x10000, scoped, tag = 'input window, operand 29, single buffered']
    #allocation39 [shape = 'u8[512]{0}', space=vmem, size = 0x400, scoped, tag = 'input window, operand 30, single buffered']
    #allocation40 [shape = 's32[1]{0}', space=sflag, size = 0x4, scoped, tag = 'scoped memory for forward.1']
    #allocation41 [shape = 'u8[512]{0}', space=vmem, size = 0x400, scoped, tag = 'input window, operand 31, single buffered']
    #allocation42 [shape = 'u8[512]{0}', space=vmem, size = 0x400, scoped, tag = 'input window, operand 32, single buffered']
    #allocation43 [shape = 's32[1]{0}', space=sflag, size = 0x4, scoped, tag = 'scoped memory for forward.1']
    #allocation44 [shape = 'u8[512]{0}', space=vmem, size = 0x400, scoped, tag = 'input window, operand 34, single buffered']
    #allocation46 [shape = 'u32[9]{0}', space=smem, size = 0x24, scoped, tag = 'DMA stride descriptor']
    #allocation48 [shape = 'u32[9]{0}', space=smem, size = 0x24, scoped, tag = 'DMA stride descriptor']
    #allocation50 [shape = 'u32[9]{0}', space=smem, size = 0x24, scoped, tag = 'DMA stride descriptor']
    #allocation52 [shape = 'u32[9]{0}', space=smem, size = 0x24, scoped, tag = 'DMA stride descriptor']
    %76 = vsyncpa [#allocation8], 0
    %77 = vsyncpa [#allocation10], 0
    %78 = vsyncpa [#allocation13], 0
    %79 = vsyncpa [#allocation16], 0
    %80 = vsyncpa [#allocation19], 0
    %81 = vsyncpa [#allocation22], 0
    %82 = vsyncpa [#allocation25], 0
    %83 = vsyncpa [#allocation28], 0
    %84 = vsyncpa [#allocation31], 0
    %85 = vsyncpa [#allocation34], 0
    %86 = vsyncpa [#allocation37], 0
    %87 = vsyncpa [#allocation40], 0
    %88 = vsyncpa [#allocation43], 0
    // Predicated region
    $region2: #{forward.1} parent=1 // pred_check
      _
    $region3: #{forward.1} parent=1 // pred_check_branch
      %90 = sbr.rel (0) target = $region5
    $region4: #{forward.1} parent=1 // pred_region
      _
    $region5: #{forward.1} parent=1 // pred_fallthru
      _
    // Predicated region
    $region6: #{forward.1} parent=1 // pred_check
      _
    $region7: #{forward.1} parent=1 // pred_check_branch
      %92 = sbr.rel (0) target = $region9
    $region8: #{forward.1} parent=1 // pred_region
      _
    $region9: #{forward.1} parent=1 // pred_fallthru
      _
    // Predicated region
    $region10: #{forward.1} parent=1 // pred_check
      _
    $region11: #{forward.1} parent=1 // pred_check_branch
      %94 = sbr.rel (0) target = $region13
    $region12: #{forward.1} parent=1 // pred_region
      %s96 = ssub.s32 2048, 2048
      %97 = vsyncadd [#allocation8], %s96
      %s98 = sshll.u32 [#allocation7], 4
      %s99 = int_to_ptr.vmem [resolvable:$true] %s98
      %104 = dma.hbm_to_vmem [thread:$0]  %s5, 2048, %s99, [#allocation8], 64, 64, 4
    $region13: #{forward.1} parent=1 // pred_fallthru
      _
    // Predicated region
    $region14: #{forward.1} parent=1 // pred_check
      _
    $region15: #{forward.1} parent=1 // pred_check_branch
      %106 = sbr.rel (0) target = $region17
    $region16: #{forward.1} parent=1 // pred_region
      _
    $region17: #{forward.1} parent=1 // pred_fallthru
      _
    // Predicated region
    $region18: #{forward.1} parent=1 // pred_check
      _
    $region19: #{forward.1} parent=1 // pred_check_branch
      %108 = sbr.rel (0) target = $region21
    $region20: #{forward.1} parent=1 // pred_region
      %s110 = ssub.s32 2048, 2048
      %111 = vsyncadd [#allocation10], %s110
      %s112 = sshll.u32 [#allocation9], 4
      %s113 = int_to_ptr.vmem [resolvable:$true] %s112
      %118 = dma.hbm_to_vmem [thread:$0]  %s9, 2048, %s113, [#allocation10], 64, 64, 4
    $region21: #{forward.1} parent=1 // pred_fallthru
      _
    // Predicated region
    $region22: #{forward.1} parent=1 // pred_check
      _
    $region23: #{forward.1} parent=1 // pred_check_branch
      %120 = sbr.rel (0) target = $region25
    $region24: #{forward.1} parent=1 // pred_region
      %s122 = ssub.s32 16, 16
      %123 = vsyncadd [#allocation10], %s122
      %s125 = sshll.u32 [#allocation11], 4
      %s126 = int_to_ptr.vmem [resolvable:$true] %s125
      %128 = dma.hbm_to_vmem [thread:$0]  %s11, 16, %s126, [#allocation10]
    $region25: #{forward.1} parent=1 // pred_fallthru
      _
    // Predicated region
    $region26: #{forward.1} parent=1 // pred_check
      _
    $region27: #{forward.1} parent=1 // pred_check_branch
      %130 = sbr.rel (0) target = $region29
    $region28: #{forward.1} parent=1 // pred_region
      %s132 = ssub.s32 2048, 2048
      %133 = vsyncadd [#allocation13], %s132
      %s134 = sshll.u32 [#allocation12], 4
      %s135 = int_to_ptr.vmem [resolvable:$true] %s134
      %140 = dma.hbm_to_vmem [thread:$0]  %s13, 2048, %s135, [#allocation13], 64, 64, 4
    $region29: #{forward.1} parent=1 // pred_fallthru
      _
    // Predicated region
    $region30: #{forward.1} parent=1 // pred_check
      _
    $region31: #{forward.1} parent=1 // pred_check_branch
      %142 = sbr.rel (0) target = $region33
    $region32: #{forward.1} parent=1 // pred_region
      %s144 = ssub.s32 16, 16
      %145 = vsyncadd [#allocation13], %s144
      %s147 = sshll.u32 [#allocation14], 4
      %s148 = int_to_ptr.vmem [resolvable:$true] %s147
      %150 = dma.hbm_to_vmem [thread:$0]  %s15, 16, %s148, [#allocation13]
    $region33: #{forward.1} parent=1 // pred_fallthru
      _
    // Predicated region
    $region34: #{forward.1} parent=1 // pred_check
      _
    $region35: #{forward.1} parent=1 // pred_check_branch
      %152 = sbr.rel (0) target = $region37
    $region36: #{forward.1} parent=1 // pred_region
      %s154 = ssub.s32 2048, 2048
      %155 = vsyncadd [#allocation16], %s154
      %s156 = sshll.u32 [#allocation15], 4
      %s157 = int_to_ptr.vmem [resolvable:$true] %s156
      %162 = dma.hbm_to_vmem [thread:$0]  %s17, 2048, %s157, [#allocation16], 128, 128, 8
    $region37: #{forward.1} parent=1 // pred_fallthru
      _
    // Predicated region
    $region38: #{forward.1} parent=1 // pred_check
      _
    $region39: #{forward.1} parent=1 // pred_check_branch
      %164 = sbr.rel (0) target = $region41
    $region40: #{forward.1} parent=1 // pred_region
      _
    $region41: #{forward.1} parent=1 // pred_fallthru
      _
    // Predicated region
    $region42: #{forward.1} parent=1 // pred_check
      _
    $region43: #{forward.1} parent=1 // pred_check_branch
      %166 = sbr.rel (0) target = $region45
    $region44: #{forward.1} parent=1 // pred_region
      %s168 = ssub.s32 32, 32
      %169 = vsyncadd [#allocation16], %s168
      %s171 = sshll.u32 [#allocation17], 4
      %s172 = int_to_ptr.vmem [resolvable:$true] %s171
      %174 = dma.hbm_to_vmem [thread:$0]  %s21, 32, %s172, [#allocation16]
    $region45: #{forward.1} parent=1 // pred_fallthru
      _
    // Predicated region
    $region46: #{forward.1} parent=1 // pred_check
      _
    $region47: #{forward.1} parent=1 // pred_check_branch
      %176 = sbr.rel (0) target = $region49
    $region48: #{forward.1} parent=1 // pred_region
      %s178 = ssub.s32 32, 32
      %179 = vsyncadd [#allocation19], %s178
      %s181 = sshll.u32 [#allocation18], 4
      %s182 = int_to_ptr.vmem [resolvable:$true] %s181
      %184 = dma.hbm_to_vmem [thread:$0]  %s23, 32, %s182, [#allocation19]
    $region49: #{forward.1} parent=1 // pred_fallthru
      _
    // Predicated region
    $region50: #{forward.1} parent=1 // pred_check
      _
    $region51: #{forward.1} parent=1 // pred_check_branch
      %186 = sbr.rel (0) target = $region53
    $region52: #{forward.1} parent=1 // pred_region
      %s188 = ssub.s32 64, 64
      %189 = vsyncadd [#allocation19], %s188
      %s191 = sshll.u32 [#allocation20], 4
      %s192 = int_to_ptr.vmem [resolvable:$true] %s191
      %194 = dma.hbm_to_vmem [thread:$0]  %s27, 64, %s192, [#allocation19]
    $region53: #{forward.1} parent=1 // pred_fallthru
      _
    // Predicated region
    $region54: #{forward.1} parent=1 // pred_check
      _
    $region55: #{forward.1} parent=1 // pred_check_branch
      %196 = sbr.rel (0) target = $region57
    $region56: #{forward.1} parent=1 // pred_region
      %s198 = ssub.s32 64, 64
      %199 = vsyncadd [#allocation22], %s198
      %s201 = sshll.u32 [#allocation21], 4
      %s202 = int_to_ptr.vmem [resolvable:$true] %s201
      %204 = dma.hbm_to_vmem [thread:$0]  %s29, 64, %s202, [#allocation22]
    $region57: #{forward.1} parent=1 // pred_fallthru
      _
    // Predicated region
    $region58: #{forward.1} parent=1 // pred_check
      _
    $region59: #{forward.1} parent=1 // pred_check_branch
      %206 = sbr.rel (0) target = $region61
    $region60: #{forward.1} parent=1 // pred_region
      %s208 = ssub.s32 64, 64
      %209 = vsyncadd [#allocation22], %s208
      %s211 = sshll.u32 [#allocation23], 4
      %s212 = int_to_ptr.vmem [resolvable:$true] %s211
      %214 = dma.hbm_to_vmem [thread:$0]  %s31, 64, %s212, [#allocation22]
    $region61: #{forward.1} parent=1 // pred_fallthru
      _
    // Predicated region
    $region62: #{forward.1} parent=1 // pred_check
      _
    $region63: #{forward.1} parent=1 // pred_check_branch
      %216 = sbr.rel (0) target = $region65
    $region64: #{forward.1} parent=1 // pred_region
      %s218 = ssub.s32 128, 128
      %219 = vsyncadd [#allocation25], %s218
      %s221 = sshll.u32 [#allocation24], 4
      %s222 = int_to_ptr.vmem [resolvable:$true] %s221
      %224 = dma.hbm_to_vmem [thread:$0]  %s35, 128, %s222, [#allocation25]
    $region65: #{forward.1} parent=1 // pred_fallthru
      _
    // Predicated region
    $region66: #{forward.1} parent=1 // pred_check
      _
    $region67: #{forward.1} parent=1 // pred_check_branch
      %226 = sbr.rel (0) target = $region69
    $region68: #{forward.1} parent=1 // pred_region
      %s228 = ssub.s32 128, 128
      %229 = vsyncadd [#allocation25], %s228
      %s231 = sshll.u32 [#allocation26], 4
      %s232 = int_to_ptr.vmem [resolvable:$true] %s231
      %234 = dma.hbm_to_vmem [thread:$0]  %s37, 128, %s232, [#allocation25]
    $region69: #{forward.1} parent=1 // pred_fallthru
      _
    // Predicated region
    $region70: #{forward.1} parent=1 // pred_check
      _
    $region71: #{forward.1} parent=1 // pred_check_branch
      %236 = sbr.rel (0) target = $region73
    $region72: #{forward.1} parent=1 // pred_region
      %s238 = ssub.s32 128, 128
      %239 = vsyncadd [#allocation28], %s238
      %s241 = sshll.u32 [#allocation27], 4
      %s242 = int_to_ptr.vmem [resolvable:$true] %s241
      %244 = dma.hbm_to_vmem [thread:$0]  %s39, 128, %s242, [#allocation28]
    $region73: #{forward.1} parent=1 // pred_fallthru
      _
    // Predicated region
    $region74: #{forward.1} parent=1 // pred_check
      _
    $region75: #{forward.1} parent=1 // pred_check_branch
      %246 = sbr.rel (0) target = $region77
    $region76: #{forward.1} parent=1 // pred_region
      _
    $region77: #{forward.1} parent=1 // pred_fallthru
      _
    // Predicated region
    $region78: #{forward.1} parent=1 // pred_check
      _
    $region79: #{forward.1} parent=1 // pred_check_branch
      %248 = sbr.rel (0) target = $region81
    $region80: #{forward.1} parent=1 // pred_region
      %s250 = ssub.s32 64, 64
      %251 = vsyncadd [#allocation28], %s250
      %s253 = sshll.u32 [#allocation29], 4
      %s254 = int_to_ptr.vmem [resolvable:$true] %s253
      %256 = dma.hbm_to_vmem [thread:$0]  %s45, 64, %s254, [#allocation28]
    $region81: #{forward.1} parent=1 // pred_fallthru
      _
    // Predicated region
    $region82: #{forward.1} parent=1 // pred_check
      _
    $region83: #{forward.1} parent=1 // pred_check_branch
      %258 = sbr.rel (0) target = $region85
    $region84: #{forward.1} parent=1 // pred_region
      %s260 = ssub.s32 64, 64
      %261 = vsyncadd [#allocation31], %s260
      %s263 = sshll.u32 [#allocation30], 4
      %s264 = int_to_ptr.vmem [resolvable:$true] %s263
      %266 = dma.hbm_to_vmem [thread:$0]  %s47, 64, %s264, [#allocation31]
    $region85: #{forward.1} parent=1 // pred_fallthru
      _
    // Predicated region
    $region86: #{forward.1} parent=1 // pred_check
      _
    $region87: #{forward.1} parent=1 // pred_check_branch
      %268 = sbr.rel (0) target = $region89
    $region88: #{forward.1} parent=1 // pred_region
      %s270 = ssub.s32 64, 64
      %271 = vsyncadd [#allocation31], %s270
      %s273 = sshll.u32 [#allocation32], 4
      %s274 = int_to_ptr.vmem [resolvable:$true] %s273
      %276 = dma.hbm_to_vmem [thread:$0]  %s49, 64, %s274, [#allocation31]
    $region89: #{forward.1} parent=1 // pred_fallthru
      _
    // Predicated region
    $region90: #{forward.1} parent=1 // pred_check
      _
    $region91: #{forward.1} parent=1 // pred_check_branch
      %278 = sbr.rel (0) target = $region93
    $region92: #{forward.1} parent=1 // pred_region
      %s280 = ssub.s32 32, 32
      %281 = vsyncadd [#allocation34], %s280
      %s283 = sshll.u32 [#allocation33], 4
      %s284 = int_to_ptr.vmem [resolvable:$true] %s283
      %286 = dma.hbm_to_vmem [thread:$0]  %s53, 32, %s284, [#allocation34]
    $region93: #{forward.1} parent=1 // pred_fallthru
      _
    // Predicated region
    $region94: #{forward.1} parent=1 // pred_check
      _
    $region95: #{forward.1} parent=1 // pred_check_branch
      %288 = sbr.rel (0) target = $region97
    $region96: #{forward.1} parent=1 // pred_region
      %s290 = ssub.s32 32, 32
      %291 = vsyncadd [#allocation34], %s290
      %s293 = sshll.u32 [#allocation35], 4
      %s294 = int_to_ptr.vmem [resolvable:$true] %s293
      %296 = dma.hbm_to_vmem [thread:$0]  %s55, 32, %s294, [#allocation34]
    $region97: #{forward.1} parent=1 // pred_fallthru
      _
    // Predicated region
    $region98: #{forward.1} parent=1 // pred_check
      _
    $region99: #{forward.1} parent=1 // pred_check_branch
      %298 = sbr.rel (0) target = $region101
    $region100: #{forward.1} parent=1 // pred_region
      %s300 = ssub.s32 32, 32
      %301 = vsyncadd [#allocation37], %s300
      %s303 = sshll.u32 [#allocation36], 4
      %s304 = int_to_ptr.vmem [resolvable:$true] %s303
      %306 = dma.hbm_to_vmem [thread:$0]  %s57, 32, %s304, [#allocation37]
    $region101: #{forward.1} parent=1 // pred_fallthru
      _
    // Predicated region
    $region102: #{forward.1} parent=1 // pred_check
      _
    $region103: #{forward.1} parent=1 // pred_check_branch
      %308 = sbr.rel (0) target = $region105
    $region104: #{forward.1} parent=1 // pred_region
      %s310 = ssub.s32 2048, 2048
      %311 = vsyncadd [#allocation37], %s310
      %s312 = sshll.u32 [#allocation38], 4
      %s313 = int_to_ptr.vmem [resolvable:$true] %s312
      %318 = dma.hbm_to_vmem [thread:$0]  %s59, 2048, %s313, [#allocation37], 64, 64, 4
    $region105: #{forward.1} parent=1 // pred_fallthru
      _
    // Predicated region
    $region106: #{forward.1} parent=1 // pred_check
      _
    $region107: #{forward.1} parent=1 // pred_check_branch
      %320 = sbr.rel (0) target = $region109
    $region108: #{forward.1} parent=1 // pred_region
      %s322 = ssub.s32 16, 16
      %323 = vsyncadd [#allocation40], %s322
      %s325 = sshll.u32 [#allocation39], 4
      %s326 = int_to_ptr.vmem [resolvable:$true] %s325
      %328 = dma.hbm_to_vmem [thread:$0]  %s61, 16, %s326, [#allocation40]
    $region109: #{forward.1} parent=1 // pred_fallthru
      _
    // Predicated region
    $region110: #{forward.1} parent=1 // pred_check
      _
    $region111: #{forward.1} parent=1 // pred_check_branch
      %330 = sbr.rel (0) target = $region113
    $region112: #{forward.1} parent=1 // pred_region
      %s332 = ssub.s32 16, 16
      %333 = vsyncadd [#allocation40], %s332
      %s335 = sshll.u32 [#allocation41], 4
      %s336 = int_to_ptr.vmem [resolvable:$true] %s335
      %338 = dma.hbm_to_vmem [thread:$0]  %s63, 16, %s336, [#allocation40]
    $region113: #{forward.1} parent=1 // pred_fallthru
      _
    // Predicated region
    $region114: #{forward.1} parent=1 // pred_check
      _
    $region115: #{forward.1} parent=1 // pred_check_branch
      %340 = sbr.rel (0) target = $region117
    $region116: #{forward.1} parent=1 // pred_region
      %s342 = ssub.s32 16, 16
      %343 = vsyncadd [#allocation43], %s342
      %s345 = sshll.u32 [#allocation42], 4
      %s346 = int_to_ptr.vmem [resolvable:$true] %s345
      %348 = dma.hbm_to_vmem [thread:$0]  %s65, 16, %s346, [#allocation43]
    $region117: #{forward.1} parent=1 // pred_fallthru
      _
    // Predicated region
    $region118: #{forward.1} parent=1 // pred_check
      _
    $region119: #{forward.1} parent=1 // pred_check_branch
      %350 = sbr.rel (0) target = $region121
    $region120: #{forward.1} parent=1 // pred_region
      _
    $region121: #{forward.1} parent=1 // pred_fallthru
      _
    // Predicated region
    $region122: #{forward.1} parent=1 // pred_check
      _
    $region123: #{forward.1} parent=1 // pred_check_branch
      %352 = sbr.rel (0) target = $region125
    $region124: #{forward.1} parent=1 // pred_region
      %s354 = ssub.s32 16, 16
      %355 = vsyncadd [#allocation43], %s354
      %s357 = sshll.u32 [#allocation44], 4
      %s358 = int_to_ptr.vmem [resolvable:$true] %s357
      %360 = dma.hbm_to_vmem [thread:$0]  %s69, 16, %s358, [#allocation43]
    $region125: #{forward.1} parent=1 // pred_fallthru
      _
    // Predicated region
    $region126: #{forward.1} parent=1 // pred_check
      _
    $region127: #{forward.1} parent=1 // pred_check_branch
      %362 = sbr.rel (0) target = $region129
    $region128: #{forward.1} parent=1 // pred_region
      %363 = dma.done [#allocation8], 2048
    $region129: #{forward.1} parent=1 // pred_fallthru
      _
    // Predicated region
    $region130: #{forward.1} parent=1 // pred_check
      _
    $region131: #{forward.1} parent=1 // pred_check_branch
      %365 = sbr.rel (0) target = $region133
    $region132: #{forward.1} parent=1 // pred_region
      %366 = dma.done [#allocation10], 2048
    $region133: #{forward.1} parent=1 // pred_fallthru
      _
    // Predicated region
    $region134: #{forward.1} parent=1 // pred_check
      _
    $region135: #{forward.1} parent=1 // pred_check_branch
      %368 = sbr.rel (0) target = $region137
    $region136: #{forward.1} parent=1 // pred_region
      %369 = dma.done [#allocation10], 16
    $region137: #{forward.1} parent=1 // pred_fallthru
      _
    // Predicated region
    $region138: #{forward.1} parent=1 // pred_check
      _
    $region139: #{forward.1} parent=1 // pred_check_branch
      %371 = sbr.rel (0) target = $region141
    $region140: #{forward.1} parent=1 // pred_region
      %372 = dma.done [#allocation13], 2048
    $region141: #{forward.1} parent=1 // pred_fallthru
      _
    // Predicated region
    $region142: #{forward.1} parent=1 // pred_check
      _
    $region143: #{forward.1} parent=1 // pred_check_branch
      %374 = sbr.rel (0) target = $region145
    $region144: #{forward.1} parent=1 // pred_region
      %375 = dma.done [#allocation13], 16
    $region145: #{forward.1} parent=1 // pred_fallthru
      _
    // Predicated region
    $region146: #{forward.1} parent=1 // pred_check
      _
    $region147: #{forward.1} parent=1 // pred_check_branch
      %377 = sbr.rel (0) target = $region149
    $region148: #{forward.1} parent=1 // pred_region
      %378 = dma.done [#allocation16], 2048
    $region149: #{forward.1} parent=1 // pred_fallthru
      _
    // Predicated region
    $region150: #{forward.1} parent=1 // pred_check
      _
    $region151: #{forward.1} parent=1 // pred_check_branch
      %380 = sbr.rel (0) target = $region153
    $region152: #{forward.1} parent=1 // pred_region
      %381 = dma.done [#allocation16], 32
    $region153: #{forward.1} parent=1 // pred_fallthru
      _
    // Predicated region
    $region154: #{forward.1} parent=1 // pred_check
      _
    $region155: #{forward.1} parent=1 // pred_check_branch
      %383 = sbr.rel (0) target = $region157
    $region156: #{forward.1} parent=1 // pred_region
      %384 = dma.done [#allocation19], 32
    $region157: #{forward.1} parent=1 // pred_fallthru
      _
    // Predicated region
    $region158: #{forward.1} parent=1 // pred_check
      _
    $region159: #{forward.1} parent=1 // pred_check_branch
      %386 = sbr.rel (0) target = $region161
    $region160: #{forward.1} parent=1 // pred_region
      %387 = dma.done [#allocation19], 64
    $region161: #{forward.1} parent=1 // pred_fallthru
      _
    // Predicated region
    $region162: #{forward.1} parent=1 // pred_check
      _
    $region163: #{forward.1} parent=1 // pred_check_branch
      %389 = sbr.rel (0) target = $region165
    $region164: #{forward.1} parent=1 // pred_region
      %390 = dma.done [#allocation22], 64
    $region165: #{forward.1} parent=1 // pred_fallthru
      _
    // Predicated region
    $region166: #{forward.1} parent=1 // pred_check
      _
    $region167: #{forward.1} parent=1 // pred_check_branch
      %392 = sbr.rel (0) target = $region169
    $region168: #{forward.1} parent=1 // pred_region
      %393 = dma.done [#allocation22], 64
    $region169: #{forward.1} parent=1 // pred_fallthru
      _
    // Predicated region
    $region170: #{forward.1} parent=1 // pred_check
      _
    $region171: #{forward.1} parent=1 // pred_check_branch
      %395 = sbr.rel (0) target = $region173
    $region172: #{forward.1} parent=1 // pred_region
      %396 = dma.done [#allocation25], 128
    $region173: #{forward.1} parent=1 // pred_fallthru
      _
    // Predicated region
    $region174: #{forward.1} parent=1 // pred_check
      _
    $region175: #{forward.1} parent=1 // pred_check_branch
      %398 = sbr.rel (0) target = $region177
    $region176: #{forward.1} parent=1 // pred_region
      %399 = dma.done [#allocation25], 128
    $region177: #{forward.1} parent=1 // pred_fallthru
      _
    // Predicated region
    $region178: #{forward.1} parent=1 // pred_check
      _
    $region179: #{forward.1} parent=1 // pred_check_branch
      %401 = sbr.rel (0) target = $region181
    $region180: #{forward.1} parent=1 // pred_region
      %402 = dma.done [#allocation28], 128
    $region181: #{forward.1} parent=1 // pred_fallthru
      _
    // Predicated region
    $region182: #{forward.1} parent=1 // pred_check
      _
    $region183: #{forward.1} parent=1 // pred_check_branch
      %404 = sbr.rel (0) target = $region185
    $region184: #{forward.1} parent=1 // pred_region
      %405 = dma.done [#allocation28], 64
    $region185: #{forward.1} parent=1 // pred_fallthru
      _
    // Predicated region
    $region186: #{forward.1} parent=1 // pred_check
      _
    $region187: #{forward.1} parent=1 // pred_check_branch
      %407 = sbr.rel (0) target = $region189
    $region188: #{forward.1} parent=1 // pred_region
      %408 = dma.done [#allocation31], 64
    $region189: #{forward.1} parent=1 // pred_fallthru
      _
    // Predicated region
    $region190: #{forward.1} parent=1 // pred_check
      _
    $region191: #{forward.1} parent=1 // pred_check_branch
      %410 = sbr.rel (0) target = $region193
    $region192: #{forward.1} parent=1 // pred_region
      %411 = dma.done [#allocation31], 64
    $region193: #{forward.1} parent=1 // pred_fallthru
      _
    // Predicated region
    $region194: #{forward.1} parent=1 // pred_check
      _
    $region195: #{forward.1} parent=1 // pred_check_branch
      %413 = sbr.rel (0) target = $region197
    $region196: #{forward.1} parent=1 // pred_region
      %414 = dma.done [#allocation34], 32
    $region197: #{forward.1} parent=1 // pred_fallthru
      _
    // Predicated region
    $region198: #{forward.1} parent=1 // pred_check
      _
    $region199: #{forward.1} parent=1 // pred_check_branch
      %416 = sbr.rel (0) target = $region201
    $region200: #{forward.1} parent=1 // pred_region
      %417 = dma.done [#allocation34], 32
    $region201: #{forward.1} parent=1 // pred_fallthru
      _
    // Predicated region
    $region202: #{forward.1} parent=1 // pred_check
      _
    $region203: #{forward.1} parent=1 // pred_check_branch
      %419 = sbr.rel (0) target = $region205
    $region204: #{forward.1} parent=1 // pred_region
      %420 = dma.done [#allocation37], 32
    $region205: #{forward.1} parent=1 // pred_fallthru
      _
    // Predicated region
    $region206: #{forward.1} parent=1 // pred_check
      _
    $region207: #{forward.1} parent=1 // pred_check_branch
      %422 = sbr.rel (0) target = $region209
    $region208: #{forward.1} parent=1 // pred_region
      %423 = dma.done [#allocation37], 2048
    $region209: #{forward.1} parent=1 // pred_fallthru
      _
    // Predicated region
    $region210: #{forward.1} parent=1 // pred_check
      _
    $region211: #{forward.1} parent=1 // pred_check_branch
      %425 = sbr.rel (0) target = $region213
    $region212: #{forward.1} parent=1 // pred_region
      %426 = dma.done [#allocation40], 16
    $region213: #{forward.1} parent=1 // pred_fallthru
      _
    // Predicated region
    $region214: #{forward.1} parent=1 // pred_check
      _
    $region215: #{forward.1} parent=1 // pred_check_branch
      %428 = sbr.rel (0) target = $region217
    $region216: #{forward.1} parent=1 // pred_region
      %429 = dma.done [#allocation40], 16
    $region217: #{forward.1} parent=1 // pred_fallthru
      _
    // Predicated region
    $region218: #{forward.1} parent=1 // pred_check
      _
    $region219: #{forward.1} parent=1 // pred_check_branch
      %431 = sbr.rel (0) target = $region221
    $region220: #{forward.1} parent=1 // pred_region
      %432 = dma.done [#allocation43], 16
    $region221: #{forward.1} parent=1 // pred_fallthru
      _
    // Predicated region
    $region222: #{forward.1} parent=1 // pred_check
      _
    $region223: #{forward.1} parent=1 // pred_check_branch
      %434 = sbr.rel (0) target = $region225
    $region224: #{forward.1} parent=1 // pred_region
      %435 = dma.done [#allocation43], 16
    $region225: #{forward.1} parent=1 // pred_fallthru
      _
    %s438 = sshll.u32 1, 14
    %s439 = sxor.u32 4294967295, %s438
    %s441 = sld [smem:[#allocation0]]
    %s442 = sadd.s32 2, %s441
    %s444 = sshll.u32 7, 26
    %s445 = sxor.u32 4294967295, %s444
    %s446 = sand.u32 0, %s445
    %s447 = sshll.u32 %s442, 26
    %s448 = sor.u32 %s446, %s447
    %s449 = sshll.u32 [#allocation2], 4
    %s450 = int_to_ptr.vmem [resolvable:$true] %s449
    %453 = sst [smem:[#allocation46]] 512
    %s454 = scalar_lea.smem [#allocation46], 1
    %455 = sst [smem:[%s454]] 512
    %s456 = scalar_lea.smem [#allocation46], 2
    %457 = sst [smem:[%s456]] 4
    %s458 = scalar_lea.smem [#allocation46], 3
    %459 = sst [smem:[%s458]] 64
    %s460 = scalar_lea.smem [#allocation46], 4
    %461 = sst [smem:[%s460]] 128
    %s462 = scalar_lea.smem [#allocation46], 5
    %463 = sst [smem:[%s462]] 2
    %s464 = scalar_lea.smem [#allocation46], 6
    %465 = sst [smem:[%s464]] 256
    %s466 = scalar_lea.smem [#allocation46], 7
    %467 = sst [smem:[%s466]] 64
    %s468 = scalar_lea.smem [#allocation46], 8
    %469 = sst [smem:[%s468]] 4
    %471 = dma.general %s25, 8192, %s450, [#allocation6], [#allocation45], [#allocation46], %s448, 0
    %s472 = scalar_lea.sflag [#allocation6], 1
    %s474 = sshll.u32 1, 14
    %s475 = sxor.u32 4294967295, %s474
    %s477 = sadd.s32 2, %s441
    %s479 = sshll.u32 7, 26
    %s480 = sxor.u32 4294967295, %s479
    %s481 = sand.u32 0, %s480
    %s482 = sshll.u32 %s477, 26
    %s483 = sor.u32 %s481, %s482
    %s484 = sshll.u32 [#allocation3], 4
    %s485 = int_to_ptr.vmem [resolvable:$true] %s484
    %488 = sst [smem:[#allocation48]] 1024
    %s489 = scalar_lea.smem [#allocation48], 1
    %490 = sst [smem:[%s489]] 1024
    %s491 = scalar_lea.smem [#allocation48], 2
    %492 = sst [smem:[%s491]] 8
    %s493 = scalar_lea.smem [#allocation48], 3
    %494 = sst [smem:[%s493]] 64
    %s495 = scalar_lea.smem [#allocation48], 4
    %496 = sst [smem:[%s495]] 128
    %s497 = scalar_lea.smem [#allocation48], 5
    %498 = sst [smem:[%s497]] 2
    %s499 = scalar_lea.smem [#allocation48], 6
    %500 = sst [smem:[%s499]] 512
    %s501 = scalar_lea.smem [#allocation48], 7
    %502 = sst [smem:[%s501]] 64
    %s503 = scalar_lea.smem [#allocation48], 8
    %504 = sst [smem:[%s503]] 4
    %506 = dma.general %s33, 32768, %s485, %s472, [#allocation47], [#allocation48], %s483, 0
    %s507 = scalar_lea.sflag [#allocation6], 2
    %s509 = sshll.u32 1, 14
    %s510 = sxor.u32 4294967295, %s509
    %s512 = sadd.s32 2, %s441
    %s514 = sshll.u32 7, 26
    %s515 = sxor.u32 4294967295, %s514
    %s516 = sand.u32 0, %s515
    %s517 = sshll.u32 %s512, 26
    %s518 = sor.u32 %s516, %s517
    %s519 = sshll.u32 [#allocation4], 4
    %s520 = int_to_ptr.vmem [resolvable:$true] %s519
    %523 = sst [smem:[#allocation50]] 512
    %s524 = scalar_lea.smem [#allocation50], 1
    %525 = sst [smem:[%s524]] 512
    %s526 = scalar_lea.smem [#allocation50], 2
    %527 = sst [smem:[%s526]] 4
    %s528 = scalar_lea.smem [#allocation50], 3
    %529 = sst [smem:[%s528]] 64
    %s530 = scalar_lea.smem [#allocation50], 4
    %531 = sst [smem:[%s530]] 128
    %s532 = scalar_lea.smem [#allocation50], 5
    %533 = sst [smem:[%s532]] 2
    %s534 = scalar_lea.smem [#allocation50], 6
    %535 = sst [smem:[%s534]] 256
    %s536 = scalar_lea.smem [#allocation50], 7
    %537 = sst [smem:[%s536]] 64
    %s538 = scalar_lea.smem [#allocation50], 8
    %539 = sst [smem:[%s538]] 4
    %541 = dma.general %s43, 32768, %s520, %s507, [#allocation49], [#allocation50], %s518, 0
    %s542 = scalar_lea.sflag [#allocation6], 3
    %s544 = sshll.u32 1, 14
    %s545 = sxor.u32 4294967295, %s544
    %s547 = sadd.s32 2, %s441
    %s549 = sshll.u32 7, 26
    %s550 = sxor.u32 4294967295, %s549
    %s551 = sand.u32 0, %s550
    %s552 = sshll.u32 %s547, 26
    %s553 = sor.u32 %s551, %s552
    %s554 = sshll.u32 [#allocation5], 4
    %s555 = int_to_ptr.vmem [resolvable:$true] %s554
    %558 = sst [smem:[#allocation52]] 256
    %s559 = scalar_lea.smem [#allocation52], 1
    %560 = sst [smem:[%s559]] 256
    %s561 = scalar_lea.smem [#allocation52], 2
    %562 = sst [smem:[%s561]] 2
    %s563 = scalar_lea.smem [#allocation52], 3
    %564 = sst [smem:[%s563]] 64
    %s565 = scalar_lea.smem [#allocation52], 4
    %566 = sst [smem:[%s565]] 128
    %s567 = scalar_lea.smem [#allocation52], 5
    %568 = sst [smem:[%s567]] 2
    %s569 = scalar_lea.smem [#allocation52], 6
    %570 = sst [smem:[%s569]] 128
    %s571 = scalar_lea.smem [#allocation52], 7
    %572 = sst [smem:[%s571]] 64
    %s573 = scalar_lea.smem [#allocation52], 8
    %574 = sst [smem:[%s573]] 4
    %576 = dma.general %s51, 8192, %s555, %s542, [#allocation51], [#allocation52], %s553, 0
    %v577 = vld [vmem:[%s1] sm:$0xf]
    %v578 = vld [vmem:[%s1 + $0x4] sm:$0xf]
    %v579 = vld [vmem:[%s1 + $0x8] sm:$0xf]
    %v580 = vld [vmem:[%s1 + $0xc] sm:$0xf]
    %v581 = vld [vmem:[%s1 + $0x10] sm:$0xf]
    %v582 = vld [vmem:[%s1 + $0x14] sm:$0xf]
    %v583 = vld [vmem:[%s1 + $0x18] sm:$0xf]
    %v584 = vld [vmem:[%s1 + $0x1c] sm:$0xf]
    %v585 = vld [vmem:[%s3] sm:$0xf]
    %v586 = vld [vmem:[%s3 + $0x4] sm:$0xf]
    %v587 = vld [vmem:[%s3 + $0x8] sm:$0xf]
    %v588 = vld [vmem:[%s3 + $0xc] sm:$0xf]
    %v589 = vld [vmem:[%s3 + $0x10] sm:$0xf]
    %v590 = vld [vmem:[%s3 + $0x14] sm:$0xf]
    %v591 = vld [vmem:[%s3 + $0x18] sm:$0xf]
    %v592 = vld [vmem:[%s3 + $0x1c] sm:$0xf]
    %v601 = vunpack.c.l.b16 %v577
    %v602 = vunpack.c.l.b16 %v578
    %v603 = vunpack.c.l.b16 %v579
    %v604 = vunpack.c.l.b16 %v580
    %v605 = vunpack.c.l.b16 %v581
    %v606 = vunpack.c.l.b16 %v582
    %v607 = vunpack.c.l.b16 %v583
    %v608 = vunpack.c.l.b16 %v584
    %v609 = vpack.c.b16 %v602, %v601
    %v610 = vpack.c.b16 %v604, %v603
    %v611 = vpack.c.b16 %v606, %v605
    %v612 = vpack.c.b16 %v608, %v607
    %v621 = vunpack.c.l.b16 %v585
    %v622 = vunpack.c.l.b16 %v586
    %v623 = vunpack.c.l.b16 %v587
    %v624 = vunpack.c.l.b16 %v588
    %v625 = vunpack.c.l.b16 %v589
    %v626 = vunpack.c.l.b16 %v590
    %v627 = vunpack.c.l.b16 %v591
    %v628 = vunpack.c.l.b16 %v592
    %v629 = vpack.c.b16 %v622, %v621
    %v630 = vpack.c.b16 %v624, %v623
    %v631 = vpack.c.b16 %v626, %v625
    %v632 = vpack.c.b16 %v628, %v627
    %vm637 = vcmask 523264
    %v639 = vsel %vm637, %v609, 0
    %v642 = vsel %vm637, %v610, 0
    %v645 = vsel %vm637, %v611, 0
    %v648 = vsel %vm637, %v612, 0
    %650 = vmatprep.subr.bf16.mxu0 0
    %651 = vmatpush1.bf16.msra.mxu0 %v629
    %652 = vmatprep.subr.bf16.mxu0 0
    %653 = vmatpush1.bf16.msra.mxu0 %v630
    %654 = vmatprep.subr.bf16.mxu0 0
    %655 = vmatpush1.bf16.msra.mxu0 %v631
    %656 = vmatprep.subr.bf16.mxu0 0
    %657 = vmatpush1.bf16.msra.mxu0 %v632
    %658 = vmatprep.subr.bf16.mxu0 0
    %659 = vmatpush1.bf16.msra.mxu0 0
    %660 = vmatprep.subr.bf16.mxu0 0
    %661 = vmatpush1.bf16.msra.mxu0 0
    %662 = vmatprep.subr.bf16.mxu0 0
    %663 = vmatpush1.bf16.msra.mxu0 0
    %664 = vmatprep.subr.bf16.mxu0 0
    %665 = vmatpush1.bf16.msra.mxu0 0
    %666 = vmatprep.subr.bf16.mxu0 0
    %667 = vmatpush1.bf16.msra.mxu0 0
    %668 = vmatprep.subr.bf16.mxu0 0
    %669 = vmatpush1.bf16.msra.mxu0 0
    %670 = vmatprep.subr.bf16.mxu0 0
    %671 = vmatpush1.bf16.msra.mxu0 0
    %672 = vmatprep.subr.bf16.mxu0 0
    %673 = vmatpush1.bf16.msra.mxu0 0
    %674 = vmatprep.subr.bf16.mxu0 0
    %675 = vmatpush1.bf16.msra.mxu0 0
    %676 = vmatprep.subr.bf16.mxu0 0
    %677 = vmatpush1.bf16.msra.mxu0 0
    %678 = vmatprep.subr.bf16.mxu0 0
    %679 = vmatpush1.bf16.msra.mxu0 0
    %680 = vmatprep.subr.bf16.mxu0 0
    %681 = vmatpush1.bf16.msra.mxu0 0
    %682 = vmatprep.mubr.bf16.mxu0 0
    %683 = vmatmul.mubr.bf16.gmra.mrb[0].mxu0 %v639
    %v684 = vpop.f32.mrb[0].mxu0
    %v685 = vadd.f32 0.0, %v684
    %v686 = vpop.f32.mrb[0].mxu0
    %v687 = vpop.f32.mrb[0].mxu0
    %v688 = vadd.f32 0.0, %v687
    %v689 = vpop.f32.mrb[0].mxu0
    %690 = vmatprep.mubr.bf16.mxu0 0
    %691 = vmatmul.mubr.bf16.gmra.mrb[0].mxu0 %v642
    %v692 = vpop.f32.mrb[0].mxu0
    %v693 = vadd.f32 0.0, %v692
    %v694 = vpop.f32.mrb[0].mxu0
    %v695 = vpop.f32.mrb[0].mxu0
    %v696 = vadd.f32 0.0, %v695
    %v697 = vpop.f32.mrb[0].mxu0
    %698 = vmatprep.mubr.bf16.mxu0 0
    %699 = vmatmul.mubr.bf16.gmra.mrb[0].mxu0 %v645
    %v700 = vpop.f32.mrb[0].mxu0
    %v701 = vadd.f32 0.0, %v700
    %v702 = vpop.f32.mrb[0].mxu0
    %v703 = vpop.f32.mrb[0].mxu0
    %v704 = vadd.f32 0.0, %v703
    %v705 = vpop.f32.mrb[0].mxu0
    %706 = vmatprep.mubr.bf16.mxu0 0
    %707 = vmatmul.mubr.bf16.gmra.mrb[0].mxu0 %v648
    %v708 = vpop.f32.mrb[0].mxu0
    %v709 = vadd.f32 0.0, %v708
    %v710 = vpop.f32.mrb[0].mxu0
    %v711 = vpop.f32.mrb[0].mxu0
    %v712 = vadd.f32 0.0, %v711
    %v713 = vpop.f32.mrb[0].mxu0
    %714 = vdwg.mxu0
    %v715 = vpack.c.bf16 %v688, %v685
    %v716 = vpack.c.bf16 %v696, %v693
    %v717 = vpack.c.bf16 %v704, %v701
    %v718 = vpack.c.bf16 %v712, %v709
    %v719 = vld [vmem:[#allocation7] sm:$0xf]
    %v720 = vld [vmem:[#allocation7 + $0x4] sm:$0xf]
    %v721 = vld [vmem:[#allocation7 + $0x8] sm:$0xf]
    %v722 = vld [vmem:[#allocation7 + $0xc] sm:$0xf]
    %v723 = vld [vmem:[#allocation7 + $0x10] sm:$0xf]
    %v724 = vld [vmem:[#allocation7 + $0x14] sm:$0xf]
    %v725 = vld [vmem:[#allocation7 + $0x18] sm:$0xf]
    %v726 = vld [vmem:[#allocation7 + $0x1c] sm:$0xf]
    %v727 = vld [vmem:[#allocation7 + $0x20] sm:$0xf]
    %v728 = vld [vmem:[#allocation7 + $0x24] sm:$0xf]
    %v729 = vld [vmem:[#allocation7 + $0x28] sm:$0xf]
    %v730 = vld [vmem:[#allocation7 + $0x2c] sm:$0xf]
    %v731 = vld [vmem:[#allocation7 + $0x30] sm:$0xf]
    %v732 = vld [vmem:[#allocation7 + $0x34] sm:$0xf]
    %v733 = vld [vmem:[#allocation7 + $0x38] sm:$0xf]
    %v734 = vld [vmem:[#allocation7 + $0x3c] sm:$0xf]
    %v735 = vld [vmem:[#allocation7 + $0x40] sm:$0xf]
    %v736 = vld [vmem:[#allocation7 + $0x44] sm:$0xf]
    %v737 = vld [vmem:[#allocation7 + $0x48] sm:$0xf]
    %v738 = vld [vmem:[#allocation7 + $0x4c] sm:$0xf]
    %v739 = vld [vmem:[#allocation7 + $0x50] sm:$0xf]
    %v740 = vld [vmem:[#allocation7 + $0x54] sm:$0xf]
    %v741 = vld [vmem:[#allocation7 + $0x58] sm:$0xf]
    %v742 = vld [vmem:[#allocation7 + $0x5c] sm:$0xf]
    %v743 = vld [vmem:[#allocation7 + $0x60] sm:$0xf]
    %v744 = vld [vmem:[#allocation7 + $0x64] sm:$0xf]
    %v745 = vld [vmem:[#allocation7 + $0x68] sm:$0xf]
    %v746 = vld [vmem:[#allocation7 + $0x6c] sm:$0xf]
    %v747 = vld [vmem:[#allocation7 + $0x70] sm:$0xf]
    %v748 = vld [vmem:[#allocation7 + $0x74] sm:$0xf]
    %v749 = vld [vmem:[#allocation7 + $0x78] sm:$0xf]
    %v750 = vld [vmem:[#allocation7 + $0x7c] sm:$0xf]
    %v751 = vld [vmem:[%s7] sm:$0x1]
    %v753 = vlaneseq
    %v754 = vshrl.u32 %v753, 7
    %v755 = vsub.s32 0, %v754
    %v756 = vrot.slane %v751, %v755
    %v790 = vunpack.c.l.b16 %v719
    %v791 = vunpack.c.l.b16 %v720
    %v792 = vunpack.c.l.b16 %v721
    %v793 = vunpack.c.l.b16 %v722
    %v794 = vunpack.c.l.b16 %v723
    %v795 = vunpack.c.l.b16 %v724
    %v796 = vunpack.c.l.b16 %v725
    %v797 = vunpack.c.l.b16 %v726
    %v798 = vunpack.c.l.b16 %v727
    %v799 = vunpack.c.l.b16 %v728
    %v800 = vunpack.c.l.b16 %v729
    %v801 = vunpack.c.l.b16 %v730
    %v802 = vunpack.c.l.b16 %v731
    %v803 = vunpack.c.l.b16 %v732
    %v804 = vunpack.c.l.b16 %v733
    %v805 = vunpack.c.l.b16 %v734
    %v806 = vunpack.c.l.b16 %v735
    %v807 = vunpack.c.l.b16 %v736
    %v808 = vunpack.c.l.b16 %v737
    %v809 = vunpack.c.l.b16 %v738
    %v810 = vunpack.c.l.b16 %v739
    %v811 = vunpack.c.l.b16 %v740
    %v812 = vunpack.c.l.b16 %v741
    %v813 = vunpack.c.l.b16 %v742
    %v814 = vunpack.c.l.b16 %v743
    %v815 = vunpack.c.l.b16 %v744
    %v816 = vunpack.c.l.b16 %v745
    %v817 = vunpack.c.l.b16 %v746
    %v818 = vunpack.c.l.b16 %v747
    %v819 = vunpack.c.l.b16 %v748
    %v820 = vunpack.c.l.b16 %v749
    %v821 = vunpack.c.l.b16 %v750
    %v822 = vpack.c.b16 %v791, %v790
    %v823 = vpack.c.b16 %v793, %v792
    %v824 = vpack.c.b16 %v795, %v794
    %v825 = vpack.c.b16 %v797, %v796
    %v826 = vpack.c.b16 %v799, %v798
    %v827 = vpack.c.b16 %v801, %v800
    %v828 = vpack.c.b16 %v803, %v802
    %v829 = vpack.c.b16 %v805, %v804
    %v830 = vpack.c.b16 %v807, %v806
    %v831 = vpack.c.b16 %v809, %v808
    %v832 = vpack.c.b16 %v811, %v810
    %v833 = vpack.c.b16 %v813, %v812
    %v834 = vpack.c.b16 %v815, %v814
    %v835 = vpack.c.b16 %v817, %v816
    %v836 = vpack.c.b16 %v819, %v818
    %v837 = vpack.c.b16 %v821, %v820
    %854 = vmatprep.subr.bf16.mxu0 0
    %855 = vmatpush1.bf16.msra.mxu0 %v822
    %856 = vmatprep.subr.bf16.mxu0 0
    %857 = vmatpush1.bf16.msra.mxu0 %v823
    %858 = vmatprep.subr.bf16.mxu0 0
    %859 = vmatpush1.bf16.msra.mxu0 %v824
    %860 = vmatprep.subr.bf16.mxu0 0
    %861 = vmatpush1.bf16.msra.mxu0 %v825
    %862 = vmatprep.subr.bf16.mxu0 0
    %863 = vmatpush1.bf16.msra.mxu0 %v826
    %864 = vmatprep.subr.bf16.mxu0 0
    %865 = vmatpush1.bf16.msra.mxu0 %v827
    %866 = vmatprep.subr.bf16.mxu0 0
    %867 = vmatpush1.bf16.msra.mxu0 %v828
    %868 = vmatprep.subr.bf16.mxu0 0
    %869 = vmatpush1.bf16.msra.mxu0 %v829
    %870 = vmatprep.subr.bf16.mxu0 0
    %871 = vmatpush1.bf16.msra.mxu0 %v830
    %872 = vmatprep.subr.bf16.mxu0 0
    %873 = vmatpush1.bf16.msra.mxu0 %v831
    %874 = vmatprep.subr.bf16.mxu0 0
    %875 = vmatpush1.bf16.msra.mxu0 %v832
    %876 = vmatprep.subr.bf16.mxu0 0
    %877 = vmatpush1.bf16.msra.mxu0 %v833
    %878 = vmatprep.subr.bf16.mxu0 0
    %879 = vmatpush1.bf16.msra.mxu0 %v834
    %880 = vmatprep.subr.bf16.mxu0 0
    %881 = vmatpush1.bf16.msra.mxu0 %v835
    %882 = vmatprep.subr.bf16.mxu0 0
    %883 = vmatpush1.bf16.msra.mxu0 %v836
    %884 = vmatprep.subr.bf16.mxu0 0
    %885 = vmatpush1.bf16.msra.mxu0 %v837
    %886 = vmatprep.mubr.bf16.mxu0 %v629
    %887 = vmatmul.mubr.bf16.gmra.mrb[0].mxu0 %v715
    %v888 = vpop.f32.mrb[0].mxu0
    %v889 = vadd.f32 %v756, %v888
    %v890 = vpop.f32.mrb[0].mxu0
    %v891 = vpop.f32.mrb[0].mxu0
    %v892 = vadd.f32 %v756, %v891
    %v893 = vpop.f32.mrb[0].mxu0
    %894 = vmatprep.mubr.bf16.mxu0 %v630
    %895 = vmatmul.mubr.bf16.gmra.mrb[0].mxu0 %v716
    %v896 = vpop.f32.mrb[0].mxu0
    %v897 = vadd.f32 %v756, %v896
    %v898 = vpop.f32.mrb[0].mxu0
    %v899 = vpop.f32.mrb[0].mxu0
    %v900 = vadd.f32 %v756, %v899
    %v901 = vpop.f32.mrb[0].mxu0
    %902 = vmatprep.mubr.bf16.mxu0 %v631
    %903 = vmatmul.mubr.bf16.gmra.mrb[0].mxu0 %v717
    %v904 = vpop.f32.mrb[0].mxu0
    %v905 = vadd.f32 %v756, %v904
    %v906 = vpop.f32.mrb[0].mxu0
    %v907 = vpop.f32.mrb[0].mxu0
    %v908 = vadd.f32 %v756, %v907
    %v909 = vpop.f32.mrb[0].mxu0
    %910 = vmatprep.mubr.bf16.mxu0 %v632
    %911 = vmatmul.mubr.bf16.gmra.mrb[0].mxu0 %v718
    %v912 = vpop.f32.mrb[0].mxu0
    %v913 = vadd.f32 %v756, %v912
    %v914 = vpop.f32.mrb[0].mxu0
    %v915 = vpop.f32.mrb[0].mxu0
    %v916 = vadd.f32 %v756, %v915
    %v917 = vpop.f32.mrb[0].mxu0
    %918 = vdwg.mxu0
    %vm919 = vcmp.gt.f32.partialorder %v889, 0.0
    %vm920 = vcmp.gt.f32.partialorder %v892, 0.0
    %vm921 = vcmp.gt.f32.partialorder %v897, 0.0
    %vm922 = vcmp.gt.f32.partialorder %v900, 0.0
    %vm923 = vcmp.gt.f32.partialorder %v905, 0.0
    %vm924 = vcmp.gt.f32.partialorder %v908, 0.0
    %vm925 = vcmp.gt.f32.partialorder %v913, 0.0
    %vm926 = vcmp.gt.f32.partialorder %v916, 0.0
    %v927 = vmin.f32 %v889, 0.0
    %v928 = vmin.f32 %v892, 0.0
    %v929 = vmin.f32 %v897, 0.0
    %v930 = vmin.f32 %v900, 0.0
    %v931 = vmin.f32 %v905, 0.0
    %v932 = vmin.f32 %v908, 0.0
    %v933 = vmin.f32 %v913, 0.0
    %v934 = vmin.f32 %v916, 0.0
    %v935 = vmul.f32 %v927, 1.442695
    %v936 = vpow.pop %v935
    %v937 = vmul.f32 %v928, 1.442695
    %v938 = vpow.pop %v937
    %v939 = vmul.f32 %v929, 1.442695
    %v940 = vpow.pop %v939
    %v941 = vmul.f32 %v930, 1.442695
    %v942 = vpow.pop %v941
    %v943 = vmul.f32 %v931, 1.442695
    %v944 = vpow.pop %v943
    %v945 = vmul.f32 %v932, 1.442695
    %v946 = vpow.pop %v945
    %v947 = vmul.f32 %v933, 1.442695
    %v948 = vpow.pop %v947
    %v949 = vmul.f32 %v934, 1.442695
    %v950 = vpow.pop %v949
    %v951 = vsub.f32 %v936, 1.0
    %v952 = vsub.f32 %v938, 1.0
    %v953 = vsub.f32 %v940, 1.0
    %v954 = vsub.f32 %v942, 1.0
    %v955 = vsub.f32 %v944, 1.0
    %v956 = vsub.f32 %v946, 1.0
    %v957 = vsub.f32 %v948, 1.0
    %v958 = vsub.f32 %v950, 1.0
    %v959 = vsel %vm919, %v889, %v951
    %v960 = vsel %vm920, %v892, %v952
    %v961 = vsel %vm921, %v897, %v953
    %v962 = vsel %vm922, %v900, %v954
    %v963 = vsel %vm923, %v905, %v955
    %v964 = vsel %vm924, %v908, %v956
    %v965 = vsel %vm925, %v913, %v957
    %v966 = vsel %vm926, %v916, %v958
    %v967 = vpack.c.bf16 %v960, %v959
    %v968 = vpack.c.bf16 %v962, %v961
    %v969 = vpack.c.bf16 %v964, %v963
    %v970 = vpack.c.bf16 %v966, %v965
    %v975 = vunpack.c.l.b16 %v967
    %v976 = vunpack.c.h.b16 %v967
    %v977 = vunpack.c.l.b16 %v968
    %v978 = vunpack.c.h.b16 %v968
    %v979 = vunpack.c.l.b16 %v969
    %v980 = vunpack.c.h.b16 %v969
    %v981 = vunpack.c.l.b16 %v970
    %v982 = vunpack.c.h.b16 %v970
    %v983 = vpack.c.b16 %v975, %v975
    %v984 = vpack.c.b16 %v976, %v976
    %v985 = vpack.c.b16 %v977, %v977
    %v986 = vpack.c.b16 %v978, %v978
    %v987 = vpack.c.b16 %v979, %v979
    %v988 = vpack.c.b16 %v980, %v980
    %v989 = vpack.c.b16 %v981, %v981
    %v990 = vpack.c.b16 %v982, %v982
    %v999 = vadd.bf16 %v585, %v983
    %v1000 = vadd.bf16 %v586, %v984
    %v1001 = vadd.bf16 %v587, %v985
    %v1002 = vadd.bf16 %v588, %v986
    %v1003 = vadd.bf16 %v589, %v987
    %v1004 = vadd.bf16 %v590, %v988
    %v1005 = vadd.bf16 %v591, %v989
    %v1006 = vadd.bf16 %v592, %v990
    %v1015 = vunpack.c.l.b16 %v999
    %v1016 = vunpack.c.l.b16 %v1000
    %v1017 = vunpack.c.l.b16 %v1001
    %v1018 = vunpack.c.l.b16 %v1002
    %v1019 = vunpack.c.l.b16 %v1003
    %v1020 = vunpack.c.l.b16 %v1004
    %v1021 = vunpack.c.l.b16 %v1005
    %v1022 = vunpack.c.l.b16 %v1006
    %v1023 = vpack.c.b16 %v1016, %v1015
    %v1024 = vpack.c.b16 %v1018, %v1017
    %v1025 = vpack.c.b16 %v1020, %v1019
    %v1026 = vpack.c.b16 %v1022, %v1021
    %1031 = vmatprep.subr.bf16.mxu0 0
    %1032 = vmatpush1.bf16.msra.mxu0 %v1023
    %1033 = vmatprep.subr.bf16.mxu0 0
    %1034 = vmatpush1.bf16.msra.mxu0 %v1024
    %1035 = vmatprep.subr.bf16.mxu0 0
    %1036 = vmatpush1.bf16.msra.mxu0 %v1025
    %1037 = vmatprep.subr.bf16.mxu0 0
    %1038 = vmatpush1.bf16.msra.mxu0 %v1026
    %1039 = vmatprep.subr.bf16.mxu0 0
    %1040 = vmatpush1.bf16.msra.mxu0 0
    %1041 = vmatprep.subr.bf16.mxu0 0
    %1042 = vmatpush1.bf16.msra.mxu0 0
    %1043 = vmatprep.subr.bf16.mxu0 0
    %1044 = vmatpush1.bf16.msra.mxu0 0
    %1045 = vmatprep.subr.bf16.mxu0 0
    %1046 = vmatpush1.bf16.msra.mxu0 0
    %1047 = vmatprep.subr.bf16.mxu0 0
    %1048 = vmatpush1.bf16.msra.mxu0 0
    %1049 = vmatprep.subr.bf16.mxu0 0
    %1050 = vmatpush1.bf16.msra.mxu0 0
    %1051 = vmatprep.subr.bf16.mxu0 0
    %1052 = vmatpush1.bf16.msra.mxu0 0
    %1053 = vmatprep.subr.bf16.mxu0 0
    %1054 = vmatpush1.bf16.msra.mxu0 0
    %1055 = vmatprep.subr.bf16.mxu0 0
    %1056 = vmatpush1.bf16.msra.mxu0 0
    %1057 = vmatprep.subr.bf16.mxu0 0
    %1058 = vmatpush1.bf16.msra.mxu0 0
    %1059 = vmatprep.subr.bf16.mxu0 0
    %1060 = vmatpush1.bf16.msra.mxu0 0
    %1061 = vmatprep.subr.bf16.mxu0 0
    %1062 = vmatpush1.bf16.msra.mxu0 0
    %1063 = vmatprep.mubr.bf16.mxu0 0
    %1064 = vmatmul.mubr.bf16.gmra.mrb[0].mxu0 %v639
    %v1065 = vpop.f32.mrb[0].mxu0
    %v1066 = vadd.f32 0.0, %v1065
    %v1067 = vpop.f32.mrb[0].mxu0
    %v1068 = vpop.f32.mrb[0].mxu0
    %v1069 = vadd.f32 0.0, %v1068
    %v1070 = vpop.f32.mrb[0].mxu0
    %1071 = vmatprep.mubr.bf16.mxu0 0
    %1072 = vmatmul.mubr.bf16.gmra.mrb[0].mxu0 %v642
    %v1073 = vpop.f32.mrb[0].mxu0
    %v1074 = vadd.f32 0.0, %v1073
    %v1075 = vpop.f32.mrb[0].mxu0
    %v1076 = vpop.f32.mrb[0].mxu0
    %v1077 = vadd.f32 0.0, %v1076
    %v1078 = vpop.f32.mrb[0].mxu0
    %1079 = vmatprep.mubr.bf16.mxu0 0
    %1080 = vmatmul.mubr.bf16.gmra.mrb[0].mxu0 %v645
    %v1081 = vpop.f32.mrb[0].mxu0
    %v1082 = vadd.f32 0.0, %v1081
    %v1083 = vpop.f32.mrb[0].mxu0
    %v1084 = vpop.f32.mrb[0].mxu0
    %v1085 = vadd.f32 0.0, %v1084
    %v1086 = vpop.f32.mrb[0].mxu0
    %1087 = vmatprep.mubr.bf16.mxu0 0
    %1088 = vmatmul.mubr.bf16.gmra.mrb[0].mxu0 %v648
    %v1089 = vpop.f32.mrb[0].mxu0
    %v1090 = vadd.f32 0.0, %v1089
    %v1091 = vpop.f32.mrb[0].mxu0
    %v1092 = vpop.f32.mrb[0].mxu0
    %v1093 = vadd.f32 0.0, %v1092
    %v1094 = vpop.f32.mrb[0].mxu0
    %1095 = vdwg.mxu0
    %v1096 = vpack.c.bf16 %v1069, %v1066
    %v1097 = vpack.c.bf16 %v1077, %v1074
    %v1098 = vpack.c.bf16 %v1085, %v1082
    %v1099 = vpack.c.bf16 %v1093, %v1090
    %v1100 = vld [vmem:[#allocation9] sm:$0xf]
    %v1101 = vld [vmem:[#allocation9 + $0x4] sm:$0xf]
    %v1102 = vld [vmem:[#allocation9 + $0x8] sm:$0xf]
    %v1103 = vld [vmem:[#allocation9 + $0xc] sm:$0xf]
    %v1104 = vld [vmem:[#allocation9 + $0x10] sm:$0xf]
    %v1105 = vld [vmem:[#allocation9 + $0x14] sm:$0xf]
    %v1106 = vld [vmem:[#allocation9 + $0x18] sm:$0xf]
    %v1107 = vld [vmem:[#allocation9 + $0x1c] sm:$0xf]
    %v1108 = vld [vmem:[#allocation9 + $0x20] sm:$0xf]
    %v1109 = vld [vmem:[#allocation9 + $0x24] sm:$0xf]
    %v1110 = vld [vmem:[#allocation9 + $0x28] sm:$0xf]
    %v1111 = vld [vmem:[#allocation9 + $0x2c] sm:$0xf]
    %v1112 = vld [vmem:[#allocation9 + $0x30] sm:$0xf]
    %v1113 = vld [vmem:[#allocation9 + $0x34] sm:$0xf]
    %v1114 = vld [vmem:[#allocation9 + $0x38] sm:$0xf]
    %v1115 = vld [vmem:[#allocation9 + $0x3c] sm:$0xf]
    %v1116 = vld [vmem:[#allocation9 + $0x40] sm:$0xf]
    %v1117 = vld [vmem:[#allocation9 + $0x44] sm:$0xf]
    %v1118 = vld [vmem:[#allocation9 + $0x48] sm:$0xf]
    %v1119 = vld [vmem:[#allocation9 + $0x4c] sm:$0xf]
    %v1120 = vld [vmem:[#allocation9 + $0x50] sm:$0xf]
    %v1121 = vld [vmem:[#allocation9 + $0x54] sm:$0xf]
    %v1122 = vld [vmem:[#allocation9 + $0x58] sm:$0xf]
    %v1123 = vld [vmem:[#allocation9 + $0x5c] sm:$0xf]
    %v1124 = vld [vmem:[#allocation9 + $0x60] sm:$0xf]
    %v1125 = vld [vmem:[#allocation9 + $0x64] sm:$0xf]
    %v1126 = vld [vmem:[#allocation9 + $0x68] sm:$0xf]
    %v1127 = vld [vmem:[#allocation9 + $0x6c] sm:$0xf]
    %v1128 = vld [vmem:[#allocation9 + $0x70] sm:$0xf]
    %v1129 = vld [vmem:[#allocation9 + $0x74] sm:$0xf]
    %v1130 = vld [vmem:[#allocation9 + $0x78] sm:$0xf]
    %v1131 = vld [vmem:[#allocation9 + $0x7c] sm:$0xf]
    %v1132 = vld [vmem:[#allocation11] sm:$0x1]
    %v1134 = vlaneseq
    %v1135 = vshrl.u32 %v1134, 7
    %v1136 = vsub.s32 0, %v1135
    %v1137 = vrot.slane %v1132, %v1136
    %v1171 = vunpack.c.l.b16 %v1100
    %v1172 = vunpack.c.l.b16 %v1101
    %v1173 = vunpack.c.l.b16 %v1102
    %v1174 = vunpack.c.l.b16 %v1103
    %v1175 = vunpack.c.l.b16 %v1104
    %v1176 = vunpack.c.l.b16 %v1105
    %v1177 = vunpack.c.l.b16 %v1106
    %v1178 = vunpack.c.l.b16 %v1107
    %v1179 = vunpack.c.l.b16 %v1108
    %v1180 = vunpack.c.l.b16 %v1109
    %v1181 = vunpack.c.l.b16 %v1110
    %v1182 = vunpack.c.l.b16 %v1111
    %v1183 = vunpack.c.l.b16 %v1112
    %v1184 = vunpack.c.l.b16 %v1113
    %v1185 = vunpack.c.l.b16 %v1114
    %v1186 = vunpack.c.l.b16 %v1115
    %v1187 = vunpack.c.l.b16 %v1116
    %v1188 = vunpack.c.l.b16 %v1117
    %v1189 = vunpack.c.l.b16 %v1118
    %v1190 = vunpack.c.l.b16 %v1119
    %v1191 = vunpack.c.l.b16 %v1120
    %v1192 = vunpack.c.l.b16 %v1121
    %v1193 = vunpack.c.l.b16 %v1122
    %v1194 = vunpack.c.l.b16 %v1123
    %v1195 = vunpack.c.l.b16 %v1124
    %v1196 = vunpack.c.l.b16 %v1125
    %v1197 = vunpack.c.l.b16 %v1126
    %v1198 = vunpack.c.l.b16 %v1127
    %v1199 = vunpack.c.l.b16 %v1128
    %v1200 = vunpack.c.l.b16 %v1129
    %v1201 = vunpack.c.l.b16 %v1130
    %v1202 = vunpack.c.l.b16 %v1131
    %v1203 = vpack.c.b16 %v1172, %v1171
    %v1204 = vpack.c.b16 %v1174, %v1173
    %v1205 = vpack.c.b16 %v1176, %v1175
    %v1206 = vpack.c.b16 %v1178, %v1177
    %v1207 = vpack.c.b16 %v1180, %v1179
    %v1208 = vpack.c.b16 %v1182, %v1181
    %v1209 = vpack.c.b16 %v1184, %v1183
    %v1210 = vpack.c.b16 %v1186, %v1185
    %v1211 = vpack.c.b16 %v1188, %v1187
    %v1212 = vpack.c.b16 %v1190, %v1189
    %v1213 = vpack.c.b16 %v1192, %v1191
    %v1214 = vpack.c.b16 %v1194, %v1193
    %v1215 = vpack.c.b16 %v1196, %v1195
    %v1216 = vpack.c.b16 %v1198, %v1197
    %v1217 = vpack.c.b16 %v1200, %v1199
    %v1218 = vpack.c.b16 %v1202, %v1201
    %1235 = vmatprep.subr.bf16.mxu0 0
    %1236 = vmatpush1.bf16.msra.mxu0 %v1203
    %1237 = vmatprep.subr.bf16.mxu0 0
    %1238 = vmatpush1.bf16.msra.mxu0 %v1204
    %1239 = vmatprep.subr.bf16.mxu0 0
    %1240 = vmatpush1.bf16.msra.mxu0 %v1205
    %1241 = vmatprep.subr.bf16.mxu0 0
    %1242 = vmatpush1.bf16.msra.mxu0 %v1206
    %1243 = vmatprep.subr.bf16.mxu0 0
    %1244 = vmatpush1.bf16.msra.mxu0 %v1207
    %1245 = vmatprep.subr.bf16.mxu0 0
    %1246 = vmatpush1.bf16.msra.mxu0 %v1208
    %1247 = vmatprep.subr.bf16.mxu0 0
    %1248 = vmatpush1.bf16.msra.mxu0 %v1209
    %1249 = vmatprep.subr.bf16.mxu0 0
    %1250 = vmatpush1.bf16.msra.mxu0 %v1210
    %1251 = vmatprep.subr.bf16.mxu0 0
    %1252 = vmatpush1.bf16.msra.mxu0 %v1211
    %1253 = vmatprep.subr.bf16.mxu0 0
    %1254 = vmatpush1.bf16.msra.mxu0 %v1212
    %1255 = vmatprep.subr.bf16.mxu0 0
    %1256 = vmatpush1.bf16.msra.mxu0 %v1213
    %1257 = vmatprep.subr.bf16.mxu0 0
    %1258 = vmatpush1.bf16.msra.mxu0 %v1214
    %1259 = vmatprep.subr.bf16.mxu0 0
    %1260 = vmatpush1.bf16.msra.mxu0 %v1215
    %1261 = vmatprep.subr.bf16.mxu0 0
    %1262 = vmatpush1.bf16.msra.mxu0 %v1216
    %1263 = vmatprep.subr.bf16.mxu0 0
    %1264 = vmatpush1.bf16.msra.mxu0 %v1217
    %1265 = vmatprep.subr.bf16.mxu0 0
    %1266 = vmatpush1.bf16.msra.mxu0 %v1218
    %1267 = vmatprep.mubr.bf16.mxu0 %v1023
    %1268 = vmatmul.mubr.bf16.gmra.mrb[0].mxu0 %v1096
    %v1269 = vpop.f32.mrb[0].mxu0
    %v1270 = vadd.f32 %v1137, %v1269
    %v1271 = vpop.f32.mrb[0].mxu0
    %v1272 = vpop.f32.mrb[0].mxu0
    %v1273 = vadd.f32 %v1137, %v1272
    %v1274 = vpop.f32.mrb[0].mxu0
    %1275 = vmatprep.mubr.bf16.mxu0 %v1024
    %1276 = vmatmul.mubr.bf16.gmra.mrb[0].mxu0 %v1097
    %v1277 = vpop.f32.mrb[0].mxu0
    %v1278 = vadd.f32 %v1137, %v1277
    %v1279 = vpop.f32.mrb[0].mxu0
    %v1280 = vpop.f32.mrb[0].mxu0
    %v1281 = vadd.f32 %v1137, %v1280
    %v1282 = vpop.f32.mrb[0].mxu0
    %1283 = vmatprep.mubr.bf16.mxu0 %v1025
    %1284 = vmatmul.mubr.bf16.gmra.mrb[0].mxu0 %v1098
    %v1285 = vpop.f32.mrb[0].mxu0
    %v1286 = vadd.f32 %v1137, %v1285
    %v1287 = vpop.f32.mrb[0].mxu0
    %v1288 = vpop.f32.mrb[0].mxu0
    %v1289 = vadd.f32 %v1137, %v1288
    %v1290 = vpop.f32.mrb[0].mxu0
    %1291 = vmatprep.mubr.bf16.mxu0 %v1026
    %1292 = vmatmul.mubr.bf16.gmra.mrb[0].mxu0 %v1099
    %v1293 = vpop.f32.mrb[0].mxu0
    %v1294 = vadd.f32 %v1137, %v1293
    %v1295 = vpop.f32.mrb[0].mxu0
    %v1296 = vpop.f32.mrb[0].mxu0
    %v1297 = vadd.f32 %v1137, %v1296
    %v1298 = vpop.f32.mrb[0].mxu0
    %1299 = vdwg.mxu0
    %vm1300 = vcmp.gt.f32.partialorder %v1270, 0.0
    %vm1301 = vcmp.gt.f32.partialorder %v1273, 0.0
    %vm1302 = vcmp.gt.f32.partialorder %v1278, 0.0
    %vm1303 = vcmp.gt.f32.partialorder %v1281, 0.0
    %vm1304 = vcmp.gt.f32.partialorder %v1286, 0.0
    %vm1305 = vcmp.gt.f32.partialorder %v1289, 0.0
    %vm1306 = vcmp.gt.f32.partialorder %v1294, 0.0
    %vm1307 = vcmp.gt.f32.partialorder %v1297, 0.0
    %v1308 = vmin.f32 %v1270, 0.0
    %v1309 = vmin.f32 %v1273, 0.0
    %v1310 = vmin.f32 %v1278, 0.0
    %v1311 = vmin.f32 %v1281, 0.0
    %v1312 = vmin.f32 %v1286, 0.0
    %v1313 = vmin.f32 %v1289, 0.0
    %v1314 = vmin.f32 %v1294, 0.0
    %v1315 = vmin.f32 %v1297, 0.0
    %v1316 = vmul.f32 %v1308, 1.442695
    %v1317 = vpow.pop %v1316
    %v1318 = vmul.f32 %v1309, 1.442695
    %v1319 = vpow.pop %v1318
    %v1320 = vmul.f32 %v1310, 1.442695
    %v1321 = vpow.pop %v1320
    %v1322 = vmul.f32 %v1311, 1.442695
    %v1323 = vpow.pop %v1322
    %v1324 = vmul.f32 %v1312, 1.442695
    %v1325 = vpow.pop %v1324
    %v1326 = vmul.f32 %v1313, 1.442695
    %v1327 = vpow.pop %v1326
    %v1328 = vmul.f32 %v1314, 1.442695
    %v1329 = vpow.pop %v1328
    %v1330 = vmul.f32 %v1315, 1.442695
    %v1331 = vpow.pop %v1330
    %v1332 = vsub.f32 %v1317, 1.0
    %v1333 = vsub.f32 %v1319, 1.0
    %v1334 = vsub.f32 %v1321, 1.0
    %v1335 = vsub.f32 %v1323, 1.0
    %v1336 = vsub.f32 %v1325, 1.0
    %v1337 = vsub.f32 %v1327, 1.0
    %v1338 = vsub.f32 %v1329, 1.0
    %v1339 = vsub.f32 %v1331, 1.0
    %v1340 = vsel %vm1300, %v1270, %v1332
    %v1341 = vsel %vm1301, %v1273, %v1333
    %v1342 = vsel %vm1302, %v1278, %v1334
    %v1343 = vsel %vm1303, %v1281, %v1335
    %v1344 = vsel %vm1304, %v1286, %v1336
    %v1345 = vsel %vm1305, %v1289, %v1337
    %v1346 = vsel %vm1306, %v1294, %v1338
    %v1347 = vsel %vm1307, %v1297, %v1339
    %v1348 = vpack.c.bf16 %v1341, %v1340
    %v1349 = vpack.c.bf16 %v1343, %v1342
    %v1350 = vpack.c.bf16 %v1345, %v1344
    %v1351 = vpack.c.bf16 %v1347, %v1346
    %v1356 = vunpack.c.l.b16 %v1348
    %v1357 = vunpack.c.h.b16 %v1348
    %v1358 = vunpack.c.l.b16 %v1349
    %v1359 = vunpack.c.h.b16 %v1349
    %v1360 = vunpack.c.l.b16 %v1350
    %v1361 = vunpack.c.h.b16 %v1350
    %v1362 = vunpack.c.l.b16 %v1351
    %v1363 = vunpack.c.h.b16 %v1351
    %v1364 = vpack.c.b16 %v1356, %v1356
    %v1365 = vpack.c.b16 %v1357, %v1357
    %v1366 = vpack.c.b16 %v1358, %v1358
    %v1367 = vpack.c.b16 %v1359, %v1359
    %v1368 = vpack.c.b16 %v1360, %v1360
    %v1369 = vpack.c.b16 %v1361, %v1361
    %v1370 = vpack.c.b16 %v1362, %v1362
    %v1371 = vpack.c.b16 %v1363, %v1363
    %v1380 = vadd.bf16 %v999, %v1364
    %v1381 = vadd.bf16 %v1000, %v1365
    %v1382 = vadd.bf16 %v1001, %v1366
    %v1383 = vadd.bf16 %v1002, %v1367
    %v1384 = vadd.bf16 %v1003, %v1368
    %v1385 = vadd.bf16 %v1004, %v1369
    %v1386 = vadd.bf16 %v1005, %v1370
    %v1387 = vadd.bf16 %v1006, %v1371
    %v1396 = vunpack.c.l.b16 %v1380
    %v1397 = vunpack.c.l.b16 %v1381
    %v1398 = vunpack.c.l.b16 %v1382
    %v1399 = vunpack.c.l.b16 %v1383
    %v1400 = vunpack.c.l.b16 %v1384
    %v1401 = vunpack.c.l.b16 %v1385
    %v1402 = vunpack.c.l.b16 %v1386
    %v1403 = vunpack.c.l.b16 %v1387
    %v1404 = vpack.c.b16 %v1397, %v1396
    %v1405 = vpack.c.b16 %v1399, %v1398
    %v1406 = vpack.c.b16 %v1401, %v1400
    %v1407 = vpack.c.b16 %v1403, %v1402
    %1412 = vmatprep.subr.bf16.mxu0 0
    %1413 = vmatpush1.bf16.msra.mxu0 %v1404
    %1414 = vmatprep.subr.bf16.mxu0 0
    %1415 = vmatpush1.bf16.msra.mxu0 %v1405
    %1416 = vmatprep.subr.bf16.mxu0 0
    %1417 = vmatpush1.bf16.msra.mxu0 %v1406
    %1418 = vmatprep.subr.bf16.mxu0 0
    %1419 = vmatpush1.bf16.msra.mxu0 %v1407
    %1420 = vmatprep.subr.bf16.mxu0 0
    %1421 = vmatpush1.bf16.msra.mxu0 0
    %1422 = vmatprep.subr.bf16.mxu0 0
    %1423 = vmatpush1.bf16.msra.mxu0 0
    %1424 = vmatprep.subr.bf16.mxu0 0
    %1425 = vmatpush1.bf16.msra.mxu0 0
    %1426 = vmatprep.subr.bf16.mxu0 0
    %1427 = vmatpush1.bf16.msra.mxu0 0
    %1428 = vmatprep.subr.bf16.mxu0 0
    %1429 = vmatpush1.bf16.msra.mxu0 0
    %1430 = vmatprep.subr.bf16.mxu0 0
    %1431 = vmatpush1.bf16.msra.mxu0 0
    %1432 = vmatprep.subr.bf16.mxu0 0
    %1433 = vmatpush1.bf16.msra.mxu0 0
    %1434 = vmatprep.subr.bf16.mxu0 0
    %1435 = vmatpush1.bf16.msra.mxu0 0
    %1436 = vmatprep.subr.bf16.mxu0 0
    %1437 = vmatpush1.bf16.msra.mxu0 0
    %1438 = vmatprep.subr.bf16.mxu0 0
    %1439 = vmatpush1.bf16.msra.mxu0 0
    %1440 = vmatprep.subr.bf16.mxu0 0
    %1441 = vmatpush1.bf16.msra.mxu0 0
    %1442 = vmatprep.subr.bf16.mxu0 0
    %1443 = vmatpush1.bf16.msra.mxu0 0
    %1444 = vmatprep.mubr.bf16.mxu0 0
    %1445 = vmatmul.mubr.bf16.gmra.mrb[0].mxu0 %v639
    %v1446 = vpop.f32.mrb[0].mxu0
    %v1447 = vadd.f32 0.0, %v1446
    %v1448 = vpop.f32.mrb[0].mxu0
    %v1449 = vpop.f32.mrb[0].mxu0
    %v1450 = vadd.f32 0.0, %v1449
    %v1451 = vpop.f32.mrb[0].mxu0
    %1452 = vmatprep.mubr.bf16.mxu0 0
    %1453 = vmatmul.mubr.bf16.gmra.mrb[0].mxu0 %v642
    %v1454 = vpop.f32.mrb[0].mxu0
    %v1455 = vadd.f32 0.0, %v1454
    %v1456 = vpop.f32.mrb[0].mxu0
    %v1457 = vpop.f32.mrb[0].mxu0
    %v1458 = vadd.f32 0.0, %v1457
    %v1459 = vpop.f32.mrb[0].mxu0
    %1460 = vmatprep.mubr.bf16.mxu0 0
    %1461 = vmatmul.mubr.bf16.gmra.mrb[0].mxu0 %v645
    %v1462 = vpop.f32.mrb[0].mxu0
    %v1463 = vadd.f32 0.0, %v1462
    %v1464 = vpop.f32.mrb[0].mxu0
    %v1465 = vpop.f32.mrb[0].mxu0
    %v1466 = vadd.f32 0.0, %v1465
    %v1467 = vpop.f32.mrb[0].mxu0
    %1468 = vmatprep.mubr.bf16.mxu0 0
    %1469 = vmatmul.mubr.bf16.gmra.mrb[0].mxu0 %v648
    %v1470 = vpop.f32.mrb[0].mxu0
    %v1471 = vadd.f32 0.0, %v1470
    %v1472 = vpop.f32.mrb[0].mxu0
    %v1473 = vpop.f32.mrb[0].mxu0
    %v1474 = vadd.f32 0.0, %v1473
    %v1475 = vpop.f32.mrb[0].mxu0
    %1476 = vdwg.mxu0
    %v1477 = vpack.c.bf16 %v1450, %v1447
    %v1478 = vpack.c.bf16 %v1458, %v1455
    %v1479 = vpack.c.bf16 %v1466, %v1463
    %v1480 = vpack.c.bf16 %v1474, %v1471
    %v1481 = vld [vmem:[#allocation12] sm:$0xf]
    %v1482 = vld [vmem:[#allocation12 + $0x4] sm:$0xf]
    %v1483 = vld [vmem:[#allocation12 + $0x8] sm:$0xf]
    %v1484 = vld [vmem:[#allocation12 + $0xc] sm:$0xf]
    %v1485 = vld [vmem:[#allocation12 + $0x10] sm:$0xf]
    %v1486 = vld [vmem:[#allocation12 + $0x14] sm:$0xf]
    %v1487 = vld [vmem:[#allocation12 + $0x18] sm:$0xf]
    %v1488 = vld [vmem:[#allocation12 + $0x1c] sm:$0xf]
    %v1489 = vld [vmem:[#allocation12 + $0x20] sm:$0xf]
    %v1490 = vld [vmem:[#allocation12 + $0x24] sm:$0xf]
    %v1491 = vld [vmem:[#allocation12 + $0x28] sm:$0xf]
    %v1492 = vld [vmem:[#allocation12 + $0x2c] sm:$0xf]
    %v1493 = vld [vmem:[#allocation12 + $0x30] sm:$0xf]
    %v1494 = vld [vmem:[#allocation12 + $0x34] sm:$0xf]
    %v1495 = vld [vmem:[#allocation12 + $0x38] sm:$0xf]
    %v1496 = vld [vmem:[#allocation12 + $0x3c] sm:$0xf]
    %v1497 = vld [vmem:[#allocation12 + $0x40] sm:$0xf]
    %v1498 = vld [vmem:[#allocation12 + $0x44] sm:$0xf]
    %v1499 = vld [vmem:[#allocation12 + $0x48] sm:$0xf]
    %v1500 = vld [vmem:[#allocation12 + $0x4c] sm:$0xf]
    %v1501 = vld [vmem:[#allocation12 + $0x50] sm:$0xf]
    %v1502 = vld [vmem:[#allocation12 + $0x54] sm:$0xf]
    %v1503 = vld [vmem:[#allocation12 + $0x58] sm:$0xf]
    %v1504 = vld [vmem:[#allocation12 + $0x5c] sm:$0xf]
    %v1505 = vld [vmem:[#allocation12 + $0x60] sm:$0xf]
    %v1506 = vld [vmem:[#allocation12 + $0x64] sm:$0xf]
    %v1507 = vld [vmem:[#allocation12 + $0x68] sm:$0xf]
    %v1508 = vld [vmem:[#allocation12 + $0x6c] sm:$0xf]
    %v1509 = vld [vmem:[#allocation12 + $0x70] sm:$0xf]
    %v1510 = vld [vmem:[#allocation12 + $0x74] sm:$0xf]
    %v1511 = vld [vmem:[#allocation12 + $0x78] sm:$0xf]
    %v1512 = vld [vmem:[#allocation12 + $0x7c] sm:$0xf]
    %v1513 = vld [vmem:[#allocation14] sm:$0x1]
    %v1515 = vlaneseq
    %v1516 = vshrl.u32 %v1515, 7
    %v1517 = vsub.s32 0, %v1516
    %v1518 = vrot.slane %v1513, %v1517
    %v1552 = vunpack.c.l.b16 %v1481
    %v1553 = vunpack.c.l.b16 %v1482
    %v1554 = vunpack.c.l.b16 %v1483
    %v1555 = vunpack.c.l.b16 %v1484
    %v1556 = vunpack.c.l.b16 %v1485
    %v1557 = vunpack.c.l.b16 %v1486
    %v1558 = vunpack.c.l.b16 %v1487
    %v1559 = vunpack.c.l.b16 %v1488
    %v1560 = vunpack.c.l.b16 %v1489
    %v1561 = vunpack.c.l.b16 %v1490
    %v1562 = vunpack.c.l.b16 %v1491
    %v1563 = vunpack.c.l.b16 %v1492
    %v1564 = vunpack.c.l.b16 %v1493
    %v1565 = vunpack.c.l.b16 %v1494
    %v1566 = vunpack.c.l.b16 %v1495
    %v1567 = vunpack.c.l.b16 %v1496
    %v1568 = vunpack.c.l.b16 %v1497
    %v1569 = vunpack.c.l.b16 %v1498
    %v1570 = vunpack.c.l.b16 %v1499
    %v1571 = vunpack.c.l.b16 %v1500
    %v1572 = vunpack.c.l.b16 %v1501
    %v1573 = vunpack.c.l.b16 %v1502
    %v1574 = vunpack.c.l.b16 %v1503
    %v1575 = vunpack.c.l.b16 %v1504
    %v1576 = vunpack.c.l.b16 %v1505
    %v1577 = vunpack.c.l.b16 %v1506
    %v1578 = vunpack.c.l.b16 %v1507
    %v1579 = vunpack.c.l.b16 %v1508
    %v1580 = vunpack.c.l.b16 %v1509
    %v1581 = vunpack.c.l.b16 %v1510
    %v1582 = vunpack.c.l.b16 %v1511
    %v1583 = vunpack.c.l.b16 %v1512
    %v1584 = vpack.c.b16 %v1553, %v1552
    %v1585 = vpack.c.b16 %v1555, %v1554
    %v1586 = vpack.c.b16 %v1557, %v1556
    %v1587 = vpack.c.b16 %v1559, %v1558
    %v1588 = vpack.c.b16 %v1561, %v1560
    %v1589 = vpack.c.b16 %v1563, %v1562
    %v1590 = vpack.c.b16 %v1565, %v1564
    %v1591 = vpack.c.b16 %v1567, %v1566
    %v1592 = vpack.c.b16 %v1569, %v1568
    %v1593 = vpack.c.b16 %v1571, %v1570
    %v1594 = vpack.c.b16 %v1573, %v1572
    %v1595 = vpack.c.b16 %v1575, %v1574
    %v1596 = vpack.c.b16 %v1577, %v1576
    %v1597 = vpack.c.b16 %v1579, %v1578
    %v1598 = vpack.c.b16 %v1581, %v1580
    %v1599 = vpack.c.b16 %v1583, %v1582
    %1616 = vmatprep.subr.bf16.mxu0 0
    %1617 = vmatpush1.bf16.msra.mxu0 %v1584
    %1618 = vmatprep.subr.bf16.mxu0 0
    %1619 = vmatpush1.bf16.msra.mxu0 %v1585
    %1620 = vmatprep.subr.bf16.mxu0 0
    %1621 = vmatpush1.bf16.msra.mxu0 %v1586
    %1622 = vmatprep.subr.bf16.mxu0 0
    %1623 = vmatpush1.bf16.msra.mxu0 %v1587
    %1624 = vmatprep.subr.bf16.mxu0 0
    %1625 = vmatpush1.bf16.msra.mxu0 %v1588
    %1626 = vmatprep.subr.bf16.mxu0 0
    %1627 = vmatpush1.bf16.msra.mxu0 %v1589
    %1628 = vmatprep.subr.bf16.mxu0 0
    %1629 = vmatpush1.bf16.msra.mxu0 %v1590
    %1630 = vmatprep.subr.bf16.mxu0 0
    %1631 = vmatpush1.bf16.msra.mxu0 %v1591
    %1632 = vmatprep.subr.bf16.mxu0 0
    %1633 = vmatpush1.bf16.msra.mxu0 %v1592
    %1634 = vmatprep.subr.bf16.mxu0 0
    %1635 = vmatpush1.bf16.msra.mxu0 %v1593
    %1636 = vmatprep.subr.bf16.mxu0 0
    %1637 = vmatpush1.bf16.msra.mxu0 %v1594
    %1638 = vmatprep.subr.bf16.mxu0 0
    %1639 = vmatpush1.bf16.msra.mxu0 %v1595
    %1640 = vmatprep.subr.bf16.mxu0 0
    %1641 = vmatpush1.bf16.msra.mxu0 %v1596
    %1642 = vmatprep.subr.bf16.mxu0 0
    %1643 = vmatpush1.bf16.msra.mxu0 %v1597
    %1644 = vmatprep.subr.bf16.mxu0 0
    %1645 = vmatpush1.bf16.msra.mxu0 %v1598
    %1646 = vmatprep.subr.bf16.mxu0 0
    %1647 = vmatpush1.bf16.msra.mxu0 %v1599
    %1648 = vmatprep.mubr.bf16.mxu0 %v1404
    %1649 = vmatmul.mubr.bf16.gmra.mrb[0].mxu0 %v1477
    %v1650 = vpop.f32.mrb[0].mxu0
    %v1651 = vadd.f32 %v1518, %v1650
    %v1652 = vpop.f32.mrb[0].mxu0
    %v1653 = vpop.f32.mrb[0].mxu0
    %v1654 = vadd.f32 %v1518, %v1653
    %v1655 = vpop.f32.mrb[0].mxu0
    %1656 = vmatprep.mubr.bf16.mxu0 %v1405
    %1657 = vmatmul.mubr.bf16.gmra.mrb[0].mxu0 %v1478
    %v1658 = vpop.f32.mrb[0].mxu0
    %v1659 = vadd.f32 %v1518, %v1658
    %v1660 = vpop.f32.mrb[0].mxu0
    %v1661 = vpop.f32.mrb[0].mxu0
    %v1662 = vadd.f32 %v1518, %v1661
    %v1663 = vpop.f32.mrb[0].mxu0
    %1664 = vmatprep.mubr.bf16.mxu0 %v1406
    %1665 = vmatmul.mubr.bf16.gmra.mrb[0].mxu0 %v1479
    %v1666 = vpop.f32.mrb[0].mxu0
    %v1667 = vadd.f32 %v1518, %v1666
    %v1668 = vpop.f32.mrb[0].mxu0
    %v1669 = vpop.f32.mrb[0].mxu0
    %v1670 = vadd.f32 %v1518, %v1669
    %v1671 = vpop.f32.mrb[0].mxu0
    %1672 = vmatprep.mubr.bf16.mxu0 %v1407
    %1673 = vmatmul.mubr.bf16.gmra.mrb[0].mxu0 %v1480
    %v1674 = vpop.f32.mrb[0].mxu0
    %v1675 = vadd.f32 %v1518, %v1674
    %v1676 = vpop.f32.mrb[0].mxu0
    %v1677 = vpop.f32.mrb[0].mxu0
    %v1678 = vadd.f32 %v1518, %v1677
    %v1679 = vpop.f32.mrb[0].mxu0
    %1680 = vdwg.mxu0
    %vm1681 = vcmp.gt.f32.partialorder %v1651, 0.0
    %vm1682 = vcmp.gt.f32.partialorder %v1654, 0.0
    %vm1683 = vcmp.gt.f32.partialorder %v1659, 0.0
    %vm1684 = vcmp.gt.f32.partialorder %v1662, 0.0
    %vm1685 = vcmp.gt.f32.partialorder %v1667, 0.0
    %vm1686 = vcmp.gt.f32.partialorder %v1670, 0.0
    %vm1687 = vcmp.gt.f32.partialorder %v1675, 0.0
    %vm1688 = vcmp.gt.f32.partialorder %v1678, 0.0
    %v1689 = vmin.f32 %v1651, 0.0
    %v1690 = vmin.f32 %v1654, 0.0
    %v1691 = vmin.f32 %v1659, 0.0
    %v1692 = vmin.f32 %v1662, 0.0
    %v1693 = vmin.f32 %v1667, 0.0
    %v1694 = vmin.f32 %v1670, 0.0
    %v1695 = vmin.f32 %v1675, 0.0
    %v1696 = vmin.f32 %v1678, 0.0
    %v1697 = vmul.f32 %v1689, 1.442695
    %v1698 = vpow.pop %v1697
    %v1699 = vmul.f32 %v1690, 1.442695
    %v1700 = vpow.pop %v1699
    %v1701 = vmul.f32 %v1691, 1.442695
    %v1702 = vpow.pop %v1701
    %v1703 = vmul.f32 %v1692, 1.442695
    %v1704 = vpow.pop %v1703
    %v1705 = vmul.f32 %v1693, 1.442695
    %v1706 = vpow.pop %v1705
    %v1707 = vmul.f32 %v1694, 1.442695
    %v1708 = vpow.pop %v1707
    %v1709 = vmul.f32 %v1695, 1.442695
    %v1710 = vpow.pop %v1709
    %v1711 = vmul.f32 %v1696, 1.442695
    %v1712 = vpow.pop %v1711
    %v1713 = vsub.f32 %v1698, 1.0
    %v1714 = vsub.f32 %v1700, 1.0
    %v1715 = vsub.f32 %v1702, 1.0
    %v1716 = vsub.f32 %v1704, 1.0
    %v1717 = vsub.f32 %v1706, 1.0
    %v1718 = vsub.f32 %v1708, 1.0
    %v1719 = vsub.f32 %v1710, 1.0
    %v1720 = vsub.f32 %v1712, 1.0
    %v1721 = vsel %vm1681, %v1651, %v1713
    %v1722 = vsel %vm1682, %v1654, %v1714
    %v1723 = vsel %vm1683, %v1659, %v1715
    %v1724 = vsel %vm1684, %v1662, %v1716
    %v1725 = vsel %vm1685, %v1667, %v1717
    %v1726 = vsel %vm1686, %v1670, %v1718
    %v1727 = vsel %vm1687, %v1675, %v1719
    %v1728 = vsel %vm1688, %v1678, %v1720
    %v1729 = vpack.c.bf16 %v1722, %v1721
    %v1730 = vpack.c.bf16 %v1724, %v1723
    %v1731 = vpack.c.bf16 %v1726, %v1725
    %v1732 = vpack.c.bf16 %v1728, %v1727
    %v1737 = vunpack.c.l.b16 %v1729
    %v1738 = vunpack.c.h.b16 %v1729
    %v1739 = vunpack.c.l.b16 %v1730
    %v1740 = vunpack.c.h.b16 %v1730
    %v1741 = vunpack.c.l.b16 %v1731
    %v1742 = vunpack.c.h.b16 %v1731
    %v1743 = vunpack.c.l.b16 %v1732
    %v1744 = vunpack.c.h.b16 %v1732
    %v1745 = vpack.c.b16 %v1737, %v1737
    %v1746 = vpack.c.b16 %v1738, %v1738
    %v1747 = vpack.c.b16 %v1739, %v1739
    %v1748 = vpack.c.b16 %v1740, %v1740
    %v1749 = vpack.c.b16 %v1741, %v1741
    %v1750 = vpack.c.b16 %v1742, %v1742
    %v1751 = vpack.c.b16 %v1743, %v1743
    %v1752 = vpack.c.b16 %v1744, %v1744
    %v1761 = vadd.bf16 %v1380, %v1745
    %v1762 = vadd.bf16 %v1381, %v1746
    %v1763 = vadd.bf16 %v1382, %v1747
    %v1764 = vadd.bf16 %v1383, %v1748
    %v1765 = vadd.bf16 %v1384, %v1749
    %v1766 = vadd.bf16 %v1385, %v1750
    %v1767 = vadd.bf16 %v1386, %v1751
    %v1768 = vadd.bf16 %v1387, %v1752
    %v1769 = vld [vmem:[#allocation15] sm:$0xff]
    %v1770 = vld [vmem:[#allocation15 + $0x8] sm:$0xff]
    %v1771 = vld [vmem:[#allocation15 + $0x10] sm:$0xff]
    %v1772 = vld [vmem:[#allocation15 + $0x18] sm:$0xff]
    %v1773 = vld [vmem:[#allocation15 + $0x20] sm:$0xff]
    %v1774 = vld [vmem:[#allocation15 + $0x28] sm:$0xff]
    %v1775 = vld [vmem:[#allocation15 + $0x30] sm:$0xff]
    %v1776 = vld [vmem:[#allocation15 + $0x38] sm:$0xff]
    %v1777 = vld [vmem:[#allocation15 + $0x40] sm:$0xff]
    %v1778 = vld [vmem:[#allocation15 + $0x48] sm:$0xff]
    %v1779 = vld [vmem:[#allocation15 + $0x50] sm:$0xff]
    %v1780 = vld [vmem:[#allocation15 + $0x58] sm:$0xff]
    %v1781 = vld [vmem:[#allocation15 + $0x60] sm:$0xff]
    %v1782 = vld [vmem:[#allocation15 + $0x68] sm:$0xff]
    %v1783 = vld [vmem:[#allocation15 + $0x70] sm:$0xff]
    %v1784 = vld [vmem:[#allocation15 + $0x78] sm:$0xff]
    %v1785 = vld [vmem:[%s19] sm:$0x3]
    %v1787 = vlaneseq
    %v1788 = vshrl.u32 %v1787, 7
    %v1789 = vsub.s32 0, %v1788
    %v1790 = vrot.slane %v1785, %v1789
    %v1791 = vlaneseq
    %v1792 = vshrl.u32 %v1791, 7
    %v1793 = vsub.s32 1, %v1792
    %v1794 = vrot.slane %v1785, %v1793
    %v1805 = vunpack.c.l.b16 %v1761
    %v1806 = vunpack.c.l.b16 %v1762
    %v1807 = vunpack.c.l.b16 %v1763
    %v1808 = vunpack.c.l.b16 %v1764
    %v1809 = vunpack.c.l.b16 %v1765
    %v1810 = vunpack.c.l.b16 %v1766
    %v1811 = vunpack.c.l.b16 %v1767
    %v1812 = vunpack.c.l.b16 %v1768
    %v1813 = vpack.c.b16 %v1806, %v1805
    %v1814 = vpack.c.b16 %v1808, %v1807
    %v1815 = vpack.c.b16 %v1810, %v1809
    %v1816 = vpack.c.b16 %v1812, %v1811
    %v1837 = vunpack.c.l.b16 %v1769
    %v1838 = vunpack.c.h.b16 %v1769
    %v1839 = vunpack.c.l.b16 %v1770
    %v1840 = vunpack.c.h.b16 %v1770
    %v1841 = vunpack.c.l.b16 %v1771
    %v1842 = vunpack.c.h.b16 %v1771
    %v1843 = vunpack.c.l.b16 %v1772
    %v1844 = vunpack.c.h.b16 %v1772
    %v1845 = vunpack.c.l.b16 %v1773
    %v1846 = vunpack.c.h.b16 %v1773
    %v1847 = vunpack.c.l.b16 %v1774
    %v1848 = vunpack.c.h.b16 %v1774
    %v1849 = vunpack.c.l.b16 %v1775
    %v1850 = vunpack.c.h.b16 %v1775
    %v1851 = vunpack.c.l.b16 %v1776
    %v1852 = vunpack.c.h.b16 %v1776
    %v1853 = vunpack.c.l.b16 %v1777
    %v1854 = vunpack.c.h.b16 %v1777
    %v1855 = vunpack.c.l.b16 %v1778
    %v1856 = vunpack.c.h.b16 %v1778
    %v1857 = vunpack.c.l.b16 %v1779
    %v1858 = vunpack.c.h.b16 %v1779
    %v1859 = vunpack.c.l.b16 %v1780
    %v1860 = vunpack.c.h.b16 %v1780
    %v1861 = vunpack.c.l.b16 %v1781
    %v1862 = vunpack.c.h.b16 %v1781
    %v1863 = vunpack.c.l.b16 %v1782
    %v1864 = vunpack.c.h.b16 %v1782
    %v1865 = vunpack.c.l.b16 %v1783
    %v1866 = vunpack.c.h.b16 %v1783
    %v1867 = vunpack.c.l.b16 %v1784
    %v1868 = vunpack.c.h.b16 %v1784
    %v1869 = vpack.c.b16 %v1839, %v1837
    %v1870 = vpack.c.b16 %v1840, %v1838
    %v1871 = vpack.c.b16 %v1843, %v1841
    %v1872 = vpack.c.b16 %v1844, %v1842
    %v1873 = vpack.c.b16 %v1847, %v1845
    %v1874 = vpack.c.b16 %v1848, %v1846
    %v1875 = vpack.c.b16 %v1851, %v1849
    %v1876 = vpack.c.b16 %v1852, %v1850
    %v1877 = vpack.c.b16 %v1855, %v1853
    %v1878 = vpack.c.b16 %v1856, %v1854
    %v1879 = vpack.c.b16 %v1859, %v1857
    %v1880 = vpack.c.b16 %v1860, %v1858
    %v1881 = vpack.c.b16 %v1863, %v1861
    %v1882 = vpack.c.b16 %v1864, %v1862
    %v1883 = vpack.c.b16 %v1867, %v1865
    %v1884 = vpack.c.b16 %v1868, %v1866
    %1901 = vmatprep.subr.bf16.mxu0 %v1870
    %1902 = vmatpush1.bf16.msra.mxu0 %v1869
    %1903 = vmatprep.subr.bf16.mxu0 %v1872
    %1904 = vmatpush1.bf16.msra.mxu0 %v1871
    %1905 = vmatprep.subr.bf16.mxu0 %v1874
    %1906 = vmatpush1.bf16.msra.mxu0 %v1873
    %1907 = vmatprep.subr.bf16.mxu0 %v1876
    %1908 = vmatpush1.bf16.msra.mxu0 %v1875
    %1909 = vmatprep.subr.bf16.mxu0 %v1878
    %1910 = vmatpush1.bf16.msra.mxu0 %v1877
    %1911 = vmatprep.subr.bf16.mxu0 %v1880
    %1912 = vmatpush1.bf16.msra.mxu0 %v1879
    %1913 = vmatprep.subr.bf16.mxu0 %v1882
    %1914 = vmatpush1.bf16.msra.mxu0 %v1881
    %1915 = vmatprep.subr.bf16.mxu0 %v1884
    %1916 = vmatpush1.bf16.msra.mxu0 %v1883
    %1917 = vmatprep.subr.bf16.mxu0 0
    %1918 = vmatpush1.bf16.msra.mxu0 0
    %1919 = vmatprep.subr.bf16.mxu0 0
    %1920 = vmatpush1.bf16.msra.mxu0 0
    %1921 = vmatprep.subr.bf16.mxu0 0
    %1922 = vmatpush1.bf16.msra.mxu0 0
    %1923 = vmatprep.subr.bf16.mxu0 0
    %1924 = vmatpush1.bf16.msra.mxu0 0
    %1925 = vmatprep.subr.bf16.mxu0 0
    %1926 = vmatpush1.bf16.msra.mxu0 0
    %1927 = vmatprep.subr.bf16.mxu0 0
    %1928 = vmatpush1.bf16.msra.mxu0 0
    %1929 = vmatprep.subr.bf16.mxu0 0
    %1930 = vmatpush1.bf16.msra.mxu0 0
    %1931 = vmatprep.subr.bf16.mxu0 0
    %1932 = vmatpush1.bf16.msra.mxu0 0
    %1933 = vmatprep.mubr.bf16.mxu0 0
    %1934 = vmatmul.mubr.bf16.gmra.mrb[0].mxu0 %v1813
    %v1935 = vpop.f32.mrb[0].mxu0
    %v1936 = vadd.f32 %v1790, %v1935
    %v1937 = vpop.f32.mrb[0].mxu0
    %v1938 = vadd.f32 %v1794, %v1937
    %v1939 = vpop.f32.mrb[0].mxu0
    %v1940 = vadd.f32 %v1790, %v1939
    %v1941 = vpop.f32.mrb[0].mxu0
    %v1942 = vadd.f32 %v1794, %v1941
    %1943 = vmatprep.mubr.bf16.mxu0 0
    %1944 = vmatmul.mubr.bf16.gmra.mrb[0].mxu0 %v1814
    %v1945 = vpop.f32.mrb[0].mxu0
    %v1946 = vadd.f32 %v1790, %v1945
    %v1947 = vpop.f32.mrb[0].mxu0
    %v1948 = vadd.f32 %v1794, %v1947
    %v1949 = vpop.f32.mrb[0].mxu0
    %v1950 = vadd.f32 %v1790, %v1949
    %v1951 = vpop.f32.mrb[0].mxu0
    %v1952 = vadd.f32 %v1794, %v1951
    %1953 = vmatprep.mubr.bf16.mxu0 0
    %1954 = vmatmul.mubr.bf16.gmra.mrb[0].mxu0 %v1815
    %v1955 = vpop.f32.mrb[0].mxu0
    %v1956 = vadd.f32 %v1790, %v1955
    %v1957 = vpop.f32.mrb[0].mxu0
    %v1958 = vadd.f32 %v1794, %v1957
    %v1959 = vpop.f32.mrb[0].mxu0
    %v1960 = vadd.f32 %v1790, %v1959
    %v1961 = vpop.f32.mrb[0].mxu0
    %v1962 = vadd.f32 %v1794, %v1961
    %1963 = vmatprep.mubr.bf16.mxu0 0
    %1964 = vmatmul.mubr.bf16.gmra.mrb[0].mxu0 %v1816
    %v1965 = vpop.f32.mrb[0].mxu0
    %v1966 = vadd.f32 %v1790, %v1965
    %v1967 = vpop.f32.mrb[0].mxu0
    %v1968 = vadd.f32 %v1794, %v1967
    %v1969 = vpop.f32.mrb[0].mxu0
    %v1970 = vadd.f32 %v1790, %v1969
    %v1971 = vpop.f32.mrb[0].mxu0
    %v1972 = vadd.f32 %v1794, %v1971
    %1973 = vdwg.mxu0
    %v1974 = vmax.f32 %v1936, 0.0
    %v1975 = vmax.f32 %v1938, 0.0
    %v1976 = vmax.f32 %v1940, 0.0
    %v1977 = vmax.f32 %v1942, 0.0
    %v1978 = vmax.f32 %v1946, 0.0
    %v1979 = vmax.f32 %v1948, 0.0
    %v1980 = vmax.f32 %v1950, 0.0
    %v1981 = vmax.f32 %v1952, 0.0
    %v1982 = vmax.f32 %v1956, 0.0
    %v1983 = vmax.f32 %v1958, 0.0
    %v1984 = vmax.f32 %v1960, 0.0
    %v1985 = vmax.f32 %v1962, 0.0
    %v1986 = vmax.f32 %v1966, 0.0
    %v1987 = vmax.f32 %v1968, 0.0
    %v1988 = vmax.f32 %v1970, 0.0
    %v1989 = vmax.f32 %v1972, 0.0
    %v1990 = vld [vmem:[#allocation17] sm:$0x3]
    %v1992 = vlaneseq
    %v1993 = vshrl.u32 %v1992, 7
    %v1994 = vsub.s32 0, %v1993
    %v1995 = vrot.slane %v1990, %v1994
    %v1996 = vlaneseq
    %v1997 = vshrl.u32 %v1996, 7
    %v1998 = vsub.s32 1, %v1997
    %v1999 = vrot.slane %v1990, %v1998
    %v2002 = vmul.f32 %v1974, %v1995
    %v2003 = vmul.f32 %v1975, %v1999
    %v2004 = vmul.f32 %v1976, %v1995
    %v2005 = vmul.f32 %v1977, %v1999
    %v2006 = vmul.f32 %v1978, %v1995
    %v2007 = vmul.f32 %v1979, %v1999
    %v2008 = vmul.f32 %v1980, %v1995
    %v2009 = vmul.f32 %v1981, %v1999
    %v2010 = vmul.f32 %v1982, %v1995
    %v2011 = vmul.f32 %v1983, %v1999
    %v2012 = vmul.f32 %v1984, %v1995
    %v2013 = vmul.f32 %v1985, %v1999
    %v2014 = vmul.f32 %v1986, %v1995
    %v2015 = vmul.f32 %v1987, %v1999
    %v2016 = vmul.f32 %v1988, %v1995
    %v2017 = vmul.f32 %v1989, %v1999
    %v2018 = vld [vmem:[#allocation18] sm:$0x3]
    %v2020 = vlaneseq
    %v2021 = vshrl.u32 %v2020, 7
    %v2022 = vsub.s32 0, %v2021
    %v2023 = vrot.slane %v2018, %v2022
    %v2024 = vlaneseq
    %v2025 = vshrl.u32 %v2024, 7
    %v2026 = vsub.s32 1, %v2025
    %v2027 = vrot.slane %v2018, %v2026
    %v2030 = vadd.f32 %v2002, %v2023
    %v2031 = vadd.f32 %v2003, %v2027
    %v2032 = vadd.f32 %v2004, %v2023
    %v2033 = vadd.f32 %v2005, %v2027
    %v2034 = vadd.f32 %v2006, %v2023
    %v2035 = vadd.f32 %v2007, %v2027
    %v2036 = vadd.f32 %v2008, %v2023
    %v2037 = vadd.f32 %v2009, %v2027
    %v2038 = vadd.f32 %v2010, %v2023
    %v2039 = vadd.f32 %v2011, %v2027
    %v2040 = vadd.f32 %v2012, %v2023
    %v2041 = vadd.f32 %v2013, %v2027
    %v2042 = vadd.f32 %v2014, %v2023
    %v2043 = vadd.f32 %v2015, %v2027
    %v2044 = vadd.f32 %v2016, %v2023
    %v2045 = vadd.f32 %v2017, %v2027
    %v2046 = vpack.c.bf16 %v2032, %v2030
    %v2047 = vpack.c.bf16 %v2033, %v2031
    %v2048 = vpack.c.bf16 %v2036, %v2034
    %v2049 = vpack.c.bf16 %v2037, %v2035
    %v2050 = vpack.c.bf16 %v2040, %v2038
    %v2051 = vpack.c.bf16 %v2041, %v2039
    %v2052 = vpack.c.bf16 %v2044, %v2042
    %v2053 = vpack.c.bf16 %v2045, %v2043
    %s2054 = smul.u32 4, 32
    %s2055 = smul.u32 %s2054, 4
    %s2056 = sshll.u32 %s2055, 4
    %2057 = dma.done [#allocation6], %s2056
    %v2058 = vld [vmem:[#allocation2] sm:$0xff]
    %v2059 = vld [vmem:[#allocation2 + $0x8] sm:$0xff]
    %v2060 = vld [vmem:[#allocation2 + $0x10] sm:$0xff]
    %v2061 = vld [vmem:[#allocation2 + $0x18] sm:$0xff]
    %v2062 = vld [vmem:[#allocation2 + $0x20] sm:$0xff]
    %v2063 = vld [vmem:[#allocation2 + $0x28] sm:$0xff]
    %v2064 = vld [vmem:[#allocation2 + $0x30] sm:$0xff]
    %v2065 = vld [vmem:[#allocation2 + $0x38] sm:$0xff]
    %v2066 = vld [vmem:[#allocation2 + $0x40] sm:$0xff]
    %v2067 = vld [vmem:[#allocation2 + $0x48] sm:$0xff]
    %v2068 = vld [vmem:[#allocation2 + $0x50] sm:$0xff]
    %v2069 = vld [vmem:[#allocation2 + $0x58] sm:$0xff]
    %v2070 = vld [vmem:[#allocation2 + $0x60] sm:$0xff]
    %v2071 = vld [vmem:[#allocation2 + $0x68] sm:$0xff]
    %v2072 = vld [vmem:[#allocation2 + $0x70] sm:$0xff]
    %v2073 = vld [vmem:[#allocation2 + $0x78] sm:$0xff]
    %v2074 = vld [vmem:[#allocation2 + $0x80] sm:$0xff]
    %v2075 = vld [vmem:[#allocation2 + $0x88] sm:$0xff]
    %v2076 = vld [vmem:[#allocation2 + $0x90] sm:$0xff]
    %v2077 = vld [vmem:[#allocation2 + $0x98] sm:$0xff]
    %v2078 = vld [vmem:[#allocation2 + $0xa0] sm:$0xff]
    %v2079 = vld [vmem:[#allocation2 + $0xa8] sm:$0xff]
    %v2080 = vld [vmem:[#allocation2 + $0xb0] sm:$0xff]
    %v2081 = vld [vmem:[#allocation2 + $0xb8] sm:$0xff]
    %v2082 = vld [vmem:[#allocation2 + $0xc0] sm:$0xff]
    %v2083 = vld [vmem:[#allocation2 + $0xc8] sm:$0xff]
    %v2084 = vld [vmem:[#allocation2 + $0xd0] sm:$0xff]
    %v2085 = vld [vmem:[#allocation2 + $0xd8] sm:$0xff]
    %v2086 = vld [vmem:[#allocation2 + $0xe0] sm:$0xff]
    %v2087 = vld [vmem:[#allocation2 + $0xe8] sm:$0xff]
    %v2088 = vld [vmem:[#allocation2 + $0xf0] sm:$0xff]
    %v2089 = vld [vmem:[#allocation2 + $0xf8] sm:$0xff]
    %v2090 = vld [vmem:[#allocation2 + $0x100] sm:$0xff]
    %v2091 = vld [vmem:[#allocation2 + $0x108] sm:$0xff]
    %v2092 = vld [vmem:[#allocation2 + $0x110] sm:$0xff]
    %v2093 = vld [vmem:[#allocation2 + $0x118] sm:$0xff]
    %v2094 = vld [vmem:[#allocation2 + $0x120] sm:$0xff]
    %v2095 = vld [vmem:[#allocation2 + $0x128] sm:$0xff]
    %v2096 = vld [vmem:[#allocation2 + $0x130] sm:$0xff]
    %v2097 = vld [vmem:[#allocation2 + $0x138] sm:$0xff]
    %v2098 = vld [vmem:[#allocation2 + $0x140] sm:$0xff]
    %v2099 = vld [vmem:[#allocation2 + $0x148] sm:$0xff]
    %v2100 = vld [vmem:[#allocation2 + $0x150] sm:$0xff]
    %v2101 = vld [vmem:[#allocation2 + $0x158] sm:$0xff]
    %v2102 = vld [vmem:[#allocation2 + $0x160] sm:$0xff]
    %v2103 = vld [vmem:[#allocation2 + $0x168] sm:$0xff]
    %v2104 = vld [vmem:[#allocation2 + $0x170] sm:$0xff]
    %v2105 = vld [vmem:[#allocation2 + $0x178] sm:$0xff]
    %v2106 = vld [vmem:[#allocation2 + $0x180] sm:$0xff]
    %v2107 = vld [vmem:[#allocation2 + $0x188] sm:$0xff]
    %v2108 = vld [vmem:[#allocation2 + $0x190] sm:$0xff]
    %v2109 = vld [vmem:[#allocation2 + $0x198] sm:$0xff]
    %v2110 = vld [vmem:[#allocation2 + $0x1a0] sm:$0xff]
    %v2111 = vld [vmem:[#allocation2 + $0x1a8] sm:$0xff]
    %v2112 = vld [vmem:[#allocation2 + $0x1b0] sm:$0xff]
    %v2113 = vld [vmem:[#allocation2 + $0x1b8] sm:$0xff]
    %v2114 = vld [vmem:[#allocation2 + $0x1c0] sm:$0xff]
    %v2115 = vld [vmem:[#allocation2 + $0x1c8] sm:$0xff]
    %v2116 = vld [vmem:[#allocation2 + $0x1d0] sm:$0xff]
    %v2117 = vld [vmem:[#allocation2 + $0x1d8] sm:$0xff]
    %v2118 = vld [vmem:[#allocation2 + $0x1e0] sm:$0xff]
    %v2119 = vld [vmem:[#allocation2 + $0x1e8] sm:$0xff]
    %v2120 = vld [vmem:[#allocation2 + $0x1f0] sm:$0xff]
    %v2121 = vld [vmem:[#allocation2 + $0x1f8] sm:$0xff]
    %v2122 = vld [vmem:[#allocation20] sm:$0xf]
    %v2124 = vlaneseq
    %v2125 = vshrl.u32 %v2124, 7
    %v2126 = vsub.s32 0, %v2125
    %v2127 = vrot.slane %v2122, %v2126
    %v2128 = vlaneseq
    %v2129 = vshrl.u32 %v2128, 7
    %v2130 = vsub.s32 1, %v2129
    %v2131 = vrot.slane %v2122, %v2130
    %v2132 = vlaneseq
    %v2133 = vshrl.u32 %v2132, 7
    %v2134 = vsub.s32 2, %v2133
    %v2135 = vrot.slane %v2122, %v2134
    %v2136 = vlaneseq
    %v2137 = vshrl.u32 %v2136, 7
    %v2138 = vsub.s32 3, %v2137
    %v2139 = vrot.slane %v2122, %v2138
    %2144 = vmatprep.subr.bf16.mxu0 %v2059
    %2145 = vmatpush1.bf16.msra.mxu0 %v2058
    %2146 = vmatprep.subr.bf16.mxu0 %v2063
    %2147 = vmatpush1.bf16.msra.mxu0 %v2062
    %2148 = vmatprep.subr.bf16.mxu0 %v2067
    %2149 = vmatpush1.bf16.msra.mxu0 %v2066
    %2150 = vmatprep.subr.bf16.mxu0 %v2071
    %2151 = vmatpush1.bf16.msra.mxu0 %v2070
    %2152 = vmatprep.subr.bf16.mxu0 %v2075
    %2153 = vmatpush1.bf16.msra.mxu0 %v2074
    %2154 = vmatprep.subr.bf16.mxu0 %v2079
    %2155 = vmatpush1.bf16.msra.mxu0 %v2078
    %2156 = vmatprep.subr.bf16.mxu0 %v2083
    %2157 = vmatpush1.bf16.msra.mxu0 %v2082
    %2158 = vmatprep.subr.bf16.mxu0 %v2087
    %2159 = vmatpush1.bf16.msra.mxu0 %v2086
    %2160 = vmatprep.subr.bf16.mxu0 %v2091
    %2161 = vmatpush1.bf16.msra.mxu0 %v2090
    %2162 = vmatprep.subr.bf16.mxu0 %v2095
    %2163 = vmatpush1.bf16.msra.mxu0 %v2094
    %2164 = vmatprep.subr.bf16.mxu0 %v2099
    %2165 = vmatpush1.bf16.msra.mxu0 %v2098
    %2166 = vmatprep.subr.bf16.mxu0 %v2103
    %2167 = vmatpush1.bf16.msra.mxu0 %v2102
    %2168 = vmatprep.subr.bf16.mxu0 %v2107
    %2169 = vmatpush1.bf16.msra.mxu0 %v2106
    %2170 = vmatprep.subr.bf16.mxu0 %v2111
    %2171 = vmatpush1.bf16.msra.mxu0 %v2110
    %2172 = vmatprep.subr.bf16.mxu0 %v2115
    %2173 = vmatpush1.bf16.msra.mxu0 %v2114
    %2174 = vmatprep.subr.bf16.mxu0 %v2119
    %2175 = vmatpush1.bf16.msra.mxu0 %v2118
    %2176 = vmatprep.mubr.bf16.mxu0 %v2047
    %2177 = vmatmul.mubr.bf16.gmra.mrb[0].mxu0 %v2046
    %v2178 = vpop.f32.mrb[0].mxu0
    %v2179 = vadd.f32 %v2127, %v2178
    %v2180 = vpop.f32.mrb[0].mxu0
    %v2181 = vadd.f32 %v2131, %v2180
    %v2182 = vpop.f32.mrb[0].mxu0
    %v2183 = vadd.f32 %v2127, %v2182
    %v2184 = vpop.f32.mrb[0].mxu0
    %v2185 = vadd.f32 %v2131, %v2184
    %2186 = vmatprep.mubr.bf16.mxu0 %v2049
    %2187 = vmatmul.mubr.bf16.gmra.mrb[0].mxu0 %v2048
    %v2188 = vpop.f32.mrb[0].mxu0
    %v2189 = vadd.f32 %v2127, %v2188
    %v2190 = vpop.f32.mrb[0].mxu0
    %v2191 = vadd.f32 %v2131, %v2190
    %v2192 = vpop.f32.mrb[0].mxu0
    %v2193 = vadd.f32 %v2127, %v2192
    %v2194 = vpop.f32.mrb[0].mxu0
    %v2195 = vadd.f32 %v2131, %v2194
    %2196 = vmatprep.mubr.bf16.mxu0 %v2051
    %2197 = vmatmul.mubr.bf16.gmra.mrb[0].mxu0 %v2050
    %v2198 = vpop.f32.mrb[0].mxu0
    %v2199 = vadd.f32 %v2127, %v2198
    %v2200 = vpop.f32.mrb[0].mxu0
    %v2201 = vadd.f32 %v2131, %v2200
    %v2202 = vpop.f32.mrb[0].mxu0
    %v2203 = vadd.f32 %v2127, %v2202
    %v2204 = vpop.f32.mrb[0].mxu0
    %v2205 = vadd.f32 %v2131, %v2204
    %2206 = vmatprep.mubr.bf16.mxu0 %v2053
    %2207 = vmatmul.mubr.bf16.gmra.mrb[0].mxu0 %v2052
    %v2208 = vpop.f32.mrb[0].mxu0
    %v2209 = vadd.f32 %v2127, %v2208
    %v2210 = vpop.f32.mrb[0].mxu0
    %v2211 = vadd.f32 %v2131, %v2210
    %v2212 = vpop.f32.mrb[0].mxu0
    %v2213 = vadd.f32 %v2127, %v2212
    %v2214 = vpop.f32.mrb[0].mxu0
    %v2215 = vadd.f32 %v2131, %v2214
    %2216 = vdwg.mxu0
    %2217 = vmatprep.subr.bf16.mxu0 %v2061
    %2218 = vmatpush1.bf16.msra.mxu0 %v2060
    %2219 = vmatprep.subr.bf16.mxu0 %v2065
    %2220 = vmatpush1.bf16.msra.mxu0 %v2064
    %2221 = vmatprep.subr.bf16.mxu0 %v2069
    %2222 = vmatpush1.bf16.msra.mxu0 %v2068
    %2223 = vmatprep.subr.bf16.mxu0 %v2073
    %2224 = vmatpush1.bf16.msra.mxu0 %v2072
    %2225 = vmatprep.subr.bf16.mxu0 %v2077
    %2226 = vmatpush1.bf16.msra.mxu0 %v2076
    %2227 = vmatprep.subr.bf16.mxu0 %v2081
    %2228 = vmatpush1.bf16.msra.mxu0 %v2080
    %2229 = vmatprep.subr.bf16.mxu0 %v2085
    %2230 = vmatpush1.bf16.msra.mxu0 %v2084
    %2231 = vmatprep.subr.bf16.mxu0 %v2089
    %2232 = vmatpush1.bf16.msra.mxu0 %v2088
    %2233 = vmatprep.subr.bf16.mxu0 %v2093
    %2234 = vmatpush1.bf16.msra.mxu0 %v2092
    %2235 = vmatprep.subr.bf16.mxu0 %v2097
    %2236 = vmatpush1.bf16.msra.mxu0 %v2096
    %2237 = vmatprep.subr.bf16.mxu0 %v2101
    %2238 = vmatpush1.bf16.msra.mxu0 %v2100
    %2239 = vmatprep.subr.bf16.mxu0 %v2105
    %2240 = vmatpush1.bf16.msra.mxu0 %v2104
    %2241 = vmatprep.subr.bf16.mxu0 %v2109
    %2242 = vmatpush1.bf16.msra.mxu0 %v2108
    %2243 = vmatprep.subr.bf16.mxu0 %v2113
    %2244 = vmatpush1.bf16.msra.mxu0 %v2112
    %2245 = vmatprep.subr.bf16.mxu0 %v2117
    %2246 = vmatpush1.bf16.msra.mxu0 %v2116
    %2247 = vmatprep.subr.bf16.mxu0 %v2121
    %2248 = vmatpush1.bf16.msra.mxu0 %v2120
    %2249 = vmatprep.mubr.bf16.mxu0 %v2047
    %2250 = vmatmul.mubr.bf16.gmra.mrb[0].mxu0 %v2046
    %v2251 = vpop.f32.mrb[0].mxu0
    %v2252 = vadd.f32 %v2135, %v2251
    %v2253 = vpop.f32.mrb[0].mxu0
    %v2254 = vadd.f32 %v2139, %v2253
    %v2255 = vpop.f32.mrb[0].mxu0
    %v2256 = vadd.f32 %v2135, %v2255
    %v2257 = vpop.f32.mrb[0].mxu0
    %v2258 = vadd.f32 %v2139, %v2257
    %2259 = vmatprep.mubr.bf16.mxu0 %v2049
    %2260 = vmatmul.mubr.bf16.gmra.mrb[0].mxu0 %v2048
    %v2261 = vpop.f32.mrb[0].mxu0
    %v2262 = vadd.f32 %v2135, %v2261
    %v2263 = vpop.f32.mrb[0].mxu0
    %v2264 = vadd.f32 %v2139, %v2263
    %v2265 = vpop.f32.mrb[0].mxu0
    %v2266 = vadd.f32 %v2135, %v2265
    %v2267 = vpop.f32.mrb[0].mxu0
    %v2268 = vadd.f32 %v2139, %v2267
    %2269 = vmatprep.mubr.bf16.mxu0 %v2051
    %2270 = vmatmul.mubr.bf16.gmra.mrb[0].mxu0 %v2050
    %v2271 = vpop.f32.mrb[0].mxu0
    %v2272 = vadd.f32 %v2135, %v2271
    %v2273 = vpop.f32.mrb[0].mxu0
    %v2274 = vadd.f32 %v2139, %v2273
    %v2275 = vpop.f32.mrb[0].mxu0
    %v2276 = vadd.f32 %v2135, %v2275
    %v2277 = vpop.f32.mrb[0].mxu0
    %v2278 = vadd.f32 %v2139, %v2277
    %2279 = vmatprep.mubr.bf16.mxu0 %v2053
    %2280 = vmatmul.mubr.bf16.gmra.mrb[0].mxu0 %v2052
    %v2281 = vpop.f32.mrb[0].mxu0
    %v2282 = vadd.f32 %v2135, %v2281
    %v2283 = vpop.f32.mrb[0].mxu0
    %v2284 = vadd.f32 %v2139, %v2283
    %v2285 = vpop.f32.mrb[0].mxu0
    %v2286 = vadd.f32 %v2135, %v2285
    %v2287 = vpop.f32.mrb[0].mxu0
    %v2288 = vadd.f32 %v2139, %v2287
    %2289 = vdwg.mxu0
    %v2290 = vmax.f32 %v2179, 0.0
    %v2291 = vmax.f32 %v2181, 0.0
    %v2292 = vmax.f32 %v2252, 0.0
    %v2293 = vmax.f32 %v2254, 0.0
    %v2294 = vmax.f32 %v2183, 0.0
    %v2295 = vmax.f32 %v2185, 0.0
    %v2296 = vmax.f32 %v2256, 0.0
    %v2297 = vmax.f32 %v2258, 0.0
    %v2298 = vmax.f32 %v2189, 0.0
    %v2299 = vmax.f32 %v2191, 0.0
    %v2300 = vmax.f32 %v2262, 0.0
    %v2301 = vmax.f32 %v2264, 0.0
    %v2302 = vmax.f32 %v2193, 0.0
    %v2303 = vmax.f32 %v2195, 0.0
    %v2304 = vmax.f32 %v2266, 0.0
    %v2305 = vmax.f32 %v2268, 0.0
    %v2306 = vmax.f32 %v2199, 0.0
    %v2307 = vmax.f32 %v2201, 0.0
    %v2308 = vmax.f32 %v2272, 0.0
    %v2309 = vmax.f32 %v2274, 0.0
    %v2310 = vmax.f32 %v2203, 0.0
    %v2311 = vmax.f32 %v2205, 0.0
    %v2312 = vmax.f32 %v2276, 0.0
    %v2313 = vmax.f32 %v2278, 0.0
    %v2314 = vmax.f32 %v2209, 0.0
    %v2315 = vmax.f32 %v2211, 0.0
    %v2316 = vmax.f32 %v2282, 0.0
    %v2317 = vmax.f32 %v2284, 0.0
    %v2318 = vmax.f32 %v2213, 0.0
    %v2319 = vmax.f32 %v2215, 0.0
    %v2320 = vmax.f32 %v2286, 0.0
    %v2321 = vmax.f32 %v2288, 0.0
    %v2322 = vld [vmem:[#allocation21] sm:$0xf]
    %v2324 = vlaneseq
    %v2325 = vshrl.u32 %v2324, 7
    %v2326 = vsub.s32 0, %v2325
    %v2327 = vrot.slane %v2322, %v2326
    %v2328 = vlaneseq
    %v2329 = vshrl.u32 %v2328, 7
    %v2330 = vsub.s32 1, %v2329
    %v2331 = vrot.slane %v2322, %v2330
    %v2332 = vlaneseq
    %v2333 = vshrl.u32 %v2332, 7
    %v2334 = vsub.s32 2, %v2333
    %v2335 = vrot.slane %v2322, %v2334
    %v2336 = vlaneseq
    %v2337 = vshrl.u32 %v2336, 7
    %v2338 = vsub.s32 3, %v2337
    %v2339 = vrot.slane %v2322, %v2338
    %v2344 = vmul.f32 %v2290, %v2327
    %v2345 = vmul.f32 %v2291, %v2331
    %v2346 = vmul.f32 %v2292, %v2335
    %v2347 = vmul.f32 %v2293, %v2339
    %v2348 = vmul.f32 %v2294, %v2327
    %v2349 = vmul.f32 %v2295, %v2331
    %v2350 = vmul.f32 %v2296, %v2335
    %v2351 = vmul.f32 %v2297, %v2339
    %v2352 = vmul.f32 %v2298, %v2327
    %v2353 = vmul.f32 %v2299, %v2331
    %v2354 = vmul.f32 %v2300, %v2335
    %v2355 = vmul.f32 %v2301, %v2339
    %v2356 = vmul.f32 %v2302, %v2327
    %v2357 = vmul.f32 %v2303, %v2331
    %v2358 = vmul.f32 %v2304, %v2335
    %v2359 = vmul.f32 %v2305, %v2339
    %v2360 = vmul.f32 %v2306, %v2327
    %v2361 = vmul.f32 %v2307, %v2331
    %v2362 = vmul.f32 %v2308, %v2335
    %v2363 = vmul.f32 %v2309, %v2339
    %v2364 = vmul.f32 %v2310, %v2327
    %v2365 = vmul.f32 %v2311, %v2331
    %v2366 = vmul.f32 %v2312, %v2335
    %v2367 = vmul.f32 %v2313, %v2339
    %v2368 = vmul.f32 %v2314, %v2327
    %v2369 = vmul.f32 %v2315, %v2331
    %v2370 = vmul.f32 %v2316, %v2335
    %v2371 = vmul.f32 %v2317, %v2339
    %v2372 = vmul.f32 %v2318, %v2327
    %v2373 = vmul.f32 %v2319, %v2331
    %v2374 = vmul.f32 %v2320, %v2335
    %v2375 = vmul.f32 %v2321, %v2339
    %v2376 = vld [vmem:[#allocation23] sm:$0xf]
    %v2378 = vlaneseq
    %v2379 = vshrl.u32 %v2378, 7
    %v2380 = vsub.s32 0, %v2379
    %v2381 = vrot.slane %v2376, %v2380
    %v2382 = vlaneseq
    %v2383 = vshrl.u32 %v2382, 7
    %v2384 = vsub.s32 1, %v2383
    %v2385 = vrot.slane %v2376, %v2384
    %v2386 = vlaneseq
    %v2387 = vshrl.u32 %v2386, 7
    %v2388 = vsub.s32 2, %v2387
    %v2389 = vrot.slane %v2376, %v2388
    %v2390 = vlaneseq
    %v2391 = vshrl.u32 %v2390, 7
    %v2392 = vsub.s32 3, %v2391
    %v2393 = vrot.slane %v2376, %v2392
    %v2398 = vadd.f32 %v2344, %v2381
    %v2399 = vadd.f32 %v2345, %v2385
    %v2400 = vadd.f32 %v2346, %v2389
    %v2401 = vadd.f32 %v2347, %v2393
    %v2402 = vadd.f32 %v2348, %v2381
    %v2403 = vadd.f32 %v2349, %v2385
    %v2404 = vadd.f32 %v2350, %v2389
    %v2405 = vadd.f32 %v2351, %v2393
    %v2406 = vadd.f32 %v2352, %v2381
    %v2407 = vadd.f32 %v2353, %v2385
    %v2408 = vadd.f32 %v2354, %v2389
    %v2409 = vadd.f32 %v2355, %v2393
    %v2410 = vadd.f32 %v2356, %v2381
    %v2411 = vadd.f32 %v2357, %v2385
    %v2412 = vadd.f32 %v2358, %v2389
    %v2413 = vadd.f32 %v2359, %v2393
    %v2414 = vadd.f32 %v2360, %v2381
    %v2415 = vadd.f32 %v2361, %v2385
    %v2416 = vadd.f32 %v2362, %v2389
    %v2417 = vadd.f32 %v2363, %v2393
    %v2418 = vadd.f32 %v2364, %v2381
    %v2419 = vadd.f32 %v2365, %v2385
    %v2420 = vadd.f32 %v2366, %v2389
    %v2421 = vadd.f32 %v2367, %v2393
    %v2422 = vadd.f32 %v2368, %v2381
    %v2423 = vadd.f32 %v2369, %v2385
    %v2424 = vadd.f32 %v2370, %v2389
    %v2425 = vadd.f32 %v2371, %v2393
    %v2426 = vadd.f32 %v2372, %v2381
    %v2427 = vadd.f32 %v2373, %v2385
    %v2428 = vadd.f32 %v2374, %v2389
    %v2429 = vadd.f32 %v2375, %v2393
    %v2430 = vpack.c.bf16 %v2402, %v2398
    %v2431 = vpack.c.bf16 %v2403, %v2399
    %v2432 = vpack.c.bf16 %v2404, %v2400
    %v2433 = vpack.c.bf16 %v2405, %v2401
    %v2434 = vpack.c.bf16 %v2410, %v2406
    %v2435 = vpack.c.bf16 %v2411, %v2407
    %v2436 = vpack.c.bf16 %v2412, %v2408
    %v2437 = vpack.c.bf16 %v2413, %v2409
    %v2438 = vpack.c.bf16 %v2418, %v2414
    %v2439 = vpack.c.bf16 %v2419, %v2415
    %v2440 = vpack.c.bf16 %v2420, %v2416
    %v2441 = vpack.c.bf16 %v2421, %v2417
    %v2442 = vpack.c.bf16 %v2426, %v2422
    %v2443 = vpack.c.bf16 %v2427, %v2423
    %v2444 = vpack.c.bf16 %v2428, %v2424
    %v2445 = vpack.c.bf16 %v2429, %v2425
    %s2446 = smul.u32 4, 64
    %s2447 = smul.u32 %s2446, 8
    %s2448 = sshll.u32 %s2447, 4
    %2449 = dma.done %s472, %s2448
    %v2450 = vld [vmem:[#allocation3] sm:$0xff]
    %v2451 = vld [vmem:[#allocation3 + $0x8] sm:$0xff]
    %v2452 = vld [vmem:[#allocation3 + $0x10] sm:$0xff]
    %v2453 = vld [vmem:[#allocation3 + $0x18] sm:$0xff]
    %v2454 = vld [vmem:[#allocation3 + $0x20] sm:$0xff]
    %v2455 = vld [vmem:[#allocation3 + $0x28] sm:$0xff]
    %v2456 = vld [vmem:[#allocation3 + $0x30] sm:$0xff]
    %v2457 = vld [vmem:[#allocation3 + $0x38] sm:$0xff]
    %v2458 = vld [vmem:[#allocation3 + $0x40] sm:$0xff]
    %v2459 = vld [vmem:[#allocation3 + $0x48] sm:$0xff]
    %v2460 = vld [vmem:[#allocation3 + $0x50] sm:$0xff]
    %v2461 = vld [vmem:[#allocation3 + $0x58] sm:$0xff]
    %v2462 = vld [vmem:[#allocation3 + $0x60] sm:$0xff]
    %v2463 = vld [vmem:[#allocation3 + $0x68] sm:$0xff]
    %v2464 = vld [vmem:[#allocation3 + $0x70] sm:$0xff]
    %v2465 = vld [vmem:[#allocation3 + $0x78] sm:$0xff]
    %v2466 = vld [vmem:[#allocation3 + $0x80] sm:$0xff]
    %v2467 = vld [vmem:[#allocation3 + $0x88] sm:$0xff]
    %v2468 = vld [vmem:[#allocation3 + $0x90] sm:$0xff]
    %v2469 = vld [vmem:[#allocation3 + $0x98] sm:$0xff]
    %v2470 = vld [vmem:[#allocation3 + $0xa0] sm:$0xff]
    %v2471 = vld [vmem:[#allocation3 + $0xa8] sm:$0xff]
    %v2472 = vld [vmem:[#allocation3 + $0xb0] sm:$0xff]
    %v2473 = vld [vmem:[#allocation3 + $0xb8] sm:$0xff]
    %v2474 = vld [vmem:[#allocation3 + $0xc0] sm:$0xff]
    %v2475 = vld [vmem:[#allocation3 + $0xc8] sm:$0xff]
    %v2476 = vld [vmem:[#allocation3 + $0xd0] sm:$0xff]
    %v2477 = vld [vmem:[#allocation3 + $0xd8] sm:$0xff]
    %v2478 = vld [vmem:[#allocation3 + $0xe0] sm:$0xff]
    %v2479 = vld [vmem:[#allocation3 + $0xe8] sm:$0xff]
    %v2480 = vld [vmem:[#allocation3 + $0xf0] sm:$0xff]
    %v2481 = vld [vmem:[#allocation3 + $0xf8] sm:$0xff]
    %v2482 = vld [vmem:[#allocation3 + $0x100] sm:$0xff]
    %v2483 = vld [vmem:[#allocation3 + $0x108] sm:$0xff]
    %v2484 = vld [vmem:[#allocation3 + $0x110] sm:$0xff]
    %v2485 = vld [vmem:[#allocation3 + $0x118] sm:$0xff]
    %v2486 = vld [vmem:[#allocation3 + $0x120] sm:$0xff]
    %v2487 = vld [vmem:[#allocation3 + $0x128] sm:$0xff]
    %v2488 = vld [vmem:[#allocation3 + $0x130] sm:$0xff]
    %v2489 = vld [vmem:[#allocation3 + $0x138] sm:$0xff]
    %v2490 = vld [vmem:[#allocation3 + $0x140] sm:$0xff]
    %v2491 = vld [vmem:[#allocation3 + $0x148] sm:$0xff]
    %v2492 = vld [vmem:[#allocation3 + $0x150] sm:$0xff]
    %v2493 = vld [vmem:[#allocation3 + $0x158] sm:$0xff]
    %v2494 = vld [vmem:[#allocation3 + $0x160] sm:$0xff]
    %v2495 = vld [vmem:[#allocation3 + $0x168] sm:$0xff]
    %v2496 = vld [vmem:[#allocation3 + $0x170] sm:$0xff]
    %v2497 = vld [vmem:[#allocation3 + $0x178] sm:$0xff]
    %v2498 = vld [vmem:[#allocation3 + $0x180] sm:$0xff]
    %v2499 = vld [vmem:[#allocation3 + $0x188] sm:$0xff]
    %v2500 = vld [vmem:[#allocation3 + $0x190] sm:$0xff]
    %v2501 = vld [vmem:[#allocation3 + $0x198] sm:$0xff]
    %v2502 = vld [vmem:[#allocation3 + $0x1a0] sm:$0xff]
    %v2503 = vld [vmem:[#allocation3 + $0x1a8] sm:$0xff]
    %v2504 = vld [vmem:[#allocation3 + $0x1b0] sm:$0xff]
    %v2505 = vld [vmem:[#allocation3 + $0x1b8] sm:$0xff]
    %v2506 = vld [vmem:[#allocation3 + $0x1c0] sm:$0xff]
    %v2507 = vld [vmem:[#allocation3 + $0x1c8] sm:$0xff]
    %v2508 = vld [vmem:[#allocation3 + $0x1d0] sm:$0xff]
    %v2509 = vld [vmem:[#allocation3 + $0x1d8] sm:$0xff]
    %v2510 = vld [vmem:[#allocation3 + $0x1e0] sm:$0xff]
    %v2511 = vld [vmem:[#allocation3 + $0x1e8] sm:$0xff]
    %v2512 = vld [vmem:[#allocation3 + $0x1f0] sm:$0xff]
    %v2513 = vld [vmem:[#allocation3 + $0x1f8] sm:$0xff]
    %v2514 = vld [vmem:[#allocation3 + $0x200] sm:$0xff]
    %v2515 = vld [vmem:[#allocation3 + $0x208] sm:$0xff]
    %v2516 = vld [vmem:[#allocation3 + $0x210] sm:$0xff]
    %v2517 = vld [vmem:[#allocation3 + $0x218] sm:$0xff]
    %v2518 = vld [vmem:[#allocation3 + $0x220] sm:$0xff]
    %v2519 = vld [vmem:[#allocation3 + $0x228] sm:$0xff]
    %v2520 = vld [vmem:[#allocation3 + $0x230] sm:$0xff]
    %v2521 = vld [vmem:[#allocation3 + $0x238] sm:$0xff]
    %v2522 = vld [vmem:[#allocation3 + $0x240] sm:$0xff]
    %v2523 = vld [vmem:[#allocation3 + $0x248] sm:$0xff]
    %v2524 = vld [vmem:[#allocation3 + $0x250] sm:$0xff]
    %v2525 = vld [vmem:[#allocation3 + $0x258] sm:$0xff]
    %v2526 = vld [vmem:[#allocation3 + $0x260] sm:$0xff]
    %v2527 = vld [vmem:[#allocation3 + $0x268] sm:$0xff]
    %v2528 = vld [vmem:[#allocation3 + $0x270] sm:$0xff]
    %v2529 = vld [vmem:[#allocation3 + $0x278] sm:$0xff]
    %v2530 = vld [vmem:[#allocation3 + $0x280] sm:$0xff]
    %v2531 = vld [vmem:[#allocation3 + $0x288] sm:$0xff]
    %v2532 = vld [vmem:[#allocation3 + $0x290] sm:$0xff]
    %v2533 = vld [vmem:[#allocation3 + $0x298] sm:$0xff]
    %v2534 = vld [vmem:[#allocation3 + $0x2a0] sm:$0xff]
    %v2535 = vld [vmem:[#allocation3 + $0x2a8] sm:$0xff]
    %v2536 = vld [vmem:[#allocation3 + $0x2b0] sm:$0xff]
    %v2537 = vld [vmem:[#allocation3 + $0x2b8] sm:$0xff]
    %v2538 = vld [vmem:[#allocation3 + $0x2c0] sm:$0xff]
    %v2539 = vld [vmem:[#allocation3 + $0x2c8] sm:$0xff]
    %v2540 = vld [vmem:[#allocation3 + $0x2d0] sm:$0xff]
    %v2541 = vld [vmem:[#allocation3 + $0x2d8] sm:$0xff]
    %v2542 = vld [vmem:[#allocation3 + $0x2e0] sm:$0xff]
    %v2543 = vld [vmem:[#allocation3 + $0x2e8] sm:$0xff]
    %v2544 = vld [vmem:[#allocation3 + $0x2f0] sm:$0xff]
    %v2545 = vld [vmem:[#allocation3 + $0x2f8] sm:$0xff]
    %v2546 = vld [vmem:[#allocation3 + $0x300] sm:$0xff]
    %v2547 = vld [vmem:[#allocation3 + $0x308] sm:$0xff]
    %v2548 = vld [vmem:[#allocation3 + $0x310] sm:$0xff]
    %v2549 = vld [vmem:[#allocation3 + $0x318] sm:$0xff]
    %v2550 = vld [vmem:[#allocation3 + $0x320] sm:$0xff]
    %v2551 = vld [vmem:[#allocation3 + $0x328] sm:$0xff]
    %v2552 = vld [vmem:[#allocation3 + $0x330] sm:$0xff]
    %v2553 = vld [vmem:[#allocation3 + $0x338] sm:$0xff]
    %v2554 = vld [vmem:[#allocation3 + $0x340] sm:$0xff]
    %v2555 = vld [vmem:[#allocation3 + $0x348] sm:$0xff]
    %v2556 = vld [vmem:[#allocation3 + $0x350] sm:$0xff]
    %v2557 = vld [vmem:[#allocation3 + $0x358] sm:$0xff]
    %v2558 = vld [vmem:[#allocation3 + $0x360] sm:$0xff]
    %v2559 = vld [vmem:[#allocation3 + $0x368] sm:$0xff]
    %v2560 = vld [vmem:[#allocation3 + $0x370] sm:$0xff]
    %v2561 = vld [vmem:[#allocation3 + $0x378] sm:$0xff]
    %v2562 = vld [vmem:[#allocation3 + $0x380] sm:$0xff]
    %v2563 = vld [vmem:[#allocation3 + $0x388] sm:$0xff]
    %v2564 = vld [vmem:[#allocation3 + $0x390] sm:$0xff]
    %v2565 = vld [vmem:[#allocation3 + $0x398] sm:$0xff]
    %v2566 = vld [vmem:[#allocation3 + $0x3a0] sm:$0xff]
    %v2567 = vld [vmem:[#allocation3 + $0x3a8] sm:$0xff]
    %v2568 = vld [vmem:[#allocation3 + $0x3b0] sm:$0xff]
    %v2569 = vld [vmem:[#allocation3 + $0x3b8] sm:$0xff]
    %v2570 = vld [vmem:[#allocation3 + $0x3c0] sm:$0xff]
    %v2571 = vld [vmem:[#allocation3 + $0x3c8] sm:$0xff]
    %v2572 = vld [vmem:[#allocation3 + $0x3d0] sm:$0xff]
    %v2573 = vld [vmem:[#allocation3 + $0x3d8] sm:$0xff]
    %v2574 = vld [vmem:[#allocation3 + $0x3e0] sm:$0xff]
    %v2575 = vld [vmem:[#allocation3 + $0x3e8] sm:$0xff]
    %v2576 = vld [vmem:[#allocation3 + $0x3f0] sm:$0xff]
    %v2577 = vld [vmem:[#allocation3 + $0x3f8] sm:$0xff]
    %v2578 = vld [vmem:[#allocation3 + $0x400] sm:$0xff]
    %v2579 = vld [vmem:[#allocation3 + $0x408] sm:$0xff]
    %v2580 = vld [vmem:[#allocation3 + $0x410] sm:$0xff]
    %v2581 = vld [vmem:[#allocation3 + $0x418] sm:$0xff]
    %v2582 = vld [vmem:[#allocation3 + $0x420] sm:$0xff]
    %v2583 = vld [vmem:[#allocation3 + $0x428] sm:$0xff]
    %v2584 = vld [vmem:[#allocation3 + $0x430] sm:$0xff]
    %v2585 = vld [vmem:[#allocation3 + $0x438] sm:$0xff]
    %v2586 = vld [vmem:[#allocation3 + $0x440] sm:$0xff]
    %v2587 = vld [vmem:[#allocation3 + $0x448] sm:$0xff]
    %v2588 = vld [vmem:[#allocation3 + $0x450] sm:$0xff]
    %v2589 = vld [vmem:[#allocation3 + $0x458] sm:$0xff]
    %v2590 = vld [vmem:[#allocation3 + $0x460] sm:$0xff]
    %v2591 = vld [vmem:[#allocation3 + $0x468] sm:$0xff]
    %v2592 = vld [vmem:[#allocation3 + $0x470] sm:$0xff]
    %v2593 = vld [vmem:[#allocation3 + $0x478] sm:$0xff]
    %v2594 = vld [vmem:[#allocation3 + $0x480] sm:$0xff]
    %v2595 = vld [vmem:[#allocation3 + $0x488] sm:$0xff]
    %v2596 = vld [vmem:[#allocation3 + $0x490] sm:$0xff]
    %v2597 = vld [vmem:[#allocation3 + $0x498] sm:$0xff]
    %v2598 = vld [vmem:[#allocation3 + $0x4a0] sm:$0xff]
    %v2599 = vld [vmem:[#allocation3 + $0x4a8] sm:$0xff]
    %v2600 = vld [vmem:[#allocation3 + $0x4b0] sm:$0xff]
    %v2601 = vld [vmem:[#allocation3 + $0x4b8] sm:$0xff]
    %v2602 = vld [vmem:[#allocation3 + $0x4c0] sm:$0xff]
    %v2603 = vld [vmem:[#allocation3 + $0x4c8] sm:$0xff]
    %v2604 = vld [vmem:[#allocation3 + $0x4d0] sm:$0xff]
    %v2605 = vld [vmem:[#allocation3 + $0x4d8] sm:$0xff]
    %v2606 = vld [vmem:[#allocation3 + $0x4e0] sm:$0xff]
    %v2607 = vld [vmem:[#allocation3 + $0x4e8] sm:$0xff]
    %v2608 = vld [vmem:[#allocation3 + $0x4f0] sm:$0xff]
    %v2609 = vld [vmem:[#allocation3 + $0x4f8] sm:$0xff]
    %v2610 = vld [vmem:[#allocation3 + $0x500] sm:$0xff]
    %v2611 = vld [vmem:[#allocation3 + $0x508] sm:$0xff]
    %v2612 = vld [vmem:[#allocation3 + $0x510] sm:$0xff]
    %v2613 = vld [vmem:[#allocation3 + $0x518] sm:$0xff]
    %v2614 = vld [vmem:[#allocation3 + $0x520] sm:$0xff]
    %v2615 = vld [vmem:[#allocation3 + $0x528] sm:$0xff]
    %v2616 = vld [vmem:[#allocation3 + $0x530] sm:$0xff]
    %v2617 = vld [vmem:[#allocation3 + $0x538] sm:$0xff]
    %v2618 = vld [vmem:[#allocation3 + $0x540] sm:$0xff]
    %v2619 = vld [vmem:[#allocation3 + $0x548] sm:$0xff]
    %v2620 = vld [vmem:[#allocation3 + $0x550] sm:$0xff]
    %v2621 = vld [vmem:[#allocation3 + $0x558] sm:$0xff]
    %v2622 = vld [vmem:[#allocation3 + $0x560] sm:$0xff]
    %v2623 = vld [vmem:[#allocation3 + $0x568] sm:$0xff]
    %v2624 = vld [vmem:[#allocation3 + $0x570] sm:$0xff]
    %v2625 = vld [vmem:[#allocation3 + $0x578] sm:$0xff]
    %v2626 = vld [vmem:[#allocation3 + $0x580] sm:$0xff]
    %v2627 = vld [vmem:[#allocation3 + $0x588] sm:$0xff]
    %v2628 = vld [vmem:[#allocation3 + $0x590] sm:$0xff]
    %v2629 = vld [vmem:[#allocation3 + $0x598] sm:$0xff]
    %v2630 = vld [vmem:[#allocation3 + $0x5a0] sm:$0xff]
    %v2631 = vld [vmem:[#allocation3 + $0x5a8] sm:$0xff]
    %v2632 = vld [vmem:[#allocation3 + $0x5b0] sm:$0xff]
    %v2633 = vld [vmem:[#allocation3 + $0x5b8] sm:$0xff]
    %v2634 = vld [vmem:[#allocation3 + $0x5c0] sm:$0xff]
    %v2635 = vld [vmem:[#allocation3 + $0x5c8] sm:$0xff]
    %v2636 = vld [vmem:[#allocation3 + $0x5d0] sm:$0xff]
    %v2637 = vld [vmem:[#allocation3 + $0x5d8] sm:$0xff]
    %v2638 = vld [vmem:[#allocation3 + $0x5e0] sm:$0xff]
    %v2639 = vld [vmem:[#allocation3 + $0x5e8] sm:$0xff]
    %v2640 = vld [vmem:[#allocation3 + $0x5f0] sm:$0xff]
    %v2641 = vld [vmem:[#allocation3 + $0x5f8] sm:$0xff]
    %v2642 = vld [vmem:[#allocation3 + $0x600] sm:$0xff]
    %v2643 = vld [vmem:[#allocation3 + $0x608] sm:$0xff]
    %v2644 = vld [vmem:[#allocation3 + $0x610] sm:$0xff]
    %v2645 = vld [vmem:[#allocation3 + $0x618] sm:$0xff]
    %v2646 = vld [vmem:[#allocation3 + $0x620] sm:$0xff]
    %v2647 = vld [vmem:[#allocation3 + $0x628] sm:$0xff]
    %v2648 = vld [vmem:[#allocation3 + $0x630] sm:$0xff]
    %v2649 = vld [vmem:[#allocation3 + $0x638] sm:$0xff]
    %v2650 = vld [vmem:[#allocation3 + $0x640] sm:$0xff]
    %v2651 = vld [vmem:[#allocation3 + $0x648] sm:$0xff]
    %v2652 = vld [vmem:[#allocation3 + $0x650] sm:$0xff]
    %v2653 = vld [vmem:[#allocation3 + $0x658] sm:$0xff]
    %v2654 = vld [vmem:[#allocation3 + $0x660] sm:$0xff]
    %v2655 = vld [vmem:[#allocation3 + $0x668] sm:$0xff]
    %v2656 = vld [vmem:[#allocation3 + $0x670] sm:$0xff]
    %v2657 = vld [vmem:[#allocation3 + $0x678] sm:$0xff]
    %v2658 = vld [vmem:[#allocation3 + $0x680] sm:$0xff]
    %v2659 = vld [vmem:[#allocation3 + $0x688] sm:$0xff]
    %v2660 = vld [vmem:[#allocation3 + $0x690] sm:$0xff]
    %v2661 = vld [vmem:[#allocation3 + $0x698] sm:$0xff]
    %v2662 = vld [vmem:[#allocation3 + $0x6a0] sm:$0xff]
    %v2663 = vld [vmem:[#allocation3 + $0x6a8] sm:$0xff]
    %v2664 = vld [vmem:[#allocation3 + $0x6b0] sm:$0xff]
    %v2665 = vld [vmem:[#allocation3 + $0x6b8] sm:$0xff]
    %v2666 = vld [vmem:[#allocation3 + $0x6c0] sm:$0xff]
    %v2667 = vld [vmem:[#allocation3 + $0x6c8] sm:$0xff]
    %v2668 = vld [vmem:[#allocation3 + $0x6d0] sm:$0xff]
    %v2669 = vld [vmem:[#allocation3 + $0x6d8] sm:$0xff]
    %v2670 = vld [vmem:[#allocation3 + $0x6e0] sm:$0xff]
    %v2671 = vld [vmem:[#allocation3 + $0x6e8] sm:$0xff]
    %v2672 = vld [vmem:[#allocation3 + $0x6f0] sm:$0xff]
    %v2673 = vld [vmem:[#allocation3 + $0x6f8] sm:$0xff]
    %v2674 = vld [vmem:[#allocation3 + $0x700] sm:$0xff]
    %v2675 = vld [vmem:[#allocation3 + $0x708] sm:$0xff]
    %v2676 = vld [vmem:[#allocation3 + $0x710] sm:$0xff]
    %v2677 = vld [vmem:[#allocation3 + $0x718] sm:$0xff]
    %v2678 = vld [vmem:[#allocation3 + $0x720] sm:$0xff]
    %v2679 = vld [vmem:[#allocation3 + $0x728] sm:$0xff]
    %v2680 = vld [vmem:[#allocation3 + $0x730] sm:$0xff]
    %v2681 = vld [vmem:[#allocation3 + $0x738] sm:$0xff]
    %v2682 = vld [vmem:[#allocation3 + $0x740] sm:$0xff]
    %v2683 = vld [vmem:[#allocation3 + $0x748] sm:$0xff]
    %v2684 = vld [vmem:[#allocation3 + $0x750] sm:$0xff]
    %v2685 = vld [vmem:[#allocation3 + $0x758] sm:$0xff]
    %v2686 = vld [vmem:[#allocation3 + $0x760] sm:$0xff]
    %v2687 = vld [vmem:[#allocation3 + $0x768] sm:$0xff]
    %v2688 = vld [vmem:[#allocation3 + $0x770] sm:$0xff]
    %v2689 = vld [vmem:[#allocation3 + $0x778] sm:$0xff]
    %v2690 = vld [vmem:[#allocation3 + $0x780] sm:$0xff]
    %v2691 = vld [vmem:[#allocation3 + $0x788] sm:$0xff]
    %v2692 = vld [vmem:[#allocation3 + $0x790] sm:$0xff]
    %v2693 = vld [vmem:[#allocation3 + $0x798] sm:$0xff]
    %v2694 = vld [vmem:[#allocation3 + $0x7a0] sm:$0xff]
    %v2695 = vld [vmem:[#allocation3 + $0x7a8] sm:$0xff]
    %v2696 = vld [vmem:[#allocation3 + $0x7b0] sm:$0xff]
    %v2697 = vld [vmem:[#allocation3 + $0x7b8] sm:$0xff]
    %v2698 = vld [vmem:[#allocation3 + $0x7c0] sm:$0xff]
    %v2699 = vld [vmem:[#allocation3 + $0x7c8] sm:$0xff]
    %v2700 = vld [vmem:[#allocation3 + $0x7d0] sm:$0xff]
    %v2701 = vld [vmem:[#allocation3 + $0x7d8] sm:$0xff]
    %v2702 = vld [vmem:[#allocation3 + $0x7e0] sm:$0xff]
    %v2703 = vld [vmem:[#allocation3 + $0x7e8] sm:$0xff]
    %v2704 = vld [vmem:[#allocation3 + $0x7f0] sm:$0xff]
    %v2705 = vld [vmem:[#allocation3 + $0x7f8] sm:$0xff]
    %v2706 = vld [vmem:[#allocation24] sm:$0xff]
    %v2708 = vlaneseq
    %v2709 = vshrl.u32 %v2708, 7
    %v2710 = vsub.s32 0, %v2709
    %v2711 = vrot.slane %v2706, %v2710
    %v2712 = vlaneseq
    %v2713 = vshrl.u32 %v2712, 7
    %v2714 = vsub.s32 1, %v2713
    %v2715 = vrot.slane %v2706, %v2714
    %v2716 = vlaneseq
    %v2717 = vshrl.u32 %v2716, 7
    %v2718 = vsub.s32 2, %v2717
    %v2719 = vrot.slane %v2706, %v2718
    %v2720 = vlaneseq
    %v2721 = vshrl.u32 %v2720, 7
    %v2722 = vsub.s32 3, %v2721
    %v2723 = vrot.slane %v2706, %v2722
    %v2724 = vlaneseq
    %v2725 = vshrl.u32 %v2724, 7
    %v2726 = vsub.s32 4, %v2725
    %v2727 = vrot.slane %v2706, %v2726
    %v2728 = vlaneseq
    %v2729 = vshrl.u32 %v2728, 7
    %v2730 = vsub.s32 5, %v2729
    %v2731 = vrot.slane %v2706, %v2730
    %v2732 = vlaneseq
    %v2733 = vshrl.u32 %v2732, 7
    %v2734 = vsub.s32 6, %v2733
    %v2735 = vrot.slane %v2706, %v2734
    %v2736 = vlaneseq
    %v2737 = vshrl.u32 %v2736, 7
    %v2738 = vsub.s32 7, %v2737
    %v2739 = vrot.slane %v2706, %v2738
    %2748 = vmatprep.subr.bf16.mxu0 %v2451
    %2749 = vmatpush1.bf16.msra.mxu0 %v2450
    %2750 = vmatprep.subr.bf16.mxu0 %v2459
    %2751 = vmatpush1.bf16.msra.mxu0 %v2458
    %2752 = vmatprep.subr.bf16.mxu0 %v2467
    %2753 = vmatpush1.bf16.msra.mxu0 %v2466
    %2754 = vmatprep.subr.bf16.mxu0 %v2475
    %2755 = vmatpush1.bf16.msra.mxu0 %v2474
    %2756 = vmatprep.subr.bf16.mxu0 %v2483
    %2757 = vmatpush1.bf16.msra.mxu0 %v2482
    %2758 = vmatprep.subr.bf16.mxu0 %v2491
    %2759 = vmatpush1.bf16.msra.mxu0 %v2490
    %2760 = vmatprep.subr.bf16.mxu0 %v2499
    %2761 = vmatpush1.bf16.msra.mxu0 %v2498
    %2762 = vmatprep.subr.bf16.mxu0 %v2507
    %2763 = vmatpush1.bf16.msra.mxu0 %v2506
    %2764 = vmatprep.subr.bf16.mxu0 %v2515
    %2765 = vmatpush1.bf16.msra.mxu0 %v2514
    %2766 = vmatprep.subr.bf16.mxu0 %v2523
    %2767 = vmatpush1.bf16.msra.mxu0 %v2522
    %2768 = vmatprep.subr.bf16.mxu0 %v2531
    %2769 = vmatpush1.bf16.msra.mxu0 %v2530
    %2770 = vmatprep.subr.bf16.mxu0 %v2539
    %2771 = vmatpush1.bf16.msra.mxu0 %v2538
    %2772 = vmatprep.subr.bf16.mxu0 %v2547
    %2773 = vmatpush1.bf16.msra.mxu0 %v2546
    %2774 = vmatprep.subr.bf16.mxu0 %v2555
    %2775 = vmatpush1.bf16.msra.mxu0 %v2554
    %2776 = vmatprep.subr.bf16.mxu0 %v2563
    %2777 = vmatpush1.bf16.msra.mxu0 %v2562
    %2778 = vmatprep.subr.bf16.mxu0 %v2571
    %2779 = vmatpush1.bf16.msra.mxu0 %v2570
    %2780 = vmatprep.mubr.bf16.mxu0 %v2431
    %2781 = vmatmul.mubr.bf16.gmra.mrb[0].mxu0 %v2430
    %v2782 = vpop.f32.mrb[0].mxu0
    %v2783 = vadd.f32 %v2711, %v2782
    %v2784 = vpop.f32.mrb[0].mxu0
    %v2785 = vadd.f32 %v2715, %v2784
    %v2786 = vpop.f32.mrb[0].mxu0
    %v2787 = vadd.f32 %v2711, %v2786
    %v2788 = vpop.f32.mrb[0].mxu0
    %v2789 = vadd.f32 %v2715, %v2788
    %2790 = vmatprep.mubr.bf16.mxu0 %v2435
    %2791 = vmatmul.mubr.bf16.gmra.mrb[0].mxu0 %v2434
    %v2792 = vpop.f32.mrb[0].mxu0
    %v2793 = vadd.f32 %v2711, %v2792
    %v2794 = vpop.f32.mrb[0].mxu0
    %v2795 = vadd.f32 %v2715, %v2794
    %v2796 = vpop.f32.mrb[0].mxu0
    %v2797 = vadd.f32 %v2711, %v2796
    %v2798 = vpop.f32.mrb[0].mxu0
    %v2799 = vadd.f32 %v2715, %v2798
    %2800 = vmatprep.mubr.bf16.mxu0 %v2439
    %2801 = vmatmul.mubr.bf16.gmra.mrb[0].mxu0 %v2438
    %v2802 = vpop.f32.mrb[0].mxu0
    %v2803 = vadd.f32 %v2711, %v2802
    %v2804 = vpop.f32.mrb[0].mxu0
    %v2805 = vadd.f32 %v2715, %v2804
    %v2806 = vpop.f32.mrb[0].mxu0
    %v2807 = vadd.f32 %v2711, %v2806
    %v2808 = vpop.f32.mrb[0].mxu0
    %v2809 = vadd.f32 %v2715, %v2808
    %2810 = vmatprep.mubr.bf16.mxu0 %v2443
    %2811 = vmatmul.mubr.bf16.gmra.mrb[0].mxu0 %v2442
    %v2812 = vpop.f32.mrb[0].mxu0
    %v2813 = vadd.f32 %v2711, %v2812
    %v2814 = vpop.f32.mrb[0].mxu0
    %v2815 = vadd.f32 %v2715, %v2814
    %v2816 = vpop.f32.mrb[0].mxu0
    %v2817 = vadd.f32 %v2711, %v2816
    %v2818 = vpop.f32.mrb[0].mxu0
    %v2819 = vadd.f32 %v2715, %v2818
    %2820 = vdwg.mxu0
    %2821 = vmatprep.subr.bf16.mxu0 %v2579
    %2822 = vmatpush1.bf16.msra.mxu0 %v2578
    %2823 = vmatprep.subr.bf16.mxu0 %v2587
    %2824 = vmatpush1.bf16.msra.mxu0 %v2586
    %2825 = vmatprep.subr.bf16.mxu0 %v2595
    %2826 = vmatpush1.bf16.msra.mxu0 %v2594
    %2827 = vmatprep.subr.bf16.mxu0 %v2603
    %2828 = vmatpush1.bf16.msra.mxu0 %v2602
    %2829 = vmatprep.subr.bf16.mxu0 %v2611
    %2830 = vmatpush1.bf16.msra.mxu0 %v2610
    %2831 = vmatprep.subr.bf16.mxu0 %v2619
    %2832 = vmatpush1.bf16.msra.mxu0 %v2618
    %2833 = vmatprep.subr.bf16.mxu0 %v2627
    %2834 = vmatpush1.bf16.msra.mxu0 %v2626
    %2835 = vmatprep.subr.bf16.mxu0 %v2635
    %2836 = vmatpush1.bf16.msra.mxu0 %v2634
    %2837 = vmatprep.subr.bf16.mxu0 %v2643
    %2838 = vmatpush1.bf16.msra.mxu0 %v2642
    %2839 = vmatprep.subr.bf16.mxu0 %v2651
    %2840 = vmatpush1.bf16.msra.mxu0 %v2650
    %2841 = vmatprep.subr.bf16.mxu0 %v2659
    %2842 = vmatpush1.bf16.msra.mxu0 %v2658
    %2843 = vmatprep.subr.bf16.mxu0 %v2667
    %2844 = vmatpush1.bf16.msra.mxu0 %v2666
    %2845 = vmatprep.subr.bf16.mxu0 %v2675
    %2846 = vmatpush1.bf16.msra.mxu0 %v2674
    %2847 = vmatprep.subr.bf16.mxu0 %v2683
    %2848 = vmatpush1.bf16.msra.mxu0 %v2682
    %2849 = vmatprep.subr.bf16.mxu0 %v2691
    %2850 = vmatpush1.bf16.msra.mxu0 %v2690
    %2851 = vmatprep.subr.bf16.mxu0 %v2699
    %2852 = vmatpush1.bf16.msra.mxu0 %v2698
    %2853 = vmatprep.mubr.bf16.mxu0 %v2433
    %2854 = vmatmul.mubr.bf16.gmra.mrb[0].mxu0 %v2432
    %v2855 = vpop.f32.mrb[0].mxu0
    %v2856 = vadd.f32 %v2783, %v2855
    %v2857 = vpop.f32.mrb[0].mxu0
    %v2858 = vadd.f32 %v2785, %v2857
    %v2859 = vpop.f32.mrb[0].mxu0
    %v2860 = vadd.f32 %v2787, %v2859
    %v2861 = vpop.f32.mrb[0].mxu0
    %v2862 = vadd.f32 %v2789, %v2861
    %2863 = vmatprep.mubr.bf16.mxu0 %v2437
    %2864 = vmatmul.mubr.bf16.gmra.mrb[0].mxu0 %v2436
    %v2865 = vpop.f32.mrb[0].mxu0
    %v2866 = vadd.f32 %v2793, %v2865
    %v2867 = vpop.f32.mrb[0].mxu0
    %v2868 = vadd.f32 %v2795, %v2867
    %v2869 = vpop.f32.mrb[0].mxu0
    %v2870 = vadd.f32 %v2797, %v2869
    %v2871 = vpop.f32.mrb[0].mxu0
    %v2872 = vadd.f32 %v2799, %v2871
    %2873 = vmatprep.mubr.bf16.mxu0 %v2441
    %2874 = vmatmul.mubr.bf16.gmra.mrb[0].mxu0 %v2440
    %v2875 = vpop.f32.mrb[0].mxu0
    %v2876 = vadd.f32 %v2803, %v2875
    %v2877 = vpop.f32.mrb[0].mxu0
    %v2878 = vadd.f32 %v2805, %v2877
    %v2879 = vpop.f32.mrb[0].mxu0
    %v2880 = vadd.f32 %v2807, %v2879
    %v2881 = vpop.f32.mrb[0].mxu0
    %v2882 = vadd.f32 %v2809, %v2881
    %2883 = vmatprep.mubr.bf16.mxu0 %v2445
    %2884 = vmatmul.mubr.bf16.gmra.mrb[0].mxu0 %v2444
    %v2885 = vpop.f32.mrb[0].mxu0
    %v2886 = vadd.f32 %v2813, %v2885
    %v2887 = vpop.f32.mrb[0].mxu0
    %v2888 = vadd.f32 %v2815, %v2887
    %v2889 = vpop.f32.mrb[0].mxu0
    %v2890 = vadd.f32 %v2817, %v2889
    %v2891 = vpop.f32.mrb[0].mxu0
    %v2892 = vadd.f32 %v2819, %v2891
    %2893 = vdwg.mxu0
    %2894 = vmatprep.subr.bf16.mxu0 %v2453
    %2895 = vmatpush1.bf16.msra.mxu0 %v2452
    %2896 = vmatprep.subr.bf16.mxu0 %v2461
    %2897 = vmatpush1.bf16.msra.mxu0 %v2460
    %2898 = vmatprep.subr.bf16.mxu0 %v2469
    %2899 = vmatpush1.bf16.msra.mxu0 %v2468
    %2900 = vmatprep.subr.bf16.mxu0 %v2477
    %2901 = vmatpush1.bf16.msra.mxu0 %v2476
    %2902 = vmatprep.subr.bf16.mxu0 %v2485
    %2903 = vmatpush1.bf16.msra.mxu0 %v2484
    %2904 = vmatprep.subr.bf16.mxu0 %v2493
    %2905 = vmatpush1.bf16.msra.mxu0 %v2492
    %2906 = vmatprep.subr.bf16.mxu0 %v2501
    %2907 = vmatpush1.bf16.msra.mxu0 %v2500
    %2908 = vmatprep.subr.bf16.mxu0 %v2509
    %2909 = vmatpush1.bf16.msra.mxu0 %v2508
    %2910 = vmatprep.subr.bf16.mxu0 %v2517
    %2911 = vmatpush1.bf16.msra.mxu0 %v2516
    %2912 = vmatprep.subr.bf16.mxu0 %v2525
    %2913 = vmatpush1.bf16.msra.mxu0 %v2524
    %2914 = vmatprep.subr.bf16.mxu0 %v2533
    %2915 = vmatpush1.bf16.msra.mxu0 %v2532
    %2916 = vmatprep.subr.bf16.mxu0 %v2541
    %2917 = vmatpush1.bf16.msra.mxu0 %v2540
    %2918 = vmatprep.subr.bf16.mxu0 %v2549
    %2919 = vmatpush1.bf16.msra.mxu0 %v2548
    %2920 = vmatprep.subr.bf16.mxu0 %v2557
    %2921 = vmatpush1.bf16.msra.mxu0 %v2556
    %2922 = vmatprep.subr.bf16.mxu0 %v2565
    %2923 = vmatpush1.bf16.msra.mxu0 %v2564
    %2924 = vmatprep.subr.bf16.mxu0 %v2573
    %2925 = vmatpush1.bf16.msra.mxu0 %v2572
    %2926 = vmatprep.mubr.bf16.mxu0 %v2431
    %2927 = vmatmul.mubr.bf16.gmra.mrb[0].mxu0 %v2430
    %v2928 = vpop.f32.mrb[0].mxu0
    %v2929 = vadd.f32 %v2719, %v2928
    %v2930 = vpop.f32.mrb[0].mxu0
    %v2931 = vadd.f32 %v2723, %v2930
    %v2932 = vpop.f32.mrb[0].mxu0
    %v2933 = vadd.f32 %v2719, %v2932
    %v2934 = vpop.f32.mrb[0].mxu0
    %v2935 = vadd.f32 %v2723, %v2934
    %2936 = vmatprep.mubr.bf16.mxu0 %v2435
    %2937 = vmatmul.mubr.bf16.gmra.mrb[0].mxu0 %v2434
    %v2938 = vpop.f32.mrb[0].mxu0
    %v2939 = vadd.f32 %v2719, %v2938
    %v2940 = vpop.f32.mrb[0].mxu0
    %v2941 = vadd.f32 %v2723, %v2940
    %v2942 = vpop.f32.mrb[0].mxu0
    %v2943 = vadd.f32 %v2719, %v2942
    %v2944 = vpop.f32.mrb[0].mxu0
    %v2945 = vadd.f32 %v2723, %v2944
    %2946 = vmatprep.mubr.bf16.mxu0 %v2439
    %2947 = vmatmul.mubr.bf16.gmra.mrb[0].mxu0 %v2438
    %v2948 = vpop.f32.mrb[0].mxu0
    %v2949 = vadd.f32 %v2719, %v2948
    %v2950 = vpop.f32.mrb[0].mxu0
    %v2951 = vadd.f32 %v2723, %v2950
    %v2952 = vpop.f32.mrb[0].mxu0
    %v2953 = vadd.f32 %v2719, %v2952
    %v2954 = vpop.f32.mrb[0].mxu0
    %v2955 = vadd.f32 %v2723, %v2954
    %2956 = vmatprep.mubr.bf16.mxu0 %v2443
    %2957 = vmatmul.mubr.bf16.gmra.mrb[0].mxu0 %v2442
    %v2958 = vpop.f32.mrb[0].mxu0
    %v2959 = vadd.f32 %v2719, %v2958
    %v2960 = vpop.f32.mrb[0].mxu0
    %v2961 = vadd.f32 %v2723, %v2960
    %v2962 = vpop.f32.mrb[0].mxu0
    %v2963 = vadd.f32 %v2719, %v2962
    %v2964 = vpop.f32.mrb[0].mxu0
    %v2965 = vadd.f32 %v2723, %v2964
    %2966 = vdwg.mxu0
    %2967 = vmatprep.subr.bf16.mxu0 %v2581
    %2968 = vmatpush1.bf16.msra.mxu0 %v2580
    %2969 = vmatprep.subr.bf16.mxu0 %v2589
    %2970 = vmatpush1.bf16.msra.mxu0 %v2588
    %2971 = vmatprep.subr.bf16.mxu0 %v2597
    %2972 = vmatpush1.bf16.msra.mxu0 %v2596
    %2973 = vmatprep.subr.bf16.mxu0 %v2605
    %2974 = vmatpush1.bf16.msra.mxu0 %v2604
    %2975 = vmatprep.subr.bf16.mxu0 %v2613
    %2976 = vmatpush1.bf16.msra.mxu0 %v2612
    %2977 = vmatprep.subr.bf16.mxu0 %v2621
    %2978 = vmatpush1.bf16.msra.mxu0 %v2620
    %2979 = vmatprep.subr.bf16.mxu0 %v2629
    %2980 = vmatpush1.bf16.msra.mxu0 %v2628
    %2981 = vmatprep.subr.bf16.mxu0 %v2637
    %2982 = vmatpush1.bf16.msra.mxu0 %v2636
    %2983 = vmatprep.subr.bf16.mxu0 %v2645
    %2984 = vmatpush1.bf16.msra.mxu0 %v2644
    %2985 = vmatprep.subr.bf16.mxu0 %v2653
    %2986 = vmatpush1.bf16.msra.mxu0 %v2652
    %2987 = vmatprep.subr.bf16.mxu0 %v2661
    %2988 = vmatpush1.bf16.msra.mxu0 %v2660
    %2989 = vmatprep.subr.bf16.mxu0 %v2669
    %2990 = vmatpush1.bf16.msra.mxu0 %v2668
    %2991 = vmatprep.subr.bf16.mxu0 %v2677
    %2992 = vmatpush1.bf16.msra.mxu0 %v2676
    %2993 = vmatprep.subr.bf16.mxu0 %v2685
    %2994 = vmatpush1.bf16.msra.mxu0 %v2684
    %2995 = vmatprep.subr.bf16.mxu0 %v2693
    %2996 = vmatpush1.bf16.msra.mxu0 %v2692
    %2997 = vmatprep.subr.bf16.mxu0 %v2701
    %2998 = vmatpush1.bf16.msra.mxu0 %v2700
    %2999 = vmatprep.mubr.bf16.mxu0 %v2433
    %3000 = vmatmul.mubr.bf16.gmra.mrb[0].mxu0 %v2432
    %v3001 = vpop.f32.mrb[0].mxu0
    %v3002 = vadd.f32 %v2929, %v3001
    %v3003 = vpop.f32.mrb[0].mxu0
    %v3004 = vadd.f32 %v2931, %v3003
    %v3005 = vpop.f32.mrb[0].mxu0
    %v3006 = vadd.f32 %v2933, %v3005
    %v3007 = vpop.f32.mrb[0].mxu0
    %v3008 = vadd.f32 %v2935, %v3007
    %3009 = vmatprep.mubr.bf16.mxu0 %v2437
    %3010 = vmatmul.mubr.bf16.gmra.mrb[0].mxu0 %v2436
    %v3011 = vpop.f32.mrb[0].mxu0
    %v3012 = vadd.f32 %v2939, %v3011
    %v3013 = vpop.f32.mrb[0].mxu0
    %v3014 = vadd.f32 %v2941, %v3013
    %v3015 = vpop.f32.mrb[0].mxu0
    %v3016 = vadd.f32 %v2943, %v3015
    %v3017 = vpop.f32.mrb[0].mxu0
    %v3018 = vadd.f32 %v2945, %v3017
    %3019 = vmatprep.mubr.bf16.mxu0 %v2441
    %3020 = vmatmul.mubr.bf16.gmra.mrb[0].mxu0 %v2440
    %v3021 = vpop.f32.mrb[0].mxu0
    %v3022 = vadd.f32 %v2949, %v3021
    %v3023 = vpop.f32.mrb[0].mxu0
    %v3024 = vadd.f32 %v2951, %v3023
    %v3025 = vpop.f32.mrb[0].mxu0
    %v3026 = vadd.f32 %v2953, %v3025
    %v3027 = vpop.f32.mrb[0].mxu0
    %v3028 = vadd.f32 %v2955, %v3027
    %3029 = vmatprep.mubr.bf16.mxu0 %v2445
    %3030 = vmatmul.mubr.bf16.gmra.mrb[0].mxu0 %v2444
    %v3031 = vpop.f32.mrb[0].mxu0
    %v3032 = vadd.f32 %v2959, %v3031
    %v3033 = vpop.f32.mrb[0].mxu0
    %v3034 = vadd.f32 %v2961, %v3033
    %v3035 = vpop.f32.mrb[0].mxu0
    %v3036 = vadd.f32 %v2963, %v3035
    %v3037 = vpop.f32.mrb[0].mxu0
    %v3038 = vadd.f32 %v2965, %v3037
    %3039 = vdwg.mxu0
    %3040 = vmatprep.subr.bf16.mxu0 %v2455
    %3041 = vmatpush1.bf16.msra.mxu0 %v2454
    %3042 = vmatprep.subr.bf16.mxu0 %v2463
    %3043 = vmatpush1.bf16.msra.mxu0 %v2462
    %3044 = vmatprep.subr.bf16.mxu0 %v2471
    %3045 = vmatpush1.bf16.msra.mxu0 %v2470
    %3046 = vmatprep.subr.bf16.mxu0 %v2479
    %3047 = vmatpush1.bf16.msra.mxu0 %v2478
    %3048 = vmatprep.subr.bf16.mxu0 %v2487
    %3049 = vmatpush1.bf16.msra.mxu0 %v2486
    %3050 = vmatprep.subr.bf16.mxu0 %v2495
    %3051 = vmatpush1.bf16.msra.mxu0 %v2494
    %3052 = vmatprep.subr.bf16.mxu0 %v2503
    %3053 = vmatpush1.bf16.msra.mxu0 %v2502
    %3054 = vmatprep.subr.bf16.mxu0 %v2511
    %3055 = vmatpush1.bf16.msra.mxu0 %v2510
    %3056 = vmatprep.subr.bf16.mxu0 %v2519
    %3057 = vmatpush1.bf16.msra.mxu0 %v2518
    %3058 = vmatprep.subr.bf16.mxu0 %v2527
    %3059 = vmatpush1.bf16.msra.mxu0 %v2526
    %3060 = vmatprep.subr.bf16.mxu0 %v2535
    %3061 = vmatpush1.bf16.msra.mxu0 %v2534
    %3062 = vmatprep.subr.bf16.mxu0 %v2543
    %3063 = vmatpush1.bf16.msra.mxu0 %v2542
    %3064 = vmatprep.subr.bf16.mxu0 %v2551
    %3065 = vmatpush1.bf16.msra.mxu0 %v2550
    %3066 = vmatprep.subr.bf16.mxu0 %v2559
    %3067 = vmatpush1.bf16.msra.mxu0 %v2558
    %3068 = vmatprep.subr.bf16.mxu0 %v2567
    %3069 = vmatpush1.bf16.msra.mxu0 %v2566
    %3070 = vmatprep.subr.bf16.mxu0 %v2575
    %3071 = vmatpush1.bf16.msra.mxu0 %v2574
    %3072 = vmatprep.mubr.bf16.mxu0 %v2431
    %3073 = vmatmul.mubr.bf16.gmra.mrb[0].mxu0 %v2430
    %v3074 = vpop.f32.mrb[0].mxu0
    %v3075 = vadd.f32 %v2727, %v3074
    %v3076 = vpop.f32.mrb[0].mxu0
    %v3077 = vadd.f32 %v2731, %v3076
    %v3078 = vpop.f32.mrb[0].mxu0
    %v3079 = vadd.f32 %v2727, %v3078
    %v3080 = vpop.f32.mrb[0].mxu0
    %v3081 = vadd.f32 %v2731, %v3080
    %3082 = vmatprep.mubr.bf16.mxu0 %v2435
    %3083 = vmatmul.mubr.bf16.gmra.mrb[0].mxu0 %v2434
    %v3084 = vpop.f32.mrb[0].mxu0
    %v3085 = vadd.f32 %v2727, %v3084
    %v3086 = vpop.f32.mrb[0].mxu0
    %v3087 = vadd.f32 %v2731, %v3086
    %v3088 = vpop.f32.mrb[0].mxu0
    %v3089 = vadd.f32 %v2727, %v3088
    %v3090 = vpop.f32.mrb[0].mxu0
    %v3091 = vadd.f32 %v2731, %v3090
    %3092 = vmatprep.mubr.bf16.mxu0 %v2439
    %3093 = vmatmul.mubr.bf16.gmra.mrb[0].mxu0 %v2438
    %v3094 = vpop.f32.mrb[0].mxu0
    %v3095 = vadd.f32 %v2727, %v3094
    %v3096 = vpop.f32.mrb[0].mxu0
    %v3097 = vadd.f32 %v2731, %v3096
    %v3098 = vpop.f32.mrb[0].mxu0
    %v3099 = vadd.f32 %v2727, %v3098
    %v3100 = vpop.f32.mrb[0].mxu0
    %v3101 = vadd.f32 %v2731, %v3100
    %3102 = vmatprep.mubr.bf16.mxu0 %v2443
    %3103 = vmatmul.mubr.bf16.gmra.mrb[0].mxu0 %v2442
    %v3104 = vpop.f32.mrb[0].mxu0
    %v3105 = vadd.f32 %v2727, %v3104
    %v3106 = vpop.f32.mrb[0].mxu0
    %v3107 = vadd.f32 %v2731, %v3106
    %v3108 = vpop.f32.mrb[0].mxu0
    %v3109 = vadd.f32 %v2727, %v3108
    %v3110 = vpop.f32.mrb[0].mxu0
    %v3111 = vadd.f32 %v2731, %v3110
    %3112 = vdwg.mxu0
    %3113 = vmatprep.subr.bf16.mxu0 %v2583
    %3114 = vmatpush1.bf16.msra.mxu0 %v2582
    %3115 = vmatprep.subr.bf16.mxu0 %v2591
    %3116 = vmatpush1.bf16.msra.mxu0 %v2590
    %3117 = vmatprep.subr.bf16.mxu0 %v2599
    %3118 = vmatpush1.bf16.msra.mxu0 %v2598
    %3119 = vmatprep.subr.bf16.mxu0 %v2607
    %3120 = vmatpush1.bf16.msra.mxu0 %v2606
    %3121 = vmatprep.subr.bf16.mxu0 %v2615
    %3122 = vmatpush1.bf16.msra.mxu0 %v2614
    %3123 = vmatprep.subr.bf16.mxu0 %v2623
    %3124 = vmatpush1.bf16.msra.mxu0 %v2622
    %3125 = vmatprep.subr.bf16.mxu0 %v2631
    %3126 = vmatpush1.bf16.msra.mxu0 %v2630
    %3127 = vmatprep.subr.bf16.mxu0 %v2639
    %3128 = vmatpush1.bf16.msra.mxu0 %v2638
    %3129 = vmatprep.subr.bf16.mxu0 %v2647
    %3130 = vmatpush1.bf16.msra.mxu0 %v2646
    %3131 = vmatprep.subr.bf16.mxu0 %v2655
    %3132 = vmatpush1.bf16.msra.mxu0 %v2654
    %3133 = vmatprep.subr.bf16.mxu0 %v2663
    %3134 = vmatpush1.bf16.msra.mxu0 %v2662
    %3135 = vmatprep.subr.bf16.mxu0 %v2671
    %3136 = vmatpush1.bf16.msra.mxu0 %v2670
    %3137 = vmatprep.subr.bf16.mxu0 %v2679
    %3138 = vmatpush1.bf16.msra.mxu0 %v2678
    %3139 = vmatprep.subr.bf16.mxu0 %v2687
    %3140 = vmatpush1.bf16.msra.mxu0 %v2686
    %3141 = vmatprep.subr.bf16.mxu0 %v2695
    %3142 = vmatpush1.bf16.msra.mxu0 %v2694
    %3143 = vmatprep.subr.bf16.mxu0 %v2703
    %3144 = vmatpush1.bf16.msra.mxu0 %v2702
    %3145 = vmatprep.mubr.bf16.mxu0 %v2433
    %3146 = vmatmul.mubr.bf16.gmra.mrb[0].mxu0 %v2432
    %v3147 = vpop.f32.mrb[0].mxu0
    %v3148 = vadd.f32 %v3075, %v3147
    %v3149 = vpop.f32.mrb[0].mxu0
    %v3150 = vadd.f32 %v3077, %v3149
    %v3151 = vpop.f32.mrb[0].mxu0
    %v3152 = vadd.f32 %v3079, %v3151
    %v3153 = vpop.f32.mrb[0].mxu0
    %v3154 = vadd.f32 %v3081, %v3153
    %3155 = vmatprep.mubr.bf16.mxu0 %v2437
    %3156 = vmatmul.mubr.bf16.gmra.mrb[0].mxu0 %v2436
    %v3157 = vpop.f32.mrb[0].mxu0
    %v3158 = vadd.f32 %v3085, %v3157
    %v3159 = vpop.f32.mrb[0].mxu0
    %v3160 = vadd.f32 %v3087, %v3159
    %v3161 = vpop.f32.mrb[0].mxu0
    %v3162 = vadd.f32 %v3089, %v3161
    %v3163 = vpop.f32.mrb[0].mxu0
    %v3164 = vadd.f32 %v3091, %v3163
    %3165 = vmatprep.mubr.bf16.mxu0 %v2441
    %3166 = vmatmul.mubr.bf16.gmra.mrb[0].mxu0 %v2440
    %v3167 = vpop.f32.mrb[0].mxu0
    %v3168 = vadd.f32 %v3095, %v3167
    %v3169 = vpop.f32.mrb[0].mxu0
    %v3170 = vadd.f32 %v3097, %v3169
    %v3171 = vpop.f32.mrb[0].mxu0
    %v3172 = vadd.f32 %v3099, %v3171
    %v3173 = vpop.f32.mrb[0].mxu0
    %v3174 = vadd.f32 %v3101, %v3173
    %3175 = vmatprep.mubr.bf16.mxu0 %v2445
    %3176 = vmatmul.mubr.bf16.gmra.mrb[0].mxu0 %v2444
    %v3177 = vpop.f32.mrb[0].mxu0
    %v3178 = vadd.f32 %v3105, %v3177
    %v3179 = vpop.f32.mrb[0].mxu0
    %v3180 = vadd.f32 %v3107, %v3179
    %v3181 = vpop.f32.mrb[0].mxu0
    %v3182 = vadd.f32 %v3109, %v3181
    %v3183 = vpop.f32.mrb[0].mxu0
    %v3184 = vadd.f32 %v3111, %v3183
    %3185 = vdwg.mxu0
    %3186 = vmatprep.subr.bf16.mxu0 %v2457
    %3187 = vmatpush1.bf16.msra.mxu0 %v2456
    %3188 = vmatprep.subr.bf16.mxu0 %v2465
    %3189 = vmatpush1.bf16.msra.mxu0 %v2464
    %3190 = vmatprep.subr.bf16.mxu0 %v2473
    %3191 = vmatpush1.bf16.msra.mxu0 %v2472
    %3192 = vmatprep.subr.bf16.mxu0 %v2481
    %3193 = vmatpush1.bf16.msra.mxu0 %v2480
    %3194 = vmatprep.subr.bf16.mxu0 %v2489
    %3195 = vmatpush1.bf16.msra.mxu0 %v2488
    %3196 = vmatprep.subr.bf16.mxu0 %v2497
    %3197 = vmatpush1.bf16.msra.mxu0 %v2496
    %3198 = vmatprep.subr.bf16.mxu0 %v2505
    %3199 = vmatpush1.bf16.msra.mxu0 %v2504
    %3200 = vmatprep.subr.bf16.mxu0 %v2513
    %3201 = vmatpush1.bf16.msra.mxu0 %v2512
    %3202 = vmatprep.subr.bf16.mxu0 %v2521
    %3203 = vmatpush1.bf16.msra.mxu0 %v2520
    %3204 = vmatprep.subr.bf16.mxu0 %v2529
    %3205 = vmatpush1.bf16.msra.mxu0 %v2528
    %3206 = vmatprep.subr.bf16.mxu0 %v2537
    %3207 = vmatpush1.bf16.msra.mxu0 %v2536
    %3208 = vmatprep.subr.bf16.mxu0 %v2545
    %3209 = vmatpush1.bf16.msra.mxu0 %v2544
    %3210 = vmatprep.subr.bf16.mxu0 %v2553
    %3211 = vmatpush1.bf16.msra.mxu0 %v2552
    %3212 = vmatprep.subr.bf16.mxu0 %v2561
    %3213 = vmatpush1.bf16.msra.mxu0 %v2560
    %3214 = vmatprep.subr.bf16.mxu0 %v2569
    %3215 = vmatpush1.bf16.msra.mxu0 %v2568
    %3216 = vmatprep.subr.bf16.mxu0 %v2577
    %3217 = vmatpush1.bf16.msra.mxu0 %v2576
    %3218 = vmatprep.mubr.bf16.mxu0 %v2431
    %3219 = vmatmul.mubr.bf16.gmra.mrb[0].mxu0 %v2430
    %v3220 = vpop.f32.mrb[0].mxu0
    %v3221 = vadd.f32 %v2735, %v3220
    %v3222 = vpop.f32.mrb[0].mxu0
    %v3223 = vadd.f32 %v2739, %v3222
    %v3224 = vpop.f32.mrb[0].mxu0
    %v3225 = vadd.f32 %v2735, %v3224
    %v3226 = vpop.f32.mrb[0].mxu0
    %v3227 = vadd.f32 %v2739, %v3226
    %3228 = vmatprep.mubr.bf16.mxu0 %v2435
    %3229 = vmatmul.mubr.bf16.gmra.mrb[0].mxu0 %v2434
    %v3230 = vpop.f32.mrb[0].mxu0
    %v3231 = vadd.f32 %v2735, %v3230
    %v3232 = vpop.f32.mrb[0].mxu0
    %v3233 = vadd.f32 %v2739, %v3232
    %v3234 = vpop.f32.mrb[0].mxu0
    %v3235 = vadd.f32 %v2735, %v3234
    %v3236 = vpop.f32.mrb[0].mxu0
    %v3237 = vadd.f32 %v2739, %v3236
    %3238 = vmatprep.mubr.bf16.mxu0 %v2439
    %3239 = vmatmul.mubr.bf16.gmra.mrb[0].mxu0 %v2438
    %v3240 = vpop.f32.mrb[0].mxu0
    %v3241 = vadd.f32 %v2735, %v3240
    %v3242 = vpop.f32.mrb[0].mxu0
    %v3243 = vadd.f32 %v2739, %v3242
    %v3244 = vpop.f32.mrb[0].mxu0
    %v3245 = vadd.f32 %v2735, %v3244
    %v3246 = vpop.f32.mrb[0].mxu0
    %v3247 = vadd.f32 %v2739, %v3246
    %3248 = vmatprep.mubr.bf16.mxu0 %v2443
    %3249 = vmatmul.mubr.bf16.gmra.mrb[0].mxu0 %v2442
    %v3250 = vpop.f32.mrb[0].mxu0
    %v3251 = vadd.f32 %v2735, %v3250
    %v3252 = vpop.f32.mrb[0].mxu0
    %v3253 = vadd.f32 %v2739, %v3252
    %v3254 = vpop.f32.mrb[0].mxu0
    %v3255 = vadd.f32 %v2735, %v3254
    %v3256 = vpop.f32.mrb[0].mxu0
    %v3257 = vadd.f32 %v2739, %v3256
    %3258 = vdwg.mxu0
    %3259 = vmatprep.subr.bf16.mxu0 %v2585
    %3260 = vmatpush1.bf16.msra.mxu0 %v2584
    %3261 = vmatprep.subr.bf16.mxu0 %v2593
    %3262 = vmatpush1.bf16.msra.mxu0 %v2592
    %3263 = vmatprep.subr.bf16.mxu0 %v2601
    %3264 = vmatpush1.bf16.msra.mxu0 %v2600
    %3265 = vmatprep.subr.bf16.mxu0 %v2609
    %3266 = vmatpush1.bf16.msra.mxu0 %v2608
    %3267 = vmatprep.subr.bf16.mxu0 %v2617
    %3268 = vmatpush1.bf16.msra.mxu0 %v2616
    %3269 = vmatprep.subr.bf16.mxu0 %v2625
    %3270 = vmatpush1.bf16.msra.mxu0 %v2624
    %3271 = vmatprep.subr.bf16.mxu0 %v2633
    %3272 = vmatpush1.bf16.msra.mxu0 %v2632
    %3273 = vmatprep.subr.bf16.mxu0 %v2641
    %3274 = vmatpush1.bf16.msra.mxu0 %v2640
    %3275 = vmatprep.subr.bf16.mxu0 %v2649
    %3276 = vmatpush1.bf16.msra.mxu0 %v2648
    %3277 = vmatprep.subr.bf16.mxu0 %v2657
    %3278 = vmatpush1.bf16.msra.mxu0 %v2656
    %3279 = vmatprep.subr.bf16.mxu0 %v2665
    %3280 = vmatpush1.bf16.msra.mxu0 %v2664
    %3281 = vmatprep.subr.bf16.mxu0 %v2673
    %3282 = vmatpush1.bf16.msra.mxu0 %v2672
    %3283 = vmatprep.subr.bf16.mxu0 %v2681
    %3284 = vmatpush1.bf16.msra.mxu0 %v2680
    %3285 = vmatprep.subr.bf16.mxu0 %v2689
    %3286 = vmatpush1.bf16.msra.mxu0 %v2688
    %3287 = vmatprep.subr.bf16.mxu0 %v2697
    %3288 = vmatpush1.bf16.msra.mxu0 %v2696
    %3289 = vmatprep.subr.bf16.mxu0 %v2705
    %3290 = vmatpush1.bf16.msra.mxu0 %v2704
    %3291 = vmatprep.mubr.bf16.mxu0 %v2433
    %3292 = vmatmul.mubr.bf16.gmra.mrb[0].mxu0 %v2432
    %v3293 = vpop.f32.mrb[0].mxu0
    %v3294 = vadd.f32 %v3221, %v3293
    %v3295 = vpop.f32.mrb[0].mxu0
    %v3296 = vadd.f32 %v3223, %v3295
    %v3297 = vpop.f32.mrb[0].mxu0
    %v3298 = vadd.f32 %v3225, %v3297
    %v3299 = vpop.f32.mrb[0].mxu0
    %v3300 = vadd.f32 %v3227, %v3299
    %3301 = vmatprep.mubr.bf16.mxu0 %v2437
    %3302 = vmatmul.mubr.bf16.gmra.mrb[0].mxu0 %v2436
    %v3303 = vpop.f32.mrb[0].mxu0
    %v3304 = vadd.f32 %v3231, %v3303
    %v3305 = vpop.f32.mrb[0].mxu0
    %v3306 = vadd.f32 %v3233, %v3305
    %v3307 = vpop.f32.mrb[0].mxu0
    %v3308 = vadd.f32 %v3235, %v3307
    %v3309 = vpop.f32.mrb[0].mxu0
    %v3310 = vadd.f32 %v3237, %v3309
    %3311 = vmatprep.mubr.bf16.mxu0 %v2441
    %3312 = vmatmul.mubr.bf16.gmra.mrb[0].mxu0 %v2440
    %v3313 = vpop.f32.mrb[0].mxu0
    %v3314 = vadd.f32 %v3241, %v3313
    %v3315 = vpop.f32.mrb[0].mxu0
    %v3316 = vadd.f32 %v3243, %v3315
    %v3317 = vpop.f32.mrb[0].mxu0
    %v3318 = vadd.f32 %v3245, %v3317
    %v3319 = vpop.f32.mrb[0].mxu0
    %v3320 = vadd.f32 %v3247, %v3319
    %3321 = vmatprep.mubr.bf16.mxu0 %v2445
    %3322 = vmatmul.mubr.bf16.gmra.mrb[0].mxu0 %v2444
    %v3323 = vpop.f32.mrb[0].mxu0
    %v3324 = vadd.f32 %v3251, %v3323
    %v3325 = vpop.f32.mrb[0].mxu0
    %v3326 = vadd.f32 %v3253, %v3325
    %v3327 = vpop.f32.mrb[0].mxu0
    %v3328 = vadd.f32 %v3255, %v3327
    %v3329 = vpop.f32.mrb[0].mxu0
    %v3330 = vadd.f32 %v3257, %v3329
    %3331 = vdwg.mxu0
    %v3332 = vmax.f32 %v2856, 0.0
    %v3333 = vmax.f32 %v2858, 0.0
    %v3334 = vmax.f32 %v3002, 0.0
    %v3335 = vmax.f32 %v3004, 0.0
    %v3336 = vmax.f32 %v3148, 0.0
    %v3337 = vmax.f32 %v3150, 0.0
    %v3338 = vmax.f32 %v3294, 0.0
    %v3339 = vmax.f32 %v3296, 0.0
    %v3340 = vmax.f32 %v2860, 0.0
    %v3341 = vmax.f32 %v2862, 0.0
    %v3342 = vmax.f32 %v3006, 0.0
    %v3343 = vmax.f32 %v3008, 0.0
    %v3344 = vmax.f32 %v3152, 0.0
    %v3345 = vmax.f32 %v3154, 0.0
    %v3346 = vmax.f32 %v3298, 0.0
    %v3347 = vmax.f32 %v3300, 0.0
    %v3348 = vmax.f32 %v2866, 0.0
    %v3349 = vmax.f32 %v2868, 0.0
    %v3350 = vmax.f32 %v3012, 0.0
    %v3351 = vmax.f32 %v3014, 0.0
    %v3352 = vmax.f32 %v3158, 0.0
    %v3353 = vmax.f32 %v3160, 0.0
    %v3354 = vmax.f32 %v3304, 0.0
    %v3355 = vmax.f32 %v3306, 0.0
    %v3356 = vmax.f32 %v2870, 0.0
    %v3357 = vmax.f32 %v2872, 0.0
    %v3358 = vmax.f32 %v3016, 0.0
    %v3359 = vmax.f32 %v3018, 0.0
    %v3360 = vmax.f32 %v3162, 0.0
    %v3361 = vmax.f32 %v3164, 0.0
    %v3362 = vmax.f32 %v3308, 0.0
    %v3363 = vmax.f32 %v3310, 0.0
    %v3364 = vmax.f32 %v2876, 0.0
    %v3365 = vmax.f32 %v2878, 0.0
    %v3366 = vmax.f32 %v3022, 0.0
    %v3367 = vmax.f32 %v3024, 0.0
    %v3368 = vmax.f32 %v3168, 0.0
    %v3369 = vmax.f32 %v3170, 0.0
    %v3370 = vmax.f32 %v3314, 0.0
    %v3371 = vmax.f32 %v3316, 0.0
    %v3372 = vmax.f32 %v2880, 0.0
    %v3373 = vmax.f32 %v2882, 0.0
    %v3374 = vmax.f32 %v3026, 0.0
    %v3375 = vmax.f32 %v3028, 0.0
    %v3376 = vmax.f32 %v3172, 0.0
    %v3377 = vmax.f32 %v3174, 0.0
    %v3378 = vmax.f32 %v3318, 0.0
    %v3379 = vmax.f32 %v3320, 0.0
    %v3380 = vmax.f32 %v2886, 0.0
    %v3381 = vmax.f32 %v2888, 0.0
    %v3382 = vmax.f32 %v3032, 0.0
    %v3383 = vmax.f32 %v3034, 0.0
    %v3384 = vmax.f32 %v3178, 0.0
    %v3385 = vmax.f32 %v3180, 0.0
    %v3386 = vmax.f32 %v3324, 0.0
    %v3387 = vmax.f32 %v3326, 0.0
    %v3388 = vmax.f32 %v2890, 0.0
    %v3389 = vmax.f32 %v2892, 0.0
    %v3390 = vmax.f32 %v3036, 0.0
    %v3391 = vmax.f32 %v3038, 0.0
    %v3392 = vmax.f32 %v3182, 0.0
    %v3393 = vmax.f32 %v3184, 0.0
    %v3394 = vmax.f32 %v3328, 0.0
    %v3395 = vmax.f32 %v3330, 0.0
    %v3396 = vld [vmem:[#allocation26] sm:$0xff]
    %v3398 = vlaneseq
    %v3399 = vshrl.u32 %v3398, 7
    %v3400 = vsub.s32 0, %v3399
    %v3401 = vrot.slane %v3396, %v3400
    %v3402 = vlaneseq
    %v3403 = vshrl.u32 %v3402, 7
    %v3404 = vsub.s32 1, %v3403
    %v3405 = vrot.slane %v3396, %v3404
    %v3406 = vlaneseq
    %v3407 = vshrl.u32 %v3406, 7
    %v3408 = vsub.s32 2, %v3407
    %v3409 = vrot.slane %v3396, %v3408
    %v3410 = vlaneseq
    %v3411 = vshrl.u32 %v3410, 7
    %v3412 = vsub.s32 3, %v3411
    %v3413 = vrot.slane %v3396, %v3412
    %v3414 = vlaneseq
    %v3415 = vshrl.u32 %v3414, 7
    %v3416 = vsub.s32 4, %v3415
    %v3417 = vrot.slane %v3396, %v3416
    %v3418 = vlaneseq
    %v3419 = vshrl.u32 %v3418, 7
    %v3420 = vsub.s32 5, %v3419
    %v3421 = vrot.slane %v3396, %v3420
    %v3422 = vlaneseq
    %v3423 = vshrl.u32 %v3422, 7
    %v3424 = vsub.s32 6, %v3423
    %v3425 = vrot.slane %v3396, %v3424
    %v3426 = vlaneseq
    %v3427 = vshrl.u32 %v3426, 7
    %v3428 = vsub.s32 7, %v3427
    %v3429 = vrot.slane %v3396, %v3428
    %v3438 = vmul.f32 %v3332, %v3401
    %v3439 = vmul.f32 %v3333, %v3405
    %v3440 = vmul.f32 %v3334, %v3409
    %v3441 = vmul.f32 %v3335, %v3413
    %v3442 = vmul.f32 %v3336, %v3417
    %v3443 = vmul.f32 %v3337, %v3421
    %v3444 = vmul.f32 %v3338, %v3425
    %v3445 = vmul.f32 %v3339, %v3429
    %v3446 = vmul.f32 %v3340, %v3401
    %v3447 = vmul.f32 %v3341, %v3405
    %v3448 = vmul.f32 %v3342, %v3409
    %v3449 = vmul.f32 %v3343, %v3413
    %v3450 = vmul.f32 %v3344, %v3417
    %v3451 = vmul.f32 %v3345, %v3421
    %v3452 = vmul.f32 %v3346, %v3425
    %v3453 = vmul.f32 %v3347, %v3429
    %v3454 = vmul.f32 %v3348, %v3401
    %v3455 = vmul.f32 %v3349, %v3405
    %v3456 = vmul.f32 %v3350, %v3409
    %v3457 = vmul.f32 %v3351, %v3413
    %v3458 = vmul.f32 %v3352, %v3417
    %v3459 = vmul.f32 %v3353, %v3421
    %v3460 = vmul.f32 %v3354, %v3425
    %v3461 = vmul.f32 %v3355, %v3429
    %v3462 = vmul.f32 %v3356, %v3401
    %v3463 = vmul.f32 %v3357, %v3405
    %v3464 = vmul.f32 %v3358, %v3409
    %v3465 = vmul.f32 %v3359, %v3413
    %v3466 = vmul.f32 %v3360, %v3417
    %v3467 = vmul.f32 %v3361, %v3421
    %v3468 = vmul.f32 %v3362, %v3425
    %v3469 = vmul.f32 %v3363, %v3429
    %v3470 = vmul.f32 %v3364, %v3401
    %v3471 = vmul.f32 %v3365, %v3405
    %v3472 = vmul.f32 %v3366, %v3409
    %v3473 = vmul.f32 %v3367, %v3413
    %v3474 = vmul.f32 %v3368, %v3417
    %v3475 = vmul.f32 %v3369, %v3421
    %v3476 = vmul.f32 %v3370, %v3425
    %v3477 = vmul.f32 %v3371, %v3429
    %v3478 = vmul.f32 %v3372, %v3401
    %v3479 = vmul.f32 %v3373, %v3405
    %v3480 = vmul.f32 %v3374, %v3409
    %v3481 = vmul.f32 %v3375, %v3413
    %v3482 = vmul.f32 %v3376, %v3417
    %v3483 = vmul.f32 %v3377, %v3421
    %v3484 = vmul.f32 %v3378, %v3425
    %v3485 = vmul.f32 %v3379, %v3429
    %v3486 = vmul.f32 %v3380, %v3401
    %v3487 = vmul.f32 %v3381, %v3405
    %v3488 = vmul.f32 %v3382, %v3409
    %v3489 = vmul.f32 %v3383, %v3413
    %v3490 = vmul.f32 %v3384, %v3417
    %v3491 = vmul.f32 %v3385, %v3421
    %v3492 = vmul.f32 %v3386, %v3425
    %v3493 = vmul.f32 %v3387, %v3429
    %v3494 = vmul.f32 %v3388, %v3401
    %v3495 = vmul.f32 %v3389, %v3405
    %v3496 = vmul.f32 %v3390, %v3409
    %v3497 = vmul.f32 %v3391, %v3413
    %v3498 = vmul.f32 %v3392, %v3417
    %v3499 = vmul.f32 %v3393, %v3421
    %v3500 = vmul.f32 %v3394, %v3425
    %v3501 = vmul.f32 %v3395, %v3429
    %v3502 = vld [vmem:[#allocation27] sm:$0xff]
    %v3504 = vlaneseq
    %v3505 = vshrl.u32 %v3504, 7
    %v3506 = vsub.s32 0, %v3505
    %v3507 = vrot.slane %v3502, %v3506
    %v3508 = vlaneseq
    %v3509 = vshrl.u32 %v3508, 7
    %v3510 = vsub.s32 1, %v3509
    %v3511 = vrot.slane %v3502, %v3510
    %v3512 = vlaneseq
    %v3513 = vshrl.u32 %v3512, 7
    %v3514 = vsub.s32 2, %v3513
    %v3515 = vrot.slane %v3502, %v3514
    %v3516 = vlaneseq
    %v3517 = vshrl.u32 %v3516, 7
    %v3518 = vsub.s32 3, %v3517
    %v3519 = vrot.slane %v3502, %v3518
    %v3520 = vlaneseq
    %v3521 = vshrl.u32 %v3520, 7
    %v3522 = vsub.s32 4, %v3521
    %v3523 = vrot.slane %v3502, %v3522
    %v3524 = vlaneseq
    %v3525 = vshrl.u32 %v3524, 7
    %v3526 = vsub.s32 5, %v3525
    %v3527 = vrot.slane %v3502, %v3526
    %v3528 = vlaneseq
    %v3529 = vshrl.u32 %v3528, 7
    %v3530 = vsub.s32 6, %v3529
    %v3531 = vrot.slane %v3502, %v3530
    %v3532 = vlaneseq
    %v3533 = vshrl.u32 %v3532, 7
    %v3534 = vsub.s32 7, %v3533
    %v3535 = vrot.slane %v3502, %v3534
    %v3544 = vadd.f32 %v3438, %v3507
    %v3545 = vadd.f32 %v3439, %v3511
    %v3546 = vadd.f32 %v3440, %v3515
    %v3547 = vadd.f32 %v3441, %v3519
    %v3548 = vadd.f32 %v3442, %v3523
    %v3549 = vadd.f32 %v3443, %v3527
    %v3550 = vadd.f32 %v3444, %v3531
    %v3551 = vadd.f32 %v3445, %v3535
    %v3552 = vadd.f32 %v3446, %v3507
    %v3553 = vadd.f32 %v3447, %v3511
    %v3554 = vadd.f32 %v3448, %v3515
    %v3555 = vadd.f32 %v3449, %v3519
    %v3556 = vadd.f32 %v3450, %v3523
    %v3557 = vadd.f32 %v3451, %v3527
    %v3558 = vadd.f32 %v3452, %v3531
    %v3559 = vadd.f32 %v3453, %v3535
    %v3560 = vadd.f32 %v3454, %v3507
    %v3561 = vadd.f32 %v3455, %v3511
    %v3562 = vadd.f32 %v3456, %v3515
    %v3563 = vadd.f32 %v3457, %v3519
    %v3564 = vadd.f32 %v3458, %v3523
    %v3565 = vadd.f32 %v3459, %v3527
    %v3566 = vadd.f32 %v3460, %v3531
    %v3567 = vadd.f32 %v3461, %v3535
    %v3568 = vadd.f32 %v3462, %v3507
    %v3569 = vadd.f32 %v3463, %v3511
    %v3570 = vadd.f32 %v3464, %v3515
    %v3571 = vadd.f32 %v3465, %v3519
    %v3572 = vadd.f32 %v3466, %v3523
    %v3573 = vadd.f32 %v3467, %v3527
    %v3574 = vadd.f32 %v3468, %v3531
    %v3575 = vadd.f32 %v3469, %v3535
    %v3576 = vadd.f32 %v3470, %v3507
    %v3577 = vadd.f32 %v3471, %v3511
    %v3578 = vadd.f32 %v3472, %v3515
    %v3579 = vadd.f32 %v3473, %v3519
    %v3580 = vadd.f32 %v3474, %v3523
    %v3581 = vadd.f32 %v3475, %v3527
    %v3582 = vadd.f32 %v3476, %v3531
    %v3583 = vadd.f32 %v3477, %v3535
    %v3584 = vadd.f32 %v3478, %v3507
    %v3585 = vadd.f32 %v3479, %v3511
    %v3586 = vadd.f32 %v3480, %v3515
    %v3587 = vadd.f32 %v3481, %v3519
    %v3588 = vadd.f32 %v3482, %v3523
    %v3589 = vadd.f32 %v3483, %v3527
    %v3590 = vadd.f32 %v3484, %v3531
    %v3591 = vadd.f32 %v3485, %v3535
    %v3592 = vadd.f32 %v3486, %v3507
    %v3593 = vadd.f32 %v3487, %v3511
    %v3594 = vadd.f32 %v3488, %v3515
    %v3595 = vadd.f32 %v3489, %v3519
    %v3596 = vadd.f32 %v3490, %v3523
    %v3597 = vadd.f32 %v3491, %v3527
    %v3598 = vadd.f32 %v3492, %v3531
    %v3599 = vadd.f32 %v3493, %v3535
    %v3600 = vadd.f32 %v3494, %v3507
    %v3601 = vadd.f32 %v3495, %v3511
    %v3602 = vadd.f32 %v3496, %v3515
    %v3603 = vadd.f32 %v3497, %v3519
    %v3604 = vadd.f32 %v3498, %v3523
    %v3605 = vadd.f32 %v3499, %v3527
    %v3606 = vadd.f32 %v3500, %v3531
    %v3607 = vadd.f32 %v3501, %v3535
    %v3608 = vpack.c.bf16 %v3552, %v3544
    %v3609 = vpack.c.bf16 %v3553, %v3545
    %v3610 = vpack.c.bf16 %v3554, %v3546
    %v3611 = vpack.c.bf16 %v3555, %v3547
    %v3612 = vpack.c.bf16 %v3556, %v3548
    %v3613 = vpack.c.bf16 %v3557, %v3549
    %v3614 = vpack.c.bf16 %v3558, %v3550
    %v3615 = vpack.c.bf16 %v3559, %v3551
    %v3616 = vpack.c.bf16 %v3568, %v3560
    %v3617 = vpack.c.bf16 %v3569, %v3561
    %v3618 = vpack.c.bf16 %v3570, %v3562
    %v3619 = vpack.c.bf16 %v3571, %v3563
    %v3620 = vpack.c.bf16 %v3572, %v3564
    %v3621 = vpack.c.bf16 %v3573, %v3565
    %v3622 = vpack.c.bf16 %v3574, %v3566
    %v3623 = vpack.c.bf16 %v3575, %v3567
    %v3624 = vpack.c.bf16 %v3584, %v3576
    %v3625 = vpack.c.bf16 %v3585, %v3577
    %v3626 = vpack.c.bf16 %v3586, %v3578
    %v3627 = vpack.c.bf16 %v3587, %v3579
    %v3628 = vpack.c.bf16 %v3588, %v3580
    %v3629 = vpack.c.bf16 %v3589, %v3581
    %v3630 = vpack.c.bf16 %v3590, %v3582
    %v3631 = vpack.c.bf16 %v3591, %v3583
    %v3632 = vpack.c.bf16 %v3600, %v3592
    %v3633 = vpack.c.bf16 %v3601, %v3593
    %v3634 = vpack.c.bf16 %v3602, %v3594
    %v3635 = vpack.c.bf16 %v3603, %v3595
    %v3636 = vpack.c.bf16 %v3604, %v3596
    %v3637 = vpack.c.bf16 %v3605, %v3597
    %v3638 = vpack.c.bf16 %v3606, %v3598
    %v3639 = vpack.c.bf16 %v3607, %v3599
    %v3640 = vld [vmem:[%s41] sm:$0xff]
    %v3641 = vld [vmem:[%s41 + $0x8] sm:$0xff]
    %v3642 = vld [vmem:[%s41 + $0x10] sm:$0xff]
    %v3643 = vld [vmem:[%s41 + $0x18] sm:$0xff]
    %v3644 = vld [vmem:[%s41 + $0x20] sm:$0xff]
    %v3645 = vld [vmem:[%s41 + $0x28] sm:$0xff]
    %v3646 = vld [vmem:[%s41 + $0x30] sm:$0xff]
    %v3647 = vld [vmem:[%s41 + $0x38] sm:$0xff]
    %v3648 = vld [vmem:[%s41 + $0x40] sm:$0xff]
    %v3649 = vld [vmem:[%s41 + $0x48] sm:$0xff]
    %v3650 = vld [vmem:[%s41 + $0x50] sm:$0xff]
    %v3651 = vld [vmem:[%s41 + $0x58] sm:$0xff]
    %v3652 = vld [vmem:[%s41 + $0x60] sm:$0xff]
    %v3653 = vld [vmem:[%s41 + $0x68] sm:$0xff]
    %v3654 = vld [vmem:[%s41 + $0x70] sm:$0xff]
    %v3655 = vld [vmem:[%s41 + $0x78] sm:$0xff]
    %v3656 = vld [vmem:[%s41 + $0x80] sm:$0xff]
    %v3657 = vld [vmem:[%s41 + $0x88] sm:$0xff]
    %v3658 = vld [vmem:[%s41 + $0x90] sm:$0xff]
    %v3659 = vld [vmem:[%s41 + $0x98] sm:$0xff]
    %v3660 = vld [vmem:[%s41 + $0xa0] sm:$0xff]
    %v3661 = vld [vmem:[%s41 + $0xa8] sm:$0xff]
    %v3662 = vld [vmem:[%s41 + $0xb0] sm:$0xff]
    %v3663 = vld [vmem:[%s41 + $0xb8] sm:$0xff]
    %v3664 = vld [vmem:[%s41 + $0xc0] sm:$0xff]
    %v3665 = vld [vmem:[%s41 + $0xc8] sm:$0xff]
    %v3666 = vld [vmem:[%s41 + $0xd0] sm:$0xff]
    %v3667 = vld [vmem:[%s41 + $0xd8] sm:$0xff]
    %v3668 = vld [vmem:[%s41 + $0xe0] sm:$0xff]
    %v3669 = vld [vmem:[%s41 + $0xe8] sm:$0xff]
    %v3670 = vld [vmem:[%s41 + $0xf0] sm:$0xff]
    %v3671 = vld [vmem:[%s41 + $0xf8] sm:$0xff]
    %v3672 = vld [vmem:[#allocation29] sm:$0xf]
    %v3674 = vlaneseq
    %v3675 = vshrl.u32 %v3674, 7
    %v3676 = vsub.s32 0, %v3675
    %v3677 = vrot.slane %v3672, %v3676
    %v3678 = vlaneseq
    %v3679 = vshrl.u32 %v3678, 7
    %v3680 = vsub.s32 1, %v3679
    %v3681 = vrot.slane %v3672, %v3680
    %v3682 = vlaneseq
    %v3683 = vshrl.u32 %v3682, 7
    %v3684 = vsub.s32 2, %v3683
    %v3685 = vrot.slane %v3672, %v3684
    %v3686 = vlaneseq
    %v3687 = vshrl.u32 %v3686, 7
    %v3688 = vsub.s32 3, %v3687
    %v3689 = vrot.slane %v3672, %v3688
    %v3726 = vunpack.c.l.b16 %v3640
    %v3727 = vunpack.c.h.b16 %v3640
    %v3728 = vunpack.c.l.b16 %v3641
    %v3729 = vunpack.c.h.b16 %v3641
    %v3730 = vunpack.c.l.b16 %v3642
    %v3731 = vunpack.c.h.b16 %v3642
    %v3732 = vunpack.c.l.b16 %v3643
    %v3733 = vunpack.c.h.b16 %v3643
    %v3734 = vunpack.c.l.b16 %v3644
    %v3735 = vunpack.c.h.b16 %v3644
    %v3736 = vunpack.c.l.b16 %v3645
    %v3737 = vunpack.c.h.b16 %v3645
    %v3738 = vunpack.c.l.b16 %v3646
    %v3739 = vunpack.c.h.b16 %v3646
    %v3740 = vunpack.c.l.b16 %v3647
    %v3741 = vunpack.c.h.b16 %v3647
    %v3742 = vunpack.c.l.b16 %v3648
    %v3743 = vunpack.c.h.b16 %v3648
    %v3744 = vunpack.c.l.b16 %v3649
    %v3745 = vunpack.c.h.b16 %v3649
    %v3746 = vunpack.c.l.b16 %v3650
    %v3747 = vunpack.c.h.b16 %v3650
    %v3748 = vunpack.c.l.b16 %v3651
    %v3749 = vunpack.c.h.b16 %v3651
    %v3750 = vunpack.c.l.b16 %v3652
    %v3751 = vunpack.c.h.b16 %v3652
    %v3752 = vunpack.c.l.b16 %v3653
    %v3753 = vunpack.c.h.b16 %v3653
    %v3754 = vunpack.c.l.b16 %v3654
    %v3755 = vunpack.c.h.b16 %v3654
    %v3756 = vunpack.c.l.b16 %v3655
    %v3757 = vunpack.c.h.b16 %v3655
    %v3758 = vunpack.c.l.b16 %v3656
    %v3759 = vunpack.c.h.b16 %v3656
    %v3760 = vunpack.c.l.b16 %v3657
    %v3761 = vunpack.c.h.b16 %v3657
    %v3762 = vunpack.c.l.b16 %v3658
    %v3763 = vunpack.c.h.b16 %v3658
    %v3764 = vunpack.c.l.b16 %v3659
    %v3765 = vunpack.c.h.b16 %v3659
    %v3766 = vunpack.c.l.b16 %v3660
    %v3767 = vunpack.c.h.b16 %v3660
    %v3768 = vunpack.c.l.b16 %v3661
    %v3769 = vunpack.c.h.b16 %v3661
    %v3770 = vunpack.c.l.b16 %v3662
    %v3771 = vunpack.c.h.b16 %v3662
    %v3772 = vunpack.c.l.b16 %v3663
    %v3773 = vunpack.c.h.b16 %v3663
    %v3774 = vunpack.c.l.b16 %v3664
    %v3775 = vunpack.c.h.b16 %v3664
    %v3776 = vunpack.c.l.b16 %v3665
    %v3777 = vunpack.c.h.b16 %v3665
    %v3778 = vunpack.c.l.b16 %v3666
    %v3779 = vunpack.c.h.b16 %v3666
    %v3780 = vunpack.c.l.b16 %v3667
    %v3781 = vunpack.c.h.b16 %v3667
    %v3782 = vunpack.c.l.b16 %v3668
    %v3783 = vunpack.c.h.b16 %v3668
    %v3784 = vunpack.c.l.b16 %v3669
    %v3785 = vunpack.c.h.b16 %v3669
    %v3786 = vunpack.c.l.b16 %v3670
    %v3787 = vunpack.c.h.b16 %v3670
    %v3788 = vunpack.c.l.b16 %v3671
    %v3789 = vunpack.c.h.b16 %v3671
    %v3790 = vpack.c.b16 %v3730, %v3726
    %v3791 = vpack.c.b16 %v3731, %v3727
    %v3792 = vpack.c.b16 %v3732, %v3728
    %v3793 = vpack.c.b16 %v3733, %v3729
    %v3794 = vpack.c.b16 %v3738, %v3734
    %v3795 = vpack.c.b16 %v3739, %v3735
    %v3796 = vpack.c.b16 %v3740, %v3736
    %v3797 = vpack.c.b16 %v3741, %v3737
    %v3798 = vpack.c.b16 %v3746, %v3742
    %v3799 = vpack.c.b16 %v3747, %v3743
    %v3800 = vpack.c.b16 %v3748, %v3744
    %v3801 = vpack.c.b16 %v3749, %v3745
    %v3802 = vpack.c.b16 %v3754, %v3750
    %v3803 = vpack.c.b16 %v3755, %v3751
    %v3804 = vpack.c.b16 %v3756, %v3752
    %v3805 = vpack.c.b16 %v3757, %v3753
    %v3806 = vpack.c.b16 %v3762, %v3758
    %v3807 = vpack.c.b16 %v3763, %v3759
    %v3808 = vpack.c.b16 %v3764, %v3760
    %v3809 = vpack.c.b16 %v3765, %v3761
    %v3810 = vpack.c.b16 %v3770, %v3766
    %v3811 = vpack.c.b16 %v3771, %v3767
    %v3812 = vpack.c.b16 %v3772, %v3768
    %v3813 = vpack.c.b16 %v3773, %v3769
    %v3814 = vpack.c.b16 %v3778, %v3774
    %v3815 = vpack.c.b16 %v3779, %v3775
    %v3816 = vpack.c.b16 %v3780, %v3776
    %v3817 = vpack.c.b16 %v3781, %v3777
    %v3818 = vpack.c.b16 %v3786, %v3782
    %v3819 = vpack.c.b16 %v3787, %v3783
    %v3820 = vpack.c.b16 %v3788, %v3784
    %v3821 = vpack.c.b16 %v3789, %v3785
    %3854 = vmatprep.subr.bf16.mxu0 %v3791
    %3855 = vmatpush1.bf16.msra.mxu0 %v3790
    %3856 = vmatprep.subr.bf16.mxu0 %v3795
    %3857 = vmatpush1.bf16.msra.mxu0 %v3794
    %3858 = vmatprep.subr.bf16.mxu0 %v3799
    %3859 = vmatpush1.bf16.msra.mxu0 %v3798
    %3860 = vmatprep.subr.bf16.mxu0 %v3803
    %3861 = vmatpush1.bf16.msra.mxu0 %v3802
    %3862 = vmatprep.subr.bf16.mxu0 %v3807
    %3863 = vmatpush1.bf16.msra.mxu0 %v3806
    %3864 = vmatprep.subr.bf16.mxu0 %v3811
    %3865 = vmatpush1.bf16.msra.mxu0 %v3810
    %3866 = vmatprep.subr.bf16.mxu0 %v3815
    %3867 = vmatpush1.bf16.msra.mxu0 %v3814
    %3868 = vmatprep.subr.bf16.mxu0 %v3819
    %3869 = vmatpush1.bf16.msra.mxu0 %v3818
    %3870 = vmatprep.subr.bf16.mxu0 0
    %3871 = vmatpush1.bf16.msra.mxu0 0
    %3872 = vmatprep.subr.bf16.mxu0 0
    %3873 = vmatpush1.bf16.msra.mxu0 0
    %3874 = vmatprep.subr.bf16.mxu0 0
    %3875 = vmatpush1.bf16.msra.mxu0 0
    %3876 = vmatprep.subr.bf16.mxu0 0
    %3877 = vmatpush1.bf16.msra.mxu0 0
    %3878 = vmatprep.subr.bf16.mxu0 0
    %3879 = vmatpush1.bf16.msra.mxu0 0
    %3880 = vmatprep.subr.bf16.mxu0 0
    %3881 = vmatpush1.bf16.msra.mxu0 0
    %3882 = vmatprep.subr.bf16.mxu0 0
    %3883 = vmatpush1.bf16.msra.mxu0 0
    %3884 = vmatprep.subr.bf16.mxu0 0
    %3885 = vmatpush1.bf16.msra.mxu0 0
    %3886 = vmatprep.mubr.bf16.mxu0 0
    %3887 = vmatmul.mubr.bf16.gmra.mrb[0].mxu0 %v1813
    %v3888 = vpop.f32.mrb[0].mxu0
    %v3889 = vadd.f32 %v3677, %v3888
    %v3890 = vpop.f32.mrb[0].mxu0
    %v3891 = vadd.f32 %v3681, %v3890
    %v3892 = vpop.f32.mrb[0].mxu0
    %v3893 = vadd.f32 %v3677, %v3892
    %v3894 = vpop.f32.mrb[0].mxu0
    %v3895 = vadd.f32 %v3681, %v3894
    %3896 = vmatprep.mubr.bf16.mxu0 0
    %3897 = vmatmul.mubr.bf16.gmra.mrb[0].mxu0 %v1814
    %v3898 = vpop.f32.mrb[0].mxu0
    %v3899 = vadd.f32 %v3677, %v3898
    %v3900 = vpop.f32.mrb[0].mxu0
    %v3901 = vadd.f32 %v3681, %v3900
    %v3902 = vpop.f32.mrb[0].mxu0
    %v3903 = vadd.f32 %v3677, %v3902
    %v3904 = vpop.f32.mrb[0].mxu0
    %v3905 = vadd.f32 %v3681, %v3904
    %3906 = vmatprep.mubr.bf16.mxu0 0
    %3907 = vmatmul.mubr.bf16.gmra.mrb[0].mxu0 %v1815
    %v3908 = vpop.f32.mrb[0].mxu0
    %v3909 = vadd.f32 %v3677, %v3908
    %v3910 = vpop.f32.mrb[0].mxu0
    %v3911 = vadd.f32 %v3681, %v3910
    %v3912 = vpop.f32.mrb[0].mxu0
    %v3913 = vadd.f32 %v3677, %v3912
    %v3914 = vpop.f32.mrb[0].mxu0
    %v3915 = vadd.f32 %v3681, %v3914
    %3916 = vmatprep.mubr.bf16.mxu0 0
    %3917 = vmatmul.mubr.bf16.gmra.mrb[0].mxu0 %v1816
    %v3918 = vpop.f32.mrb[0].mxu0
    %v3919 = vadd.f32 %v3677, %v3918
    %v3920 = vpop.f32.mrb[0].mxu0
    %v3921 = vadd.f32 %v3681, %v3920
    %v3922 = vpop.f32.mrb[0].mxu0
    %v3923 = vadd.f32 %v3677, %v3922
    %v3924 = vpop.f32.mrb[0].mxu0
    %v3925 = vadd.f32 %v3681, %v3924
    %3926 = vdwg.mxu0
    %3927 = vmatprep.subr.bf16.mxu0 %v3793
    %3928 = vmatpush1.bf16.msra.mxu0 %v3792
    %3929 = vmatprep.subr.bf16.mxu0 %v3797
    %3930 = vmatpush1.bf16.msra.mxu0 %v3796
    %3931 = vmatprep.subr.bf16.mxu0 %v3801
    %3932 = vmatpush1.bf16.msra.mxu0 %v3800
    %3933 = vmatprep.subr.bf16.mxu0 %v3805
    %3934 = vmatpush1.bf16.msra.mxu0 %v3804
    %3935 = vmatprep.subr.bf16.mxu0 %v3809
    %3936 = vmatpush1.bf16.msra.mxu0 %v3808
    %3937 = vmatprep.subr.bf16.mxu0 %v3813
    %3938 = vmatpush1.bf16.msra.mxu0 %v3812
    %3939 = vmatprep.subr.bf16.mxu0 %v3817
    %3940 = vmatpush1.bf16.msra.mxu0 %v3816
    %3941 = vmatprep.subr.bf16.mxu0 %v3821
    %3942 = vmatpush1.bf16.msra.mxu0 %v3820
    %3943 = vmatprep.subr.bf16.mxu0 0
    %3944 = vmatpush1.bf16.msra.mxu0 0
    %3945 = vmatprep.subr.bf16.mxu0 0
    %3946 = vmatpush1.bf16.msra.mxu0 0
    %3947 = vmatprep.subr.bf16.mxu0 0
    %3948 = vmatpush1.bf16.msra.mxu0 0
    %3949 = vmatprep.subr.bf16.mxu0 0
    %3950 = vmatpush1.bf16.msra.mxu0 0
    %3951 = vmatprep.subr.bf16.mxu0 0
    %3952 = vmatpush1.bf16.msra.mxu0 0
    %3953 = vmatprep.subr.bf16.mxu0 0
    %3954 = vmatpush1.bf16.msra.mxu0 0
    %3955 = vmatprep.subr.bf16.mxu0 0
    %3956 = vmatpush1.bf16.msra.mxu0 0
    %3957 = vmatprep.subr.bf16.mxu0 0
    %3958 = vmatpush1.bf16.msra.mxu0 0
    %3959 = vmatprep.mubr.bf16.mxu0 0
    %3960 = vmatmul.mubr.bf16.gmra.mrb[0].mxu0 %v1813
    %v3961 = vpop.f32.mrb[0].mxu0
    %v3962 = vadd.f32 %v3685, %v3961
    %v3963 = vpop.f32.mrb[0].mxu0
    %v3964 = vadd.f32 %v3689, %v3963
    %v3965 = vpop.f32.mrb[0].mxu0
    %v3966 = vadd.f32 %v3685, %v3965
    %v3967 = vpop.f32.mrb[0].mxu0
    %v3968 = vadd.f32 %v3689, %v3967
    %3969 = vmatprep.mubr.bf16.mxu0 0
    %3970 = vmatmul.mubr.bf16.gmra.mrb[0].mxu0 %v1814
    %v3971 = vpop.f32.mrb[0].mxu0
    %v3972 = vadd.f32 %v3685, %v3971
    %v3973 = vpop.f32.mrb[0].mxu0
    %v3974 = vadd.f32 %v3689, %v3973
    %v3975 = vpop.f32.mrb[0].mxu0
    %v3976 = vadd.f32 %v3685, %v3975
    %v3977 = vpop.f32.mrb[0].mxu0
    %v3978 = vadd.f32 %v3689, %v3977
    %3979 = vmatprep.mubr.bf16.mxu0 0
    %3980 = vmatmul.mubr.bf16.gmra.mrb[0].mxu0 %v1815
    %v3981 = vpop.f32.mrb[0].mxu0
    %v3982 = vadd.f32 %v3685, %v3981
    %v3983 = vpop.f32.mrb[0].mxu0
    %v3984 = vadd.f32 %v3689, %v3983
    %v3985 = vpop.f32.mrb[0].mxu0
    %v3986 = vadd.f32 %v3685, %v3985
    %v3987 = vpop.f32.mrb[0].mxu0
    %v3988 = vadd.f32 %v3689, %v3987
    %3989 = vmatprep.mubr.bf16.mxu0 0
    %3990 = vmatmul.mubr.bf16.gmra.mrb[0].mxu0 %v1816
    %v3991 = vpop.f32.mrb[0].mxu0
    %v3992 = vadd.f32 %v3685, %v3991
    %v3993 = vpop.f32.mrb[0].mxu0
    %v3994 = vadd.f32 %v3689, %v3993
    %v3995 = vpop.f32.mrb[0].mxu0
    %v3996 = vadd.f32 %v3685, %v3995
    %v3997 = vpop.f32.mrb[0].mxu0
    %v3998 = vadd.f32 %v3689, %v3997
    %3999 = vdwg.mxu0
    %s4000 = smul.u32 4, 128
    %s4001 = smul.u32 %s4000, 4
    %s4002 = sshll.u32 %s4001, 4
    %4003 = dma.done %s507, %s4002
    %v4004 = vlaneseq
    %v4005 = vshrl.u32 %v4004, 7
    %v4006 = vadd.s32 %v4005, 8
    %v4007 = vadd.s32 %v4005, 16
    %v4008 = vadd.s32 %v4005, 24
    %v4009 = vadd.s32 %v4005, 32
    %v4010 = vadd.s32 %v4005, 40
    %v4011 = vadd.s32 %v4005, 48
    %v4012 = vadd.s32 %v4005, 56
    %v4013 = vmax.bf16 %v3608, %v3616
    %v4014 = vunpack.i.l.bf16 %v4013
    %v4015 = vunpack.i.h.bf16 %v4013
    %v4016 = vmax.f32 %v4014, %v4015
    %v4017 = vrot.slane %v4016, 4
    %v4018 = vmax.f32 %v4016, %v4017
    %v4019 = vrot.slane %v4018, 2
    %v4020 = vmax.f32 %v4018, %v4019
    %v4021 = vrot.slane %v4020, 1
    %v4022 = vmax.f32 %v4020, %v4021
    %v4023 = vpack.i.bf16 %v4022, %v4022
    %v4024 = vmax.bf16 %v3609, %v3617
    %v4025 = vunpack.i.l.bf16 %v4024
    %v4026 = vunpack.i.h.bf16 %v4024
    %v4027 = vmax.f32 %v4025, %v4026
    %v4028 = vrot.slane %v4027, 4
    %v4029 = vmax.f32 %v4027, %v4028
    %v4030 = vrot.slane %v4029, 2
    %v4031 = vmax.f32 %v4029, %v4030
    %v4032 = vrot.slane %v4031, 1
    %v4033 = vmax.f32 %v4031, %v4032
    %v4034 = vpack.i.bf16 %v4033, %v4033
    %v4035 = vmax.bf16 %v3610, %v3618
    %v4036 = vunpack.i.l.bf16 %v4035
    %v4037 = vunpack.i.h.bf16 %v4035
    %v4038 = vmax.f32 %v4036, %v4037
    %v4039 = vrot.slane %v4038, 4
    %v4040 = vmax.f32 %v4038, %v4039
    %v4041 = vrot.slane %v4040, 2
    %v4042 = vmax.f32 %v4040, %v4041
    %v4043 = vrot.slane %v4042, 1
    %v4044 = vmax.f32 %v4042, %v4043
    %v4045 = vpack.i.bf16 %v4044, %v4044
    %v4046 = vmax.bf16 %v3611, %v3619
    %v4047 = vunpack.i.l.bf16 %v4046
    %v4048 = vunpack.i.h.bf16 %v4046
    %v4049 = vmax.f32 %v4047, %v4048
    %v4050 = vrot.slane %v4049, 4
    %v4051 = vmax.f32 %v4049, %v4050
    %v4052 = vrot.slane %v4051, 2
    %v4053 = vmax.f32 %v4051, %v4052
    %v4054 = vrot.slane %v4053, 1
    %v4055 = vmax.f32 %v4053, %v4054
    %v4056 = vpack.i.bf16 %v4055, %v4055
    %v4057 = vmax.bf16 %v3612, %v3620
    %v4058 = vunpack.i.l.bf16 %v4057
    %v4059 = vunpack.i.h.bf16 %v4057
    %v4060 = vmax.f32 %v4058, %v4059
    %v4061 = vrot.slane %v4060, 4
    %v4062 = vmax.f32 %v4060, %v4061
    %v4063 = vrot.slane %v4062, 2
    %v4064 = vmax.f32 %v4062, %v4063
    %v4065 = vrot.slane %v4064, 1
    %v4066 = vmax.f32 %v4064, %v4065
    %v4067 = vpack.i.bf16 %v4066, %v4066
    %v4068 = vmax.bf16 %v3613, %v3621
    %v4069 = vunpack.i.l.bf16 %v4068
    %v4070 = vunpack.i.h.bf16 %v4068
    %v4071 = vmax.f32 %v4069, %v4070
    %v4072 = vrot.slane %v4071, 4
    %v4073 = vmax.f32 %v4071, %v4072
    %v4074 = vrot.slane %v4073, 2
    %v4075 = vmax.f32 %v4073, %v4074
    %v4076 = vrot.slane %v4075, 1
    %v4077 = vmax.f32 %v4075, %v4076
    %v4078 = vpack.i.bf16 %v4077, %v4077
    %v4079 = vmax.bf16 %v3614, %v3622
    %v4080 = vunpack.i.l.bf16 %v4079
    %v4081 = vunpack.i.h.bf16 %v4079
    %v4082 = vmax.f32 %v4080, %v4081
    %v4083 = vrot.slane %v4082, 4
    %v4084 = vmax.f32 %v4082, %v4083
    %v4085 = vrot.slane %v4084, 2
    %v4086 = vmax.f32 %v4084, %v4085
    %v4087 = vrot.slane %v4086, 1
    %v4088 = vmax.f32 %v4086, %v4087
    %v4089 = vpack.i.bf16 %v4088, %v4088
    %v4090 = vmax.bf16 %v3615, %v3623
    %v4091 = vunpack.i.l.bf16 %v4090
    %v4092 = vunpack.i.h.bf16 %v4090
    %v4093 = vmax.f32 %v4091, %v4092
    %v4094 = vrot.slane %v4093, 4
    %v4095 = vmax.f32 %v4093, %v4094
    %v4096 = vrot.slane %v4095, 2
    %v4097 = vmax.f32 %v4095, %v4096
    %v4098 = vrot.slane %v4097, 1
    %v4099 = vmax.f32 %v4097, %v4098
    %v4100 = vpack.i.bf16 %v4099, %v4099
    %v4101 = vld [vmem:[#allocation4] sm:$0xff]
    %v4102 = vld [vmem:[#allocation4 + $0x8] sm:$0xff]
    %v4103 = vld [vmem:[#allocation4 + $0x10] sm:$0xff]
    %v4104 = vld [vmem:[#allocation4 + $0x18] sm:$0xff]
    %v4105 = vld [vmem:[#allocation4 + $0x20] sm:$0xff]
    %v4106 = vld [vmem:[#allocation4 + $0x28] sm:$0xff]
    %v4107 = vld [vmem:[#allocation4 + $0x30] sm:$0xff]
    %v4108 = vld [vmem:[#allocation4 + $0x38] sm:$0xff]
    %v4109 = vld [vmem:[#allocation4 + $0x40] sm:$0xff]
    %v4110 = vld [vmem:[#allocation4 + $0x48] sm:$0xff]
    %v4111 = vld [vmem:[#allocation4 + $0x50] sm:$0xff]
    %v4112 = vld [vmem:[#allocation4 + $0x58] sm:$0xff]
    %v4113 = vld [vmem:[#allocation4 + $0x60] sm:$0xff]
    %v4114 = vld [vmem:[#allocation4 + $0x68] sm:$0xff]
    %v4115 = vld [vmem:[#allocation4 + $0x70] sm:$0xff]
    %v4116 = vld [vmem:[#allocation4 + $0x78] sm:$0xff]
    %v4117 = vld [vmem:[#allocation4 + $0x80] sm:$0xff]
    %v4118 = vld [vmem:[#allocation4 + $0x88] sm:$0xff]
    %v4119 = vld [vmem:[#allocation4 + $0x90] sm:$0xff]
    %v4120 = vld [vmem:[#allocation4 + $0x98] sm:$0xff]
    %v4121 = vld [vmem:[#allocation4 + $0xa0] sm:$0xff]
    %v4122 = vld [vmem:[#allocation4 + $0xa8] sm:$0xff]
    %v4123 = vld [vmem:[#allocation4 + $0xb0] sm:$0xff]
    %v4124 = vld [vmem:[#allocation4 + $0xb8] sm:$0xff]
    %v4125 = vld [vmem:[#allocation4 + $0xc0] sm:$0xff]
    %v4126 = vld [vmem:[#allocation4 + $0xc8] sm:$0xff]
    %v4127 = vld [vmem:[#allocation4 + $0xd0] sm:$0xff]
    %v4128 = vld [vmem:[#allocation4 + $0xd8] sm:$0xff]
    %v4129 = vld [vmem:[#allocation4 + $0xe0] sm:$0xff]
    %v4130 = vld [vmem:[#allocation4 + $0xe8] sm:$0xff]
    %v4131 = vld [vmem:[#allocation4 + $0xf0] sm:$0xff]
    %v4132 = vld [vmem:[#allocation4 + $0xf8] sm:$0xff]
    %v4133 = vld [vmem:[#allocation4 + $0x100] sm:$0xff]
    %v4134 = vld [vmem:[#allocation4 + $0x108] sm:$0xff]
    %v4135 = vld [vmem:[#allocation4 + $0x110] sm:$0xff]
    %v4136 = vld [vmem:[#allocation4 + $0x118] sm:$0xff]
    %v4137 = vld [vmem:[#allocation4 + $0x120] sm:$0xff]
    %v4138 = vld [vmem:[#allocation4 + $0x128] sm:$0xff]
    %v4139 = vld [vmem:[#allocation4 + $0x130] sm:$0xff]
    %v4140 = vld [vmem:[#allocation4 + $0x138] sm:$0xff]
    %v4141 = vld [vmem:[#allocation4 + $0x140] sm:$0xff]
    %v4142 = vld [vmem:[#allocation4 + $0x148] sm:$0xff]
    %v4143 = vld [vmem:[#allocation4 + $0x150] sm:$0xff]
    %v4144 = vld [vmem:[#allocation4 + $0x158] sm:$0xff]
    %v4145 = vld [vmem:[#allocation4 + $0x160] sm:$0xff]
    %v4146 = vld [vmem:[#allocation4 + $0x168] sm:$0xff]
    %v4147 = vld [vmem:[#allocation4 + $0x170] sm:$0xff]
    %v4148 = vld [vmem:[#allocation4 + $0x178] sm:$0xff]
    %v4149 = vld [vmem:[#allocation4 + $0x180] sm:$0xff]
    %v4150 = vld [vmem:[#allocation4 + $0x188] sm:$0xff]
    %v4151 = vld [vmem:[#allocation4 + $0x190] sm:$0xff]
    %v4152 = vld [vmem:[#allocation4 + $0x198] sm:$0xff]
    %v4153 = vld [vmem:[#allocation4 + $0x1a0] sm:$0xff]
    %v4154 = vld [vmem:[#allocation4 + $0x1a8] sm:$0xff]
    %v4155 = vld [vmem:[#allocation4 + $0x1b0] sm:$0xff]
    %v4156 = vld [vmem:[#allocation4 + $0x1b8] sm:$0xff]
    %v4157 = vld [vmem:[#allocation4 + $0x1c0] sm:$0xff]
    %v4158 = vld [vmem:[#allocation4 + $0x1c8] sm:$0xff]
    %v4159 = vld [vmem:[#allocation4 + $0x1d0] sm:$0xff]
    %v4160 = vld [vmem:[#allocation4 + $0x1d8] sm:$0xff]
    %v4161 = vld [vmem:[#allocation4 + $0x1e0] sm:$0xff]
    %v4162 = vld [vmem:[#allocation4 + $0x1e8] sm:$0xff]
    %v4163 = vld [vmem:[#allocation4 + $0x1f0] sm:$0xff]
    %v4164 = vld [vmem:[#allocation4 + $0x1f8] sm:$0xff]
    %v4165 = vld [vmem:[#allocation4 + $0x200] sm:$0xff]
    %v4166 = vld [vmem:[#allocation4 + $0x208] sm:$0xff]
    %v4167 = vld [vmem:[#allocation4 + $0x210] sm:$0xff]
    %v4168 = vld [vmem:[#allocation4 + $0x218] sm:$0xff]
    %v4169 = vld [vmem:[#allocation4 + $0x220] sm:$0xff]
    %v4170 = vld [vmem:[#allocation4 + $0x228] sm:$0xff]
    %v4171 = vld [vmem:[#allocation4 + $0x230] sm:$0xff]
    %v4172 = vld [vmem:[#allocation4 + $0x238] sm:$0xff]
    %v4173 = vld [vmem:[#allocation4 + $0x240] sm:$0xff]
    %v4174 = vld [vmem:[#allocation4 + $0x248] sm:$0xff]
    %v4175 = vld [vmem:[#allocation4 + $0x250] sm:$0xff]
    %v4176 = vld [vmem:[#allocation4 + $0x258] sm:$0xff]
    %v4177 = vld [vmem:[#allocation4 + $0x260] sm:$0xff]
    %v4178 = vld [vmem:[#allocation4 + $0x268] sm:$0xff]
    %v4179 = vld [vmem:[#allocation4 + $0x270] sm:$0xff]
    %v4180 = vld [vmem:[#allocation4 + $0x278] sm:$0xff]
    %v4181 = vld [vmem:[#allocation4 + $0x280] sm:$0xff]
    %v4182 = vld [vmem:[#allocation4 + $0x288] sm:$0xff]
    %v4183 = vld [vmem:[#allocation4 + $0x290] sm:$0xff]
    %v4184 = vld [vmem:[#allocation4 + $0x298] sm:$0xff]
    %v4185 = vld [vmem:[#allocation4 + $0x2a0] sm:$0xff]
    %v4186 = vld [vmem:[#allocation4 + $0x2a8] sm:$0xff]
    %v4187 = vld [vmem:[#allocation4 + $0x2b0] sm:$0xff]
    %v4188 = vld [vmem:[#allocation4 + $0x2b8] sm:$0xff]
    %v4189 = vld [vmem:[#allocation4 + $0x2c0] sm:$0xff]
    %v4190 = vld [vmem:[#allocation4 + $0x2c8] sm:$0xff]
    %v4191 = vld [vmem:[#allocation4 + $0x2d0] sm:$0xff]
    %v4192 = vld [vmem:[#allocation4 + $0x2d8] sm:$0xff]
    %v4193 = vld [vmem:[#allocation4 + $0x2e0] sm:$0xff]
    %v4194 = vld [vmem:[#allocation4 + $0x2e8] sm:$0xff]
    %v4195 = vld [vmem:[#allocation4 + $0x2f0] sm:$0xff]
    %v4196 = vld [vmem:[#allocation4 + $0x2f8] sm:$0xff]
    %v4197 = vld [vmem:[#allocation4 + $0x300] sm:$0xff]
    %v4198 = vld [vmem:[#allocation4 + $0x308] sm:$0xff]
    %v4199 = vld [vmem:[#allocation4 + $0x310] sm:$0xff]
    %v4200 = vld [vmem:[#allocation4 + $0x318] sm:$0xff]
    %v4201 = vld [vmem:[#allocation4 + $0x320] sm:$0xff]
    %v4202 = vld [vmem:[#allocation4 + $0x328] sm:$0xff]
    %v4203 = vld [vmem:[#allocation4 + $0x330] sm:$0xff]
    %v4204 = vld [vmem:[#allocation4 + $0x338] sm:$0xff]
    %v4205 = vld [vmem:[#allocation4 + $0x340] sm:$0xff]
    %v4206 = vld [vmem:[#allocation4 + $0x348] sm:$0xff]
    %v4207 = vld [vmem:[#allocation4 + $0x350] sm:$0xff]
    %v4208 = vld [vmem:[#allocation4 + $0x358] sm:$0xff]
    %v4209 = vld [vmem:[#allocation4 + $0x360] sm:$0xff]
    %v4210 = vld [vmem:[#allocation4 + $0x368] sm:$0xff]
    %v4211 = vld [vmem:[#allocation4 + $0x370] sm:$0xff]
    %v4212 = vld [vmem:[#allocation4 + $0x378] sm:$0xff]
    %v4213 = vld [vmem:[#allocation4 + $0x380] sm:$0xff]
    %v4214 = vld [vmem:[#allocation4 + $0x388] sm:$0xff]
    %v4215 = vld [vmem:[#allocation4 + $0x390] sm:$0xff]
    %v4216 = vld [vmem:[#allocation4 + $0x398] sm:$0xff]
    %v4217 = vld [vmem:[#allocation4 + $0x3a0] sm:$0xff]
    %v4218 = vld [vmem:[#allocation4 + $0x3a8] sm:$0xff]
    %v4219 = vld [vmem:[#allocation4 + $0x3b0] sm:$0xff]
    %v4220 = vld [vmem:[#allocation4 + $0x3b8] sm:$0xff]
    %v4221 = vld [vmem:[#allocation4 + $0x3c0] sm:$0xff]
    %v4222 = vld [vmem:[#allocation4 + $0x3c8] sm:$0xff]
    %v4223 = vld [vmem:[#allocation4 + $0x3d0] sm:$0xff]
    %v4224 = vld [vmem:[#allocation4 + $0x3d8] sm:$0xff]
    %v4225 = vld [vmem:[#allocation4 + $0x3e0] sm:$0xff]
    %v4226 = vld [vmem:[#allocation4 + $0x3e8] sm:$0xff]
    %v4227 = vld [vmem:[#allocation4 + $0x3f0] sm:$0xff]
    %v4228 = vld [vmem:[#allocation4 + $0x3f8] sm:$0xff]
    %v4229 = vld [vmem:[#allocation4 + $0x400] sm:$0xff]
    %v4230 = vld [vmem:[#allocation4 + $0x408] sm:$0xff]
    %v4231 = vld [vmem:[#allocation4 + $0x410] sm:$0xff]
    %v4232 = vld [vmem:[#allocation4 + $0x418] sm:$0xff]
    %v4233 = vld [vmem:[#allocation4 + $0x420] sm:$0xff]
    %v4234 = vld [vmem:[#allocation4 + $0x428] sm:$0xff]
    %v4235 = vld [vmem:[#allocation4 + $0x430] sm:$0xff]
    %v4236 = vld [vmem:[#allocation4 + $0x438] sm:$0xff]
    %v4237 = vld [vmem:[#allocation4 + $0x440] sm:$0xff]
    %v4238 = vld [vmem:[#allocation4 + $0x448] sm:$0xff]
    %v4239 = vld [vmem:[#allocation4 + $0x450] sm:$0xff]
    %v4240 = vld [vmem:[#allocation4 + $0x458] sm:$0xff]
    %v4241 = vld [vmem:[#allocation4 + $0x460] sm:$0xff]
    %v4242 = vld [vmem:[#allocation4 + $0x468] sm:$0xff]
    %v4243 = vld [vmem:[#allocation4 + $0x470] sm:$0xff]
    %v4244 = vld [vmem:[#allocation4 + $0x478] sm:$0xff]
    %v4245 = vld [vmem:[#allocation4 + $0x480] sm:$0xff]
    %v4246 = vld [vmem:[#allocation4 + $0x488] sm:$0xff]
    %v4247 = vld [vmem:[#allocation4 + $0x490] sm:$0xff]
    %v4248 = vld [vmem:[#allocation4 + $0x498] sm:$0xff]
    %v4249 = vld [vmem:[#allocation4 + $0x4a0] sm:$0xff]
    %v4250 = vld [vmem:[#allocation4 + $0x4a8] sm:$0xff]
    %v4251 = vld [vmem:[#allocation4 + $0x4b0] sm:$0xff]
    %v4252 = vld [vmem:[#allocation4 + $0x4b8] sm:$0xff]
    %v4253 = vld [vmem:[#allocation4 + $0x4c0] sm:$0xff]
    %v4254 = vld [vmem:[#allocation4 + $0x4c8] sm:$0xff]
    %v4255 = vld [vmem:[#allocation4 + $0x4d0] sm:$0xff]
    %v4256 = vld [vmem:[#allocation4 + $0x4d8] sm:$0xff]
    %v4257 = vld [vmem:[#allocation4 + $0x4e0] sm:$0xff]
    %v4258 = vld [vmem:[#allocation4 + $0x4e8] sm:$0xff]
    %v4259 = vld [vmem:[#allocation4 + $0x4f0] sm:$0xff]
    %v4260 = vld [vmem:[#allocation4 + $0x4f8] sm:$0xff]
    %v4261 = vld [vmem:[#allocation4 + $0x500] sm:$0xff]
    %v4262 = vld [vmem:[#allocation4 + $0x508] sm:$0xff]
    %v4263 = vld [vmem:[#allocation4 + $0x510] sm:$0xff]
    %v4264 = vld [vmem:[#allocation4 + $0x518] sm:$0xff]
    %v4265 = vld [vmem:[#allocation4 + $0x520] sm:$0xff]
    %v4266 = vld [vmem:[#allocation4 + $0x528] sm:$0xff]
    %v4267 = vld [vmem:[#allocation4 + $0x530] sm:$0xff]
    %v4268 = vld [vmem:[#allocation4 + $0x538] sm:$0xff]
    %v4269 = vld [vmem:[#allocation4 + $0x540] sm:$0xff]
    %v4270 = vld [vmem:[#allocation4 + $0x548] sm:$0xff]
    %v4271 = vld [vmem:[#allocation4 + $0x550] sm:$0xff]
    %v4272 = vld [vmem:[#allocation4 + $0x558] sm:$0xff]
    %v4273 = vld [vmem:[#allocation4 + $0x560] sm:$0xff]
    %v4274 = vld [vmem:[#allocation4 + $0x568] sm:$0xff]
    %v4275 = vld [vmem:[#allocation4 + $0x570] sm:$0xff]
    %v4276 = vld [vmem:[#allocation4 + $0x578] sm:$0xff]
    %v4277 = vld [vmem:[#allocation4 + $0x580] sm:$0xff]
    %v4278 = vld [vmem:[#allocation4 + $0x588] sm:$0xff]
    %v4279 = vld [vmem:[#allocation4 + $0x590] sm:$0xff]
    %v4280 = vld [vmem:[#allocation4 + $0x598] sm:$0xff]
    %v4281 = vld [vmem:[#allocation4 + $0x5a0] sm:$0xff]
    %v4282 = vld [vmem:[#allocation4 + $0x5a8] sm:$0xff]
    %v4283 = vld [vmem:[#allocation4 + $0x5b0] sm:$0xff]
    %v4284 = vld [vmem:[#allocation4 + $0x5b8] sm:$0xff]
    %v4285 = vld [vmem:[#allocation4 + $0x5c0] sm:$0xff]
    %v4286 = vld [vmem:[#allocation4 + $0x5c8] sm:$0xff]
    %v4287 = vld [vmem:[#allocation4 + $0x5d0] sm:$0xff]
    %v4288 = vld [vmem:[#allocation4 + $0x5d8] sm:$0xff]
    %v4289 = vld [vmem:[#allocation4 + $0x5e0] sm:$0xff]
    %v4290 = vld [vmem:[#allocation4 + $0x5e8] sm:$0xff]
    %v4291 = vld [vmem:[#allocation4 + $0x5f0] sm:$0xff]
    %v4292 = vld [vmem:[#allocation4 + $0x5f8] sm:$0xff]
    %v4293 = vld [vmem:[#allocation4 + $0x600] sm:$0xff]
    %v4294 = vld [vmem:[#allocation4 + $0x608] sm:$0xff]
    %v4295 = vld [vmem:[#allocation4 + $0x610] sm:$0xff]
    %v4296 = vld [vmem:[#allocation4 + $0x618] sm:$0xff]
    %v4297 = vld [vmem:[#allocation4 + $0x620] sm:$0xff]
    %v4298 = vld [vmem:[#allocation4 + $0x628] sm:$0xff]
    %v4299 = vld [vmem:[#allocation4 + $0x630] sm:$0xff]
    %v4300 = vld [vmem:[#allocation4 + $0x638] sm:$0xff]
    %v4301 = vld [vmem:[#allocation4 + $0x640] sm:$0xff]
    %v4302 = vld [vmem:[#allocation4 + $0x648] sm:$0xff]
    %v4303 = vld [vmem:[#allocation4 + $0x650] sm:$0xff]
    %v4304 = vld [vmem:[#allocation4 + $0x658] sm:$0xff]
    %v4305 = vld [vmem:[#allocation4 + $0x660] sm:$0xff]
    %v4306 = vld [vmem:[#allocation4 + $0x668] sm:$0xff]
    %v4307 = vld [vmem:[#allocation4 + $0x670] sm:$0xff]
    %v4308 = vld [vmem:[#allocation4 + $0x678] sm:$0xff]
    %v4309 = vld [vmem:[#allocation4 + $0x680] sm:$0xff]
    %v4310 = vld [vmem:[#allocation4 + $0x688] sm:$0xff]
    %v4311 = vld [vmem:[#allocation4 + $0x690] sm:$0xff]
    %v4312 = vld [vmem:[#allocation4 + $0x698] sm:$0xff]
    %v4313 = vld [vmem:[#allocation4 + $0x6a0] sm:$0xff]
    %v4314 = vld [vmem:[#allocation4 + $0x6a8] sm:$0xff]
    %v4315 = vld [vmem:[#allocation4 + $0x6b0] sm:$0xff]
    %v4316 = vld [vmem:[#allocation4 + $0x6b8] sm:$0xff]
    %v4317 = vld [vmem:[#allocation4 + $0x6c0] sm:$0xff]
    %v4318 = vld [vmem:[#allocation4 + $0x6c8] sm:$0xff]
    %v4319 = vld [vmem:[#allocation4 + $0x6d0] sm:$0xff]
    %v4320 = vld [vmem:[#allocation4 + $0x6d8] sm:$0xff]
    %v4321 = vld [vmem:[#allocation4 + $0x6e0] sm:$0xff]
    %v4322 = vld [vmem:[#allocation4 + $0x6e8] sm:$0xff]
    %v4323 = vld [vmem:[#allocation4 + $0x6f0] sm:$0xff]
    %v4324 = vld [vmem:[#allocation4 + $0x6f8] sm:$0xff]
    %v4325 = vld [vmem:[#allocation4 + $0x700] sm:$0xff]
    %v4326 = vld [vmem:[#allocation4 + $0x708] sm:$0xff]
    %v4327 = vld [vmem:[#allocation4 + $0x710] sm:$0xff]
    %v4328 = vld [vmem:[#allocation4 + $0x718] sm:$0xff]
    %v4329 = vld [vmem:[#allocation4 + $0x720] sm:$0xff]
    %v4330 = vld [vmem:[#allocation4 + $0x728] sm:$0xff]
    %v4331 = vld [vmem:[#allocation4 + $0x730] sm:$0xff]
    %v4332 = vld [vmem:[#allocation4 + $0x738] sm:$0xff]
    %v4333 = vld [vmem:[#allocation4 + $0x740] sm:$0xff]
    %v4334 = vld [vmem:[#allocation4 + $0x748] sm:$0xff]
    %v4335 = vld [vmem:[#allocation4 + $0x750] sm:$0xff]
    %v4336 = vld [vmem:[#allocation4 + $0x758] sm:$0xff]
    %v4337 = vld [vmem:[#allocation4 + $0x760] sm:$0xff]
    %v4338 = vld [vmem:[#allocation4 + $0x768] sm:$0xff]
    %v4339 = vld [vmem:[#allocation4 + $0x770] sm:$0xff]
    %v4340 = vld [vmem:[#allocation4 + $0x778] sm:$0xff]
    %v4341 = vld [vmem:[#allocation4 + $0x780] sm:$0xff]
    %v4342 = vld [vmem:[#allocation4 + $0x788] sm:$0xff]
    %v4343 = vld [vmem:[#allocation4 + $0x790] sm:$0xff]
    %v4344 = vld [vmem:[#allocation4 + $0x798] sm:$0xff]
    %v4345 = vld [vmem:[#allocation4 + $0x7a0] sm:$0xff]
    %v4346 = vld [vmem:[#allocation4 + $0x7a8] sm:$0xff]
    %v4347 = vld [vmem:[#allocation4 + $0x7b0] sm:$0xff]
    %v4348 = vld [vmem:[#allocation4 + $0x7b8] sm:$0xff]
    %v4349 = vld [vmem:[#allocation4 + $0x7c0] sm:$0xff]
    %v4350 = vld [vmem:[#allocation4 + $0x7c8] sm:$0xff]
    %v4351 = vld [vmem:[#allocation4 + $0x7d0] sm:$0xff]
    %v4352 = vld [vmem:[#allocation4 + $0x7d8] sm:$0xff]
    %v4353 = vld [vmem:[#allocation4 + $0x7e0] sm:$0xff]
    %v4354 = vld [vmem:[#allocation4 + $0x7e8] sm:$0xff]
    %v4355 = vld [vmem:[#allocation4 + $0x7f0] sm:$0xff]
    %v4356 = vld [vmem:[#allocation4 + $0x7f8] sm:$0xff]
    %4357 = vmatprep.subr.bf16.mxu0 %v4102
    %4358 = vmatpush1.bf16.msra.mxu0 %v4101
    %4359 = vmatprep.subr.bf16.mxu0 %v4106
    %4360 = vmatpush1.bf16.msra.mxu0 %v4105
    %4361 = vmatprep.subr.bf16.mxu0 %v4110
    %4362 = vmatpush1.bf16.msra.mxu0 %v4109
    %4363 = vmatprep.subr.bf16.mxu0 %v4114
    %4364 = vmatpush1.bf16.msra.mxu0 %v4113
    %4365 = vmatprep.subr.bf16.mxu0 %v4118
    %4366 = vmatpush1.bf16.msra.mxu0 %v4117
    %4367 = vmatprep.subr.bf16.mxu0 %v4122
    %4368 = vmatpush1.bf16.msra.mxu0 %v4121
    %4369 = vmatprep.subr.bf16.mxu0 %v4126
    %4370 = vmatpush1.bf16.msra.mxu0 %v4125
    %4371 = vmatprep.subr.bf16.mxu0 %v4130
    %4372 = vmatpush1.bf16.msra.mxu0 %v4129
    %4373 = vmatprep.subr.bf16.mxu0 %v4134
    %4374 = vmatpush1.bf16.msra.mxu0 %v4133
    %4375 = vmatprep.subr.bf16.mxu0 %v4138
    %4376 = vmatpush1.bf16.msra.mxu0 %v4137
    %4377 = vmatprep.subr.bf16.mxu0 %v4142
    %4378 = vmatpush1.bf16.msra.mxu0 %v4141
    %4379 = vmatprep.subr.bf16.mxu0 %v4146
    %4380 = vmatpush1.bf16.msra.mxu0 %v4145
    %4381 = vmatprep.subr.bf16.mxu0 %v4150
    %4382 = vmatpush1.bf16.msra.mxu0 %v4149
    %4383 = vmatprep.subr.bf16.mxu0 %v4154
    %4384 = vmatpush1.bf16.msra.mxu0 %v4153
    %4385 = vmatprep.subr.bf16.mxu0 %v4158
    %4386 = vmatpush1.bf16.msra.mxu0 %v4157
    %4387 = vmatprep.subr.bf16.mxu0 %v4162
    %4388 = vmatpush1.bf16.msra.mxu0 %v4161
    %4389 = vmatprep.mubr.bf16.mxu0 %v4034
    %4390 = vmatmul.mubr.bf16.gmra.mrb[0].mxu0 %v4023
    %v4391 = vpop.f32.mrb[0].mxu0
    %v4392 = vadd.f32 0.0, %v4391
    %v4393 = vpop.f32.mrb[0].mxu0
    %v4394 = vadd.f32 0.0, %v4393
    %v4395 = vpop.f32.mrb[0].mxu0
    %v4396 = vpop.f32.mrb[0].mxu0
    %4397 = vdwg.mxu0
    %4398 = vmatprep.subr.bf16.mxu0 %v4166
    %4399 = vmatpush1.bf16.msra.mxu0 %v4165
    %4400 = vmatprep.subr.bf16.mxu0 %v4170
    %4401 = vmatpush1.bf16.msra.mxu0 %v4169
    %4402 = vmatprep.subr.bf16.mxu0 %v4174
    %4403 = vmatpush1.bf16.msra.mxu0 %v4173
    %4404 = vmatprep.subr.bf16.mxu0 %v4178
    %4405 = vmatpush1.bf16.msra.mxu0 %v4177
    %4406 = vmatprep.subr.bf16.mxu0 %v4182
    %4407 = vmatpush1.bf16.msra.mxu0 %v4181
    %4408 = vmatprep.subr.bf16.mxu0 %v4186
    %4409 = vmatpush1.bf16.msra.mxu0 %v4185
    %4410 = vmatprep.subr.bf16.mxu0 %v4190
    %4411 = vmatpush1.bf16.msra.mxu0 %v4189
    %4412 = vmatprep.subr.bf16.mxu0 %v4194
    %4413 = vmatpush1.bf16.msra.mxu0 %v4193
    %4414 = vmatprep.subr.bf16.mxu0 %v4198
    %4415 = vmatpush1.bf16.msra.mxu0 %v4197
    %4416 = vmatprep.subr.bf16.mxu0 %v4202
    %4417 = vmatpush1.bf16.msra.mxu0 %v4201
    %4418 = vmatprep.subr.bf16.mxu0 %v4206
    %4419 = vmatpush1.bf16.msra.mxu0 %v4205
    %4420 = vmatprep.subr.bf16.mxu0 %v4210
    %4421 = vmatpush1.bf16.msra.mxu0 %v4209
    %4422 = vmatprep.subr.bf16.mxu0 %v4214
    %4423 = vmatpush1.bf16.msra.mxu0 %v4213
    %4424 = vmatprep.subr.bf16.mxu0 %v4218
    %4425 = vmatpush1.bf16.msra.mxu0 %v4217
    %4426 = vmatprep.subr.bf16.mxu0 %v4222
    %4427 = vmatpush1.bf16.msra.mxu0 %v4221
    %4428 = vmatprep.subr.bf16.mxu0 %v4226
    %4429 = vmatpush1.bf16.msra.mxu0 %v4225
    %4430 = vmatprep.mubr.bf16.mxu0 %v4056
    %4431 = vmatmul.mubr.bf16.gmra.mrb[0].mxu0 %v4045
    %v4432 = vpop.f32.mrb[0].mxu0
    %v4433 = vadd.f32 %v4392, %v4432
    %v4434 = vpop.f32.mrb[0].mxu0
    %v4435 = vadd.f32 %v4394, %v4434
    %v4436 = vpop.f32.mrb[0].mxu0
    %v4437 = vpop.f32.mrb[0].mxu0
    %4438 = vdwg.mxu0
    %4439 = vmatprep.subr.bf16.mxu0 %v4230
    %4440 = vmatpush1.bf16.msra.mxu0 %v4229
    %4441 = vmatprep.subr.bf16.mxu0 %v4234
    %4442 = vmatpush1.bf16.msra.mxu0 %v4233
    %4443 = vmatprep.subr.bf16.mxu0 %v4238
    %4444 = vmatpush1.bf16.msra.mxu0 %v4237
    %4445 = vmatprep.subr.bf16.mxu0 %v4242
    %4446 = vmatpush1.bf16.msra.mxu0 %v4241
    %4447 = vmatprep.subr.bf16.mxu0 %v4246
    %4448 = vmatpush1.bf16.msra.mxu0 %v4245
    %4449 = vmatprep.subr.bf16.mxu0 %v4250
    %4450 = vmatpush1.bf16.msra.mxu0 %v4249
    %4451 = vmatprep.subr.bf16.mxu0 %v4254
    %4452 = vmatpush1.bf16.msra.mxu0 %v4253
    %4453 = vmatprep.subr.bf16.mxu0 %v4258
    %4454 = vmatpush1.bf16.msra.mxu0 %v4257
    %4455 = vmatprep.subr.bf16.mxu0 %v4262
    %4456 = vmatpush1.bf16.msra.mxu0 %v4261
    %4457 = vmatprep.subr.bf16.mxu0 %v4266
    %4458 = vmatpush1.bf16.msra.mxu0 %v4265
    %4459 = vmatprep.subr.bf16.mxu0 %v4270
    %4460 = vmatpush1.bf16.msra.mxu0 %v4269
    %4461 = vmatprep.subr.bf16.mxu0 %v4274
    %4462 = vmatpush1.bf16.msra.mxu0 %v4273
    %4463 = vmatprep.subr.bf16.mxu0 %v4278
    %4464 = vmatpush1.bf16.msra.mxu0 %v4277
    %4465 = vmatprep.subr.bf16.mxu0 %v4282
    %4466 = vmatpush1.bf16.msra.mxu0 %v4281
    %4467 = vmatprep.subr.bf16.mxu0 %v4286
    %4468 = vmatpush1.bf16.msra.mxu0 %v4285
    %4469 = vmatprep.subr.bf16.mxu0 %v4290
    %4470 = vmatpush1.bf16.msra.mxu0 %v4289
    %4471 = vmatprep.mubr.bf16.mxu0 %v4078
    %4472 = vmatmul.mubr.bf16.gmra.mrb[0].mxu0 %v4067
    %v4473 = vpop.f32.mrb[0].mxu0
    %v4474 = vadd.f32 %v4433, %v4473
    %v4475 = vpop.f32.mrb[0].mxu0
    %v4476 = vadd.f32 %v4435, %v4475
    %v4477 = vpop.f32.mrb[0].mxu0
    %v4478 = vpop.f32.mrb[0].mxu0
    %4479 = vdwg.mxu0
    %4480 = vmatprep.subr.bf16.mxu0 %v4294
    %4481 = vmatpush1.bf16.msra.mxu0 %v4293
    %4482 = vmatprep.subr.bf16.mxu0 %v4298
    %4483 = vmatpush1.bf16.msra.mxu0 %v4297
    %4484 = vmatprep.subr.bf16.mxu0 %v4302
    %4485 = vmatpush1.bf16.msra.mxu0 %v4301
    %4486 = vmatprep.subr.bf16.mxu0 %v4306
    %4487 = vmatpush1.bf16.msra.mxu0 %v4305
    %4488 = vmatprep.subr.bf16.mxu0 %v4310
    %4489 = vmatpush1.bf16.msra.mxu0 %v4309
    %4490 = vmatprep.subr.bf16.mxu0 %v4314
    %4491 = vmatpush1.bf16.msra.mxu0 %v4313
    %4492 = vmatprep.subr.bf16.mxu0 %v4318
    %4493 = vmatpush1.bf16.msra.mxu0 %v4317
    %4494 = vmatprep.subr.bf16.mxu0 %v4322
    %4495 = vmatpush1.bf16.msra.mxu0 %v4321
    %4496 = vmatprep.subr.bf16.mxu0 %v4326
    %4497 = vmatpush1.bf16.msra.mxu0 %v4325
    %4498 = vmatprep.subr.bf16.mxu0 %v4330
    %4499 = vmatpush1.bf16.msra.mxu0 %v4329
    %4500 = vmatprep.subr.bf16.mxu0 %v4334
    %4501 = vmatpush1.bf16.msra.mxu0 %v4333
    %4502 = vmatprep.subr.bf16.mxu0 %v4338
    %4503 = vmatpush1.bf16.msra.mxu0 %v4337
    %4504 = vmatprep.subr.bf16.mxu0 %v4342
    %4505 = vmatpush1.bf16.msra.mxu0 %v4341
    %4506 = vmatprep.subr.bf16.mxu0 %v4346
    %4507 = vmatpush1.bf16.msra.mxu0 %v4345
    %4508 = vmatprep.subr.bf16.mxu0 %v4350
    %4509 = vmatpush1.bf16.msra.mxu0 %v4349
    %4510 = vmatprep.subr.bf16.mxu0 %v4354
    %4511 = vmatpush1.bf16.msra.mxu0 %v4353
    %4512 = vmatprep.mubr.bf16.mxu0 %v4100
    %4513 = vmatmul.mubr.bf16.gmra.mrb[0].mxu0 %v4089
    %v4514 = vpop.f32.mrb[0].mxu0
    %v4515 = vadd.f32 %v4474, %v4514
    %v4516 = vpop.f32.mrb[0].mxu0
    %v4517 = vadd.f32 %v4476, %v4516
    %v4518 = vpop.f32.mrb[0].mxu0
    %v4519 = vpop.f32.mrb[0].mxu0
    %4520 = vdwg.mxu0
    %4521 = vmatprep.subr.bf16.mxu0 %v4104
    %4522 = vmatpush1.bf16.msra.mxu0 %v4103
    %4523 = vmatprep.subr.bf16.mxu0 %v4108
    %4524 = vmatpush1.bf16.msra.mxu0 %v4107
    %4525 = vmatprep.subr.bf16.mxu0 %v4112
    %4526 = vmatpush1.bf16.msra.mxu0 %v4111
    %4527 = vmatprep.subr.bf16.mxu0 %v4116
    %4528 = vmatpush1.bf16.msra.mxu0 %v4115
    %4529 = vmatprep.subr.bf16.mxu0 %v4120
    %4530 = vmatpush1.bf16.msra.mxu0 %v4119
    %4531 = vmatprep.subr.bf16.mxu0 %v4124
    %4532 = vmatpush1.bf16.msra.mxu0 %v4123
    %4533 = vmatprep.subr.bf16.mxu0 %v4128
    %4534 = vmatpush1.bf16.msra.mxu0 %v4127
    %4535 = vmatprep.subr.bf16.mxu0 %v4132
    %4536 = vmatpush1.bf16.msra.mxu0 %v4131
    %4537 = vmatprep.subr.bf16.mxu0 %v4136
    %4538 = vmatpush1.bf16.msra.mxu0 %v4135
    %4539 = vmatprep.subr.bf16.mxu0 %v4140
    %4540 = vmatpush1.bf16.msra.mxu0 %v4139
    %4541 = vmatprep.subr.bf16.mxu0 %v4144
    %4542 = vmatpush1.bf16.msra.mxu0 %v4143
    %4543 = vmatprep.subr.bf16.mxu0 %v4148
    %4544 = vmatpush1.bf16.msra.mxu0 %v4147
    %4545 = vmatprep.subr.bf16.mxu0 %v4152
    %4546 = vmatpush1.bf16.msra.mxu0 %v4151
    %4547 = vmatprep.subr.bf16.mxu0 %v4156
    %4548 = vmatpush1.bf16.msra.mxu0 %v4155
    %4549 = vmatprep.subr.bf16.mxu0 %v4160
    %4550 = vmatpush1.bf16.msra.mxu0 %v4159
    %4551 = vmatprep.subr.bf16.mxu0 %v4164
    %4552 = vmatpush1.bf16.msra.mxu0 %v4163
    %4553 = vmatprep.mubr.bf16.mxu0 %v4034
    %4554 = vmatmul.mubr.bf16.gmra.mrb[0].mxu0 %v4023
    %v4555 = vpop.f32.mrb[0].mxu0
    %v4556 = vadd.f32 0.0, %v4555
    %v4557 = vpop.f32.mrb[0].mxu0
    %v4558 = vadd.f32 0.0, %v4557
    %v4559 = vpop.f32.mrb[0].mxu0
    %v4560 = vpop.f32.mrb[0].mxu0
    %4561 = vdwg.mxu0
    %4562 = vmatprep.subr.bf16.mxu0 %v4168
    %4563 = vmatpush1.bf16.msra.mxu0 %v4167
    %4564 = vmatprep.subr.bf16.mxu0 %v4172
    %4565 = vmatpush1.bf16.msra.mxu0 %v4171
    %4566 = vmatprep.subr.bf16.mxu0 %v4176
    %4567 = vmatpush1.bf16.msra.mxu0 %v4175
    %4568 = vmatprep.subr.bf16.mxu0 %v4180
    %4569 = vmatpush1.bf16.msra.mxu0 %v4179
    %4570 = vmatprep.subr.bf16.mxu0 %v4184
    %4571 = vmatpush1.bf16.msra.mxu0 %v4183
    %4572 = vmatprep.subr.bf16.mxu0 %v4188
    %4573 = vmatpush1.bf16.msra.mxu0 %v4187
    %4574 = vmatprep.subr.bf16.mxu0 %v4192
    %4575 = vmatpush1.bf16.msra.mxu0 %v4191
    %4576 = vmatprep.subr.bf16.mxu0 %v4196
    %4577 = vmatpush1.bf16.msra.mxu0 %v4195
    %4578 = vmatprep.subr.bf16.mxu0 %v4200
    %4579 = vmatpush1.bf16.msra.mxu0 %v4199
    %4580 = vmatprep.subr.bf16.mxu0 %v4204
    %4581 = vmatpush1.bf16.msra.mxu0 %v4203
    %4582 = vmatprep.subr.bf16.mxu0 %v4208
    %4583 = vmatpush1.bf16.msra.mxu0 %v4207
    %4584 = vmatprep.subr.bf16.mxu0 %v4212
    %4585 = vmatpush1.bf16.msra.mxu0 %v4211
    %4586 = vmatprep.subr.bf16.mxu0 %v4216
    %4587 = vmatpush1.bf16.msra.mxu0 %v4215
    %4588 = vmatprep.subr.bf16.mxu0 %v4220
    %4589 = vmatpush1.bf16.msra.mxu0 %v4219
    %4590 = vmatprep.subr.bf16.mxu0 %v4224
    %4591 = vmatpush1.bf16.msra.mxu0 %v4223
    %4592 = vmatprep.subr.bf16.mxu0 %v4228
    %4593 = vmatpush1.bf16.msra.mxu0 %v4227
    %4594 = vmatprep.mubr.bf16.mxu0 %v4056
    %4595 = vmatmul.mubr.bf16.gmra.mrb[0].mxu0 %v4045
    %v4596 = vpop.f32.mrb[0].mxu0
    %v4597 = vadd.f32 %v4556, %v4596
    %v4598 = vpop.f32.mrb[0].mxu0
    %v4599 = vadd.f32 %v4558, %v4598
    %v4600 = vpop.f32.mrb[0].mxu0
    %v4601 = vpop.f32.mrb[0].mxu0
    %4602 = vdwg.mxu0
    %4603 = vmatprep.subr.bf16.mxu0 %v4232
    %4604 = vmatpush1.bf16.msra.mxu0 %v4231
    %4605 = vmatprep.subr.bf16.mxu0 %v4236
    %4606 = vmatpush1.bf16.msra.mxu0 %v4235
    %4607 = vmatprep.subr.bf16.mxu0 %v4240
    %4608 = vmatpush1.bf16.msra.mxu0 %v4239
    %4609 = vmatprep.subr.bf16.mxu0 %v4244
    %4610 = vmatpush1.bf16.msra.mxu0 %v4243
    %4611 = vmatprep.subr.bf16.mxu0 %v4248
    %4612 = vmatpush1.bf16.msra.mxu0 %v4247
    %4613 = vmatprep.subr.bf16.mxu0 %v4252
    %4614 = vmatpush1.bf16.msra.mxu0 %v4251
    %4615 = vmatprep.subr.bf16.mxu0 %v4256
    %4616 = vmatpush1.bf16.msra.mxu0 %v4255
    %4617 = vmatprep.subr.bf16.mxu0 %v4260
    %4618 = vmatpush1.bf16.msra.mxu0 %v4259
    %4619 = vmatprep.subr.bf16.mxu0 %v4264
    %4620 = vmatpush1.bf16.msra.mxu0 %v4263
    %4621 = vmatprep.subr.bf16.mxu0 %v4268
    %4622 = vmatpush1.bf16.msra.mxu0 %v4267
    %4623 = vmatprep.subr.bf16.mxu0 %v4272
    %4624 = vmatpush1.bf16.msra.mxu0 %v4271
    %4625 = vmatprep.subr.bf16.mxu0 %v4276
    %4626 = vmatpush1.bf16.msra.mxu0 %v4275
    %4627 = vmatprep.subr.bf16.mxu0 %v4280
    %4628 = vmatpush1.bf16.msra.mxu0 %v4279
    %4629 = vmatprep.subr.bf16.mxu0 %v4284
    %4630 = vmatpush1.bf16.msra.mxu0 %v4283
    %4631 = vmatprep.subr.bf16.mxu0 %v4288
    %4632 = vmatpush1.bf16.msra.mxu0 %v4287
    %4633 = vmatprep.subr.bf16.mxu0 %v4292
    %4634 = vmatpush1.bf16.msra.mxu0 %v4291
    %4635 = vmatprep.mubr.bf16.mxu0 %v4078
    %4636 = vmatmul.mubr.bf16.gmra.mrb[0].mxu0 %v4067
    %v4637 = vpop.f32.mrb[0].mxu0
    %v4638 = vadd.f32 %v4597, %v4637
    %v4639 = vpop.f32.mrb[0].mxu0
    %v4640 = vadd.f32 %v4599, %v4639
    %v4641 = vpop.f32.mrb[0].mxu0
    %v4642 = vpop.f32.mrb[0].mxu0
    %4643 = vdwg.mxu0
    %4644 = vmatprep.subr.bf16.mxu0 %v4296
    %4645 = vmatpush1.bf16.msra.mxu0 %v4295
    %4646 = vmatprep.subr.bf16.mxu0 %v4300
    %4647 = vmatpush1.bf16.msra.mxu0 %v4299
    %4648 = vmatprep.subr.bf16.mxu0 %v4304
    %4649 = vmatpush1.bf16.msra.mxu0 %v4303
    %4650 = vmatprep.subr.bf16.mxu0 %v4308
    %4651 = vmatpush1.bf16.msra.mxu0 %v4307
    %4652 = vmatprep.subr.bf16.mxu0 %v4312
    %4653 = vmatpush1.bf16.msra.mxu0 %v4311
    %4654 = vmatprep.subr.bf16.mxu0 %v4316
    %4655 = vmatpush1.bf16.msra.mxu0 %v4315
    %4656 = vmatprep.subr.bf16.mxu0 %v4320
    %4657 = vmatpush1.bf16.msra.mxu0 %v4319
    %4658 = vmatprep.subr.bf16.mxu0 %v4324
    %4659 = vmatpush1.bf16.msra.mxu0 %v4323
    %4660 = vmatprep.subr.bf16.mxu0 %v4328
    %4661 = vmatpush1.bf16.msra.mxu0 %v4327
    %4662 = vmatprep.subr.bf16.mxu0 %v4332
    %4663 = vmatpush1.bf16.msra.mxu0 %v4331
    %4664 = vmatprep.subr.bf16.mxu0 %v4336
    %4665 = vmatpush1.bf16.msra.mxu0 %v4335
    %4666 = vmatprep.subr.bf16.mxu0 %v4340
    %4667 = vmatpush1.bf16.msra.mxu0 %v4339
    %4668 = vmatprep.subr.bf16.mxu0 %v4344
    %4669 = vmatpush1.bf16.msra.mxu0 %v4343
    %4670 = vmatprep.subr.bf16.mxu0 %v4348
    %4671 = vmatpush1.bf16.msra.mxu0 %v4347
    %4672 = vmatprep.subr.bf16.mxu0 %v4352
    %4673 = vmatpush1.bf16.msra.mxu0 %v4351
    %4674 = vmatprep.subr.bf16.mxu0 %v4356
    %4675 = vmatpush1.bf16.msra.mxu0 %v4355
    %4676 = vmatprep.mubr.bf16.mxu0 %v4100
    %4677 = vmatmul.mubr.bf16.gmra.mrb[0].mxu0 %v4089
    %v4678 = vpop.f32.mrb[0].mxu0
    %v4679 = vadd.f32 %v4638, %v4678
    %v4680 = vpop.f32.mrb[0].mxu0
    %v4681 = vadd.f32 %v4640, %v4680
    %v4682 = vpop.f32.mrb[0].mxu0
    %v4683 = vpop.f32.mrb[0].mxu0
    %4684 = vdwg.mxu0
    %vm4685 = vcmp.ge.s32.totalorder %v4005, 0
    %vm4686 = vcmp.ge.s32.totalorder %v4006, 0
    %vm4687 = vcmp.ge.s32.totalorder %v4007, 0
    %vm4688 = vcmp.ge.s32.totalorder %v4008, 0
    %vm4689 = vcmp.ge.s32.totalorder %v4009, 0
    %vm4690 = vcmp.ge.s32.totalorder %v4010, 0
    %vm4691 = vcmp.ge.s32.totalorder %v4011, 0
    %vm4692 = vcmp.ge.s32.totalorder %v4012, 0
    %vm4693 = vcmp.lt.s32.totalorder %v4005, 32
    %vm4694 = vcmp.lt.s32.totalorder %v4006, 32
    %vm4695 = vcmp.lt.s32.totalorder %v4007, 32
    %vm4696 = vcmp.lt.s32.totalorder %v4008, 32
    %vm4697 = vcmp.lt.s32.totalorder %v4009, 32
    %vm4698 = vcmp.lt.s32.totalorder %v4010, 32
    %vm4699 = vcmp.lt.s32.totalorder %v4011, 32
    %vm4700 = vcmp.lt.s32.totalorder %v4012, 32
    %vm4701 = vmand %vm4685, %vm4693
    %vm4702 = vmand %vm4686, %vm4694
    %vm4703 = vmand %vm4687, %vm4695
    %vm4704 = vmand %vm4688, %vm4696
    %vm4705 = vmand %vm4689, %vm4697
    %vm4706 = vmand %vm4690, %vm4698
    %vm4707 = vmand %vm4691, %vm4699
    %vm4708 = vmand %vm4692, %vm4700
    %v4709 = vsel %vm4701, 1, 0
    %v4710 = vsel %vm4702, 1, 0
    %v4711 = vsel %vm4703, 1, 0
    %v4712 = vsel %vm4704, 1, 0
    %v4713 = vsel %vm4705, 1, 0
    %v4714 = vsel %vm4706, 1, 0
    %v4715 = vsel %vm4707, 1, 0
    %v4716 = vsel %vm4708, 1, 0
    %vm4717 = vcmp.eq.s32.totalorder %v4709, 1
    %vm4718 = vcmp.eq.s32.totalorder %v4710, 1
    %vm4719 = vcmp.eq.s32.totalorder %v4711, 1
    %vm4720 = vcmp.eq.s32.totalorder %v4712, 1
    %vm4721 = vcmp.eq.s32.totalorder %v4713, 1
    %vm4722 = vcmp.eq.s32.totalorder %v4714, 1
    %vm4723 = vcmp.eq.s32.totalorder %v4715, 1
    %vm4724 = vcmp.eq.s32.totalorder %v4716, 1
    %v4725 = vlaneseq
    %v4726 = vshrl.u32 %v4725, 7
    %v4727 = vsub.s32 0, %v4726
    %v4728 = vrot.slane %v4515, %v4727
    %v4729 = vlaneseq
    %v4730 = vshrl.u32 %v4729, 7
    %v4731 = vsub.s32 0, %v4730
    %v4732 = vrot.slane %v4517, %v4731
    %v4733 = vlaneseq
    %v4734 = vshrl.u32 %v4733, 7
    %v4735 = vsub.s32 0, %v4734
    %v4736 = vrot.slane %v4679, %v4735
    %v4737 = vlaneseq
    %v4738 = vshrl.u32 %v4737, 7
    %v4739 = vsub.s32 0, %v4738
    %v4740 = vrot.slane %v4681, %v4739
    %v4741 = vsel %vm4717, %v4728, 0.0
    %v4742 = vsel %vm4717, %v4732, 0.0
    %v4743 = vsel %vm4717, %v4736, 0.0
    %v4744 = vsel %vm4717, %v4740, 0.0
    %v4745 = vsel %vm4718, %v4728, 0.0
    %v4746 = vsel %vm4718, %v4732, 0.0
    %v4747 = vsel %vm4718, %v4736, 0.0
    %v4748 = vsel %vm4718, %v4740, 0.0
    %v4749 = vsel %vm4719, %v4728, 0.0
    %v4750 = vsel %vm4719, %v4732, 0.0
    %v4751 = vsel %vm4719, %v4736, 0.0
    %v4752 = vsel %vm4719, %v4740, 0.0
    %v4753 = vsel %vm4720, %v4728, 0.0
    %v4754 = vsel %vm4720, %v4732, 0.0
    %v4755 = vsel %vm4720, %v4736, 0.0
    %v4756 = vsel %vm4720, %v4740, 0.0
    %v4757 = vsel %vm4721, %v4728, 0.0
    %v4758 = vsel %vm4721, %v4732, 0.0
    %v4759 = vsel %vm4721, %v4736, 0.0
    %v4760 = vsel %vm4721, %v4740, 0.0
    %v4761 = vsel %vm4722, %v4728, 0.0
    %v4762 = vsel %vm4722, %v4732, 0.0
    %v4763 = vsel %vm4722, %v4736, 0.0
    %v4764 = vsel %vm4722, %v4740, 0.0
    %v4765 = vsel %vm4723, %v4728, 0.0
    %v4766 = vsel %vm4723, %v4732, 0.0
    %v4767 = vsel %vm4723, %v4736, 0.0
    %v4768 = vsel %vm4723, %v4740, 0.0
    %v4769 = vsel %vm4724, %v4728, 0.0
    %v4770 = vsel %vm4724, %v4732, 0.0
    %v4771 = vsel %vm4724, %v4736, 0.0
    %v4772 = vsel %vm4724, %v4740, 0.0
    %v4773 = vmax.bf16 %v3624, %v3632
    %v4774 = vunpack.i.l.bf16 %v4773
    %v4775 = vunpack.i.h.bf16 %v4773
    %v4776 = vmax.f32 %v4774, %v4775
    %v4777 = vrot.slane %v4776, 4
    %v4778 = vmax.f32 %v4776, %v4777
    %v4779 = vrot.slane %v4778, 2
    %v4780 = vmax.f32 %v4778, %v4779
    %v4781 = vrot.slane %v4780, 1
    %v4782 = vmax.f32 %v4780, %v4781
    %v4783 = vpack.i.bf16 %v4782, %v4782
    %v4784 = vmax.bf16 %v3625, %v3633
    %v4785 = vunpack.i.l.bf16 %v4784
    %v4786 = vunpack.i.h.bf16 %v4784
    %v4787 = vmax.f32 %v4785, %v4786
    %v4788 = vrot.slane %v4787, 4
    %v4789 = vmax.f32 %v4787, %v4788
    %v4790 = vrot.slane %v4789, 2
    %v4791 = vmax.f32 %v4789, %v4790
    %v4792 = vrot.slane %v4791, 1
    %v4793 = vmax.f32 %v4791, %v4792
    %v4794 = vpack.i.bf16 %v4793, %v4793
    %v4795 = vmax.bf16 %v3626, %v3634
    %v4796 = vunpack.i.l.bf16 %v4795
    %v4797 = vunpack.i.h.bf16 %v4795
    %v4798 = vmax.f32 %v4796, %v4797
    %v4799 = vrot.slane %v4798, 4
    %v4800 = vmax.f32 %v4798, %v4799
    %v4801 = vrot.slane %v4800, 2
    %v4802 = vmax.f32 %v4800, %v4801
    %v4803 = vrot.slane %v4802, 1
    %v4804 = vmax.f32 %v4802, %v4803
    %v4805 = vpack.i.bf16 %v4804, %v4804
    %v4806 = vmax.bf16 %v3627, %v3635
    %v4807 = vunpack.i.l.bf16 %v4806
    %v4808 = vunpack.i.h.bf16 %v4806
    %v4809 = vmax.f32 %v4807, %v4808
    %v4810 = vrot.slane %v4809, 4
    %v4811 = vmax.f32 %v4809, %v4810
    %v4812 = vrot.slane %v4811, 2
    %v4813 = vmax.f32 %v4811, %v4812
    %v4814 = vrot.slane %v4813, 1
    %v4815 = vmax.f32 %v4813, %v4814
    %v4816 = vpack.i.bf16 %v4815, %v4815
    %v4817 = vmax.bf16 %v3628, %v3636
    %v4818 = vunpack.i.l.bf16 %v4817
    %v4819 = vunpack.i.h.bf16 %v4817
    %v4820 = vmax.f32 %v4818, %v4819
    %v4821 = vrot.slane %v4820, 4
    %v4822 = vmax.f32 %v4820, %v4821
    %v4823 = vrot.slane %v4822, 2
    %v4824 = vmax.f32 %v4822, %v4823
    %v4825 = vrot.slane %v4824, 1
    %v4826 = vmax.f32 %v4824, %v4825
    %v4827 = vpack.i.bf16 %v4826, %v4826
    %v4828 = vmax.bf16 %v3629, %v3637
    %v4829 = vunpack.i.l.bf16 %v4828
    %v4830 = vunpack.i.h.bf16 %v4828
    %v4831 = vmax.f32 %v4829, %v4830
    %v4832 = vrot.slane %v4831, 4
    %v4833 = vmax.f32 %v4831, %v4832
    %v4834 = vrot.slane %v4833, 2
    %v4835 = vmax.f32 %v4833, %v4834
    %v4836 = vrot.slane %v4835, 1
    %v4837 = vmax.f32 %v4835, %v4836
    %v4838 = vpack.i.bf16 %v4837, %v4837
    %v4839 = vmax.bf16 %v3630, %v3638
    %v4840 = vunpack.i.l.bf16 %v4839
    %v4841 = vunpack.i.h.bf16 %v4839
    %v4842 = vmax.f32 %v4840, %v4841
    %v4843 = vrot.slane %v4842, 4
    %v4844 = vmax.f32 %v4842, %v4843
    %v4845 = vrot.slane %v4844, 2
    %v4846 = vmax.f32 %v4844, %v4845
    %v4847 = vrot.slane %v4846, 1
    %v4848 = vmax.f32 %v4846, %v4847
    %v4849 = vpack.i.bf16 %v4848, %v4848
    %v4850 = vmax.bf16 %v3631, %v3639
    %v4851 = vunpack.i.l.bf16 %v4850
    %v4852 = vunpack.i.h.bf16 %v4850
    %v4853 = vmax.f32 %v4851, %v4852
    %v4854 = vrot.slane %v4853, 4
    %v4855 = vmax.f32 %v4853, %v4854
    %v4856 = vrot.slane %v4855, 2
    %v4857 = vmax.f32 %v4855, %v4856
    %v4858 = vrot.slane %v4857, 1
    %v4859 = vmax.f32 %v4857, %v4858
    %v4860 = vpack.i.bf16 %v4859, %v4859
    %4861 = vmatprep.subr.bf16.mxu0 %v4102
    %4862 = vmatpush1.bf16.msra.mxu0 %v4101
    %4863 = vmatprep.subr.bf16.mxu0 %v4106
    %4864 = vmatpush1.bf16.msra.mxu0 %v4105
    %4865 = vmatprep.subr.bf16.mxu0 %v4110
    %4866 = vmatpush1.bf16.msra.mxu0 %v4109
    %4867 = vmatprep.subr.bf16.mxu0 %v4114
    %4868 = vmatpush1.bf16.msra.mxu0 %v4113
    %4869 = vmatprep.subr.bf16.mxu0 %v4118
    %4870 = vmatpush1.bf16.msra.mxu0 %v4117
    %4871 = vmatprep.subr.bf16.mxu0 %v4122
    %4872 = vmatpush1.bf16.msra.mxu0 %v4121
    %4873 = vmatprep.subr.bf16.mxu0 %v4126
    %4874 = vmatpush1.bf16.msra.mxu0 %v4125
    %4875 = vmatprep.subr.bf16.mxu0 %v4130
    %4876 = vmatpush1.bf16.msra.mxu0 %v4129
    %4877 = vmatprep.subr.bf16.mxu0 %v4134
    %4878 = vmatpush1.bf16.msra.mxu0 %v4133
    %4879 = vmatprep.subr.bf16.mxu0 %v4138
    %4880 = vmatpush1.bf16.msra.mxu0 %v4137
    %4881 = vmatprep.subr.bf16.mxu0 %v4142
    %4882 = vmatpush1.bf16.msra.mxu0 %v4141
    %4883 = vmatprep.subr.bf16.mxu0 %v4146
    %4884 = vmatpush1.bf16.msra.mxu0 %v4145
    %4885 = vmatprep.subr.bf16.mxu0 %v4150
    %4886 = vmatpush1.bf16.msra.mxu0 %v4149
    %4887 = vmatprep.subr.bf16.mxu0 %v4154
    %4888 = vmatpush1.bf16.msra.mxu0 %v4153
    %4889 = vmatprep.subr.bf16.mxu0 %v4158
    %4890 = vmatpush1.bf16.msra.mxu0 %v4157
    %4891 = vmatprep.subr.bf16.mxu0 %v4162
    %4892 = vmatpush1.bf16.msra.mxu0 %v4161
    %4893 = vmatprep.mubr.bf16.mxu0 %v4794
    %4894 = vmatmul.mubr.bf16.gmra.mrb[0].mxu0 %v4783
    %v4895 = vpop.f32.mrb[0].mxu0
    %v4896 = vadd.f32 0.0, %v4895
    %v4897 = vpop.f32.mrb[0].mxu0
    %v4898 = vadd.f32 0.0, %v4897
    %v4899 = vpop.f32.mrb[0].mxu0
    %v4900 = vpop.f32.mrb[0].mxu0
    %4901 = vdwg.mxu0
    %4902 = vmatprep.subr.bf16.mxu0 %v4166
    %4903 = vmatpush1.bf16.msra.mxu0 %v4165
    %4904 = vmatprep.subr.bf16.mxu0 %v4170
    %4905 = vmatpush1.bf16.msra.mxu0 %v4169
    %4906 = vmatprep.subr.bf16.mxu0 %v4174
    %4907 = vmatpush1.bf16.msra.mxu0 %v4173
    %4908 = vmatprep.subr.bf16.mxu0 %v4178
    %4909 = vmatpush1.bf16.msra.mxu0 %v4177
    %4910 = vmatprep.subr.bf16.mxu0 %v4182
    %4911 = vmatpush1.bf16.msra.mxu0 %v4181
    %4912 = vmatprep.subr.bf16.mxu0 %v4186
    %4913 = vmatpush1.bf16.msra.mxu0 %v4185
    %4914 = vmatprep.subr.bf16.mxu0 %v4190
    %4915 = vmatpush1.bf16.msra.mxu0 %v4189
    %4916 = vmatprep.subr.bf16.mxu0 %v4194
    %4917 = vmatpush1.bf16.msra.mxu0 %v4193
    %4918 = vmatprep.subr.bf16.mxu0 %v4198
    %4919 = vmatpush1.bf16.msra.mxu0 %v4197
    %4920 = vmatprep.subr.bf16.mxu0 %v4202
    %4921 = vmatpush1.bf16.msra.mxu0 %v4201
    %4922 = vmatprep.subr.bf16.mxu0 %v4206
    %4923 = vmatpush1.bf16.msra.mxu0 %v4205
    %4924 = vmatprep.subr.bf16.mxu0 %v4210
    %4925 = vmatpush1.bf16.msra.mxu0 %v4209
    %4926 = vmatprep.subr.bf16.mxu0 %v4214
    %4927 = vmatpush1.bf16.msra.mxu0 %v4213
    %4928 = vmatprep.subr.bf16.mxu0 %v4218
    %4929 = vmatpush1.bf16.msra.mxu0 %v4217
    %4930 = vmatprep.subr.bf16.mxu0 %v4222
    %4931 = vmatpush1.bf16.msra.mxu0 %v4221
    %4932 = vmatprep.subr.bf16.mxu0 %v4226
    %4933 = vmatpush1.bf16.msra.mxu0 %v4225
    %4934 = vmatprep.mubr.bf16.mxu0 %v4816
    %4935 = vmatmul.mubr.bf16.gmra.mrb[0].mxu0 %v4805
    %v4936 = vpop.f32.mrb[0].mxu0
    %v4937 = vadd.f32 %v4896, %v4936
    %v4938 = vpop.f32.mrb[0].mxu0
    %v4939 = vadd.f32 %v4898, %v4938
    %v4940 = vpop.f32.mrb[0].mxu0
    %v4941 = vpop.f32.mrb[0].mxu0
    %4942 = vdwg.mxu0
    %4943 = vmatprep.subr.bf16.mxu0 %v4230
    %4944 = vmatpush1.bf16.msra.mxu0 %v4229
    %4945 = vmatprep.subr.bf16.mxu0 %v4234
    %4946 = vmatpush1.bf16.msra.mxu0 %v4233
    %4947 = vmatprep.subr.bf16.mxu0 %v4238
    %4948 = vmatpush1.bf16.msra.mxu0 %v4237
    %4949 = vmatprep.subr.bf16.mxu0 %v4242
    %4950 = vmatpush1.bf16.msra.mxu0 %v4241
    %4951 = vmatprep.subr.bf16.mxu0 %v4246
    %4952 = vmatpush1.bf16.msra.mxu0 %v4245
    %4953 = vmatprep.subr.bf16.mxu0 %v4250
    %4954 = vmatpush1.bf16.msra.mxu0 %v4249
    %4955 = vmatprep.subr.bf16.mxu0 %v4254
    %4956 = vmatpush1.bf16.msra.mxu0 %v4253
    %4957 = vmatprep.subr.bf16.mxu0 %v4258
    %4958 = vmatpush1.bf16.msra.mxu0 %v4257
    %4959 = vmatprep.subr.bf16.mxu0 %v4262
    %4960 = vmatpush1.bf16.msra.mxu0 %v4261
    %4961 = vmatprep.subr.bf16.mxu0 %v4266
    %4962 = vmatpush1.bf16.msra.mxu0 %v4265
    %4963 = vmatprep.subr.bf16.mxu0 %v4270
    %4964 = vmatpush1.bf16.msra.mxu0 %v4269
    %4965 = vmatprep.subr.bf16.mxu0 %v4274
    %4966 = vmatpush1.bf16.msra.mxu0 %v4273
    %4967 = vmatprep.subr.bf16.mxu0 %v4278
    %4968 = vmatpush1.bf16.msra.mxu0 %v4277
    %4969 = vmatprep.subr.bf16.mxu0 %v4282
    %4970 = vmatpush1.bf16.msra.mxu0 %v4281
    %4971 = vmatprep.subr.bf16.mxu0 %v4286
    %4972 = vmatpush1.bf16.msra.mxu0 %v4285
    %4973 = vmatprep.subr.bf16.mxu0 %v4290
    %4974 = vmatpush1.bf16.msra.mxu0 %v4289
    %4975 = vmatprep.mubr.bf16.mxu0 %v4838
    %4976 = vmatmul.mubr.bf16.gmra.mrb[0].mxu0 %v4827
    %v4977 = vpop.f32.mrb[0].mxu0
    %v4978 = vadd.f32 %v4937, %v4977
    %v4979 = vpop.f32.mrb[0].mxu0
    %v4980 = vadd.f32 %v4939, %v4979
    %v4981 = vpop.f32.mrb[0].mxu0
    %v4982 = vpop.f32.mrb[0].mxu0
    %4983 = vdwg.mxu0
    %4984 = vmatprep.subr.bf16.mxu0 %v4294
    %4985 = vmatpush1.bf16.msra.mxu0 %v4293
    %4986 = vmatprep.subr.bf16.mxu0 %v4298
    %4987 = vmatpush1.bf16.msra.mxu0 %v4297
    %4988 = vmatprep.subr.bf16.mxu0 %v4302
    %4989 = vmatpush1.bf16.msra.mxu0 %v4301
    %4990 = vmatprep.subr.bf16.mxu0 %v4306
    %4991 = vmatpush1.bf16.msra.mxu0 %v4305
    %4992 = vmatprep.subr.bf16.mxu0 %v4310
    %4993 = vmatpush1.bf16.msra.mxu0 %v4309
    %4994 = vmatprep.subr.bf16.mxu0 %v4314
    %4995 = vmatpush1.bf16.msra.mxu0 %v4313
    %4996 = vmatprep.subr.bf16.mxu0 %v4318
    %4997 = vmatpush1.bf16.msra.mxu0 %v4317
    %4998 = vmatprep.subr.bf16.mxu0 %v4322
    %4999 = vmatpush1.bf16.msra.mxu0 %v4321
    %5000 = vmatprep.subr.bf16.mxu0 %v4326
    %5001 = vmatpush1.bf16.msra.mxu0 %v4325
    %5002 = vmatprep.subr.bf16.mxu0 %v4330
    %5003 = vmatpush1.bf16.msra.mxu0 %v4329
    %5004 = vmatprep.subr.bf16.mxu0 %v4334
    %5005 = vmatpush1.bf16.msra.mxu0 %v4333
    %5006 = vmatprep.subr.bf16.mxu0 %v4338
    %5007 = vmatpush1.bf16.msra.mxu0 %v4337
    %5008 = vmatprep.subr.bf16.mxu0 %v4342
    %5009 = vmatpush1.bf16.msra.mxu0 %v4341
    %5010 = vmatprep.subr.bf16.mxu0 %v4346
    %5011 = vmatpush1.bf16.msra.mxu0 %v4345
    %5012 = vmatprep.subr.bf16.mxu0 %v4350
    %5013 = vmatpush1.bf16.msra.mxu0 %v4349
    %5014 = vmatprep.subr.bf16.mxu0 %v4354
    %5015 = vmatpush1.bf16.msra.mxu0 %v4353
    %5016 = vmatprep.mubr.bf16.mxu0 %v4860
    %5017 = vmatmul.mubr.bf16.gmra.mrb[0].mxu0 %v4849
    %v5018 = vpop.f32.mrb[0].mxu0
    %v5019 = vadd.f32 %v4978, %v5018
    %v5020 = vpop.f32.mrb[0].mxu0
    %v5021 = vadd.f32 %v4980, %v5020
    %v5022 = vpop.f32.mrb[0].mxu0
    %v5023 = vpop.f32.mrb[0].mxu0
    %5024 = vdwg.mxu0
    %5025 = vmatprep.subr.bf16.mxu0 %v4104
    %5026 = vmatpush1.bf16.msra.mxu0 %v4103
    %5027 = vmatprep.subr.bf16.mxu0 %v4108
    %5028 = vmatpush1.bf16.msra.mxu0 %v4107
    %5029 = vmatprep.subr.bf16.mxu0 %v4112
    %5030 = vmatpush1.bf16.msra.mxu0 %v4111
    %5031 = vmatprep.subr.bf16.mxu0 %v4116
    %5032 = vmatpush1.bf16.msra.mxu0 %v4115
    %5033 = vmatprep.subr.bf16.mxu0 %v4120
    %5034 = vmatpush1.bf16.msra.mxu0 %v4119
    %5035 = vmatprep.subr.bf16.mxu0 %v4124
    %5036 = vmatpush1.bf16.msra.mxu0 %v4123
    %5037 = vmatprep.subr.bf16.mxu0 %v4128
    %5038 = vmatpush1.bf16.msra.mxu0 %v4127
    %5039 = vmatprep.subr.bf16.mxu0 %v4132
    %5040 = vmatpush1.bf16.msra.mxu0 %v4131
    %5041 = vmatprep.subr.bf16.mxu0 %v4136
    %5042 = vmatpush1.bf16.msra.mxu0 %v4135
    %5043 = vmatprep.subr.bf16.mxu0 %v4140
    %5044 = vmatpush1.bf16.msra.mxu0 %v4139
    %5045 = vmatprep.subr.bf16.mxu0 %v4144
    %5046 = vmatpush1.bf16.msra.mxu0 %v4143
    %5047 = vmatprep.subr.bf16.mxu0 %v4148
    %5048 = vmatpush1.bf16.msra.mxu0 %v4147
    %5049 = vmatprep.subr.bf16.mxu0 %v4152
    %5050 = vmatpush1.bf16.msra.mxu0 %v4151
    %5051 = vmatprep.subr.bf16.mxu0 %v4156
    %5052 = vmatpush1.bf16.msra.mxu0 %v4155
    %5053 = vmatprep.subr.bf16.mxu0 %v4160
    %5054 = vmatpush1.bf16.msra.mxu0 %v4159
    %5055 = vmatprep.subr.bf16.mxu0 %v4164
    %5056 = vmatpush1.bf16.msra.mxu0 %v4163
    %5057 = vmatprep.mubr.bf16.mxu0 %v4794
    %5058 = vmatmul.mubr.bf16.gmra.mrb[0].mxu0 %v4783
    %v5059 = vpop.f32.mrb[0].mxu0
    %v5060 = vadd.f32 0.0, %v5059
    %v5061 = vpop.f32.mrb[0].mxu0
    %v5062 = vadd.f32 0.0, %v5061
    %v5063 = vpop.f32.mrb[0].mxu0
    %v5064 = vpop.f32.mrb[0].mxu0
    %5065 = vdwg.mxu0
    %5066 = vmatprep.subr.bf16.mxu0 %v4168
    %5067 = vmatpush1.bf16.msra.mxu0 %v4167
    %5068 = vmatprep.subr.bf16.mxu0 %v4172
    %5069 = vmatpush1.bf16.msra.mxu0 %v4171
    %5070 = vmatprep.subr.bf16.mxu0 %v4176
    %5071 = vmatpush1.bf16.msra.mxu0 %v4175
    %5072 = vmatprep.subr.bf16.mxu0 %v4180
    %5073 = vmatpush1.bf16.msra.mxu0 %v4179
    %5074 = vmatprep.subr.bf16.mxu0 %v4184
    %5075 = vmatpush1.bf16.msra.mxu0 %v4183
    %5076 = vmatprep.subr.bf16.mxu0 %v4188
    %5077 = vmatpush1.bf16.msra.mxu0 %v4187
    %5078 = vmatprep.subr.bf16.mxu0 %v4192
    %5079 = vmatpush1.bf16.msra.mxu0 %v4191
    %5080 = vmatprep.subr.bf16.mxu0 %v4196
    %5081 = vmatpush1.bf16.msra.mxu0 %v4195
    %5082 = vmatprep.subr.bf16.mxu0 %v4200
    %5083 = vmatpush1.bf16.msra.mxu0 %v4199
    %5084 = vmatprep.subr.bf16.mxu0 %v4204
    %5085 = vmatpush1.bf16.msra.mxu0 %v4203
    %5086 = vmatprep.subr.bf16.mxu0 %v4208
    %5087 = vmatpush1.bf16.msra.mxu0 %v4207
    %5088 = vmatprep.subr.bf16.mxu0 %v4212
    %5089 = vmatpush1.bf16.msra.mxu0 %v4211
    %5090 = vmatprep.subr.bf16.mxu0 %v4216
    %5091 = vmatpush1.bf16.msra.mxu0 %v4215
    %5092 = vmatprep.subr.bf16.mxu0 %v4220
    %5093 = vmatpush1.bf16.msra.mxu0 %v4219
    %5094 = vmatprep.subr.bf16.mxu0 %v4224
    %5095 = vmatpush1.bf16.msra.mxu0 %v4223
    %5096 = vmatprep.subr.bf16.mxu0 %v4228
    %5097 = vmatpush1.bf16.msra.mxu0 %v4227
    %5098 = vmatprep.mubr.bf16.mxu0 %v4816
    %5099 = vmatmul.mubr.bf16.gmra.mrb[0].mxu0 %v4805
    %v5100 = vpop.f32.mrb[0].mxu0
    %v5101 = vadd.f32 %v5060, %v5100
    %v5102 = vpop.f32.mrb[0].mxu0
    %v5103 = vadd.f32 %v5062, %v5102
    %v5104 = vpop.f32.mrb[0].mxu0
    %v5105 = vpop.f32.mrb[0].mxu0
    %5106 = vdwg.mxu0
    %5107 = vmatprep.subr.bf16.mxu0 %v4232
    %5108 = vmatpush1.bf16.msra.mxu0 %v4231
    %5109 = vmatprep.subr.bf16.mxu0 %v4236
    %5110 = vmatpush1.bf16.msra.mxu0 %v4235
    %5111 = vmatprep.subr.bf16.mxu0 %v4240
    %5112 = vmatpush1.bf16.msra.mxu0 %v4239
    %5113 = vmatprep.subr.bf16.mxu0 %v4244
    %5114 = vmatpush1.bf16.msra.mxu0 %v4243
    %5115 = vmatprep.subr.bf16.mxu0 %v4248
    %5116 = vmatpush1.bf16.msra.mxu0 %v4247
    %5117 = vmatprep.subr.bf16.mxu0 %v4252
    %5118 = vmatpush1.bf16.msra.mxu0 %v4251
    %5119 = vmatprep.subr.bf16.mxu0 %v4256
    %5120 = vmatpush1.bf16.msra.mxu0 %v4255
    %5121 = vmatprep.subr.bf16.mxu0 %v4260
    %5122 = vmatpush1.bf16.msra.mxu0 %v4259
    %5123 = vmatprep.subr.bf16.mxu0 %v4264
    %5124 = vmatpush1.bf16.msra.mxu0 %v4263
    %5125 = vmatprep.subr.bf16.mxu0 %v4268
    %5126 = vmatpush1.bf16.msra.mxu0 %v4267
    %5127 = vmatprep.subr.bf16.mxu0 %v4272
    %5128 = vmatpush1.bf16.msra.mxu0 %v4271
    %5129 = vmatprep.subr.bf16.mxu0 %v4276
    %5130 = vmatpush1.bf16.msra.mxu0 %v4275
    %5131 = vmatprep.subr.bf16.mxu0 %v4280
    %5132 = vmatpush1.bf16.msra.mxu0 %v4279
    %5133 = vmatprep.subr.bf16.mxu0 %v4284
    %5134 = vmatpush1.bf16.msra.mxu0 %v4283
    %5135 = vmatprep.subr.bf16.mxu0 %v4288
    %5136 = vmatpush1.bf16.msra.mxu0 %v4287
    %5137 = vmatprep.subr.bf16.mxu0 %v4292
    %5138 = vmatpush1.bf16.msra.mxu0 %v4291
    %5139 = vmatprep.mubr.bf16.mxu0 %v4838
    %5140 = vmatmul.mubr.bf16.gmra.mrb[0].mxu0 %v4827
    %v5141 = vpop.f32.mrb[0].mxu0
    %v5142 = vadd.f32 %v5101, %v5141
    %v5143 = vpop.f32.mrb[0].mxu0
    %v5144 = vadd.f32 %v5103, %v5143
    %v5145 = vpop.f32.mrb[0].mxu0
    %v5146 = vpop.f32.mrb[0].mxu0
    %5147 = vdwg.mxu0
    %5148 = vmatprep.subr.bf16.mxu0 %v4296
    %5149 = vmatpush1.bf16.msra.mxu0 %v4295
    %5150 = vmatprep.subr.bf16.mxu0 %v4300
    %5151 = vmatpush1.bf16.msra.mxu0 %v4299
    %5152 = vmatprep.subr.bf16.mxu0 %v4304
    %5153 = vmatpush1.bf16.msra.mxu0 %v4303
    %5154 = vmatprep.subr.bf16.mxu0 %v4308
    %5155 = vmatpush1.bf16.msra.mxu0 %v4307
    %5156 = vmatprep.subr.bf16.mxu0 %v4312
    %5157 = vmatpush1.bf16.msra.mxu0 %v4311
    %5158 = vmatprep.subr.bf16.mxu0 %v4316
    %5159 = vmatpush1.bf16.msra.mxu0 %v4315
    %5160 = vmatprep.subr.bf16.mxu0 %v4320
    %5161 = vmatpush1.bf16.msra.mxu0 %v4319
    %5162 = vmatprep.subr.bf16.mxu0 %v4324
    %5163 = vmatpush1.bf16.msra.mxu0 %v4323
    %5164 = vmatprep.subr.bf16.mxu0 %v4328
    %5165 = vmatpush1.bf16.msra.mxu0 %v4327
    %5166 = vmatprep.subr.bf16.mxu0 %v4332
    %5167 = vmatpush1.bf16.msra.mxu0 %v4331
    %5168 = vmatprep.subr.bf16.mxu0 %v4336
    %5169 = vmatpush1.bf16.msra.mxu0 %v4335
    %5170 = vmatprep.subr.bf16.mxu0 %v4340
    %5171 = vmatpush1.bf16.msra.mxu0 %v4339
    %5172 = vmatprep.subr.bf16.mxu0 %v4344
    %5173 = vmatpush1.bf16.msra.mxu0 %v4343
    %5174 = vmatprep.subr.bf16.mxu0 %v4348
    %5175 = vmatpush1.bf16.msra.mxu0 %v4347
    %5176 = vmatprep.subr.bf16.mxu0 %v4352
    %5177 = vmatpush1.bf16.msra.mxu0 %v4351
    %5178 = vmatprep.subr.bf16.mxu0 %v4356
    %5179 = vmatpush1.bf16.msra.mxu0 %v4355
    %5180 = vmatprep.mubr.bf16.mxu0 %v4860
    %5181 = vmatmul.mubr.bf16.gmra.mrb[0].mxu0 %v4849
    %v5182 = vpop.f32.mrb[0].mxu0
    %v5183 = vadd.f32 %v5142, %v5182
    %v5184 = vpop.f32.mrb[0].mxu0
    %v5185 = vadd.f32 %v5144, %v5184
    %v5186 = vpop.f32.mrb[0].mxu0
    %v5187 = vpop.f32.mrb[0].mxu0
    %5188 = vdwg.mxu0
    %vm5189 = vcmp.ge.s32.totalorder %v4005, 32
    %vm5190 = vcmp.ge.s32.totalorder %v4006, 32
    %vm5191 = vcmp.ge.s32.totalorder %v4007, 32
    %vm5192 = vcmp.ge.s32.totalorder %v4008, 32
    %vm5193 = vcmp.ge.s32.totalorder %v4009, 32
    %vm5194 = vcmp.ge.s32.totalorder %v4010, 32
    %vm5195 = vcmp.ge.s32.totalorder %v4011, 32
    %vm5196 = vcmp.ge.s32.totalorder %v4012, 32
    %vm5197 = vcmp.lt.s32.totalorder %v4005, 64
    %vm5198 = vcmp.lt.s32.totalorder %v4006, 64
    %vm5199 = vcmp.lt.s32.totalorder %v4007, 64
    %vm5200 = vcmp.lt.s32.totalorder %v4008, 64
    %vm5201 = vcmp.lt.s32.totalorder %v4009, 64
    %vm5202 = vcmp.lt.s32.totalorder %v4010, 64
    %vm5203 = vcmp.lt.s32.totalorder %v4011, 64
    %vm5204 = vcmp.lt.s32.totalorder %v4012, 64
    %vm5205 = vmand %vm5189, %vm5197
    %vm5206 = vmand %vm5190, %vm5198
    %vm5207 = vmand %vm5191, %vm5199
    %vm5208 = vmand %vm5192, %vm5200
    %vm5209 = vmand %vm5193, %vm5201
    %vm5210 = vmand %vm5194, %vm5202
    %vm5211 = vmand %vm5195, %vm5203
    %vm5212 = vmand %vm5196, %vm5204
    %v5213 = vsel %vm5205, 1, 0
    %v5214 = vsel %vm5206, 1, 0
    %v5215 = vsel %vm5207, 1, 0
    %v5216 = vsel %vm5208, 1, 0
    %v5217 = vsel %vm5209, 1, 0
    %v5218 = vsel %vm5210, 1, 0
    %v5219 = vsel %vm5211, 1, 0
    %v5220 = vsel %vm5212, 1, 0
    %vm5221 = vcmp.eq.s32.totalorder %v5213, 1
    %vm5222 = vcmp.eq.s32.totalorder %v5214, 1
    %vm5223 = vcmp.eq.s32.totalorder %v5215, 1
    %vm5224 = vcmp.eq.s32.totalorder %v5216, 1
    %vm5225 = vcmp.eq.s32.totalorder %v5217, 1
    %vm5226 = vcmp.eq.s32.totalorder %v5218, 1
    %vm5227 = vcmp.eq.s32.totalorder %v5219, 1
    %vm5228 = vcmp.eq.s32.totalorder %v5220, 1
    %v5229 = vlaneseq
    %v5230 = vshrl.u32 %v5229, 7
    %v5231 = vsub.s32 0, %v5230
    %v5232 = vrot.slane %v5019, %v5231
    %v5233 = vlaneseq
    %v5234 = vshrl.u32 %v5233, 7
    %v5235 = vsub.s32 0, %v5234
    %v5236 = vrot.slane %v5021, %v5235
    %v5237 = vlaneseq
    %v5238 = vshrl.u32 %v5237, 7
    %v5239 = vsub.s32 0, %v5238
    %v5240 = vrot.slane %v5183, %v5239
    %v5241 = vlaneseq
    %v5242 = vshrl.u32 %v5241, 7
    %v5243 = vsub.s32 0, %v5242
    %v5244 = vrot.slane %v5185, %v5243
    %v5245 = vsel %vm5221, %v5232, %v4741
    %v5246 = vsel %vm5221, %v5236, %v4742
    %v5247 = vsel %vm5221, %v5240, %v4743
    %v5248 = vsel %vm5221, %v5244, %v4744
    %v5249 = vsel %vm5222, %v5232, %v4745
    %v5250 = vsel %vm5222, %v5236, %v4746
    %v5251 = vsel %vm5222, %v5240, %v4747
    %v5252 = vsel %vm5222, %v5244, %v4748
    %v5253 = vsel %vm5223, %v5232, %v4749
    %v5254 = vsel %vm5223, %v5236, %v4750
    %v5255 = vsel %vm5223, %v5240, %v4751
    %v5256 = vsel %vm5223, %v5244, %v4752
    %v5257 = vsel %vm5224, %v5232, %v4753
    %v5258 = vsel %vm5224, %v5236, %v4754
    %v5259 = vsel %vm5224, %v5240, %v4755
    %v5260 = vsel %vm5224, %v5244, %v4756
    %v5261 = vsel %vm5225, %v5232, %v4757
    %v5262 = vsel %vm5225, %v5236, %v4758
    %v5263 = vsel %vm5225, %v5240, %v4759
    %v5264 = vsel %vm5225, %v5244, %v4760
    %v5265 = vsel %vm5226, %v5232, %v4761
    %v5266 = vsel %vm5226, %v5236, %v4762
    %v5267 = vsel %vm5226, %v5240, %v4763
    %v5268 = vsel %vm5226, %v5244, %v4764
    %v5269 = vsel %vm5227, %v5232, %v4765
    %v5270 = vsel %vm5227, %v5236, %v4766
    %v5271 = vsel %vm5227, %v5240, %v4767
    %v5272 = vsel %vm5227, %v5244, %v4768
    %v5273 = vsel %vm5228, %v5232, %v4769
    %v5274 = vsel %vm5228, %v5236, %v4770
    %v5275 = vsel %vm5228, %v5240, %v4771
    %v5276 = vsel %vm5228, %v5244, %v4772
    %v5277 = vadd.f32 %v3889, %v5245
    %v5278 = vadd.f32 %v3891, %v5246
    %v5279 = vadd.f32 %v3962, %v5247
    %v5280 = vadd.f32 %v3964, %v5248
    %v5281 = vadd.f32 %v3893, %v5249
    %v5282 = vadd.f32 %v3895, %v5250
    %v5283 = vadd.f32 %v3966, %v5251
    %v5284 = vadd.f32 %v3968, %v5252
    %v5285 = vadd.f32 %v3899, %v5253
    %v5286 = vadd.f32 %v3901, %v5254
    %v5287 = vadd.f32 %v3972, %v5255
    %v5288 = vadd.f32 %v3974, %v5256
    %v5289 = vadd.f32 %v3903, %v5257
    %v5290 = vadd.f32 %v3905, %v5258
    %v5291 = vadd.f32 %v3976, %v5259
    %v5292 = vadd.f32 %v3978, %v5260
    %v5293 = vadd.f32 %v3909, %v5261
    %v5294 = vadd.f32 %v3911, %v5262
    %v5295 = vadd.f32 %v3982, %v5263
    %v5296 = vadd.f32 %v3984, %v5264
    %v5297 = vadd.f32 %v3913, %v5265
    %v5298 = vadd.f32 %v3915, %v5266
    %v5299 = vadd.f32 %v3986, %v5267
    %v5300 = vadd.f32 %v3988, %v5268
    %v5301 = vadd.f32 %v3919, %v5269
    %v5302 = vadd.f32 %v3921, %v5270
    %v5303 = vadd.f32 %v3992, %v5271
    %v5304 = vadd.f32 %v3994, %v5272
    %v5305 = vadd.f32 %v3923, %v5273
    %v5306 = vadd.f32 %v3925, %v5274
    %v5307 = vadd.f32 %v3996, %v5275
    %v5308 = vadd.f32 %v3998, %v5276
    %v5309 = vmax.f32 %v5277, 0.0
    %v5310 = vmax.f32 %v5278, 0.0
    %v5311 = vmax.f32 %v5279, 0.0
    %v5312 = vmax.f32 %v5280, 0.0
    %v5313 = vmax.f32 %v5281, 0.0
    %v5314 = vmax.f32 %v5282, 0.0
    %v5315 = vmax.f32 %v5283, 0.0
    %v5316 = vmax.f32 %v5284, 0.0
    %v5317 = vmax.f32 %v5285, 0.0
    %v5318 = vmax.f32 %v5286, 0.0
    %v5319 = vmax.f32 %v5287, 0.0
    %v5320 = vmax.f32 %v5288, 0.0
    %v5321 = vmax.f32 %v5289, 0.0
    %v5322 = vmax.f32 %v5290, 0.0
    %v5323 = vmax.f32 %v5291, 0.0
    %v5324 = vmax.f32 %v5292, 0.0
    %v5325 = vmax.f32 %v5293, 0.0
    %v5326 = vmax.f32 %v5294, 0.0
    %v5327 = vmax.f32 %v5295, 0.0
    %v5328 = vmax.f32 %v5296, 0.0
    %v5329 = vmax.f32 %v5297, 0.0
    %v5330 = vmax.f32 %v5298, 0.0
    %v5331 = vmax.f32 %v5299, 0.0
    %v5332 = vmax.f32 %v5300, 0.0
    %v5333 = vmax.f32 %v5301, 0.0
    %v5334 = vmax.f32 %v5302, 0.0
    %v5335 = vmax.f32 %v5303, 0.0
    %v5336 = vmax.f32 %v5304, 0.0
    %v5337 = vmax.f32 %v5305, 0.0
    %v5338 = vmax.f32 %v5306, 0.0
    %v5339 = vmax.f32 %v5307, 0.0
    %v5340 = vmax.f32 %v5308, 0.0
    %v5341 = vld [vmem:[#allocation30] sm:$0xf]
    %v5343 = vlaneseq
    %v5344 = vshrl.u32 %v5343, 7
    %v5345 = vsub.s32 0, %v5344
    %v5346 = vrot.slane %v5341, %v5345
    %v5347 = vlaneseq
    %v5348 = vshrl.u32 %v5347, 7
    %v5349 = vsub.s32 1, %v5348
    %v5350 = vrot.slane %v5341, %v5349
    %v5351 = vlaneseq
    %v5352 = vshrl.u32 %v5351, 7
    %v5353 = vsub.s32 2, %v5352
    %v5354 = vrot.slane %v5341, %v5353
    %v5355 = vlaneseq
    %v5356 = vshrl.u32 %v5355, 7
    %v5357 = vsub.s32 3, %v5356
    %v5358 = vrot.slane %v5341, %v5357
    %v5363 = vmul.f32 %v5309, %v5346
    %v5364 = vmul.f32 %v5310, %v5350
    %v5365 = vmul.f32 %v5311, %v5354
    %v5366 = vmul.f32 %v5312, %v5358
    %v5367 = vmul.f32 %v5313, %v5346
    %v5368 = vmul.f32 %v5314, %v5350
    %v5369 = vmul.f32 %v5315, %v5354
    %v5370 = vmul.f32 %v5316, %v5358
    %v5371 = vmul.f32 %v5317, %v5346
    %v5372 = vmul.f32 %v5318, %v5350
    %v5373 = vmul.f32 %v5319, %v5354
    %v5374 = vmul.f32 %v5320, %v5358
    %v5375 = vmul.f32 %v5321, %v5346
    %v5376 = vmul.f32 %v5322, %v5350
    %v5377 = vmul.f32 %v5323, %v5354
    %v5378 = vmul.f32 %v5324, %v5358
    %v5379 = vmul.f32 %v5325, %v5346
    %v5380 = vmul.f32 %v5326, %v5350
    %v5381 = vmul.f32 %v5327, %v5354
    %v5382 = vmul.f32 %v5328, %v5358
    %v5383 = vmul.f32 %v5329, %v5346
    %v5384 = vmul.f32 %v5330, %v5350
    %v5385 = vmul.f32 %v5331, %v5354
    %v5386 = vmul.f32 %v5332, %v5358
    %v5387 = vmul.f32 %v5333, %v5346
    %v5388 = vmul.f32 %v5334, %v5350
    %v5389 = vmul.f32 %v5335, %v5354
    %v5390 = vmul.f32 %v5336, %v5358
    %v5391 = vmul.f32 %v5337, %v5346
    %v5392 = vmul.f32 %v5338, %v5350
    %v5393 = vmul.f32 %v5339, %v5354
    %v5394 = vmul.f32 %v5340, %v5358
    %v5395 = vld [vmem:[#allocation32] sm:$0xf]
    %v5397 = vlaneseq
    %v5398 = vshrl.u32 %v5397, 7
    %v5399 = vsub.s32 0, %v5398
    %v5400 = vrot.slane %v5395, %v5399
    %v5401 = vlaneseq
    %v5402 = vshrl.u32 %v5401, 7
    %v5403 = vsub.s32 1, %v5402
    %v5404 = vrot.slane %v5395, %v5403
    %v5405 = vlaneseq
    %v5406 = vshrl.u32 %v5405, 7
    %v5407 = vsub.s32 2, %v5406
    %v5408 = vrot.slane %v5395, %v5407
    %v5409 = vlaneseq
    %v5410 = vshrl.u32 %v5409, 7
    %v5411 = vsub.s32 3, %v5410
    %v5412 = vrot.slane %v5395, %v5411
    %v5417 = vadd.f32 %v5363, %v5400
    %v5418 = vadd.f32 %v5364, %v5404
    %v5419 = vadd.f32 %v5365, %v5408
    %v5420 = vadd.f32 %v5366, %v5412
    %v5421 = vadd.f32 %v5367, %v5400
    %v5422 = vadd.f32 %v5368, %v5404
    %v5423 = vadd.f32 %v5369, %v5408
    %v5424 = vadd.f32 %v5370, %v5412
    %v5425 = vadd.f32 %v5371, %v5400
    %v5426 = vadd.f32 %v5372, %v5404
    %v5427 = vadd.f32 %v5373, %v5408
    %v5428 = vadd.f32 %v5374, %v5412
    %v5429 = vadd.f32 %v5375, %v5400
    %v5430 = vadd.f32 %v5376, %v5404
    %v5431 = vadd.f32 %v5377, %v5408
    %v5432 = vadd.f32 %v5378, %v5412
    %v5433 = vadd.f32 %v5379, %v5400
    %v5434 = vadd.f32 %v5380, %v5404
    %v5435 = vadd.f32 %v5381, %v5408
    %v5436 = vadd.f32 %v5382, %v5412
    %v5437 = vadd.f32 %v5383, %v5400
    %v5438 = vadd.f32 %v5384, %v5404
    %v5439 = vadd.f32 %v5385, %v5408
    %v5440 = vadd.f32 %v5386, %v5412
    %v5441 = vadd.f32 %v5387, %v5400
    %v5442 = vadd.f32 %v5388, %v5404
    %v5443 = vadd.f32 %v5389, %v5408
    %v5444 = vadd.f32 %v5390, %v5412
    %v5445 = vadd.f32 %v5391, %v5400
    %v5446 = vadd.f32 %v5392, %v5404
    %v5447 = vadd.f32 %v5393, %v5408
    %v5448 = vadd.f32 %v5394, %v5412
    %v5449 = vpack.c.bf16 %v5421, %v5417
    %v5450 = vpack.c.bf16 %v5422, %v5418
    %v5451 = vpack.c.bf16 %v5423, %v5419
    %v5452 = vpack.c.bf16 %v5424, %v5420
    %v5453 = vpack.c.bf16 %v5429, %v5425
    %v5454 = vpack.c.bf16 %v5430, %v5426
    %v5455 = vpack.c.bf16 %v5431, %v5427
    %v5456 = vpack.c.bf16 %v5432, %v5428
    %v5457 = vpack.c.bf16 %v5437, %v5433
    %v5458 = vpack.c.bf16 %v5438, %v5434
    %v5459 = vpack.c.bf16 %v5439, %v5435
    %v5460 = vpack.c.bf16 %v5440, %v5436
    %v5461 = vpack.c.bf16 %v5445, %v5441
    %v5462 = vpack.c.bf16 %v5446, %v5442
    %v5463 = vpack.c.bf16 %v5447, %v5443
    %v5464 = vpack.c.bf16 %v5448, %v5444
    %s5465 = smul.u32 %s2446, 2
    %s5466 = sshll.u32 %s5465, 4
    %5467 = dma.done %s542, %s5466
    %v5468 = vld [vmem:[#allocation5] sm:$0xff]
    %v5469 = vld [vmem:[#allocation5 + $0x8] sm:$0xff]
    %v5470 = vld [vmem:[#allocation5 + $0x10] sm:$0xff]
    %v5471 = vld [vmem:[#allocation5 + $0x18] sm:$0xff]
    %v5472 = vld [vmem:[#allocation5 + $0x20] sm:$0xff]
    %v5473 = vld [vmem:[#allocation5 + $0x28] sm:$0xff]
    %v5474 = vld [vmem:[#allocation5 + $0x30] sm:$0xff]
    %v5475 = vld [vmem:[#allocation5 + $0x38] sm:$0xff]
    %v5476 = vld [vmem:[#allocation5 + $0x40] sm:$0xff]
    %v5477 = vld [vmem:[#allocation5 + $0x48] sm:$0xff]
    %v5478 = vld [vmem:[#allocation5 + $0x50] sm:$0xff]
    %v5479 = vld [vmem:[#allocation5 + $0x58] sm:$0xff]
    %v5480 = vld [vmem:[#allocation5 + $0x60] sm:$0xff]
    %v5481 = vld [vmem:[#allocation5 + $0x68] sm:$0xff]
    %v5482 = vld [vmem:[#allocation5 + $0x70] sm:$0xff]
    %v5483 = vld [vmem:[#allocation5 + $0x78] sm:$0xff]
    %v5484 = vld [vmem:[#allocation5 + $0x80] sm:$0xff]
    %v5485 = vld [vmem:[#allocation5 + $0x88] sm:$0xff]
    %v5486 = vld [vmem:[#allocation5 + $0x90] sm:$0xff]
    %v5487 = vld [vmem:[#allocation5 + $0x98] sm:$0xff]
    %v5488 = vld [vmem:[#allocation5 + $0xa0] sm:$0xff]
    %v5489 = vld [vmem:[#allocation5 + $0xa8] sm:$0xff]
    %v5490 = vld [vmem:[#allocation5 + $0xb0] sm:$0xff]
    %v5491 = vld [vmem:[#allocation5 + $0xb8] sm:$0xff]
    %v5492 = vld [vmem:[#allocation5 + $0xc0] sm:$0xff]
    %v5493 = vld [vmem:[#allocation5 + $0xc8] sm:$0xff]
    %v5494 = vld [vmem:[#allocation5 + $0xd0] sm:$0xff]
    %v5495 = vld [vmem:[#allocation5 + $0xd8] sm:$0xff]
    %v5496 = vld [vmem:[#allocation5 + $0xe0] sm:$0xff]
    %v5497 = vld [vmem:[#allocation5 + $0xe8] sm:$0xff]
    %v5498 = vld [vmem:[#allocation5 + $0xf0] sm:$0xff]
    %v5499 = vld [vmem:[#allocation5 + $0xf8] sm:$0xff]
    %v5500 = vld [vmem:[#allocation5 + $0x100] sm:$0xff]
    %v5501 = vld [vmem:[#allocation5 + $0x108] sm:$0xff]
    %v5502 = vld [vmem:[#allocation5 + $0x110] sm:$0xff]
    %v5503 = vld [vmem:[#allocation5 + $0x118] sm:$0xff]
    %v5504 = vld [vmem:[#allocation5 + $0x120] sm:$0xff]
    %v5505 = vld [vmem:[#allocation5 + $0x128] sm:$0xff]
    %v5506 = vld [vmem:[#allocation5 + $0x130] sm:$0xff]
    %v5507 = vld [vmem:[#allocation5 + $0x138] sm:$0xff]
    %v5508 = vld [vmem:[#allocation5 + $0x140] sm:$0xff]
    %v5509 = vld [vmem:[#allocation5 + $0x148] sm:$0xff]
    %v5510 = vld [vmem:[#allocation5 + $0x150] sm:$0xff]
    %v5511 = vld [vmem:[#allocation5 + $0x158] sm:$0xff]
    %v5512 = vld [vmem:[#allocation5 + $0x160] sm:$0xff]
    %v5513 = vld [vmem:[#allocation5 + $0x168] sm:$0xff]
    %v5514 = vld [vmem:[#allocation5 + $0x170] sm:$0xff]
    %v5515 = vld [vmem:[#allocation5 + $0x178] sm:$0xff]
    %v5516 = vld [vmem:[#allocation5 + $0x180] sm:$0xff]
    %v5517 = vld [vmem:[#allocation5 + $0x188] sm:$0xff]
    %v5518 = vld [vmem:[#allocation5 + $0x190] sm:$0xff]
    %v5519 = vld [vmem:[#allocation5 + $0x198] sm:$0xff]
    %v5520 = vld [vmem:[#allocation5 + $0x1a0] sm:$0xff]
    %v5521 = vld [vmem:[#allocation5 + $0x1a8] sm:$0xff]
    %v5522 = vld [vmem:[#allocation5 + $0x1b0] sm:$0xff]
    %v5523 = vld [vmem:[#allocation5 + $0x1b8] sm:$0xff]
    %v5524 = vld [vmem:[#allocation5 + $0x1c0] sm:$0xff]
    %v5525 = vld [vmem:[#allocation5 + $0x1c8] sm:$0xff]
    %v5526 = vld [vmem:[#allocation5 + $0x1d0] sm:$0xff]
    %v5527 = vld [vmem:[#allocation5 + $0x1d8] sm:$0xff]
    %v5528 = vld [vmem:[#allocation5 + $0x1e0] sm:$0xff]
    %v5529 = vld [vmem:[#allocation5 + $0x1e8] sm:$0xff]
    %v5530 = vld [vmem:[#allocation5 + $0x1f0] sm:$0xff]
    %v5531 = vld [vmem:[#allocation5 + $0x1f8] sm:$0xff]
    %v5532 = vld [vmem:[#allocation33] sm:$0x3]
    %v5534 = vlaneseq
    %v5535 = vshrl.u32 %v5534, 7
    %v5536 = vsub.s32 0, %v5535
    %v5537 = vrot.slane %v5532, %v5536
    %v5538 = vlaneseq
    %v5539 = vshrl.u32 %v5538, 7
    %v5540 = vsub.s32 1, %v5539
    %v5541 = vrot.slane %v5532, %v5540
    %5544 = vmatprep.subr.bf16.mxu0 %v5469
    %5545 = vmatpush1.bf16.msra.mxu0 %v5468
    %5546 = vmatprep.subr.bf16.mxu0 %v5471
    %5547 = vmatpush1.bf16.msra.mxu0 %v5470
    %5548 = vmatprep.subr.bf16.mxu0 %v5473
    %5549 = vmatpush1.bf16.msra.mxu0 %v5472
    %5550 = vmatprep.subr.bf16.mxu0 %v5475
    %5551 = vmatpush1.bf16.msra.mxu0 %v5474
    %5552 = vmatprep.subr.bf16.mxu0 %v5477
    %5553 = vmatpush1.bf16.msra.mxu0 %v5476
    %5554 = vmatprep.subr.bf16.mxu0 %v5479
    %5555 = vmatpush1.bf16.msra.mxu0 %v5478
    %5556 = vmatprep.subr.bf16.mxu0 %v5481
    %5557 = vmatpush1.bf16.msra.mxu0 %v5480
    %5558 = vmatprep.subr.bf16.mxu0 %v5483
    %5559 = vmatpush1.bf16.msra.mxu0 %v5482
    %5560 = vmatprep.subr.bf16.mxu0 %v5485
    %5561 = vmatpush1.bf16.msra.mxu0 %v5484
    %5562 = vmatprep.subr.bf16.mxu0 %v5487
    %5563 = vmatpush1.bf16.msra.mxu0 %v5486
    %5564 = vmatprep.subr.bf16.mxu0 %v5489
    %5565 = vmatpush1.bf16.msra.mxu0 %v5488
    %5566 = vmatprep.subr.bf16.mxu0 %v5491
    %5567 = vmatpush1.bf16.msra.mxu0 %v5490
    %5568 = vmatprep.subr.bf16.mxu0 %v5493
    %5569 = vmatpush1.bf16.msra.mxu0 %v5492
    %5570 = vmatprep.subr.bf16.mxu0 %v5495
    %5571 = vmatpush1.bf16.msra.mxu0 %v5494
    %5572 = vmatprep.subr.bf16.mxu0 %v5497
    %5573 = vmatpush1.bf16.msra.mxu0 %v5496
    %5574 = vmatprep.subr.bf16.mxu0 %v5499
    %5575 = vmatpush1.bf16.msra.mxu0 %v5498
    %5576 = vmatprep.mubr.bf16.mxu0 %v5450
    %5577 = vmatmul.mubr.bf16.gmra.mrb[0].mxu0 %v5449
    %v5578 = vpop.f32.mrb[0].mxu0
    %v5579 = vadd.f32 %v5537, %v5578
    %v5580 = vpop.f32.mrb[0].mxu0
    %v5581 = vadd.f32 %v5541, %v5580
    %v5582 = vpop.f32.mrb[0].mxu0
    %v5583 = vadd.f32 %v5537, %v5582
    %v5584 = vpop.f32.mrb[0].mxu0
    %v5585 = vadd.f32 %v5541, %v5584
    %5586 = vmatprep.mubr.bf16.mxu0 %v5454
    %5587 = vmatmul.mubr.bf16.gmra.mrb[0].mxu0 %v5453
    %v5588 = vpop.f32.mrb[0].mxu0
    %v5589 = vadd.f32 %v5537, %v5588
    %v5590 = vpop.f32.mrb[0].mxu0
    %v5591 = vadd.f32 %v5541, %v5590
    %v5592 = vpop.f32.mrb[0].mxu0
    %v5593 = vadd.f32 %v5537, %v5592
    %v5594 = vpop.f32.mrb[0].mxu0
    %v5595 = vadd.f32 %v5541, %v5594
    %5596 = vmatprep.mubr.bf16.mxu0 %v5458
    %5597 = vmatmul.mubr.bf16.gmra.mrb[0].mxu0 %v5457
    %v5598 = vpop.f32.mrb[0].mxu0
    %v5599 = vadd.f32 %v5537, %v5598
    %v5600 = vpop.f32.mrb[0].mxu0
    %v5601 = vadd.f32 %v5541, %v5600
    %v5602 = vpop.f32.mrb[0].mxu0
    %v5603 = vadd.f32 %v5537, %v5602
    %v5604 = vpop.f32.mrb[0].mxu0
    %v5605 = vadd.f32 %v5541, %v5604
    %5606 = vmatprep.mubr.bf16.mxu0 %v5462
    %5607 = vmatmul.mubr.bf16.gmra.mrb[0].mxu0 %v5461
    %v5608 = vpop.f32.mrb[0].mxu0
    %v5609 = vadd.f32 %v5537, %v5608
    %v5610 = vpop.f32.mrb[0].mxu0
    %v5611 = vadd.f32 %v5541, %v5610
    %v5612 = vpop.f32.mrb[0].mxu0
    %v5613 = vadd.f32 %v5537, %v5612
    %v5614 = vpop.f32.mrb[0].mxu0
    %v5615 = vadd.f32 %v5541, %v5614
    %5616 = vdwg.mxu0
    %5617 = vmatprep.subr.bf16.mxu0 %v5501
    %5618 = vmatpush1.bf16.msra.mxu0 %v5500
    %5619 = vmatprep.subr.bf16.mxu0 %v5503
    %5620 = vmatpush1.bf16.msra.mxu0 %v5502
    %5621 = vmatprep.subr.bf16.mxu0 %v5505
    %5622 = vmatpush1.bf16.msra.mxu0 %v5504
    %5623 = vmatprep.subr.bf16.mxu0 %v5507
    %5624 = vmatpush1.bf16.msra.mxu0 %v5506
    %5625 = vmatprep.subr.bf16.mxu0 %v5509
    %5626 = vmatpush1.bf16.msra.mxu0 %v5508
    %5627 = vmatprep.subr.bf16.mxu0 %v5511
    %5628 = vmatpush1.bf16.msra.mxu0 %v5510
    %5629 = vmatprep.subr.bf16.mxu0 %v5513
    %5630 = vmatpush1.bf16.msra.mxu0 %v5512
    %5631 = vmatprep.subr.bf16.mxu0 %v5515
    %5632 = vmatpush1.bf16.msra.mxu0 %v5514
    %5633 = vmatprep.subr.bf16.mxu0 %v5517
    %5634 = vmatpush1.bf16.msra.mxu0 %v5516
    %5635 = vmatprep.subr.bf16.mxu0 %v5519
    %5636 = vmatpush1.bf16.msra.mxu0 %v5518
    %5637 = vmatprep.subr.bf16.mxu0 %v5521
    %5638 = vmatpush1.bf16.msra.mxu0 %v5520
    %5639 = vmatprep.subr.bf16.mxu0 %v5523
    %5640 = vmatpush1.bf16.msra.mxu0 %v5522
    %5641 = vmatprep.subr.bf16.mxu0 %v5525
    %5642 = vmatpush1.bf16.msra.mxu0 %v5524
    %5643 = vmatprep.subr.bf16.mxu0 %v5527
    %5644 = vmatpush1.bf16.msra.mxu0 %v5526
    %5645 = vmatprep.subr.bf16.mxu0 %v5529
    %5646 = vmatpush1.bf16.msra.mxu0 %v5528
    %5647 = vmatprep.subr.bf16.mxu0 %v5531
    %5648 = vmatpush1.bf16.msra.mxu0 %v5530
    %5649 = vmatprep.mubr.bf16.mxu0 %v5452
    %5650 = vmatmul.mubr.bf16.gmra.mrb[0].mxu0 %v5451
    %v5651 = vpop.f32.mrb[0].mxu0
    %v5652 = vadd.f32 %v5579, %v5651
    %v5653 = vpop.f32.mrb[0].mxu0
    %v5654 = vadd.f32 %v5581, %v5653
    %v5655 = vpop.f32.mrb[0].mxu0
    %v5656 = vadd.f32 %v5583, %v5655
    %v5657 = vpop.f32.mrb[0].mxu0
    %v5658 = vadd.f32 %v5585, %v5657
    %5659 = vmatprep.mubr.bf16.mxu0 %v5456
    %5660 = vmatmul.mubr.bf16.gmra.mrb[0].mxu0 %v5455
    %v5661 = vpop.f32.mrb[0].mxu0
    %v5662 = vadd.f32 %v5589, %v5661
    %v5663 = vpop.f32.mrb[0].mxu0
    %v5664 = vadd.f32 %v5591, %v5663
    %v5665 = vpop.f32.mrb[0].mxu0
    %v5666 = vadd.f32 %v5593, %v5665
    %v5667 = vpop.f32.mrb[0].mxu0
    %v5668 = vadd.f32 %v5595, %v5667
    %5669 = vmatprep.mubr.bf16.mxu0 %v5460
    %5670 = vmatmul.mubr.bf16.gmra.mrb[0].mxu0 %v5459
    %v5671 = vpop.f32.mrb[0].mxu0
    %v5672 = vadd.f32 %v5599, %v5671
    %v5673 = vpop.f32.mrb[0].mxu0
    %v5674 = vadd.f32 %v5601, %v5673
    %v5675 = vpop.f32.mrb[0].mxu0
    %v5676 = vadd.f32 %v5603, %v5675
    %v5677 = vpop.f32.mrb[0].mxu0
    %v5678 = vadd.f32 %v5605, %v5677
    %5679 = vmatprep.mubr.bf16.mxu0 %v5464
    %5680 = vmatmul.mubr.bf16.gmra.mrb[0].mxu0 %v5463
    %v5681 = vpop.f32.mrb[0].mxu0
    %v5682 = vadd.f32 %v5609, %v5681
    %v5683 = vpop.f32.mrb[0].mxu0
    %v5684 = vadd.f32 %v5611, %v5683
    %v5685 = vpop.f32.mrb[0].mxu0
    %v5686 = vadd.f32 %v5613, %v5685
    %v5687 = vpop.f32.mrb[0].mxu0
    %v5688 = vadd.f32 %v5615, %v5687
    %5689 = vdwg.mxu0
    %v5690 = vmax.f32 %v5652, 0.0
    %v5691 = vmax.f32 %v5654, 0.0
    %v5692 = vmax.f32 %v5656, 0.0
    %v5693 = vmax.f32 %v5658, 0.0
    %v5694 = vmax.f32 %v5662, 0.0
    %v5695 = vmax.f32 %v5664, 0.0
    %v5696 = vmax.f32 %v5666, 0.0
    %v5697 = vmax.f32 %v5668, 0.0
    %v5698 = vmax.f32 %v5672, 0.0
    %v5699 = vmax.f32 %v5674, 0.0
    %v5700 = vmax.f32 %v5676, 0.0
    %v5701 = vmax.f32 %v5678, 0.0
    %v5702 = vmax.f32 %v5682, 0.0
    %v5703 = vmax.f32 %v5684, 0.0
    %v5704 = vmax.f32 %v5686, 0.0
    %v5705 = vmax.f32 %v5688, 0.0
    %v5706 = vld [vmem:[#allocation35] sm:$0x3]
    %v5708 = vlaneseq
    %v5709 = vshrl.u32 %v5708, 7
    %v5710 = vsub.s32 0, %v5709
    %v5711 = vrot.slane %v5706, %v5710
    %v5712 = vlaneseq
    %v5713 = vshrl.u32 %v5712, 7
    %v5714 = vsub.s32 1, %v5713
    %v5715 = vrot.slane %v5706, %v5714
    %v5718 = vmul.f32 %v5690, %v5711
    %v5719 = vmul.f32 %v5691, %v5715
    %v5720 = vmul.f32 %v5692, %v5711
    %v5721 = vmul.f32 %v5693, %v5715
    %v5722 = vmul.f32 %v5694, %v5711
    %v5723 = vmul.f32 %v5695, %v5715
    %v5724 = vmul.f32 %v5696, %v5711
    %v5725 = vmul.f32 %v5697, %v5715
    %v5726 = vmul.f32 %v5698, %v5711
    %v5727 = vmul.f32 %v5699, %v5715
    %v5728 = vmul.f32 %v5700, %v5711
    %v5729 = vmul.f32 %v5701, %v5715
    %v5730 = vmul.f32 %v5702, %v5711
    %v5731 = vmul.f32 %v5703, %v5715
    %v5732 = vmul.f32 %v5704, %v5711
    %v5733 = vmul.f32 %v5705, %v5715
    %v5734 = vld [vmem:[#allocation36] sm:$0x3]
    %v5736 = vlaneseq
    %v5737 = vshrl.u32 %v5736, 7
    %v5738 = vsub.s32 0, %v5737
    %v5739 = vrot.slane %v5734, %v5738
    %v5740 = vlaneseq
    %v5741 = vshrl.u32 %v5740, 7
    %v5742 = vsub.s32 1, %v5741
    %v5743 = vrot.slane %v5734, %v5742
    %v5746 = vadd.f32 %v5718, %v5739
    %v5747 = vadd.f32 %v5719, %v5743
    %v5748 = vadd.f32 %v5720, %v5739
    %v5749 = vadd.f32 %v5721, %v5743
    %v5750 = vadd.f32 %v5722, %v5739
    %v5751 = vadd.f32 %v5723, %v5743
    %v5752 = vadd.f32 %v5724, %v5739
    %v5753 = vadd.f32 %v5725, %v5743
    %v5754 = vadd.f32 %v5726, %v5739
    %v5755 = vadd.f32 %v5727, %v5743
    %v5756 = vadd.f32 %v5728, %v5739
    %v5757 = vadd.f32 %v5729, %v5743
    %v5758 = vadd.f32 %v5730, %v5739
    %v5759 = vadd.f32 %v5731, %v5743
    %v5760 = vadd.f32 %v5732, %v5739
    %v5761 = vadd.f32 %v5733, %v5743
    %v5762 = vpack.c.bf16 %v5748, %v5746
    %v5763 = vpack.c.bf16 %v5749, %v5747
    %v5764 = vpack.c.bf16 %v5752, %v5750
    %v5765 = vpack.c.bf16 %v5753, %v5751
    %v5766 = vpack.c.bf16 %v5756, %v5754
    %v5767 = vpack.c.bf16 %v5757, %v5755
    %v5768 = vpack.c.bf16 %v5760, %v5758
    %v5769 = vpack.c.bf16 %v5761, %v5759
    %v5770 = vld [vmem:[#allocation38] sm:$0xf]
    %v5771 = vld [vmem:[#allocation38 + $0x4] sm:$0xf]
    %v5772 = vld [vmem:[#allocation38 + $0x8] sm:$0xf]
    %v5773 = vld [vmem:[#allocation38 + $0xc] sm:$0xf]
    %v5774 = vld [vmem:[#allocation38 + $0x10] sm:$0xf]
    %v5775 = vld [vmem:[#allocation38 + $0x14] sm:$0xf]
    %v5776 = vld [vmem:[#allocation38 + $0x18] sm:$0xf]
    %v5777 = vld [vmem:[#allocation38 + $0x1c] sm:$0xf]
    %v5778 = vld [vmem:[#allocation38 + $0x20] sm:$0xf]
    %v5779 = vld [vmem:[#allocation38 + $0x24] sm:$0xf]
    %v5780 = vld [vmem:[#allocation38 + $0x28] sm:$0xf]
    %v5781 = vld [vmem:[#allocation38 + $0x2c] sm:$0xf]
    %v5782 = vld [vmem:[#allocation38 + $0x30] sm:$0xf]
    %v5783 = vld [vmem:[#allocation38 + $0x34] sm:$0xf]
    %v5784 = vld [vmem:[#allocation38 + $0x38] sm:$0xf]
    %v5785 = vld [vmem:[#allocation38 + $0x3c] sm:$0xf]
    %v5786 = vld [vmem:[#allocation38 + $0x40] sm:$0xf]
    %v5787 = vld [vmem:[#allocation38 + $0x44] sm:$0xf]
    %v5788 = vld [vmem:[#allocation38 + $0x48] sm:$0xf]
    %v5789 = vld [vmem:[#allocation38 + $0x4c] sm:$0xf]
    %v5790 = vld [vmem:[#allocation38 + $0x50] sm:$0xf]
    %v5791 = vld [vmem:[#allocation38 + $0x54] sm:$0xf]
    %v5792 = vld [vmem:[#allocation38 + $0x58] sm:$0xf]
    %v5793 = vld [vmem:[#allocation38 + $0x5c] sm:$0xf]
    %v5794 = vld [vmem:[#allocation38 + $0x60] sm:$0xf]
    %v5795 = vld [vmem:[#allocation38 + $0x64] sm:$0xf]
    %v5796 = vld [vmem:[#allocation38 + $0x68] sm:$0xf]
    %v5797 = vld [vmem:[#allocation38 + $0x6c] sm:$0xf]
    %v5798 = vld [vmem:[#allocation38 + $0x70] sm:$0xf]
    %v5799 = vld [vmem:[#allocation38 + $0x74] sm:$0xf]
    %v5800 = vld [vmem:[#allocation38 + $0x78] sm:$0xf]
    %v5801 = vld [vmem:[#allocation38 + $0x7c] sm:$0xf]
    %v5802 = vld [vmem:[#allocation39] sm:$0x1]
    %v5804 = vlaneseq
    %v5805 = vshrl.u32 %v5804, 7
    %v5806 = vsub.s32 0, %v5805
    %v5807 = vrot.slane %v5802, %v5806
    %v5841 = vunpack.c.l.b16 %v5770
    %v5842 = vunpack.c.l.b16 %v5771
    %v5843 = vunpack.c.l.b16 %v5772
    %v5844 = vunpack.c.l.b16 %v5773
    %v5845 = vunpack.c.l.b16 %v5774
    %v5846 = vunpack.c.l.b16 %v5775
    %v5847 = vunpack.c.l.b16 %v5776
    %v5848 = vunpack.c.l.b16 %v5777
    %v5849 = vunpack.c.l.b16 %v5778
    %v5850 = vunpack.c.l.b16 %v5779
    %v5851 = vunpack.c.l.b16 %v5780
    %v5852 = vunpack.c.l.b16 %v5781
    %v5853 = vunpack.c.l.b16 %v5782
    %v5854 = vunpack.c.l.b16 %v5783
    %v5855 = vunpack.c.l.b16 %v5784
    %v5856 = vunpack.c.l.b16 %v5785
    %v5857 = vunpack.c.l.b16 %v5786
    %v5858 = vunpack.c.l.b16 %v5787
    %v5859 = vunpack.c.l.b16 %v5788
    %v5860 = vunpack.c.l.b16 %v5789
    %v5861 = vunpack.c.l.b16 %v5790
    %v5862 = vunpack.c.l.b16 %v5791
    %v5863 = vunpack.c.l.b16 %v5792
    %v5864 = vunpack.c.l.b16 %v5793
    %v5865 = vunpack.c.l.b16 %v5794
    %v5866 = vunpack.c.l.b16 %v5795
    %v5867 = vunpack.c.l.b16 %v5796
    %v5868 = vunpack.c.l.b16 %v5797
    %v5869 = vunpack.c.l.b16 %v5798
    %v5870 = vunpack.c.l.b16 %v5799
    %v5871 = vunpack.c.l.b16 %v5800
    %v5872 = vunpack.c.l.b16 %v5801
    %v5873 = vpack.c.b16 %v5842, %v5841
    %v5874 = vpack.c.b16 %v5844, %v5843
    %v5875 = vpack.c.b16 %v5846, %v5845
    %v5876 = vpack.c.b16 %v5848, %v5847
    %v5877 = vpack.c.b16 %v5850, %v5849
    %v5878 = vpack.c.b16 %v5852, %v5851
    %v5879 = vpack.c.b16 %v5854, %v5853
    %v5880 = vpack.c.b16 %v5856, %v5855
    %v5881 = vpack.c.b16 %v5858, %v5857
    %v5882 = vpack.c.b16 %v5860, %v5859
    %v5883 = vpack.c.b16 %v5862, %v5861
    %v5884 = vpack.c.b16 %v5864, %v5863
    %v5885 = vpack.c.b16 %v5866, %v5865
    %v5886 = vpack.c.b16 %v5868, %v5867
    %v5887 = vpack.c.b16 %v5870, %v5869
    %v5888 = vpack.c.b16 %v5872, %v5871
    %5905 = vmatprep.subr.bf16.mxu0 0
    %5906 = vmatpush1.bf16.msra.mxu0 %v5873
    %5907 = vmatprep.subr.bf16.mxu0 0
    %5908 = vmatpush1.bf16.msra.mxu0 %v5874
    %5909 = vmatprep.subr.bf16.mxu0 0
    %5910 = vmatpush1.bf16.msra.mxu0 %v5875
    %5911 = vmatprep.subr.bf16.mxu0 0
    %5912 = vmatpush1.bf16.msra.mxu0 %v5876
    %5913 = vmatprep.subr.bf16.mxu0 0
    %5914 = vmatpush1.bf16.msra.mxu0 %v5877
    %5915 = vmatprep.subr.bf16.mxu0 0
    %5916 = vmatpush1.bf16.msra.mxu0 %v5878
    %5917 = vmatprep.subr.bf16.mxu0 0
    %5918 = vmatpush1.bf16.msra.mxu0 %v5879
    %5919 = vmatprep.subr.bf16.mxu0 0
    %5920 = vmatpush1.bf16.msra.mxu0 %v5880
    %5921 = vmatprep.subr.bf16.mxu0 0
    %5922 = vmatpush1.bf16.msra.mxu0 %v5881
    %5923 = vmatprep.subr.bf16.mxu0 0
    %5924 = vmatpush1.bf16.msra.mxu0 %v5882
    %5925 = vmatprep.subr.bf16.mxu0 0
    %5926 = vmatpush1.bf16.msra.mxu0 %v5883
    %5927 = vmatprep.subr.bf16.mxu0 0
    %5928 = vmatpush1.bf16.msra.mxu0 %v5884
    %5929 = vmatprep.subr.bf16.mxu0 0
    %5930 = vmatpush1.bf16.msra.mxu0 %v5885
    %5931 = vmatprep.subr.bf16.mxu0 0
    %5932 = vmatpush1.bf16.msra.mxu0 %v5886
    %5933 = vmatprep.subr.bf16.mxu0 0
    %5934 = vmatpush1.bf16.msra.mxu0 %v5887
    %5935 = vmatprep.subr.bf16.mxu0 0
    %5936 = vmatpush1.bf16.msra.mxu0 %v5888
    %5937 = vmatprep.mubr.bf16.mxu0 %v5763
    %5938 = vmatmul.mubr.bf16.gmra.mrb[0].mxu0 %v5762
    %v5939 = vpop.f32.mrb[0].mxu0
    %v5940 = vadd.f32 %v5807, %v5939
    %v5941 = vpop.f32.mrb[0].mxu0
    %v5942 = vpop.f32.mrb[0].mxu0
    %v5943 = vadd.f32 %v5807, %v5942
    %v5944 = vpop.f32.mrb[0].mxu0
    %5945 = vmatprep.mubr.bf16.mxu0 %v5765
    %5946 = vmatmul.mubr.bf16.gmra.mrb[0].mxu0 %v5764
    %v5947 = vpop.f32.mrb[0].mxu0
    %v5948 = vadd.f32 %v5807, %v5947
    %v5949 = vpop.f32.mrb[0].mxu0
    %v5950 = vpop.f32.mrb[0].mxu0
    %v5951 = vadd.f32 %v5807, %v5950
    %v5952 = vpop.f32.mrb[0].mxu0
    %5953 = vmatprep.mubr.bf16.mxu0 %v5767
    %5954 = vmatmul.mubr.bf16.gmra.mrb[0].mxu0 %v5766
    %v5955 = vpop.f32.mrb[0].mxu0
    %v5956 = vadd.f32 %v5807, %v5955
    %v5957 = vpop.f32.mrb[0].mxu0
    %v5958 = vpop.f32.mrb[0].mxu0
    %v5959 = vadd.f32 %v5807, %v5958
    %v5960 = vpop.f32.mrb[0].mxu0
    %5961 = vmatprep.mubr.bf16.mxu0 %v5769
    %5962 = vmatmul.mubr.bf16.gmra.mrb[0].mxu0 %v5768
    %v5963 = vpop.f32.mrb[0].mxu0
    %v5964 = vadd.f32 %v5807, %v5963
    %v5965 = vpop.f32.mrb[0].mxu0
    %v5966 = vpop.f32.mrb[0].mxu0
    %v5967 = vadd.f32 %v5807, %v5966
    %v5968 = vpop.f32.mrb[0].mxu0
    %5969 = vdwg.mxu0
    %v5970 = vmax.f32 %v5940, 0.0
    %v5971 = vmax.f32 %v5943, 0.0
    %v5972 = vmax.f32 %v5948, 0.0
    %v5973 = vmax.f32 %v5951, 0.0
    %v5974 = vmax.f32 %v5956, 0.0
    %v5975 = vmax.f32 %v5959, 0.0
    %v5976 = vmax.f32 %v5964, 0.0
    %v5977 = vmax.f32 %v5967, 0.0
    %v5978 = vld [vmem:[#allocation41] sm:$0x1]
    %v5980 = vlaneseq
    %v5981 = vshrl.u32 %v5980, 7
    %v5982 = vsub.s32 0, %v5981
    %v5983 = vrot.slane %v5978, %v5982
    %v5985 = vmul.f32 %v5970, %v5983
    %v5986 = vmul.f32 %v5971, %v5983
    %v5987 = vmul.f32 %v5972, %v5983
    %v5988 = vmul.f32 %v5973, %v5983
    %v5989 = vmul.f32 %v5974, %v5983
    %v5990 = vmul.f32 %v5975, %v5983
    %v5991 = vmul.f32 %v5976, %v5983
    %v5992 = vmul.f32 %v5977, %v5983
    %v5993 = vld [vmem:[#allocation42] sm:$0x1]
    %v5995 = vlaneseq
    %v5996 = vshrl.u32 %v5995, 7
    %v5997 = vsub.s32 0, %v5996
    %v5998 = vrot.slane %v5993, %v5997
    %v6000 = vadd.f32 %v5985, %v5998
    %v6001 = vadd.f32 %v5986, %v5998
    %v6002 = vadd.f32 %v5987, %v5998
    %v6003 = vadd.f32 %v5988, %v5998
    %v6004 = vadd.f32 %v5989, %v5998
    %v6005 = vadd.f32 %v5990, %v5998
    %v6006 = vadd.f32 %v5991, %v5998
    %v6007 = vadd.f32 %v5992, %v5998
    %v6008 = vpack.c.bf16 %v6001, %v6000
    %v6009 = vpack.c.bf16 %v6003, %v6002
    %v6010 = vpack.c.bf16 %v6005, %v6004
    %v6011 = vpack.c.bf16 %v6007, %v6006
    %v6012 = vld [vmem:[%s67] sm:$0xf]
    %v6013 = vld [vmem:[%s67 + $0x4] sm:$0xf]
    %v6014 = vld [vmem:[%s67 + $0x8] sm:$0xf]
    %v6015 = vld [vmem:[%s67 + $0xc] sm:$0xf]
    %v6016 = vld [vmem:[%s67 + $0x10] sm:$0xf]
    %v6017 = vld [vmem:[%s67 + $0x14] sm:$0xf]
    %v6018 = vld [vmem:[%s67 + $0x18] sm:$0xf]
    %v6019 = vld [vmem:[%s67 + $0x1c] sm:$0xf]
    %v6020 = vld [vmem:[%s67 + $0x20] sm:$0xf]
    %v6021 = vld [vmem:[%s67 + $0x24] sm:$0xf]
    %v6022 = vld [vmem:[%s67 + $0x28] sm:$0xf]
    %v6023 = vld [vmem:[%s67 + $0x2c] sm:$0xf]
    %v6024 = vld [vmem:[%s67 + $0x30] sm:$0xf]
    %v6025 = vld [vmem:[%s67 + $0x34] sm:$0xf]
    %v6026 = vld [vmem:[%s67 + $0x38] sm:$0xf]
    %v6027 = vld [vmem:[%s67 + $0x3c] sm:$0xf]
    %v6028 = vld [vmem:[#allocation44] sm:$0x1]
    %v6030 = vlaneseq
    %v6031 = vshrl.u32 %v6030, 7
    %v6032 = vsub.s32 0, %v6031
    %v6033 = vrot.slane %v6028, %v6032
    %v6051 = vunpack.c.l.b16 %v6012
    %v6052 = vunpack.c.l.b16 %v6013
    %v6053 = vunpack.c.l.b16 %v6014
    %v6054 = vunpack.c.l.b16 %v6015
    %v6055 = vunpack.c.l.b16 %v6016
    %v6056 = vunpack.c.l.b16 %v6017
    %v6057 = vunpack.c.l.b16 %v6018
    %v6058 = vunpack.c.l.b16 %v6019
    %v6059 = vunpack.c.l.b16 %v6020
    %v6060 = vunpack.c.l.b16 %v6021
    %v6061 = vunpack.c.l.b16 %v6022
    %v6062 = vunpack.c.l.b16 %v6023
    %v6063 = vunpack.c.l.b16 %v6024
    %v6064 = vunpack.c.l.b16 %v6025
    %v6065 = vunpack.c.l.b16 %v6026
    %v6066 = vunpack.c.l.b16 %v6027
    %v6067 = vpack.c.b16 %v6052, %v6051
    %v6068 = vpack.c.b16 %v6054, %v6053
    %v6069 = vpack.c.b16 %v6056, %v6055
    %v6070 = vpack.c.b16 %v6058, %v6057
    %v6071 = vpack.c.b16 %v6060, %v6059
    %v6072 = vpack.c.b16 %v6062, %v6061
    %v6073 = vpack.c.b16 %v6064, %v6063
    %v6074 = vpack.c.b16 %v6066, %v6065
    %6083 = vmatprep.subr.bf16.mxu0 0
    %6084 = vmatpush1.bf16.msra.mxu0 %v6067
    %6085 = vmatprep.subr.bf16.mxu0 0
    %6086 = vmatpush1.bf16.msra.mxu0 %v6068
    %6087 = vmatprep.subr.bf16.mxu0 0
    %6088 = vmatpush1.bf16.msra.mxu0 %v6069
    %6089 = vmatprep.subr.bf16.mxu0 0
    %6090 = vmatpush1.bf16.msra.mxu0 %v6070
    %6091 = vmatprep.subr.bf16.mxu0 0
    %6092 = vmatpush1.bf16.msra.mxu0 %v6071
    %6093 = vmatprep.subr.bf16.mxu0 0
    %6094 = vmatpush1.bf16.msra.mxu0 %v6072
    %6095 = vmatprep.subr.bf16.mxu0 0
    %6096 = vmatpush1.bf16.msra.mxu0 %v6073
    %6097 = vmatprep.subr.bf16.mxu0 0
    %6098 = vmatpush1.bf16.msra.mxu0 %v6074
    %6099 = vmatprep.subr.bf16.mxu0 0
    %6100 = vmatpush1.bf16.msra.mxu0 0
    %6101 = vmatprep.subr.bf16.mxu0 0
    %6102 = vmatpush1.bf16.msra.mxu0 0
    %6103 = vmatprep.subr.bf16.mxu0 0
    %6104 = vmatpush1.bf16.msra.mxu0 0
    %6105 = vmatprep.subr.bf16.mxu0 0
    %6106 = vmatpush1.bf16.msra.mxu0 0
    %6107 = vmatprep.subr.bf16.mxu0 0
    %6108 = vmatpush1.bf16.msra.mxu0 0
    %6109 = vmatprep.subr.bf16.mxu0 0
    %6110 = vmatpush1.bf16.msra.mxu0 0
    %6111 = vmatprep.subr.bf16.mxu0 0
    %6112 = vmatpush1.bf16.msra.mxu0 0
    %6113 = vmatprep.subr.bf16.mxu0 0
    %6114 = vmatpush1.bf16.msra.mxu0 0
    %6115 = vmatprep.mubr.bf16.mxu0 0
    %6116 = vmatmul.mubr.bf16.gmra.mrb[0].mxu0 %v6008
    %v6117 = vpop.f32.mrb[0].mxu0
    %v6118 = vadd.f32 %v6033, %v6117
    %v6119 = vpop.f32.mrb[0].mxu0
    %v6120 = vpop.f32.mrb[0].mxu0
    %v6121 = vadd.f32 %v6033, %v6120
    %v6122 = vpop.f32.mrb[0].mxu0
    %6123 = vmatprep.mubr.bf16.mxu0 0
    %6124 = vmatmul.mubr.bf16.gmra.mrb[0].mxu0 %v6009
    %v6125 = vpop.f32.mrb[0].mxu0
    %v6126 = vadd.f32 %v6033, %v6125
    %v6127 = vpop.f32.mrb[0].mxu0
    %v6128 = vpop.f32.mrb[0].mxu0
    %v6129 = vadd.f32 %v6033, %v6128
    %v6130 = vpop.f32.mrb[0].mxu0
    %6131 = vmatprep.mubr.bf16.mxu0 0
    %6132 = vmatmul.mubr.bf16.gmra.mrb[0].mxu0 %v6010
    %v6133 = vpop.f32.mrb[0].mxu0
    %v6134 = vadd.f32 %v6033, %v6133
    %v6135 = vpop.f32.mrb[0].mxu0
    %v6136 = vpop.f32.mrb[0].mxu0
    %v6137 = vadd.f32 %v6033, %v6136
    %v6138 = vpop.f32.mrb[0].mxu0
    %6139 = vmatprep.mubr.bf16.mxu0 0
    %6140 = vmatmul.mubr.bf16.gmra.mrb[0].mxu0 %v6011
    %v6141 = vpop.f32.mrb[0].mxu0
    %v6142 = vadd.f32 %v6033, %v6141
    %v6143 = vpop.f32.mrb[0].mxu0
    %v6144 = vpop.f32.mrb[0].mxu0
    %v6145 = vadd.f32 %v6033, %v6144
    %v6146 = vpop.f32.mrb[0].mxu0
    %6147 = vdwg.mxu0
    %6148 = vst [vmem:[%s71] sm:$0xff] %v6118
    %6149 = vst [vmem:[%s71 + $0x8] sm:$0xff] %v6121
    %6150 = vst [vmem:[%s71 + $0x10] sm:$0xff] %v6126
    %6151 = vst [vmem:[%s71 + $0x18] sm:$0xff] %v6129
    %6152 = vst [vmem:[%s71 + $0x20] sm:$0xff] %v6134
    %6153 = vst [vmem:[%s71 + $0x28] sm:$0xff] %v6137
    %6154 = vst [vmem:[%s71 + $0x30] sm:$0xff] %v6142
    %6155 = vst [vmem:[%s71 + $0x38] sm:$0xff] %v6145
    // Predicated region
    $region226: #{forward.1} parent=1 // pred_check
      _
    $region227: #{forward.1} parent=1 // pred_check_branch
      %6157 = sbr.rel (0) target = $region229
    $region228: #{forward.1} parent=1 // pred_region
      _
    $region229: #{forward.1} parent=1 // pred_fallthru
      _
    // Predicated region
    $region230: #{forward.1} parent=1 // pred_check
      _
    $region231: #{forward.1} parent=1 // pred_check_branch
      %6159 = sbr.rel (0) target = $region233
    $region232: #{forward.1} parent=1 // pred_region
      _
    $region233: #{forward.1} parent=1 // pred_fallthru
      _
    %6160 = vsyncpa [#allocation8], 1
    %6161 = vsyncpa [#allocation10], 1
    %6162 = vsyncpa [#allocation13], 1
    %6163 = vsyncpa [#allocation16], 1
    %6164 = vsyncpa [#allocation19], 1
    %6165 = vsyncpa [#allocation22], 1
    %6166 = vsyncpa [#allocation25], 1
    %6167 = vsyncpa [#allocation28], 1
    %6168 = vsyncpa [#allocation31], 1
    %6169 = vsyncpa [#allocation34], 1
    %6170 = vsyncpa [#allocation37], 1
    %6171 = vsyncpa [#allocation40], 1
    %6172 = vsyncpa [#allocation43], 1
  %6173 = vsyncmov [#allocation6]
  %s6174 = vpop.sfrf %6173
  %p6175 = scmp.eq.s32.totalorder %s6174, 0
  %p6176 = pneg %p6175
  %6178 = shalt.err (%p6176)
  %s6179 = scalar_lea.sflag [#allocation6], 1
  %6180 = vsyncmov %s6179
  %s6181 = vpop.sfrf %6180
  %p6182 = scmp.eq.s32.totalorder %s6181, 0
  %p6183 = pneg %p6182
  %6185 = shalt.err (%p6183)
  %s6186 = scalar_lea.sflag [#allocation6], 2
  %6187 = vsyncmov %s6186
  %s6188 = vpop.sfrf %6187
  %p6189 = scmp.eq.s32.totalorder %s6188, 0
  %p6190 = pneg %p6189
  %6192 = shalt.err (%p6190)
  %s6193 = scalar_lea.sflag [#allocation6], 3
  %6194 = vsyncmov %s6193
  %s6195 = vpop.sfrf %6194
  %p6196 = scmp.eq.s32.totalorder %s6195, 0
  %p6197 = pneg %p6196
  %6199 = shalt.err (%p6197)

</llo_original>
